<compile_context>
chip_gen: v5e
topology: v5e:2x2
jax: 0.10.0
libtpu: 0.0.40
codegen_flags: <defaults>
</compile_context>

<pallas_src>
import numpy as np
import jax
import jax.numpy as jnp
from jax import lax
from jax.experimental import pallas as pl
from jax.experimental.pallas import tpu as pltpu


def _round_up(v, m):
    return ((v + m - 1) // m) * m


def _bilinear_matrix(l_out, l_in):
    """Interpolation matrix matching nn.UpsamplingBilinear2d (align_corners=True)."""
    m = np.zeros((l_out, l_in), dtype=np.float32)
    if l_out == 1 or l_in == 1:
        m[:, 0] = 1.0
        return m
    scale = (l_in - 1) / (l_out - 1)
    for i in range(l_out):
        pos = i * scale
        lo = min(int(np.floor(pos)), l_in - 1)
        hi = min(lo + 1, l_in - 1)
        frac = pos - lo
        m[i, lo] += 1.0 - frac
        m[i, hi] += frac
    return m


def _h_taps(l_out, l_in):
    """Per output row: (lo, hi, w_lo, w_hi) for align_corners=True bilinear."""
    if l_out == 1 or l_in == 1:
        return [(0, 0, 1.0, 0.0)] * l_out
    taps = []
    scale = (l_in - 1) / (l_out - 1)
    for i in range(l_out):
        pos = i * scale
        lo = min(int(np.floor(pos)), l_in - 1)
        hi = min(lo + 1, l_in - 1)
        frac = float(pos - lo)
        taps.append((lo, hi, 1.0 - frac, frac))
    return taps


def _vmem_limit_bytes():
    # Generation-aware budget: ~75% of per-core VMEM (v5e/v6e: 128 MiB, v7x: 64 MiB),
    # leaving headroom for Mosaic's internal scratch and the default double buffering.
    try:
        cap = pltpu.get_tpu_info().vmem_capacity_bytes
        return int(cap * 3 // 4)
    except Exception:
        return None


def segmentation_head_forward(x, params, upsampling):
    """x: (N, C, H, W) float32 (NCHW, like PyTorch). Returns (N, C_out, H*u, W*u)."""
    w5, b5, w1, b1 = params
    N, C, H, W = x.shape
    C_out = w1.shape[0]
    u = int(upsampling)
    H_out, W_out = H * u, W * u
    Hp, Wp = H_out + 4, W_out + 4            # 2-wide zero halo for the 5x5 conv
    Wlane = _round_up(Wp, 128)               # lane-dense padded row width
    Pl = Hp * Wlane                          # flattened padded plane per sample
    CP = _round_up(C, 16)                    # 16-row blocks: full bf16 (16,128) tiles
    Coutp = _round_up(C_out, 8)
    eps = 1e-5
    neg_slope = 0.01

    # Batch folding: samples per grid step (raises MXU row utilization of the upsample
    # matmul), while keeping the 'parallel' grid extent >= 2 so both v7x TensorCores
    # get work.  On v5e/v6e (1 TC) fewer, fatter steps are fine too.
    rows_per_sample = H * CP
    nb = max(1, min(max(1, 256 // rows_per_sample), max(1, N // 2)))
    NB = -(-N // nb)
    N_pad = NB * nb
    NPl = nb * Pl                            # lanes per grid step (whole sample block)
    L = NPl - 4 * Wlane                      # conv-output columns per grid step

    # ---- host-precomputed, shape-only operators (all small after the separable rewrite)
    a_w = np.zeros((W, Wlane), np.float32)
    a_w[:, 2:2 + W_out] = _bilinear_matrix(W_out, W).T       # zero halo + lane tail folded in
    h_taps = _h_taps(H_out, H)
    m2 = np.zeros((Hp, Wlane), np.float32)                    # interior mask of one plane
    m2[2:2 + H_out, 2:2 + W_out] = 1.0
    mask = m2.reshape(1, Pl)

    # Conv operands (bf16 for MXU, f32 accumulation).  K ordered as (dx, ci).
    w5_t = jnp.transpose(w5.astype(jnp.float32), (2, 0, 3, 1))            # (dy, co, dx, ci)
    w5_t = jnp.pad(w5_t, ((0, 0), (0, CP - C), (0, 0), (0, CP - C)))
    w5m = w5_t.reshape(5, CP, 5 * CP).astype(jnp.bfloat16)
    b5p = jnp.pad(b5.astype(jnp.float32), (0, CP - C)).reshape(CP, 1)
    w1m = jnp.pad(w1.astype(jnp.float32).reshape(C_out, C),
                  ((0, Coutp - C_out), (0, CP - C))).astype(jnp.bfloat16)
    b1p = jnp.pad(b1.astype(jnp.float32), (0, Coutp - C_out)).reshape(Coutp, 1)

    # Input as (sample, h, channel) rows x W lanes so the W-upsample is one fat matmul.
    x_p = jnp.pad(x.astype(jnp.float32),
                  ((0, N_pad - N), (0, CP - C), (0, 0), (0, 0)))
    x2d = jnp.transpose(x_p, (0, 2, 1, 3)).reshape(N_pad * H * CP, W)

    inv_n = 1.0 / float(C * H_out * W_out)
    f32 = jnp.float32
    bf16 = jnp.bfloat16

    def kernel(x_ref, aw_ref, mask_ref, w5_ref, b5_ref, w1_ref, b1_ref, o_ref, s_ref):
        # 1) W-upsample (+ implicit zero halo / lane padding): one MXU matmul with the
        #    batch block folded into the M rows.
        xw = jnp.dot(x_ref[...], aw_ref[...], preferred_element_type=f32)  # (nb*H*CP, Wlane)

        # 2) H-upsample: per (sample, padded output row) lerp of two 16-row input slabs.
        #    All slices are sublane/lane tile aligned; result is written straight into
        #    the dx=0 block of the im2col scratch as the flattened zero-padded plane.
        zero_row = jnp.zeros((CP, Wlane), bf16)
        for s in range(nb):
            for yp in range(Hp):
                dst = slice((s * Hp + yp) * Wlane, (s * Hp + yp + 1) * Wlane)
                i = yp - 2
                if 0 <= i < H_out:
                    lo, hi, w_lo, w_hi = h_taps[i]
                    r0 = (s * H + lo) * CP
                    row = xw[r0:r0 + CP, :] * w_lo
                    if w_hi != 0.0:
                        r1 = (s * H + hi) * CP
                        row = row + xw[r1:r1 + CP, :] * w_hi
                    s_ref[0:CP, dst] = row.astype(bf16)
                else:
                    s_ref[0:CP, dst] = zero_row

        # 3) GroupNorm(1, affine=False) per sample, in place.  Halo / padded channels are
        #    exactly zero so they do not perturb the sums; the interior mask keeps the
        #    halo exactly zero after normalization.  var clamped before rsqrt.
        msk = mask_ref[...]                                               # (1, Pl)
        for s in range(nb):
            cols = slice(s * Pl, (s + 1) * Pl)
            blk = s_ref[0:CP, cols].astype(f32)                           # (CP, Pl)
            mean = jnp.sum(blk) * inv_n
            var = jnp.maximum(jnp.sum(blk * blk) * inv_n - mean * mean, 0.0)
            rstd = lax.rsqrt(var + eps)
            s_ref[0:CP, cols] = (blk * rstd - (mean * rstd) * msk).astype(bf16)

        # 4) im2col, dx only: 4 lane rolls (XLU) into 16-row-aligned bf16 blocks.  The dy
        #    taps are handled below as free 128-aligned column offsets, so the scratch is
        #    5x smaller than a full 25-tap im2col and every store is a full-tile store.
        base32 = s_ref[0:CP, :].astype(f32)                               # (CP, NPl)
        for dx in range(1, 5):
            s_ref[dx * CP:(dx + 1) * CP, :] = pltpu.roll(
                base32, shift=NPl - dx, axis=1).astype(bf16)

        # 5) 5x5 conv = 5 accumulating MXU matmuls (K = 5*CP, bf16 operands, f32 acc),
        #    then bias + LeakyReLU.
        acc = jnp.dot(w5_ref[0], s_ref[:, 0:L], preferred_element_type=f32)
        for dy in range(1, 5):
            acc = acc + jnp.dot(w5_ref[dy],
                                s_ref[:, dy * Wlane: dy * Wlane + L],
                                preferred_element_type=f32)
        y5 = acc + b5_ref[...]
        act = jnp.where(y5 >= 0, y5, neg_slope * y5).astype(bf16)

        # 6) 1x1 conv + bias, then per-sample lane-dense output slabs (128-aligned).
        y1 = jnp.dot(w1_ref[...], act, preferred_element_type=f32) + b1_ref[...]
        for s in range(nb):
            o_ref[0, s] = y1[:, s * Pl: s * Pl + H_out * Wlane]

    compiler_kwargs = dict(dimension_semantics=("parallel",))
    lim = _vmem_limit_bytes()
    if lim is not None:
        compiler_kwargs["vmem_limit_bytes"] = lim

    out = pl.pallas_call(
        kernel,
        out_shape=jax.ShapeDtypeStruct((NB, nb, Coutp, H_out * Wlane), jnp.float32),
        grid_spec=pltpu.PrefetchScalarGridSpec(
            num_scalar_prefetch=0,
            grid=(NB,),
            in_specs=[
                pl.BlockSpec((nb * H * CP, W), lambda n: (n, 0)),     # per-block input rows
                # The grid-invariant operands below are all small after the separable
                # rewrite, so default double-buffering costs negligible VMEM.
                pl.BlockSpec((W, Wlane), lambda n: (0, 0)),            # W-upsample operator
                pl.BlockSpec((1, Pl), lambda n: (0, 0)),               # interior mask
                pl.BlockSpec((5, CP, 5 * CP), lambda n: (0, 0, 0)),    # conv5 weights (bf16)
                pl.BlockSpec((CP, 1), lambda n: (0, 0)),               # conv5 bias
                pl.BlockSpec((Coutp, CP), lambda n: (0, 0)),           # conv1 weights (bf16)
                pl.BlockSpec((Coutp, 1), lambda n: (0, 0)),            # conv1 bias
            ],
            out_specs=pl.BlockSpec((1, nb, Coutp, H_out * Wlane),
                                   lambda n: (n, 0, 0, 0)),
            scratch_shapes=[pltpu.VMEM((5 * CP, NPl), jnp.bfloat16)],  # im2col (dx blocks)
        ),
        compiler_params=pltpu.CompilerParams(**compiler_kwargs),
    )(x2d, jnp.asarray(a_w), jnp.asarray(mask), w5m, b5p, w1m, b1p)

    # Lane-dense kernel output: only a free reshape + one slice remain in the wrapper.
    out = out.reshape(N_pad, Coutp, H_out, Wlane)[:N, :C_out, :, :W_out]
    return out


def _reference_forward(x, params, upsampling):
    """Pure-JAX reference (same math as the PyTorch module)."""
    w5, b5, w1, b1 = params
    N, C, H, W = x.shape
    H_out, W_out = H * upsampling, W * upsampling
    uph = jnp.asarray(_bilinear_matrix(H_out, H))
    upw = jnp.asarray(_bilinear_matrix(W_out, W))
    xu = jnp.einsum('oh,nchw->ncow', uph, x)
    xu = jnp.einsum('pw,ncow->ncop', upw, xu)
    mean = jnp.mean(xu, axis=(1, 2, 3), keepdims=True)
    var = jnp.mean((xu - mean) ** 2, axis=(1, 2, 3), keepdims=True)
    xn = (xu - mean) / jnp.sqrt(var + 1e-5)
    y = lax.conv_general_dilated(xn, w5, (1, 1), ((2, 2), (2, 2)),
                                 dimension_numbers=('NCHW', 'OIHW', 'NCHW'))
    y = y + b5[None, :, None, None]
    y = jnp.where(y >= 0, y, 0.01 * y)
    y = lax.conv_general_dilated(y, w1, (1, 1), ((0, 0), (0, 0)),
                                 dimension_numbers=('NCHW', 'OIHW', 'NCHW'))
    return y + b1[None, :, None, None]


if __name__ == "__main__":
    N, C, C_out, H, W, upsampling = 2, 4, 3, 16, 16, 2

    key = jax.random.PRNGKey(0)
    k1, k2, k3, k4, kx = jax.random.split(key, 5)
    w5 = jax.random.normal(k1, (C, C, 5, 5), jnp.float32) * 0.1      # Conv2d(C, C, 5)
    b5 = jax.random.normal(k2, (C,), jnp.float32) * 0.1
    w1 = jax.random.normal(k3, (C_out, C, 1, 1), jnp.float32) * 0.1  # Conv2d(C, C_out, 1)
    b1 = jax.random.normal(k4, (C_out,), jnp.float32) * 0.1
    x = jax.random.normal(kx, (N, C, H, W), jnp.float32)
    params = (w5, b5, w1, b1)

    y = jax.block_until_ready(segmentation_head_forward(x, params, upsampling))
    assert y.shape == (N, C_out, H * upsampling, W * upsampling), y.shape

    y_ref = jax.block_until_ready(_reference_forward(x, params, upsampling))
    max_err = float(jnp.max(jnp.abs(y - y_ref)))
    # Tolerance accounts for bf16 operand storage + TPU default matmul precision.
    if not max_err < 2e-2:
        raise AssertionError(f"Pallas output mismatch, max abs err = {max_err}")

    print("KERNEL_OK")
</pallas_src>

<mosaic_0001>
module attributes {stable_mosaic.version = 11 : i64} {
  func.func @kernel(%arg0: i32, %arg1: memref<256x16xf32, #tpu.memory_space<vmem>>, %arg2: memref<16x128xf32, #tpu.memory_space<vmem>>, %arg3: memref<1x4608xf32, #tpu.memory_space<vmem>>, %arg4: memref<5x16x80xbf16, #tpu.memory_space<vmem>>, %arg5: memref<16x1xf32, #tpu.memory_space<vmem>>, %arg6: memref<8x16xbf16, #tpu.memory_space<vmem>>, %arg7: memref<8x1xf32, #tpu.memory_space<vmem>>, %arg8: memref<1x1x8x4096xf32, #tpu.memory_space<vmem>>, %arg9: memref<80x4608xbf16, #tpu.memory_space<vmem>>) attributes {dimension_semantics = [#tpu.dimension_semantics<parallel>], iteration_bounds = array<i64: 2>, scalar_prefetch = 0 : i64, scratch_operands = 1 : i64, tpu.core_type = #tpu.core_type<tc>, window_params = [{transform_indices = @transform_0, window_bounds = array<i64: 256, 16>}, {pipeline_mode = #tpu.pipeline_mode<synchronous>, transform_indices = @transform_1, window_bounds = array<i64: 16, 128>}, {pipeline_mode = #tpu.pipeline_mode<synchronous>, transform_indices = @transform_2, window_bounds = array<i64: 1, 4608>}, {pipeline_mode = #tpu.pipeline_mode<synchronous>, transform_indices = @transform_3, window_bounds = array<i64: 5, 16, 80>}, {pipeline_mode = #tpu.pipeline_mode<synchronous>, transform_indices = @transform_4, window_bounds = array<i64: 16, 1>}, {pipeline_mode = #tpu.pipeline_mode<synchronous>, transform_indices = @transform_5, window_bounds = array<i64: 8, 16>}, {pipeline_mode = #tpu.pipeline_mode<synchronous>, transform_indices = @transform_6, window_bounds = array<i64: 8, 1>}, {transform_indices = @transform_7, window_bounds = array<i64: 1, 1, 8, 4096>}]} {
    %c0 = arith.constant 0 : index
    %c0_0 = arith.constant 0 : index
    %0 = vector.load %arg1[%c0, %c0_0] : memref<256x16xf32, #tpu.memory_space<vmem>>, vector<256x16xf32>
    %c0_1 = arith.constant 0 : index
    %c0_2 = arith.constant 0 : index
    %1 = vector.load %arg2[%c0_1, %c0_2] : memref<16x128xf32, #tpu.memory_space<vmem>>, vector<16x128xf32>
    %cst = arith.constant dense<0.000000e+00> : vector<256x128xf32>
    %2 = tpu.matmul %0, %1, %cst {dimension_numbers = #tpu.dot_dimension_numbers<[1], [0], [0], [1], [0, 0, 1, 1], [], []>} : vector<256x16xf32>, vector<16x128xf32>, vector<256x128xf32> -> vector<256x128xf32>
    %cst_3 = arith.constant 0.000000e+00 : bf16
    %3 = vector.broadcast %cst_3 : bf16 to vector<16x128xbf16>
    %c0_4 = arith.constant 0 : index
    %c0_5 = arith.constant 0 : index
    %4 = vector.load %arg9[%c0_4, %c0_5] : memref<80x4608xbf16, #tpu.memory_space<vmem>>, vector<16x128xbf16>
    tpu.vector_store %arg9[%c0_4, %c0_5], %3 {strides = array<i32>} : memref<80x4608xbf16, #tpu.memory_space<vmem>>, vector<16x128xbf16>,
    %c0_6 = arith.constant 0 : index
    %c128 = arith.constant 128 : index
    %5 = vector.load %arg9[%c0_6, %c128] : memref<80x4608xbf16, #tpu.memory_space<vmem>>, vector<16x128xbf16>
    tpu.vector_store %arg9[%c0_6, %c128], %3 {strides = array<i32>} : memref<80x4608xbf16, #tpu.memory_space<vmem>>, vector<16x128xbf16>,
    %6 = vector.extract_strided_slice %2 {offsets = [0, 0], sizes = [16, 128], strides = [1, 1]} : vector<256x128xf32> to vector<16x128xf32>
    %cst_7 = arith.constant 1.000000e+00 : f32
    %7 = vector.broadcast %cst_7 : f32 to vector<16x128xf32>
    %8 = arith.mulf %6, %7 : vector<16x128xf32>
    %9 = arith.truncf %8 : vector<16x128xf32> to vector<16x128xbf16>
    %c0_8 = arith.constant 0 : index
    %c256 = arith.constant 256 : index
    %10 = vector.load %arg9[%c0_8, %c256] : memref<80x4608xbf16, #tpu.memory_space<vmem>>, vector<16x128xbf16>
    tpu.vector_store %arg9[%c0_8, %c256], %9 {strides = array<i32>} : memref<80x4608xbf16, #tpu.memory_space<vmem>>, vector<16x128xbf16>,
    %11 = vector.extract_strided_slice %2 {offsets = [0, 0], sizes = [16, 128], strides = [1, 1]} : vector<256x128xf32> to vector<16x128xf32>
    %cst_9 = arith.constant 5.161290e-01 : f32
    %12 = vector.broadcast %cst_9 : f32 to vector<16x128xf32>
    %13 = arith.mulf %11, %12 : vector<16x128xf32>
    %14 = vector.extract_strided_slice %2 {offsets = [16, 0], sizes = [16, 128], strides = [1, 1]} : vector<256x128xf32> to vector<16x128xf32>
    %cst_10 = arith.constant 0.483870953 : f32
    %15 = vector.broadcast %cst_10 : f32 to vector<16x128xf32>
    %16 = arith.mulf %14, %15 : vector<16x128xf32>
    %17 = arith.addf %13, %16 : vector<16x128xf32>
    %18 = arith.truncf %17 : vector<16x128xf32> to vector<16x128xbf16>
    %c0_11 = arith.constant 0 : index
    %c384 = arith.constant 384 : index
    %19 = vector.load %arg9[%c0_11, %c384] : memref<80x4608xbf16, #tpu.memory_space<vmem>>, vector<16x128xbf16>
    tpu.vector_store %arg9[%c0_11, %c384], %18 {strides = array<i32>} : memref<80x4608xbf16, #tpu.memory_space<vmem>>, vector<16x128xbf16>,
    %20 = vector.extract_strided_slice %2 {offsets = [0, 0], sizes = [16, 128], strides = [1, 1]} : vector<256x128xf32> to vector<16x128xf32>
    %cst_12 = arith.constant 0.0322580636 : f32
    %21 = vector.broadcast %cst_12 : f32 to vector<16x128xf32>
    %22 = arith.mulf %20, %21 : vector<16x128xf32>
    %23 = vector.extract_strided_slice %2 {offsets = [16, 0], sizes = [16, 128], strides = [1, 1]} : vector<256x128xf32> to vector<16x128xf32>
    %cst_13 = arith.constant 0.967741906 : f32
    %24 = vector.broadcast %cst_13 : f32 to vector<16x128xf32>
    %25 = arith.mulf %23, %24 : vector<16x128xf32>
    %26 = arith.addf %22, %25 : vector<16x128xf32>
    %27 = arith.truncf %26 : vector<16x128xf32> to vector<16x128xbf16>
    %c0_14 = arith.constant 0 : index
    %c512 = arith.constant 512 : index
    %28 = vector.load %arg9[%c0_14, %c512] : memref<80x4608xbf16, #tpu.memory_space<vmem>>, vector<16x128xbf16>
    tpu.vector_store %arg9[%c0_14, %c512], %27 {strides = array<i32>} : memref<80x4608xbf16, #tpu.memory_space<vmem>>, vector<16x128xbf16>,
    %29 = vector.extract_strided_slice %2 {offsets = [16, 0], sizes = [16, 128], strides = [1, 1]} : vector<256x128xf32> to vector<16x128xf32>
    %cst_15 = arith.constant 0.54838711 : f32
    %30 = vector.broadcast %cst_15 : f32 to vector<16x128xf32>
    %31 = arith.mulf %29, %30 : vector<16x128xf32>
    %32 = vector.extract_strided_slice %2 {offsets = [32, 0], sizes = [16, 128], strides = [1, 1]} : vector<256x128xf32> to vector<16x128xf32>
    %cst_16 = arith.constant 0.45161289 : f32
    %33 = vector.broadcast %cst_16 : f32 to vector<16x128xf32>
    %34 = arith.mulf %32, %33 : vector<16x128xf32>
    %35 = arith.addf %31, %34 : vector<16x128xf32>
    %36 = arith.truncf %35 : vector<16x128xf32> to vector<16x128xbf16>
    %c0_17 = arith.constant 0 : index
    %c640 = arith.constant 640 : index
    %37 = vector.load %arg9[%c0_17, %c640] : memref<80x4608xbf16, #tpu.memory_space<vmem>>, vector<16x128xbf16>
    tpu.vector_store %arg9[%c0_17, %c640], %36 {strides = array<i32>} : memref<80x4608xbf16, #tpu.memory_space<vmem>>, vector<16x128xbf16>,
    %38 = vector.extract_strided_slice %2 {offsets = [16, 0], sizes = [16, 128], strides = [1, 1]} : vector<256x128xf32> to vector<16x128xf32>
    %cst_18 = arith.constant 0.0645161271 : f32
    %39 = vector.broadcast %cst_18 : f32 to vector<16x128xf32>
    %40 = arith.mulf %38, %39 : vector<16x128xf32>
    %41 = vector.extract_strided_slice %2 {offsets = [32, 0], sizes = [16, 128], strides = [1, 1]} : vector<256x128xf32> to vector<16x128xf32>
    %cst_19 = arith.constant 0.935483872 : f32
    %42 = vector.broadcast %cst_19 : f32 to vector<16x128xf32>
    %43 = arith.mulf %41, %42 : vector<16x128xf32>
    %44 = arith.addf %40, %43 : vector<16x128xf32>
    %45 = arith.truncf %44 : vector<16x128xf32> to vector<16x128xbf16>
    %c0_20 = arith.constant 0 : index
    %c768 = arith.constant 768 : index
    %46 = vector.load %arg9[%c0_20, %c768] : memref<80x4608xbf16, #tpu.memory_space<vmem>>, vector<16x128xbf16>
    tpu.vector_store %arg9[%c0_20, %c768], %45 {strides = array<i32>} : memref<80x4608xbf16, #tpu.memory_space<vmem>>, vector<16x128xbf16>,
    %47 = vector.extract_strided_slice %2 {offsets = [32, 0], sizes = [16, 128], strides = [1, 1]} : vector<256x128xf32> to vector<16x128xf32>
    %cst_21 = arith.constant 0.580645144 : f32
    %48 = vector.broadcast %cst_21 : f32 to vector<16x128xf32>
    %49 = arith.mulf %47, %48 : vector<16x128xf32>
    %50 = vector.extract_strided_slice %2 {offsets = [48, 0], sizes = [16, 128], strides = [1, 1]} : vector<256x128xf32> to vector<16x128xf32>
    %cst_22 = arith.constant 0.419354826 : f32
    %51 = vector.broadcast %cst_22 : f32 to vector<16x128xf32>
    %52 = arith.mulf %50, %51 : vector<16x128xf32>
    %53 = arith.addf %49, %52 : vector<16x128xf32>
    %54 = arith.truncf %53 : vector<16x128xf32> to vector<16x128xbf16>
    %c0_23 = arith.constant 0 : index
    %c896 = arith.constant 896 : index
    %55 = vector.load %arg9[%c0_23, %c896] : memref<80x4608xbf16, #tpu.memory_space<vmem>>, vector<16x128xbf16>
    tpu.vector_store %arg9[%c0_23, %c896], %54 {strides = array<i32>} : memref<80x4608xbf16, #tpu.memory_space<vmem>>, vector<16x128xbf16>,
    %56 = vector.extract_strided_slice %2 {offsets = [32, 0], sizes = [16, 128], strides = [1, 1]} : vector<256x128xf32> to vector<16x128xf32>
    %cst_24 = arith.constant 0.0967741906 : f32
    %57 = vector.broadcast %cst_24 : f32 to vector<16x128xf32>
    %58 = arith.mulf %56, %57 : vector<16x128xf32>
    %59 = vector.extract_strided_slice %2 {offsets = [48, 0], sizes = [16, 128], strides = [1, 1]} : vector<256x128xf32> to vector<16x128xf32>
    %cst_25 = arith.constant 0.903225779 : f32
    %60 = vector.broadcast %cst_25 : f32 to vector<16x128xf32>
    %61 = arith.mulf %59, %60 : vector<16x128xf32>
    %62 = arith.addf %58, %61 : vector<16x128xf32>
    %63 = arith.truncf %62 : vector<16x128xf32> to vector<16x128xbf16>
    %c0_26 = arith.constant 0 : index
    %c1024 = arith.constant 1024 : index
    %64 = vector.load %arg9[%c0_26, %c1024] : memref<80x4608xbf16, #tpu.memory_space<vmem>>, vector<16x128xbf16>
    tpu.vector_store %arg9[%c0_26, %c1024], %63 {strides = array<i32>} : memref<80x4608xbf16, #tpu.memory_space<vmem>>, vector<16x128xbf16>,
    %65 = vector.extract_strided_slice %2 {offsets = [48, 0], sizes = [16, 128], strides = [1, 1]} : vector<256x128xf32> to vector<16x128xf32>
    %cst_27 = arith.constant 0.612903237 : f32
    %66 = vector.broadcast %cst_27 : f32 to vector<16x128xf32>
    %67 = arith.mulf %65, %66 : vector<16x128xf32>
    %68 = vector.extract_strided_slice %2 {offsets = [64, 0], sizes = [16, 128], strides = [1, 1]} : vector<256x128xf32> to vector<16x128xf32>
    %cst_28 = arith.constant 0.387096763 : f32
    %69 = vector.broadcast %cst_28 : f32 to vector<16x128xf32>
    %70 = arith.mulf %68, %69 : vector<16x128xf32>
    %71 = arith.addf %67, %70 : vector<16x128xf32>
    %72 = arith.truncf %71 : vector<16x128xf32> to vector<16x128xbf16>
    %c0_29 = arith.constant 0 : index
    %c1152 = arith.constant 1152 : index
    %73 = vector.load %arg9[%c0_29, %c1152] : memref<80x4608xbf16, #tpu.memory_space<vmem>>, vector<16x128xbf16>
    tpu.vector_store %arg9[%c0_29, %c1152], %72 {strides = array<i32>} : memref<80x4608xbf16, #tpu.memory_space<vmem>>, vector<16x128xbf16>,
    %74 = vector.extract_strided_slice %2 {offsets = [48, 0], sizes = [16, 128], strides = [1, 1]} : vector<256x128xf32> to vector<16x128xf32>
    %cst_30 = arith.constant 0.129032254 : f32
    %75 = vector.broadcast %cst_30 : f32 to vector<16x128xf32>
    %76 = arith.mulf %74, %75 : vector<16x128xf32>
    %77 = vector.extract_strided_slice %2 {offsets = [64, 0], sizes = [16, 128], strides = [1, 1]} : vector<256x128xf32> to vector<16x128xf32>
    %cst_31 = arith.constant 0.870967745 : f32
    %78 = vector.broadcast %cst_31 : f32 to vector<16x128xf32>
    %79 = arith.mulf %77, %78 : vector<16x128xf32>
    %80 = arith.addf %76, %79 : vector<16x128xf32>
    %81 = arith.truncf %80 : vector<16x128xf32> to vector<16x128xbf16>
    %c0_32 = arith.constant 0 : index
    %c1280 = arith.constant 1280 : index
    %82 = vector.load %arg9[%c0_32, %c1280] : memref<80x4608xbf16, #tpu.memory_space<vmem>>, vector<16x128xbf16>
    tpu.vector_store %arg9[%c0_32, %c1280], %81 {strides = array<i32>} : memref<80x4608xbf16, #tpu.memory_space<vmem>>, vector<16x128xbf16>,
    %83 = vector.extract_strided_slice %2 {offsets = [64, 0], sizes = [16, 128], strides = [1, 1]} : vector<256x128xf32> to vector<16x128xf32>
    %cst_33 = arith.constant 0.645161271 : f32
    %84 = vector.broadcast %cst_33 : f32 to vector<16x128xf32>
    %85 = arith.mulf %83, %84 : vector<16x128xf32>
    %86 = vector.extract_strided_slice %2 {offsets = [80, 0], sizes = [16, 128], strides = [1, 1]} : vector<256x128xf32> to vector<16x128xf32>
    %cst_34 = arith.constant 0.354838699 : f32
    %87 = vector.broadcast %cst_34 : f32 to vector<16x128xf32>
    %88 = arith.mulf %86, %87 : vector<16x128xf32>
    %89 = arith.addf %85, %88 : vector<16x128xf32>
    %90 = arith.truncf %89 : vector<16x128xf32> to vector<16x128xbf16>
    %c0_35 = arith.constant 0 : index
    %c1408 = arith.constant 1408 : index
    %91 = vector.load %arg9[%c0_35, %c1408] : memref<80x4608xbf16, #tpu.memory_space<vmem>>, vector<16x128xbf16>
    tpu.vector_store %arg9[%c0_35, %c1408], %90 {strides = array<i32>} : memref<80x4608xbf16, #tpu.memory_space<vmem>>, vector<16x128xbf16>,
    %92 = vector.extract_strided_slice %2 {offsets = [64, 0], sizes = [16, 128], strides = [1, 1]} : vector<256x128xf32> to vector<16x128xf32>
    %cst_36 = arith.constant 0.161290318 : f32
    %93 = vector.broadcast %cst_36 : f32 to vector<16x128xf32>
    %94 = arith.mulf %92, %93 : vector<16x128xf32>
    %95 = vector.extract_strided_slice %2 {offsets = [80, 0], sizes = [16, 128], strides = [1, 1]} : vector<256x128xf32> to vector<16x128xf32>
    %cst_37 = arith.constant 0.838709652 : f32
    %96 = vector.broadcast %cst_37 : f32 to vector<16x128xf32>
    %97 = arith.mulf %95, %96 : vector<16x128xf32>
    %98 = arith.addf %94, %97 : vector<16x128xf32>
    %99 = arith.truncf %98 : vector<16x128xf32> to vector<16x128xbf16>
    %c0_38 = arith.constant 0 : index
    %c1536 = arith.constant 1536 : index
    %100 = vector.load %arg9[%c0_38, %c1536] : memref<80x4608xbf16, #tpu.memory_space<vmem>>, vector<16x128xbf16>
    tpu.vector_store %arg9[%c0_38, %c1536], %99 {strides = array<i32>} : memref<80x4608xbf16, #tpu.memory_space<vmem>>, vector<16x128xbf16>,
    %101 = vector.extract_strided_slice %2 {offsets = [80, 0], sizes = [16, 128], strides = [1, 1]} : vector<256x128xf32> to vector<16x128xf32>
    %cst_39 = arith.constant 0.677419364 : f32
    %102 = vector.broadcast %cst_39 : f32 to vector<16x128xf32>
    %103 = arith.mulf %101, %102 : vector<16x128xf32>
    %104 = vector.extract_strided_slice %2 {offsets = [96, 0], sizes = [16, 128], strides = [1, 1]} : vector<256x128xf32> to vector<16x128xf32>
    %cst_40 = arith.constant 0.322580636 : f32
    %105 = vector.broadcast %cst_40 : f32 to vector<16x128xf32>
    %106 = arith.mulf %104, %105 : vector<16x128xf32>
    %107 = arith.addf %103, %106 : vector<16x128xf32>
    %108 = arith.truncf %107 : vector<16x128xf32> to vector<16x128xbf16>
    %c0_41 = arith.constant 0 : index
    %c1664 = arith.constant 1664 : index
    %109 = vector.load %arg9[%c0_41, %c1664] : memref<80x4608xbf16, #tpu.memory_space<vmem>>, vector<16x128xbf16>
    tpu.vector_store %arg9[%c0_41, %c1664], %108 {strides = array<i32>} : memref<80x4608xbf16, #tpu.memory_space<vmem>>, vector<16x128xbf16>,
    %110 = vector.extract_strided_slice %2 {offsets = [80, 0], sizes = [16, 128], strides = [1, 1]} : vector<256x128xf32> to vector<16x128xf32>
    %cst_42 = arith.constant 0.193548381 : f32
    %111 = vector.broadcast %cst_42 : f32 to vector<16x128xf32>
    %112 = arith.mulf %110, %111 : vector<16x128xf32>
    %113 = vector.extract_strided_slice %2 {offsets = [96, 0], sizes = [16, 128], strides = [1, 1]} : vector<256x128xf32> to vector<16x128xf32>
    %cst_43 = arith.constant 0.806451618 : f32
    %114 = vector.broadcast %cst_43 : f32 to vector<16x128xf32>
    %115 = arith.mulf %113, %114 : vector<16x128xf32>
    %116 = arith.addf %112, %115 : vector<16x128xf32>
    %117 = arith.truncf %116 : vector<16x128xf32> to vector<16x128xbf16>
    %c0_44 = arith.constant 0 : index
    %c1792 = arith.constant 1792 : index
    %118 = vector.load %arg9[%c0_44, %c1792] : memref<80x4608xbf16, #tpu.memory_space<vmem>>, vector<16x128xbf16>
    tpu.vector_store %arg9[%c0_44, %c1792], %117 {strides = array<i32>} : memref<80x4608xbf16, #tpu.memory_space<vmem>>, vector<16x128xbf16>,
    %119 = vector.extract_strided_slice %2 {offsets = [96, 0], sizes = [16, 128], strides = [1, 1]} : vector<256x128xf32> to vector<16x128xf32>
    %cst_45 = arith.constant 0.709677398 : f32
    %120 = vector.broadcast %cst_45 : f32 to vector<16x128xf32>
    %121 = arith.mulf %119, %120 : vector<16x128xf32>
    %122 = vector.extract_strided_slice %2 {offsets = [112, 0], sizes = [16, 128], strides = [1, 1]} : vector<256x128xf32> to vector<16x128xf32>
    %cst_46 = arith.constant 0.290322572 : f32
    %123 = vector.broadcast %cst_46 : f32 to vector<16x128xf32>
    %124 = arith.mulf %122, %123 : vector<16x128xf32>
    %125 = arith.addf %121, %124 : vector<16x128xf32>
    %126 = arith.truncf %125 : vector<16x128xf32> to vector<16x128xbf16>
    %c0_47 = arith.constant 0 : index
    %c1920 = arith.constant 1920 : index
    %127 = vector.load %arg9[%c0_47, %c1920] : memref<80x4608xbf16, #tpu.memory_space<vmem>>, vector<16x128xbf16>
    tpu.vector_store %arg9[%c0_47, %c1920], %126 {strides = array<i32>} : memref<80x4608xbf16, #tpu.memory_space<vmem>>, vector<16x128xbf16>,
    %128 = vector.extract_strided_slice %2 {offsets = [96, 0], sizes = [16, 128], strides = [1, 1]} : vector<256x128xf32> to vector<16x128xf32>
    %cst_48 = arith.constant 0.225806445 : f32
    %129 = vector.broadcast %cst_48 : f32 to vector<16x128xf32>
    %130 = arith.mulf %128, %129 : vector<16x128xf32>
    %131 = vector.extract_strided_slice %2 {offsets = [112, 0], sizes = [16, 128], strides = [1, 1]} : vector<256x128xf32> to vector<16x128xf32>
    %cst_49 = arith.constant 0.774193525 : f32
    %132 = vector.broadcast %cst_49 : f32 to vector<16x128xf32>
    %133 = arith.mulf %131, %132 : vector<16x128xf32>
    %134 = arith.addf %130, %133 : vector<16x128xf32>
    %135 = arith.truncf %134 : vector<16x128xf32> to vector<16x128xbf16>
    %c0_50 = arith.constant 0 : index
    %c2048 = arith.constant 2048 : index
    %136 = vector.load %arg9[%c0_50, %c2048] : memref<80x4608xbf16, #tpu.memory_space<vmem>>, vector<16x128xbf16>
    tpu.vector_store %arg9[%c0_50, %c2048], %135 {strides = array<i32>} : memref<80x4608xbf16, #tpu.memory_space<vmem>>, vector<16x128xbf16>,
    %137 = vector.extract_strided_slice %2 {offsets = [112, 0], sizes = [16, 128], strides = [1, 1]} : vector<256x128xf32> to vector<16x128xf32>
    %cst_51 = arith.constant 0.741935492 : f32
    %138 = vector.broadcast %cst_51 : f32 to vector<16x128xf32>
    %139 = arith.mulf %137, %138 : vector<16x128xf32>
    %140 = vector.extract_strided_slice %2 {offsets = [128, 0], sizes = [16, 128], strides = [1, 1]} : vector<256x128xf32> to vector<16x128xf32>
    %cst_52 = arith.constant 0.258064508 : f32
    %141 = vector.broadcast %cst_52 : f32 to vector<16x128xf32>
    %142 = arith.mulf %140, %141 : vector<16x128xf32>
    %143 = arith.addf %139, %142 : vector<16x128xf32>
    %144 = arith.truncf %143 : vector<16x128xf32> to vector<16x128xbf16>
    %c0_53 = arith.constant 0 : index
    %c2176 = arith.constant 2176 : index
    %145 = vector.load %arg9[%c0_53, %c2176] : memref<80x4608xbf16, #tpu.memory_space<vmem>>, vector<16x128xbf16>
    tpu.vector_store %arg9[%c0_53, %c2176], %144 {strides = array<i32>} : memref<80x4608xbf16, #tpu.memory_space<vmem>>, vector<16x128xbf16>,
    %146 = vector.extract_strided_slice %2 {offsets = [112, 0], sizes = [16, 128], strides = [1, 1]} : vector<256x128xf32> to vector<16x128xf32>
    %cst_54 = arith.constant 0.258064508 : f32
    %147 = vector.broadcast %cst_54 : f32 to vector<16x128xf32>
    %148 = arith.mulf %146, %147 : vector<16x128xf32>
    %149 = vector.extract_strided_slice %2 {offsets = [128, 0], sizes = [16, 128], strides = [1, 1]} : vector<256x128xf32> to vector<16x128xf32>
    %cst_55 = arith.constant 0.741935492 : f32
    %150 = vector.broadcast %cst_55 : f32 to vector<16x128xf32>
    %151 = arith.mulf %149, %150 : vector<16x128xf32>
    %152 = arith.addf %148, %151 : vector<16x128xf32>
    %153 = arith.truncf %152 : vector<16x128xf32> to vector<16x128xbf16>
    %c0_56 = arith.constant 0 : index
    %c2304 = arith.constant 2304 : index
    %154 = vector.load %arg9[%c0_56, %c2304] : memref<80x4608xbf16, #tpu.memory_space<vmem>>, vector<16x128xbf16>
    tpu.vector_store %arg9[%c0_56, %c2304], %153 {strides = array<i32>} : memref<80x4608xbf16, #tpu.memory_space<vmem>>, vector<16x128xbf16>,
    %155 = vector.extract_strided_slice %2 {offsets = [128, 0], sizes = [16, 128], strides = [1, 1]} : vector<256x128xf32> to vector<16x128xf32>
    %cst_57 = arith.constant 0.774193525 : f32
    %156 = vector.broadcast %cst_57 : f32 to vector<16x128xf32>
    %157 = arith.mulf %155, %156 : vector<16x128xf32>
    %158 = vector.extract_strided_slice %2 {offsets = [144, 0], sizes = [16, 128], strides = [1, 1]} : vector<256x128xf32> to vector<16x128xf32>
    %cst_58 = arith.constant 0.225806445 : f32
    %159 = vector.broadcast %cst_58 : f32 to vector<16x128xf32>
    %160 = arith.mulf %158, %159 : vector<16x128xf32>
    %161 = arith.addf %157, %160 : vector<16x128xf32>
    %162 = arith.truncf %161 : vector<16x128xf32> to vector<16x128xbf16>
    %c0_59 = arith.constant 0 : index
    %c2432 = arith.constant 2432 : index
    %163 = vector.load %arg9[%c0_59, %c2432] : memref<80x4608xbf16, #tpu.memory_space<vmem>>, vector<16x128xbf16>
    tpu.vector_store %arg9[%c0_59, %c2432], %162 {strides = array<i32>} : memref<80x4608xbf16, #tpu.memory_space<vmem>>, vector<16x128xbf16>,
    %164 = vector.extract_strided_slice %2 {offsets = [128, 0], sizes = [16, 128], strides = [1, 1]} : vector<256x128xf32> to vector<16x128xf32>
    %cst_60 = arith.constant 0.290322572 : f32
    %165 = vector.broadcast %cst_60 : f32 to vector<16x128xf32>
    %166 = arith.mulf %164, %165 : vector<16x128xf32>
    %167 = vector.extract_strided_slice %2 {offsets = [144, 0], sizes = [16, 128], strides = [1, 1]} : vector<256x128xf32> to vector<16x128xf32>
    %cst_61 = arith.constant 0.709677398 : f32
    %168 = vector.broadcast %cst_61 : f32 to vector<16x128xf32>
    %169 = arith.mulf %167, %168 : vector<16x128xf32>
    %170 = arith.addf %166, %169 : vector<16x128xf32>
    %171 = arith.truncf %170 : vector<16x128xf32> to vector<16x128xbf16>
    %c0_62 = arith.constant 0 : index
    %c2560 = arith.constant 2560 : index
    %172 = vector.load %arg9[%c0_62, %c2560] : memref<80x4608xbf16, #tpu.memory_space<vmem>>, vector<16x128xbf16>
    tpu.vector_store %arg9[%c0_62, %c2560], %171 {strides = array<i32>} : memref<80x4608xbf16, #tpu.memory_space<vmem>>, vector<16x128xbf16>,
    %173 = vector.extract_strided_slice %2 {offsets = [144, 0], sizes = [16, 128], strides = [1, 1]} : vector<256x128xf32> to vector<16x128xf32>
    %cst_63 = arith.constant 0.806451618 : f32
    %174 = vector.broadcast %cst_63 : f32 to vector<16x128xf32>
    %175 = arith.mulf %173, %174 : vector<16x128xf32>
    %176 = vector.extract_strided_slice %2 {offsets = [160, 0], sizes = [16, 128], strides = [1, 1]} : vector<256x128xf32> to vector<16x128xf32>
    %cst_64 = arith.constant 0.193548381 : f32
    %177 = vector.broadcast %cst_64 : f32 to vector<16x128xf32>
    %178 = arith.mulf %176, %177 : vector<16x128xf32>
    %179 = arith.addf %175, %178 : vector<16x128xf32>
    %180 = arith.truncf %179 : vector<16x128xf32> to vector<16x128xbf16>
    %c0_65 = arith.constant 0 : index
    %c2688 = arith.constant 2688 : index
    %181 = vector.load %arg9[%c0_65, %c2688] : memref<80x4608xbf16, #tpu.memory_space<vmem>>, vector<16x128xbf16>
    tpu.vector_store %arg9[%c0_65, %c2688], %180 {strides = array<i32>} : memref<80x4608xbf16, #tpu.memory_space<vmem>>, vector<16x128xbf16>,
    %182 = vector.extract_strided_slice %2 {offsets = [144, 0], sizes = [16, 128], strides = [1, 1]} : vector<256x128xf32> to vector<16x128xf32>
    %cst_66 = arith.constant 0.322580636 : f32
    %183 = vector.broadcast %cst_66 : f32 to vector<16x128xf32>
    %184 = arith.mulf %182, %183 : vector<16x128xf32>
    %185 = vector.extract_strided_slice %2 {offsets = [160, 0], sizes = [16, 128], strides = [1, 1]} : vector<256x128xf32> to vector<16x128xf32>
    %cst_67 = arith.constant 0.677419364 : f32
    %186 = vector.broadcast %cst_67 : f32 to vector<16x128xf32>
    %187 = arith.mulf %185, %186 : vector<16x128xf32>
    %188 = arith.addf %184, %187 : vector<16x128xf32>
    %189 = arith.truncf %188 : vector<16x128xf32> to vector<16x128xbf16>
    %c0_68 = arith.constant 0 : index
    %c2816 = arith.constant 2816 : index
    %190 = vector.load %arg9[%c0_68, %c2816] : memref<80x4608xbf16, #tpu.memory_space<vmem>>, vector<16x128xbf16>
    tpu.vector_store %arg9[%c0_68, %c2816], %189 {strides = array<i32>} : memref<80x4608xbf16, #tpu.memory_space<vmem>>, vector<16x128xbf16>,
    %191 = vector.extract_strided_slice %2 {offsets = [160, 0], sizes = [16, 128], strides = [1, 1]} : vector<256x128xf32> to vector<16x128xf32>
    %cst_69 = arith.constant 0.838709652 : f32
    %192 = vector.broadcast %cst_69 : f32 to vector<16x128xf32>
    %193 = arith.mulf %191, %192 : vector<16x128xf32>
    %194 = vector.extract_strided_slice %2 {offsets = [176, 0], sizes = [16, 128], strides = [1, 1]} : vector<256x128xf32> to vector<16x128xf32>
    %cst_70 = arith.constant 0.161290318 : f32
    %195 = vector.broadcast %cst_70 : f32 to vector<16x128xf32>
    %196 = arith.mulf %194, %195 : vector<16x128xf32>
    %197 = arith.addf %193, %196 : vector<16x128xf32>
    %198 = arith.truncf %197 : vector<16x128xf32> to vector<16x128xbf16>
    %c0_71 = arith.constant 0 : index
    %c2944 = arith.constant 2944 : index
    %199 = vector.load %arg9[%c0_71, %c2944] : memref<80x4608xbf16, #tpu.memory_space<vmem>>, vector<16x128xbf16>
    tpu.vector_store %arg9[%c0_71, %c2944], %198 {strides = array<i32>} : memref<80x4608xbf16, #tpu.memory_space<vmem>>, vector<16x128xbf16>,
    %200 = vector.extract_strided_slice %2 {offsets = [160, 0], sizes = [16, 128], strides = [1, 1]} : vector<256x128xf32> to vector<16x128xf32>
    %cst_72 = arith.constant 0.354838699 : f32
    %201 = vector.broadcast %cst_72 : f32 to vector<16x128xf32>
    %202 = arith.mulf %200, %201 : vector<16x128xf32>
    %203 = vector.extract_strided_slice %2 {offsets = [176, 0], sizes = [16, 128], strides = [1, 1]} : vector<256x128xf32> to vector<16x128xf32>
    %cst_73 = arith.constant 0.645161271 : f32
    %204 = vector.broadcast %cst_73 : f32 to vector<16x128xf32>
    %205 = arith.mulf %203, %204 : vector<16x128xf32>
    %206 = arith.addf %202, %205 : vector<16x128xf32>
    %207 = arith.truncf %206 : vector<16x128xf32> to vector<16x128xbf16>
    %c0_74 = arith.constant 0 : index
    %c3072 = arith.constant 3072 : index
    %208 = vector.load %arg9[%c0_74, %c3072] : memref<80x4608xbf16, #tpu.memory_space<vmem>>, vector<16x128xbf16>
    tpu.vector_store %arg9[%c0_74, %c3072], %207 {strides = array<i32>} : memref<80x4608xbf16, #tpu.memory_space<vmem>>, vector<16x128xbf16>,
    %209 = vector.extract_strided_slice %2 {offsets = [176, 0], sizes = [16, 128], strides = [1, 1]} : vector<256x128xf32> to vector<16x128xf32>
    %cst_75 = arith.constant 0.870967745 : f32
    %210 = vector.broadcast %cst_75 : f32 to vector<16x128xf32>
    %211 = arith.mulf %209, %210 : vector<16x128xf32>
    %212 = vector.extract_strided_slice %2 {offsets = [192, 0], sizes = [16, 128], strides = [1, 1]} : vector<256x128xf32> to vector<16x128xf32>
    %cst_76 = arith.constant 0.129032254 : f32
    %213 = vector.broadcast %cst_76 : f32 to vector<16x128xf32>
    %214 = arith.mulf %212, %213 : vector<16x128xf32>
    %215 = arith.addf %211, %214 : vector<16x128xf32>
    %216 = arith.truncf %215 : vector<16x128xf32> to vector<16x128xbf16>
    %c0_77 = arith.constant 0 : index
    %c3200 = arith.constant 3200 : index
    %217 = vector.load %arg9[%c0_77, %c3200] : memref<80x4608xbf16, #tpu.memory_space<vmem>>, vector<16x128xbf16>
    tpu.vector_store %arg9[%c0_77, %c3200], %216 {strides = array<i32>} : memref<80x4608xbf16, #tpu.memory_space<vmem>>, vector<16x128xbf16>,
    %218 = vector.extract_strided_slice %2 {offsets = [176, 0], sizes = [16, 128], strides = [1, 1]} : vector<256x128xf32> to vector<16x128xf32>
    %cst_78 = arith.constant 0.387096763 : f32
    %219 = vector.broadcast %cst_78 : f32 to vector<16x128xf32>
    %220 = arith.mulf %218, %219 : vector<16x128xf32>
    %221 = vector.extract_strided_slice %2 {offsets = [192, 0], sizes = [16, 128], strides = [1, 1]} : vector<256x128xf32> to vector<16x128xf32>
    %cst_79 = arith.constant 0.612903237 : f32
    %222 = vector.broadcast %cst_79 : f32 to vector<16x128xf32>
    %223 = arith.mulf %221, %222 : vector<16x128xf32>
    %224 = arith.addf %220, %223 : vector<16x128xf32>
    %225 = arith.truncf %224 : vector<16x128xf32> to vector<16x128xbf16>
    %c0_80 = arith.constant 0 : index
    %c3328 = arith.constant 3328 : index
    %226 = vector.load %arg9[%c0_80, %c3328] : memref<80x4608xbf16, #tpu.memory_space<vmem>>, vector<16x128xbf16>
    tpu.vector_store %arg9[%c0_80, %c3328], %225 {strides = array<i32>} : memref<80x4608xbf16, #tpu.memory_space<vmem>>, vector<16x128xbf16>,
    %227 = vector.extract_strided_slice %2 {offsets = [192, 0], sizes = [16, 128], strides = [1, 1]} : vector<256x128xf32> to vector<16x128xf32>
    %cst_81 = arith.constant 0.903225779 : f32
    %228 = vector.broadcast %cst_81 : f32 to vector<16x128xf32>
    %229 = arith.mulf %227, %228 : vector<16x128xf32>
    %230 = vector.extract_strided_slice %2 {offsets = [208, 0], sizes = [16, 128], strides = [1, 1]} : vector<256x128xf32> to vector<16x128xf32>
    %cst_82 = arith.constant 0.0967741906 : f32
    %231 = vector.broadcast %cst_82 : f32 to vector<16x128xf32>
    %232 = arith.mulf %230, %231 : vector<16x128xf32>
    %233 = arith.addf %229, %232 : vector<16x128xf32>
    %234 = arith.truncf %233 : vector<16x128xf32> to vector<16x128xbf16>
    %c0_83 = arith.constant 0 : index
    %c3456 = arith.constant 3456 : index
    %235 = vector.load %arg9[%c0_83, %c3456] : memref<80x4608xbf16, #tpu.memory_space<vmem>>, vector<16x128xbf16>
    tpu.vector_store %arg9[%c0_83, %c3456], %234 {strides = array<i32>} : memref<80x4608xbf16, #tpu.memory_space<vmem>>, vector<16x128xbf16>,
    %236 = vector.extract_strided_slice %2 {offsets = [192, 0], sizes = [16, 128], strides = [1, 1]} : vector<256x128xf32> to vector<16x128xf32>
    %cst_84 = arith.constant 0.419354826 : f32
    %237 = vector.broadcast %cst_84 : f32 to vector<16x128xf32>
    %238 = arith.mulf %236, %237 : vector<16x128xf32>
    %239 = vector.extract_strided_slice %2 {offsets = [208, 0], sizes = [16, 128], strides = [1, 1]} : vector<256x128xf32> to vector<16x128xf32>
    %cst_85 = arith.constant 0.580645144 : f32
    %240 = vector.broadcast %cst_85 : f32 to vector<16x128xf32>
    %241 = arith.mulf %239, %240 : vector<16x128xf32>
    %242 = arith.addf %238, %241 : vector<16x128xf32>
    %243 = arith.truncf %242 : vector<16x128xf32> to vector<16x128xbf16>
    %c0_86 = arith.constant 0 : index
    %c3584 = arith.constant 3584 : index
    %244 = vector.load %arg9[%c0_86, %c3584] : memref<80x4608xbf16, #tpu.memory_space<vmem>>, vector<16x128xbf16>
    tpu.vector_store %arg9[%c0_86, %c3584], %243 {strides = array<i32>} : memref<80x4608xbf16, #tpu.memory_space<vmem>>, vector<16x128xbf16>,
    %245 = vector.extract_strided_slice %2 {offsets = [208, 0], sizes = [16, 128], strides = [1, 1]} : vector<256x128xf32> to vector<16x128xf32>
    %cst_87 = arith.constant 0.935483872 : f32
    %246 = vector.broadcast %cst_87 : f32 to vector<16x128xf32>
    %247 = arith.mulf %245, %246 : vector<16x128xf32>
    %248 = vector.extract_strided_slice %2 {offsets = [224, 0], sizes = [16, 128], strides = [1, 1]} : vector<256x128xf32> to vector<16x128xf32>
    %cst_88 = arith.constant 0.0645161271 : f32
    %249 = vector.broadcast %cst_88 : f32 to vector<16x128xf32>
    %250 = arith.mulf %248, %249 : vector<16x128xf32>
    %251 = arith.addf %247, %250 : vector<16x128xf32>
    %252 = arith.truncf %251 : vector<16x128xf32> to vector<16x128xbf16>
    %c0_89 = arith.constant 0 : index
    %c3712 = arith.constant 3712 : index
    %253 = vector.load %arg9[%c0_89, %c3712] : memref<80x4608xbf16, #tpu.memory_space<vmem>>, vector<16x128xbf16>
    tpu.vector_store %arg9[%c0_89, %c3712], %252 {strides = array<i32>} : memref<80x4608xbf16, #tpu.memory_space<vmem>>, vector<16x128xbf16>,
    %254 = vector.extract_strided_slice %2 {offsets = [208, 0], sizes = [16, 128], strides = [1, 1]} : vector<256x128xf32> to vector<16x128xf32>
    %cst_90 = arith.constant 0.45161289 : f32
    %255 = vector.broadcast %cst_90 : f32 to vector<16x128xf32>
    %256 = arith.mulf %254, %255 : vector<16x128xf32>
    %257 = vector.extract_strided_slice %2 {offsets = [224, 0], sizes = [16, 128], strides = [1, 1]} : vector<256x128xf32> to vector<16x128xf32>
    %cst_91 = arith.constant 0.54838711 : f32
    %258 = vector.broadcast %cst_91 : f32 to vector<16x128xf32>
    %259 = arith.mulf %257, %258 : vector<16x128xf32>
    %260 = arith.addf %256, %259 : vector<16x128xf32>
    %261 = arith.truncf %260 : vector<16x128xf32> to vector<16x128xbf16>
    %c0_92 = arith.constant 0 : index
    %c3840 = arith.constant 3840 : index
    %262 = vector.load %arg9[%c0_92, %c3840] : memref<80x4608xbf16, #tpu.memory_space<vmem>>, vector<16x128xbf16>
    tpu.vector_store %arg9[%c0_92, %c3840], %261 {strides = array<i32>} : memref<80x4608xbf16, #tpu.memory_space<vmem>>, vector<16x128xbf16>,
    %263 = vector.extract_strided_slice %2 {offsets = [224, 0], sizes = [16, 128], strides = [1, 1]} : vector<256x128xf32> to vector<16x128xf32>
    %cst_93 = arith.constant 0.967741906 : f32
    %264 = vector.broadcast %cst_93 : f32 to vector<16x128xf32>
    %265 = arith.mulf %263, %264 : vector<16x128xf32>
    %266 = vector.extract_strided_slice %2 {offsets = [240, 0], sizes = [16, 128], strides = [1, 1]} : vector<256x128xf32> to vector<16x128xf32>
    %cst_94 = arith.constant 0.0322580636 : f32
    %267 = vector.broadcast %cst_94 : f32 to vector<16x128xf32>
    %268 = arith.mulf %266, %267 : vector<16x128xf32>
    %269 = arith.addf %265, %268 : vector<16x128xf32>
    %270 = arith.truncf %269 : vector<16x128xf32> to vector<16x128xbf16>
    %c0_95 = arith.constant 0 : index
    %c3968 = arith.constant 3968 : index
    %271 = vector.load %arg9[%c0_95, %c3968] : memref<80x4608xbf16, #tpu.memory_space<vmem>>, vector<16x128xbf16>
    tpu.vector_store %arg9[%c0_95, %c3968], %270 {strides = array<i32>} : memref<80x4608xbf16, #tpu.memory_space<vmem>>, vector<16x128xbf16>,
    %272 = vector.extract_strided_slice %2 {offsets = [224, 0], sizes = [16, 128], strides = [1, 1]} : vector<256x128xf32> to vector<16x128xf32>
    %cst_96 = arith.constant 0.483870953 : f32
    %273 = vector.broadcast %cst_96 : f32 to vector<16x128xf32>
    %274 = arith.mulf %272, %273 : vector<16x128xf32>
    %275 = vector.extract_strided_slice %2 {offsets = [240, 0], sizes = [16, 128], strides = [1, 1]} : vector<256x128xf32> to vector<16x128xf32>
    %cst_97 = arith.constant 5.161290e-01 : f32
    %276 = vector.broadcast %cst_97 : f32 to vector<16x128xf32>
    %277 = arith.mulf %275, %276 : vector<16x128xf32>
    %278 = arith.addf %274, %277 : vector<16x128xf32>
    %279 = arith.truncf %278 : vector<16x128xf32> to vector<16x128xbf16>
    %c0_98 = arith.constant 0 : index
    %c4096 = arith.constant 4096 : index
    %280 = vector.load %arg9[%c0_98, %c4096] : memref<80x4608xbf16, #tpu.memory_space<vmem>>, vector<16x128xbf16>
    tpu.vector_store %arg9[%c0_98, %c4096], %279 {strides = array<i32>} : memref<80x4608xbf16, #tpu.memory_space<vmem>>, vector<16x128xbf16>,
    %281 = vector.extract_strided_slice %2 {offsets = [240, 0], sizes = [16, 128], strides = [1, 1]} : vector<256x128xf32> to vector<16x128xf32>
    %cst_99 = arith.constant 1.000000e+00 : f32
    %282 = vector.broadcast %cst_99 : f32 to vector<16x128xf32>
    %283 = arith.mulf %281, %282 : vector<16x128xf32>
    %284 = arith.truncf %283 : vector<16x128xf32> to vector<16x128xbf16>
    %c0_100 = arith.constant 0 : index
    %c4224 = arith.constant 4224 : index
    %285 = vector.load %arg9[%c0_100, %c4224] : memref<80x4608xbf16, #tpu.memory_space<vmem>>, vector<16x128xbf16>
    tpu.vector_store %arg9[%c0_100, %c4224], %284 {strides = array<i32>} : memref<80x4608xbf16, #tpu.memory_space<vmem>>, vector<16x128xbf16>,
    %c0_101 = arith.constant 0 : index
    %c4352 = arith.constant 4352 : index
    %286 = vector.load %arg9[%c0_101, %c4352] : memref<80x4608xbf16, #tpu.memory_space<vmem>>, vector<16x128xbf16>
    tpu.vector_store %arg9[%c0_101, %c4352], %3 {strides = array<i32>} : memref<80x4608xbf16, #tpu.memory_space<vmem>>, vector<16x128xbf16>,
    %c0_102 = arith.constant 0 : index
    %c4480 = arith.constant 4480 : index
    %287 = vector.load %arg9[%c0_102, %c4480] : memref<80x4608xbf16, #tpu.memory_space<vmem>>, vector<16x128xbf16>
    tpu.vector_store %arg9[%c0_102, %c4480], %3 {strides = array<i32>} : memref<80x4608xbf16, #tpu.memory_space<vmem>>, vector<16x128xbf16>,
    %c0_103 = arith.constant 0 : index
    %c0_104 = arith.constant 0 : index
    %288 = vector.load %arg3[%c0_103, %c0_104] : memref<1x4608xf32, #tpu.memory_space<vmem>>, vector<1x4608xf32>
    %c0_105 = arith.constant 0 : index
    %c0_106 = arith.constant 0 : index
    %289 = vector.load %arg9[%c0_105, %c0_106] : memref<80x4608xbf16, #tpu.memory_space<vmem>>, vector<16x4608xbf16>
    %290 = arith.extf %289 : vector<16x4608xbf16> to vector<16x4608xf32>
    %291 = vector.shape_cast %290 : vector<16x4608xf32> to vector<1x16x4608xf32>
    %cst_107 = arith.constant dense<0.000000e+00> : vector<1xf32>
    %292 = vector.multi_reduction <add>, %291, %cst_107 [1, 2] : vector<1x16x4608xf32> to vector<1xf32>
    %293 = vector.shape_cast %292 : vector<1xf32> to vector<1x1x1xf32>
    %294 = vector.extract %293[0, 0, 0] : f32 from vector<1x1x1xf32>
    %cst_108 = arith.constant 2.44140625E-4 : f32
    %295 = arith.mulf %294, %cst_108 : f32
    %296 = arith.mulf %290, %290 : vector<16x4608xf32>
    %297 = vector.shape_cast %296 : vector<16x4608xf32> to vector<1x16x4608xf32>
    %cst_109 = arith.constant dense<0.000000e+00> : vector<1xf32>
    %298 = vector.multi_reduction <add>, %297, %cst_109 [1, 2] : vector<1x16x4608xf32> to vector<1xf32>
    %299 = vector.shape_cast %298 : vector<1xf32> to vector<1x1x1xf32>
    %300 = vector.extract %299[0, 0, 0] : f32 from vector<1x1x1xf32>
    %cst_110 = arith.constant 2.44140625E-4 : f32
    %301 = arith.mulf %300, %cst_110 : f32
    %302 = arith.mulf %295, %295 : f32
    %303 = arith.subf %301, %302 : f32
    %cst_111 = arith.constant 0.000000e+00 : f32
    %304 = arith.maximumf %303, %cst_111 : f32
    %cst_112 = arith.constant 9.99999974E-6 : f32
    %305 = arith.addf %304, %cst_112 : f32
    %306 = math.rsqrt %305 : f32
    %307 = vector.broadcast %306 : f32 to vector<16x4608xf32>
    %308 = arith.mulf %290, %307 : vector<16x4608xf32>
    %309 = arith.mulf %295, %306 : f32
    %310 = vector.broadcast %309 : f32 to vector<1x4608xf32>
    %311 = arith.mulf %310, %288 : vector<1x4608xf32>
    %312 = vector.broadcast %311 : vector<1x4608xf32> to vector<16x4608xf32>
    %313 = arith.subf %308, %312 : vector<16x4608xf32>
    %314 = arith.truncf %313 : vector<16x4608xf32> to vector<16x4608xbf16>
    %c0_113 = arith.constant 0 : index
    %c0_114 = arith.constant 0 : index
    %315 = vector.load %arg9[%c0_113, %c0_114] : memref<80x4608xbf16, #tpu.memory_space<vmem>>, vector<16x4608xbf16>
    tpu.vector_store %arg9[%c0_113, %c0_114], %314 {strides = array<i32>} : memref<80x4608xbf16, #tpu.memory_space<vmem>>, vector<16x4608xbf16>,
    %c0_115 = arith.constant 0 : index
    %c0_116 = arith.constant 0 : index
    %316 = vector.load %arg9[%c0_115, %c0_116] : memref<80x4608xbf16, #tpu.memory_space<vmem>>, vector<16x4608xbf16>
    %317 = arith.extf %316 : vector<16x4608xbf16> to vector<16x4608xf32>
    %c4607_i32 = arith.constant 4607 : i32
    %318 = tpu.dynamic_rotate %317 by %c4607_i32 dim 1 : vector<16x4608xf32>, i32 -> vector<16x4608xf32>
    %319 = arith.truncf %318 : vector<16x4608xf32> to vector<16x4608xbf16>
    %c16 = arith.constant 16 : index
    %c0_117 = arith.constant 0 : index
    %320 = vector.load %arg9[%c16, %c0_117] : memref<80x4608xbf16, #tpu.memory_space<vmem>>, vector<16x4608xbf16>
    tpu.vector_store %arg9[%c16, %c0_117], %319 {strides = array<i32>} : memref<80x4608xbf16, #tpu.memory_space<vmem>>, vector<16x4608xbf16>,
    %c4606_i32 = arith.constant 4606 : i32
    %321 = tpu.dynamic_rotate %317 by %c4606_i32 dim 1 : vector<16x4608xf32>, i32 -> vector<16x4608xf32>
    %322 = arith.truncf %321 : vector<16x4608xf32> to vector<16x4608xbf16>
    %c32 = arith.constant 32 : index
    %c0_118 = arith.constant 0 : index
    %323 = vector.load %arg9[%c32, %c0_118] : memref<80x4608xbf16, #tpu.memory_space<vmem>>, vector<16x4608xbf16>
    tpu.vector_store %arg9[%c32, %c0_118], %322 {strides = array<i32>} : memref<80x4608xbf16, #tpu.memory_space<vmem>>, vector<16x4608xbf16>,
    %c4605_i32 = arith.constant 4605 : i32
    %324 = tpu.dynamic_rotate %317 by %c4605_i32 dim 1 : vector<16x4608xf32>, i32 -> vector<16x4608xf32>
    %325 = arith.truncf %324 : vector<16x4608xf32> to vector<16x4608xbf16>
    %c48 = arith.constant 48 : index
    %c0_119 = arith.constant 0 : index
    %326 = vector.load %arg9[%c48, %c0_119] : memref<80x4608xbf16, #tpu.memory_space<vmem>>, vector<16x4608xbf16>
    tpu.vector_store %arg9[%c48, %c0_119], %325 {strides = array<i32>} : memref<80x4608xbf16, #tpu.memory_space<vmem>>, vector<16x4608xbf16>,
    %c4604_i32 = arith.constant 4604 : i32
    %327 = tpu.dynamic_rotate %317 by %c4604_i32 dim 1 : vector<16x4608xf32>, i32 -> vector<16x4608xf32>
    %328 = arith.truncf %327 : vector<16x4608xf32> to vector<16x4608xbf16>
    %c64 = arith.constant 64 : index
    %c0_120 = arith.constant 0 : index
    %329 = vector.load %arg9[%c64, %c0_120] : memref<80x4608xbf16, #tpu.memory_space<vmem>>, vector<16x4608xbf16>
    tpu.vector_store %arg9[%c64, %c0_120], %328 {strides = array<i32>} : memref<80x4608xbf16, #tpu.memory_space<vmem>>, vector<16x4608xbf16>,
    %c0_121 = arith.constant 0 : index
    %c0_122 = arith.constant 0 : index
    %c0_123 = arith.constant 0 : index
    %330 = vector.load %arg4[%c0_121, %c0_122, %c0_123] : memref<5x16x80xbf16, #tpu.memory_space<vmem>>, vector<1x16x80xbf16>
    %331 = vector.shape_cast %330 : vector<1x16x80xbf16> to vector<16x80xbf16>
    %c0_124 = arith.constant 0 : index
    %c0_125 = arith.constant 0 : index
    %332 = vector.load %arg9[%c0_124, %c0_125] : memref<80x4608xbf16, #tpu.memory_space<vmem>>, vector<80x4096xbf16>
    %cst_126 = arith.constant dense<0.000000e+00> : vector<16x4096xf32>
    %333 = tpu.matmul %331, %332, %cst_126 {dimension_numbers = #tpu.dot_dimension_numbers<[1], [0], [0], [1], [0, 0, 1, 1], [], []>} : vector<16x80xbf16>, vector<80x4096xbf16>, vector<16x4096xf32> -> vector<16x4096xf32>
    %c1 = arith.constant 1 : index
    %c0_127 = arith.constant 0 : index
    %c0_128 = arith.constant 0 : index
    %334 = vector.load %arg4[%c1, %c0_127, %c0_128] : memref<5x16x80xbf16, #tpu.memory_space<vmem>>, vector<1x16x80xbf16>
    %335 = vector.shape_cast %334 : vector<1x16x80xbf16> to vector<16x80xbf16>
    %c0_129 = arith.constant 0 : index
    %c128_130 = arith.constant 128 : index
    %336 = vector.load %arg9[%c0_129, %c128_130] : memref<80x4608xbf16, #tpu.memory_space<vmem>>, vector<80x4096xbf16>
    %cst_131 = arith.constant dense<0.000000e+00> : vector<16x4096xf32>
    %337 = tpu.matmul %335, %336, %cst_131 {dimension_numbers = #tpu.dot_dimension_numbers<[1], [0], [0], [1], [0, 0, 1, 1], [], []>} : vector<16x80xbf16>, vector<80x4096xbf16>, vector<16x4096xf32> -> vector<16x4096xf32>
    %338 = arith.addf %333, %337 : vector<16x4096xf32>
    %c2 = arith.constant 2 : index
    %c0_132 = arith.constant 0 : index
    %c0_133 = arith.constant 0 : index
    %339 = vector.load %arg4[%c2, %c0_132, %c0_133] : memref<5x16x80xbf16, #tpu.memory_space<vmem>>, vector<1x16x80xbf16>
    %340 = vector.shape_cast %339 : vector<1x16x80xbf16> to vector<16x80xbf16>
    %c0_134 = arith.constant 0 : index
    %c256_135 = arith.constant 256 : index
    %341 = vector.load %arg9[%c0_134, %c256_135] : memref<80x4608xbf16, #tpu.memory_space<vmem>>, vector<80x4096xbf16>
    %cst_136 = arith.constant dense<0.000000e+00> : vector<16x4096xf32>
    %342 = tpu.matmul %340, %341, %cst_136 {dimension_numbers = #tpu.dot_dimension_numbers<[1], [0], [0], [1], [0, 0, 1, 1], [], []>} : vector<16x80xbf16>, vector<80x4096xbf16>, vector<16x4096xf32> -> vector<16x4096xf32>
    %343 = arith.addf %338, %342 : vector<16x4096xf32>
    %c3 = arith.constant 3 : index
    %c0_137 = arith.constant 0 : index
    %c0_138 = arith.constant 0 : index
    %344 = vector.load %arg4[%c3, %c0_137, %c0_138] : memref<5x16x80xbf16, #tpu.memory_space<vmem>>, vector<1x16x80xbf16>
    %345 = vector.shape_cast %344 : vector<1x16x80xbf16> to vector<16x80xbf16>
    %c0_139 = arith.constant 0 : index
    %c384_140 = arith.constant 384 : index
    %346 = vector.load %arg9[%c0_139, %c384_140] : memref<80x4608xbf16, #tpu.memory_space<vmem>>, vector<80x4096xbf16>
    %cst_141 = arith.constant dense<0.000000e+00> : vector<16x4096xf32>
    %347 = tpu.matmul %345, %346, %cst_141 {dimension_numbers = #tpu.dot_dimension_numbers<[1], [0], [0], [1], [0, 0, 1, 1], [], []>} : vector<16x80xbf16>, vector<80x4096xbf16>, vector<16x4096xf32> -> vector<16x4096xf32>
    %348 = arith.addf %343, %347 : vector<16x4096xf32>
    %c4 = arith.constant 4 : index
    %c0_142 = arith.constant 0 : index
    %c0_143 = arith.constant 0 : index
    %349 = vector.load %arg4[%c4, %c0_142, %c0_143] : memref<5x16x80xbf16, #tpu.memory_space<vmem>>, vector<1x16x80xbf16>
    %350 = vector.shape_cast %349 : vector<1x16x80xbf16> to vector<16x80xbf16>
    %c0_144 = arith.constant 0 : index
    %c512_145 = arith.constant 512 : index
    %351 = vector.load %arg9[%c0_144, %c512_145] : memref<80x4608xbf16, #tpu.memory_space<vmem>>, vector<80x4096xbf16>
    %cst_146 = arith.constant dense<0.000000e+00> : vector<16x4096xf32>
    %352 = tpu.matmul %350, %351, %cst_146 {dimension_numbers = #tpu.dot_dimension_numbers<[1], [0], [0], [1], [0, 0, 1, 1], [], []>} : vector<16x80xbf16>, vector<80x4096xbf16>, vector<16x4096xf32> -> vector<16x4096xf32>
    %353 = arith.addf %348, %352 : vector<16x4096xf32>
    %c0_147 = arith.constant 0 : index
    %c0_148 = arith.constant 0 : index
    %354 = vector.load %arg5[%c0_147, %c0_148] : memref<16x1xf32, #tpu.memory_space<vmem>>, vector<16x1xf32>
    %355 = vector.broadcast %354 : vector<16x1xf32> to vector<16x4096xf32>
    %356 = arith.addf %353, %355 : vector<16x4096xf32>
    %cst_149 = arith.constant 0.000000e+00 : f32
    %357 = vector.broadcast %cst_149 : f32 to vector<16x4096xf32>
    %358 = arith.cmpf oge, %356, %357 : vector<16x4096xf32>
    %cst_150 = arith.constant 0.00999999977 : f32
    %359 = vector.broadcast %cst_150 : f32 to vector<16x4096xf32>
    %360 = arith.mulf %359, %356 : vector<16x4096xf32>
    %361 = arith.select %358, %356, %360 : vector<16x4096xi1>, vector<16x4096xf32>
    %362 = arith.truncf %361 : vector<16x4096xf32> to vector<16x4096xbf16>
    %c0_151 = arith.constant 0 : index
    %c0_152 = arith.constant 0 : index
    %363 = vector.load %arg6[%c0_151, %c0_152] : memref<8x16xbf16, #tpu.memory_space<vmem>>, vector<8x16xbf16>
    %cst_153 = arith.constant dense<0.000000e+00> : vector<8x4096xf32>
    %364 = tpu.matmul %363, %362, %cst_153 {dimension_numbers = #tpu.dot_dimension_numbers<[1], [0], [0], [1], [0, 0, 1, 1], [], []>} : vector<8x16xbf16>, vector<16x4096xbf16>, vector<8x4096xf32> -> vector<8x4096xf32>
    %c0_154 = arith.constant 0 : index
    %c0_155 = arith.constant 0 : index
    %365 = vector.load %arg7[%c0_154, %c0_155] : memref<8x1xf32, #tpu.memory_space<vmem>>, vector<8x1xf32>
    %366 = vector.broadcast %365 : vector<8x1xf32> to vector<8x4096xf32>
    %367 = arith.addf %364, %366 : vector<8x4096xf32>
    %c0_156 = arith.constant 0 : index
    %c0_157 = arith.constant 0 : index
    %c0_158 = arith.constant 0 : index
    %c0_159 = arith.constant 0 : index
    %368 = vector.load %arg8[%c0_156, %c0_157, %c0_158, %c0_159] : memref<1x1x8x4096xf32, #tpu.memory_space<vmem>>, vector<1x1x8x4096xf32>
    %369 = vector.shape_cast %368 : vector<1x1x8x4096xf32> to vector<8x4096xf32>
    %370 = vector.shape_cast %367 : vector<8x4096xf32> to vector<1x1x8x4096xf32>
    tpu.vector_store %arg8[%c0_156, %c0_157, %c0_158, %c0_159], %370 {strides = array<i32>} : memref<1x1x8x4096xf32, #tpu.memory_space<vmem>>, vector<1x1x8x4096xf32>,
    return
  }
  func.func @transform_0(%arg0: i32) -> (i32, i32) {
    %c0_i32 = arith.constant 0 : i32
    %c0_i32_0 = arith.constant 0 : i32
    return %arg0, %c0_i32 : i32, i32
  }
  func.func @transform_1(%arg0: i32) -> (i32, i32) {
    %c0_i32 = arith.constant 0 : i32
    %c0_i32_0 = arith.constant 0 : i32
    %c0_i32_1 = arith.constant 0 : i32
    return %c0_i32, %c0_i32_0 : i32, i32
  }
  func.func @transform_2(%arg0: i32) -> (i32, i32) {
    %c0_i32 = arith.constant 0 : i32
    %c0_i32_0 = arith.constant 0 : i32
    %c0_i32_1 = arith.constant 0 : i32
    return %c0_i32, %c0_i32_0 : i32, i32
  }
  func.func @transform_3(%arg0: i32) -> (i32, i32, i32) {
    %c0_i32 = arith.constant 0 : i32
    %c0_i32_0 = arith.constant 0 : i32
    %c0_i32_1 = arith.constant 0 : i32
    %c0_i32_2 = arith.constant 0 : i32
    return %c0_i32, %c0_i32_0, %c0_i32_1 : i32, i32, i32
  }
  func.func @transform_4(%arg0: i32) -> (i32, i32) {
    %c0_i32 = arith.constant 0 : i32
    %c0_i32_0 = arith.constant 0 : i32
    %c0_i32_1 = arith.constant 0 : i32
    return %c0_i32, %c0_i32_0 : i32, i32
  }
  func.func @transform_5(%arg0: i32) -> (i32, i32) {
    %c0_i32 = arith.constant 0 : i32
    %c0_i32_0 = arith.constant 0 : i32
    %c0_i32_1 = arith.constant 0 : i32
    return %c0_i32, %c0_i32_0 : i32, i32
  }
  func.func @transform_6(%arg0: i32) -> (i32, i32) {
    %c0_i32 = arith.constant 0 : i32
    %c0_i32_0 = arith.constant 0 : i32
    %c0_i32_1 = arith.constant 0 : i32
    return %c0_i32, %c0_i32_0 : i32, i32
  }
  func.func @transform_7(%arg0: i32) -> (i32, i32, i32, i32) {
    %c0_i32 = arith.constant 0 : i32
    %c0_i32_0 = arith.constant 0 : i32
    %c0_i32_1 = arith.constant 0 : i32
    %c0_i32_2 = arith.constant 0 : i32
    return %arg0, %c0_i32, %c0_i32_0, %c0_i32_1 : i32, i32, i32, i32
  }
}

</mosaic_0001>

<llo_original>
// kernel: tpu_custom_call.1
$region0: #{tpu_custom_call.1}
  #allocation0 [shape = 'u32[]', space=smem, size = 0x4, offset = 0x4, fixed_abs, tag = 'smem constant byte address 0x4 - core index']
  #allocation1 [shape = 'u32[72,128]{1,0:T(1,128)}', space=vmem, size = 0x9000, scoped, tag = 'internal scratch']
  #allocation2 [shape = 'bf16[80,4608]{1,0:T(8,128)(2,1)}', space=vmem, size = 0xb4000, scoped, tag = 'scratch operand']
  %s0 = inlined_call_operand.vmem [shape: f32[512,16], index: 0, kind: input, shape index: {}]
  %s1 = inlined_call_operand.vmem [shape: f32[16,128], index: 1, kind: input, shape index: {}]
  %s2 = inlined_call_operand.vmem [shape: f32[1,4608], index: 2, kind: input, shape index: {}]
  %s3 = inlined_call_operand.vmem [shape: bf16[5,16,80], index: 3, kind: input, shape index: {}]
  %s4 = inlined_call_operand.vmem [shape: f32[16,1], index: 4, kind: input, shape index: {}]
  %s5 = inlined_call_operand.vmem [shape: bf16[8,16], index: 5, kind: input, shape index: {}]
  %s6 = inlined_call_operand.vmem [shape: f32[8,1], index: 6, kind: input, shape index: {}]
  %s7 = inlined_call_operand.hbm [shape: f32[2,1,8,4096], index: 7, kind: output, shape index: {}]
  %s8 = sld [smem:[#allocation0]]
  $region61: #{tpu_custom_call.1} parent=0
    _
  %s10 = ssub.s32 1, %s8
  %s11 = scalar_select 0, %s10, %s8
  $region1: #{tpu_custom_call.1} parent=0
    #allocation3 [shape = 'u8[262144]{0}', space=vmem, size = 0x40000, scoped, tag = 'output window, operand 0']
    #allocation4 [shape = 's32[2]{0}', space=sflag, size = 0x8, scoped, tag = 'scoped memory for tpu_custom_call.1']
    %12 = vsyncpa [#allocation4], 0
    %s13 = scalar_lea.sflag [#allocation4], 1
    %14 = vsyncpa %s13, 0
    loop: start=0, step=1, limit=4
    $region2: #{tpu_custom_call.1} parent=1 // loop_pre_header
      _
    $region3: #{tpu_custom_call.1} parent=1 // loop_header
      %s16 = sphi 0, %s20
      %p17 = scmp.ge.s32.totalorder %s16, 4
      %s26 = sphi 0, %s28
      %s29 = sphi 0, %s26
      %s30 = sphi 0, %s29
      %s46 = sphi 0, %s30
      %s50 = sphi 0, %s50
      %s52 = sphi 0, %s50
      %s53 = sphi 0, %s52
      %s67 = sphi 0, %s53
      %s71 = sphi 0, %s71
      %s73 = sphi 0, %s71
      %s74 = sphi 0, %s73
      %s88 = sphi 0, %s74
      %s92 = sphi 0, %s92
      %s94 = sphi 0, %s92
      %s95 = sphi 0, %s94
      %s109 = sphi 0, %s95
      %s113 = sphi 0, %s113
      %s115 = sphi 0, %s113
      %s116 = sphi 0, %s115
      %s130 = sphi 0, %s116
      %s134 = sphi 0, %s134
      %s136 = sphi 0, %s134
      %s137 = sphi 0, %s136
      %s151 = sphi 0, %s137
      %s155 = sphi 0, %s155
      %s157 = sphi 0, %s155
      %s158 = sphi 0, %s157
      %s172 = sphi 0, %s158
      %s178 = sphi 0, %s180
      %s181 = sphi 0, %s178
      %s182 = sphi 0, %s181
      %s198 = sphi 0, %s182
    $region4: #{tpu_custom_call.1} parent=1 // loop_header_branch
      %19 = sbr.rel (%p17) target = $region8
    $region5: #{tpu_custom_call.1} parent=1 // loop_body
      %s21 = ssub.s32 %s16, 1
      %s22 = ssub.s32 %s16, 2
      %s23 = sadd.s32 %s16, 1
      %s24 = ssub.s32 %s16, %s23
      %p25 = scmp.eq.s32.totalorder %s24, 0
      %s27 = sadd.s32 %s26, 1
      %s28 = scalar_select %p25, %s26, %s27
      %p31 = pneg %p25
      %p32 = scmp.eq.s32.totalorder %s16, 1
      %p33 = por %p31, %p32
      %p34 = scmp.ne.s32.totalorder %s26, %s29
      %p35 = scmp.eq.s32.totalorder %s16, 0
      %p36 = por %p34, %p35
      %p37 = scmp.ne.s32.totalorder %s26, %s29
      %p38 = scmp.eq.s32.totalorder %s21, 1
      %p39 = por %p37, %p38
      %p40 = scmp.ne.s32.totalorder %s29, %s30
      %p41 = scmp.eq.s32.totalorder %s21, 0
      %p42 = por %p40, %p41
      %p43 = scmp.ne.s32.totalorder %s29, %s30
      %p44 = scmp.eq.s32.totalorder %s22, 1
      %p45 = por %p43, %p44
      %p47 = scmp.ne.s32.totalorder %s30, %s46
      %p48 = scmp.eq.s32.totalorder %s22, 0
      %p49 = por %p47, %p48
      %s51 = sadd.s32 %s50, 1
      %p54 = scmp.eq.s32.totalorder %s16, 1
      %p55 = scmp.ne.s32.totalorder %s50, %s52
      %p56 = scmp.eq.s32.totalorder %s16, 0
      %p57 = por %p55, %p56
      %p58 = scmp.ne.s32.totalorder %s50, %s52
      %p59 = scmp.eq.s32.totalorder %s21, 1
      %p60 = por %p58, %p59
      %p61 = scmp.ne.s32.totalorder %s52, %s53
      %p62 = scmp.eq.s32.totalorder %s21, 0
      %p63 = por %p61, %p62
      %p64 = scmp.ne.s32.totalorder %s52, %s53
      %p65 = scmp.eq.s32.totalorder %s22, 1
      %p66 = por %p64, %p65
      %p68 = scmp.ne.s32.totalorder %s53, %s67
      %p69 = scmp.eq.s32.totalorder %s22, 0
      %p70 = por %p68, %p69
      %s72 = sadd.s32 %s71, 1
      %p75 = scmp.eq.s32.totalorder %s16, 1
      %p76 = scmp.ne.s32.totalorder %s71, %s73
      %p77 = scmp.eq.s32.totalorder %s16, 0
      %p78 = por %p76, %p77
      %p79 = scmp.ne.s32.totalorder %s71, %s73
      %p80 = scmp.eq.s32.totalorder %s21, 1
      %p81 = por %p79, %p80
      %p82 = scmp.ne.s32.totalorder %s73, %s74
      %p83 = scmp.eq.s32.totalorder %s21, 0
      %p84 = por %p82, %p83
      %p85 = scmp.ne.s32.totalorder %s73, %s74
      %p86 = scmp.eq.s32.totalorder %s22, 1
      %p87 = por %p85, %p86
      %p89 = scmp.ne.s32.totalorder %s74, %s88
      %p90 = scmp.eq.s32.totalorder %s22, 0
      %p91 = por %p89, %p90
      %s93 = sadd.s32 %s92, 1
      %p96 = scmp.eq.s32.totalorder %s16, 1
      %p97 = scmp.ne.s32.totalorder %s92, %s94
      %p98 = scmp.eq.s32.totalorder %s16, 0
      %p99 = por %p97, %p98
      %p100 = scmp.ne.s32.totalorder %s92, %s94
      %p101 = scmp.eq.s32.totalorder %s21, 1
      %p102 = por %p100, %p101
      %p103 = scmp.ne.s32.totalorder %s94, %s95
      %p104 = scmp.eq.s32.totalorder %s21, 0
      %p105 = por %p103, %p104
      %p106 = scmp.ne.s32.totalorder %s94, %s95
      %p107 = scmp.eq.s32.totalorder %s22, 1
      %p108 = por %p106, %p107
      %p110 = scmp.ne.s32.totalorder %s95, %s109
      %p111 = scmp.eq.s32.totalorder %s22, 0
      %p112 = por %p110, %p111
      %s114 = sadd.s32 %s113, 1
      %p117 = scmp.eq.s32.totalorder %s16, 1
      %p118 = scmp.ne.s32.totalorder %s113, %s115
      %p119 = scmp.eq.s32.totalorder %s16, 0
      %p120 = por %p118, %p119
      %p121 = scmp.ne.s32.totalorder %s113, %s115
      %p122 = scmp.eq.s32.totalorder %s21, 1
      %p123 = por %p121, %p122
      %p124 = scmp.ne.s32.totalorder %s115, %s116
      %p125 = scmp.eq.s32.totalorder %s21, 0
      %p126 = por %p124, %p125
      %p127 = scmp.ne.s32.totalorder %s115, %s116
      %p128 = scmp.eq.s32.totalorder %s22, 1
      %p129 = por %p127, %p128
      %p131 = scmp.ne.s32.totalorder %s116, %s130
      %p132 = scmp.eq.s32.totalorder %s22, 0
      %p133 = por %p131, %p132
      %s135 = sadd.s32 %s134, 1
      %p138 = scmp.eq.s32.totalorder %s16, 1
      %p139 = scmp.ne.s32.totalorder %s134, %s136
      %p140 = scmp.eq.s32.totalorder %s16, 0
      %p141 = por %p139, %p140
      %p142 = scmp.ne.s32.totalorder %s134, %s136
      %p143 = scmp.eq.s32.totalorder %s21, 1
      %p144 = por %p142, %p143
      %p145 = scmp.ne.s32.totalorder %s136, %s137
      %p146 = scmp.eq.s32.totalorder %s21, 0
      %p147 = por %p145, %p146
      %p148 = scmp.ne.s32.totalorder %s136, %s137
      %p149 = scmp.eq.s32.totalorder %s22, 1
      %p150 = por %p148, %p149
      %p152 = scmp.ne.s32.totalorder %s137, %s151
      %p153 = scmp.eq.s32.totalorder %s22, 0
      %p154 = por %p152, %p153
      %s156 = sadd.s32 %s155, 1
      %p159 = scmp.eq.s32.totalorder %s16, 1
      %p160 = scmp.ne.s32.totalorder %s155, %s157
      %p161 = scmp.eq.s32.totalorder %s16, 0
      %p162 = por %p160, %p161
      %p163 = scmp.ne.s32.totalorder %s155, %s157
      %p164 = scmp.eq.s32.totalorder %s21, 1
      %p165 = por %p163, %p164
      %p166 = scmp.ne.s32.totalorder %s157, %s158
      %p167 = scmp.eq.s32.totalorder %s21, 0
      %p168 = por %p166, %p167
      %p169 = scmp.ne.s32.totalorder %s157, %s158
      %p170 = scmp.eq.s32.totalorder %s22, 1
      %p171 = por %p169, %p170
      %p173 = scmp.ne.s32.totalorder %s158, %s172
      %p174 = scmp.eq.s32.totalorder %s22, 0
      %p175 = por %p173, %p174
      %s176 = ssub.s32 %s16, %s23
      %p177 = scmp.eq.s32.totalorder %s176, 0
      %s179 = sadd.s32 %s178, 1
      %s180 = scalar_select %p177, %s178, %s179
      %p183 = pneg %p177
      %p184 = scmp.eq.s32.totalorder %s16, 1
      %p185 = por %p183, %p184
      %p186 = scmp.ne.s32.totalorder %s178, %s181
      %p187 = scmp.eq.s32.totalorder %s16, 0
      %p188 = por %p186, %p187
      %p189 = scmp.ne.s32.totalorder %s178, %s181
      %p190 = scmp.eq.s32.totalorder %s21, 1
      %p191 = por %p189, %p190
      %p192 = scmp.ne.s32.totalorder %s181, %s182
      %p193 = scmp.eq.s32.totalorder %s21, 0
      %p194 = por %p192, %p193
      %p195 = scmp.ne.s32.totalorder %s181, %s182
      %p196 = scmp.eq.s32.totalorder %s22, 1
      %p197 = por %p195, %p196
      %p199 = scmp.ne.s32.totalorder %s182, %s198
      %p200 = scmp.eq.s32.totalorder %s22, 0
      %p201 = por %p199, %p200
      %p202 = scmp.le.s32.totalorder 1, %s16
      %p203 = scmp.lt.s32.totalorder %s16, 3
      %p204 = pnand %p202, %p203
      %p205 = pneg %p204
      // Predicated region
      $region9: #{tpu_custom_call.1} parent=5 // pred_check
        _
      $region10: #{tpu_custom_call.1} parent=5 // pred_check_branch
        %207 = sbr.rel (%p204) target = $region12
      $region11: #{tpu_custom_call.1} parent=5 // pred_region
        %s208 = ssub.s32 %s16, 1
        // Predicated region
        $region13: #{tpu_custom_call.1} parent=11 // pred_check
          %p209 = pneg %p63
        $region14: #{tpu_custom_call.1} parent=11 // pred_check_branch
          %211 = sbr.rel (%p209) target = $region16
        $region15: #{tpu_custom_call.1} parent=11 // pred_region
          _
        $region16: #{tpu_custom_call.1} parent=11 // pred_fallthru
          _
        // Predicated region
        $region17: #{tpu_custom_call.1} parent=11 // pred_check
          %p212 = pneg %p84
        $region18: #{tpu_custom_call.1} parent=11 // pred_check_branch
          %214 = sbr.rel (%p212) target = $region20
        $region19: #{tpu_custom_call.1} parent=11 // pred_region
          _
        $region20: #{tpu_custom_call.1} parent=11 // pred_fallthru
          _
        // Predicated region
        $region21: #{tpu_custom_call.1} parent=11 // pred_check
          %p215 = pneg %p105
        $region22: #{tpu_custom_call.1} parent=11 // pred_check_branch
          %217 = sbr.rel (%p215) target = $region24
        $region23: #{tpu_custom_call.1} parent=11 // pred_region
          _
        $region24: #{tpu_custom_call.1} parent=11 // pred_fallthru
          _
        // Predicated region
        $region25: #{tpu_custom_call.1} parent=11 // pred_check
          %p218 = pneg %p126
        $region26: #{tpu_custom_call.1} parent=11 // pred_check_branch
          %220 = sbr.rel (%p218) target = $region28
        $region27: #{tpu_custom_call.1} parent=11 // pred_region
          _
        $region28: #{tpu_custom_call.1} parent=11 // pred_fallthru
          _
        // Predicated region
        $region29: #{tpu_custom_call.1} parent=11 // pred_check
          %p221 = pneg %p147
        $region30: #{tpu_custom_call.1} parent=11 // pred_check_branch
          %223 = sbr.rel (%p221) target = $region32
        $region31: #{tpu_custom_call.1} parent=11 // pred_region
          _
        $region32: #{tpu_custom_call.1} parent=11 // pred_fallthru
          _
        // Predicated region
        $region33: #{tpu_custom_call.1} parent=11 // pred_check
          %p224 = pneg %p168
        $region34: #{tpu_custom_call.1} parent=11 // pred_check_branch
          %226 = sbr.rel (%p224) target = $region36
        $region35: #{tpu_custom_call.1} parent=11 // pred_region
          _
        $region36: #{tpu_custom_call.1} parent=11 // pred_fallthru
          _
      $region12: #{tpu_custom_call.1} parent=5 // pred_fallthru
        _
      %p227 = scmp.lt.s32.totalorder %s16, 2
      // Predicated region
      $region37: #{tpu_custom_call.1} parent=5 // pred_check
        %p228 = pneg %p227
      $region38: #{tpu_custom_call.1} parent=5 // pred_check_branch
        %230 = sbr.rel (%p228) target = $region40
      $region39: #{tpu_custom_call.1} parent=5 // pred_region
        // Predicated region
        $region41: #{tpu_custom_call.1} parent=39 // pred_check
          %p231 = pneg %p36
        $region42: #{tpu_custom_call.1} parent=39 // pred_check_branch
          %233 = sbr.rel (%p231) target = $region44
        $region43: #{tpu_custom_call.1} parent=39 // pred_region
          %s234 = smul.u32 32, %s16
          %p235 = scmp.lt.s32.totalorder %s234, 63
          %s236 = scalar_select %p235, %s234, 63
          %s237 = smul.addr %s236, 8
          %s238 = scalar_lea.vmem %s0, %s237
          %s239 = smul.u32 32, %s16
        $region44: #{tpu_custom_call.1} parent=39 // pred_fallthru
          _
      $region40: #{tpu_custom_call.1} parent=5 // pred_fallthru
        _
      %p240 = scmp.le.s32.totalorder 1, %s16
      %p241 = scmp.lt.s32.totalorder %s16, 3
      %p242 = pnand %p240, %p241
      %p243 = pneg %p242
      // Predicated region
      $region45: #{tpu_custom_call.1} parent=5 // pred_check
        _
      $region46: #{tpu_custom_call.1} parent=5 // pred_check_branch
        %245 = sbr.rel (%p242) target = $region48
      $region47: #{tpu_custom_call.1} parent=5 // pred_region
        %s246 = ssub.s32 %s16, 1
        %s247 = smul.u32 32, %s21
        %p248 = scmp.lt.s32.totalorder %s247, 63
        %s249 = scalar_select %p248, %s247, 63
        %s250 = smul.addr %s249, 8
        %s251 = scalar_lea.vmem %s0, %s250
        %p252 = pneg %p42
        %p253 = pneg %p39
        %p254 = pneg %p63
        %p255 = pneg %p60
        %p256 = pneg %p84
        %p257 = pneg %p81
        %p258 = pneg %p105
        %p259 = pneg %p102
        %p260 = pneg %p126
        %p261 = pneg %p123
        %p262 = pneg %p147
        %p263 = pneg %p144
        %p264 = pneg %p168
        %p265 = pneg %p165
        %p266 = pneg %p194
        %p267 = pneg %p191
        %s268 = sand.u32 %s181, 1
        %s269 = scalar_lea.sflag [#allocation4], %s268
        %s270 = sand.u32 %s181, 1
        %s271 = smul.addr %s270, 256
        %s272 = scalar_lea.vmem [#allocation3], %s271
        %s273 = smul.u32 32, %s21
        %p274 = scmp.lt.s32.totalorder %s273, 63
        %s275 = scalar_select %p274, %s273, 63
        %s276 = smul.addr %s275, 8
        %s277 = scalar_lea.vmem %s0, %s276
        %s278 = smul.u32 32, %s21
        %v280 = vld [vmem:[%s277] sm:$0xff]
        %v281 = vld [vmem:[%s277 + $0x8] sm:$0xff]
        %v282 = vld [vmem:[%s277 + $0x10] sm:$0xff]
        %v283 = vld [vmem:[%s277 + $0x18] sm:$0xff]
        %v284 = vld [vmem:[%s277 + $0x20] sm:$0xff]
        %v285 = vld [vmem:[%s277 + $0x28] sm:$0xff]
        %v286 = vld [vmem:[%s277 + $0x30] sm:$0xff]
        %v287 = vld [vmem:[%s277 + $0x38] sm:$0xff]
        %v288 = vld [vmem:[%s277 + $0x40] sm:$0xff]
        %v289 = vld [vmem:[%s277 + $0x48] sm:$0xff]
        %v290 = vld [vmem:[%s277 + $0x50] sm:$0xff]
        %v291 = vld [vmem:[%s277 + $0x58] sm:$0xff]
        %v292 = vld [vmem:[%s277 + $0x60] sm:$0xff]
        %v293 = vld [vmem:[%s277 + $0x68] sm:$0xff]
        %v294 = vld [vmem:[%s277 + $0x70] sm:$0xff]
        %v295 = vld [vmem:[%s277 + $0x78] sm:$0xff]
        %v296 = vld [vmem:[%s277 + $0x80] sm:$0xff]
        %v297 = vld [vmem:[%s277 + $0x88] sm:$0xff]
        %v298 = vld [vmem:[%s277 + $0x90] sm:$0xff]
        %v299 = vld [vmem:[%s277 + $0x98] sm:$0xff]
        %v300 = vld [vmem:[%s277 + $0xa0] sm:$0xff]
        %v301 = vld [vmem:[%s277 + $0xa8] sm:$0xff]
        %v302 = vld [vmem:[%s277 + $0xb0] sm:$0xff]
        %v303 = vld [vmem:[%s277 + $0xb8] sm:$0xff]
        %v304 = vld [vmem:[%s277 + $0xc0] sm:$0xff]
        %v305 = vld [vmem:[%s277 + $0xc8] sm:$0xff]
        %v306 = vld [vmem:[%s277 + $0xd0] sm:$0xff]
        %v307 = vld [vmem:[%s277 + $0xd8] sm:$0xff]
        %v308 = vld [vmem:[%s277 + $0xe0] sm:$0xff]
        %v309 = vld [vmem:[%s277 + $0xe8] sm:$0xff]
        %v310 = vld [vmem:[%s277 + $0xf0] sm:$0xff]
        %v311 = vld [vmem:[%s277 + $0xf8] sm:$0xff]
        %v312 = vld [vmem:[%s1] sm:$0xff]
        %v313 = vld [vmem:[%s1 + $0x8] sm:$0xff]
        %vm314 = vcmask 130048
        %v316 = vsel %vm314, %v280, 0
        %v319 = vsel %vm314, %v281, 0
        %v322 = vsel %vm314, %v282, 0
        %v325 = vsel %vm314, %v283, 0
        %v328 = vsel %vm314, %v284, 0
        %v331 = vsel %vm314, %v285, 0
        %v334 = vsel %vm314, %v286, 0
        %v337 = vsel %vm314, %v287, 0
        %v340 = vsel %vm314, %v288, 0
        %v343 = vsel %vm314, %v289, 0
        %v346 = vsel %vm314, %v290, 0
        %v349 = vsel %vm314, %v291, 0
        %v352 = vsel %vm314, %v292, 0
        %v355 = vsel %vm314, %v293, 0
        %v358 = vsel %vm314, %v294, 0
        %v361 = vsel %vm314, %v295, 0
        %v364 = vsel %vm314, %v296, 0
        %v367 = vsel %vm314, %v297, 0
        %v370 = vsel %vm314, %v298, 0
        %v373 = vsel %vm314, %v299, 0
        %v376 = vsel %vm314, %v300, 0
        %v379 = vsel %vm314, %v301, 0
        %v382 = vsel %vm314, %v302, 0
        %v385 = vsel %vm314, %v303, 0
        %v388 = vsel %vm314, %v304, 0
        %v391 = vsel %vm314, %v305, 0
        %v394 = vsel %vm314, %v306, 0
        %v397 = vsel %vm314, %v307, 0
        %v400 = vsel %vm314, %v308, 0
        %v403 = vsel %vm314, %v309, 0
        %v406 = vsel %vm314, %v310, 0
        %v409 = vsel %vm314, %v311, 0
        %411 = vmatpush.msra.mxu0 0.0
        %412 = vmatpush.msra.mxu0 0.0
        %413 = vmatpush.msra.mxu0 0.0
        %414 = vmatpush.msra.mxu0 0.0
        %415 = vmatpush.msra.mxu0 0.0
        %416 = vmatpush.msra.mxu0 0.0
        %417 = vmatpush.msra.mxu0 0.0
        %418 = vmatpush.msra.mxu0 0.0
        %419 = vmatpush.msra.mxu0 0.0
        %420 = vmatpush.msra.mxu0 0.0
        %421 = vmatpush.msra.mxu0 0.0
        %422 = vmatpush.msra.mxu0 0.0
        %423 = vmatpush.msra.mxu0 0.0
        %424 = vmatpush.msra.mxu0 0.0
        %425 = vmatpush.msra.mxu0 %v313
        %426 = vmatpush.msra.mxu0 %v312
        %427 = vmatmul.f32.gmra.mxu0 %v316
        %v428 = vpop.f32.mrf.mxu0
        %v429 = vadd.f32 0.0, %v428
        %430 = vmatmul.f32.gmra.mxu0 %v319
        %v431 = vpop.f32.mrf.mxu0
        %v432 = vadd.f32 0.0, %v431
        %433 = vmatmul.f32.gmra.mxu0 %v322
        %v434 = vpop.f32.mrf.mxu0
        %v435 = vadd.f32 0.0, %v434
        %436 = vmatmul.f32.gmra.mxu0 %v325
        %v437 = vpop.f32.mrf.mxu0
        %v438 = vadd.f32 0.0, %v437
        %439 = vmatmul.f32.gmra.mxu0 %v328
        %v440 = vpop.f32.mrf.mxu0
        %v441 = vadd.f32 0.0, %v440
        %442 = vmatmul.f32.gmra.mxu0 %v331
        %v443 = vpop.f32.mrf.mxu0
        %v444 = vadd.f32 0.0, %v443
        %445 = vmatmul.f32.gmra.mxu0 %v334
        %v446 = vpop.f32.mrf.mxu0
        %v447 = vadd.f32 0.0, %v446
        %448 = vmatmul.f32.gmra.mxu0 %v337
        %v449 = vpop.f32.mrf.mxu0
        %v450 = vadd.f32 0.0, %v449
        %451 = vmatmul.f32.gmra.mxu0 %v340
        %v452 = vpop.f32.mrf.mxu0
        %v453 = vadd.f32 0.0, %v452
        %454 = vmatmul.f32.gmra.mxu0 %v343
        %v455 = vpop.f32.mrf.mxu0
        %v456 = vadd.f32 0.0, %v455
        %457 = vmatmul.f32.gmra.mxu0 %v346
        %v458 = vpop.f32.mrf.mxu0
        %v459 = vadd.f32 0.0, %v458
        %460 = vmatmul.f32.gmra.mxu0 %v349
        %v461 = vpop.f32.mrf.mxu0
        %v462 = vadd.f32 0.0, %v461
        %463 = vmatmul.f32.gmra.mxu0 %v352
        %v464 = vpop.f32.mrf.mxu0
        %v465 = vadd.f32 0.0, %v464
        %466 = vmatmul.f32.gmra.mxu0 %v355
        %v467 = vpop.f32.mrf.mxu0
        %v468 = vadd.f32 0.0, %v467
        %469 = vmatmul.f32.gmra.mxu0 %v358
        %v470 = vpop.f32.mrf.mxu0
        %v471 = vadd.f32 0.0, %v470
        %472 = vmatmul.f32.gmra.mxu0 %v361
        %v473 = vpop.f32.mrf.mxu0
        %v474 = vadd.f32 0.0, %v473
        %475 = vmatmul.f32.gmra.mxu0 %v364
        %v476 = vpop.f32.mrf.mxu0
        %v477 = vadd.f32 0.0, %v476
        %478 = vmatmul.f32.gmra.mxu0 %v367
        %v479 = vpop.f32.mrf.mxu0
        %v480 = vadd.f32 0.0, %v479
        %481 = vmatmul.f32.gmra.mxu0 %v370
        %v482 = vpop.f32.mrf.mxu0
        %v483 = vadd.f32 0.0, %v482
        %484 = vmatmul.f32.gmra.mxu0 %v373
        %v485 = vpop.f32.mrf.mxu0
        %v486 = vadd.f32 0.0, %v485
        %487 = vmatmul.f32.gmra.mxu0 %v376
        %v488 = vpop.f32.mrf.mxu0
        %v489 = vadd.f32 0.0, %v488
        %490 = vmatmul.f32.gmra.mxu0 %v379
        %v491 = vpop.f32.mrf.mxu0
        %v492 = vadd.f32 0.0, %v491
        %493 = vmatmul.f32.gmra.mxu0 %v382
        %v494 = vpop.f32.mrf.mxu0
        %v495 = vadd.f32 0.0, %v494
        %496 = vmatmul.f32.gmra.mxu0 %v385
        %v497 = vpop.f32.mrf.mxu0
        %v498 = vadd.f32 0.0, %v497
        %499 = vmatmul.f32.gmra.mxu0 %v388
        %v500 = vpop.f32.mrf.mxu0
        %v501 = vadd.f32 0.0, %v500
        %502 = vmatmul.f32.gmra.mxu0 %v391
        %v503 = vpop.f32.mrf.mxu0
        %v504 = vadd.f32 0.0, %v503
        %505 = vmatmul.f32.gmra.mxu0 %v394
        %v506 = vpop.f32.mrf.mxu0
        %v507 = vadd.f32 0.0, %v506
        %508 = vmatmul.f32.gmra.mxu0 %v397
        %v509 = vpop.f32.mrf.mxu0
        %v510 = vadd.f32 0.0, %v509
        %511 = vmatmul.f32.gmra.mxu0 %v400
        %v512 = vpop.f32.mrf.mxu0
        %v513 = vadd.f32 0.0, %v512
        %514 = vmatmul.f32.gmra.mxu0 %v403
        %v515 = vpop.f32.mrf.mxu0
        %v516 = vadd.f32 0.0, %v515
        %517 = vmatmul.f32.gmra.mxu0 %v406
        %v518 = vpop.f32.mrf.mxu0
        %v519 = vadd.f32 0.0, %v518
        %520 = vmatmul.f32.gmra.mxu0 %v409
        %v521 = vpop.f32.mrf.mxu0
        %v522 = vadd.f32 0.0, %v521
        %523 = vdwg.mxu0
        %524 = vst [vmem:[#allocation2] sm:$0xf] 0
        %525 = vst [vmem:[#allocation2 + $0x90] sm:$0xf] 0
        %526 = vst [vmem:[#allocation2 + $0x4] sm:$0xf] 0
        %527 = vst [vmem:[#allocation2 + $0x94] sm:$0xf] 0
        %v528 = vpack.c.bf16 %v429, %v429
        %v529 = vpack.c.bf16 %v432, %v432
        %530 = vst [vmem:[#allocation2 + $0x8] sm:$0xf] %v528
        %531 = vst [vmem:[#allocation2 + $0x98] sm:$0xf] %v529
        %v532 = vmul.f32 %v429, 0.516129
        %v533 = vmul.f32 %v432, 0.516129
        %v534 = vmul.f32 %v435, 0.48387095
        %v535 = vmul.f32 %v438, 0.48387095
        %v536 = vadd.f32 %v532, %v534
        %v537 = vadd.f32 %v533, %v535
        %v538 = vpack.c.bf16 %v536, %v536
        %v539 = vpack.c.bf16 %v537, %v537
        %540 = vst [vmem:[#allocation2 + $0xc] sm:$0xf] %v538
        %541 = vst [vmem:[#allocation2 + $0x9c] sm:$0xf] %v539
        %v542 = vmul.f32 %v429, 0.032258064
        %v543 = vmul.f32 %v432, 0.032258064
        %v544 = vmul.f32 %v435, 0.9677419
        %v545 = vmul.f32 %v438, 0.9677419
        %v546 = vadd.f32 %v542, %v544
        %v547 = vadd.f32 %v543, %v545
        %v548 = vpack.c.bf16 %v546, %v546
        %v549 = vpack.c.bf16 %v547, %v547
        %550 = vst [vmem:[#allocation2 + $0x10] sm:$0xf] %v548
        %551 = vst [vmem:[#allocation2 + $0xa0] sm:$0xf] %v549
        %v552 = vmul.f32 %v435, 0.5483871
        %v553 = vmul.f32 %v438, 0.5483871
        %v554 = vmul.f32 %v441, 0.4516129
        %v555 = vmul.f32 %v444, 0.4516129
        %v556 = vadd.f32 %v552, %v554
        %v557 = vadd.f32 %v553, %v555
        %v558 = vpack.c.bf16 %v556, %v556
        %v559 = vpack.c.bf16 %v557, %v557
        %560 = vst [vmem:[#allocation2 + $0x14] sm:$0xf] %v558
        %561 = vst [vmem:[#allocation2 + $0xa4] sm:$0xf] %v559
        %v562 = vmul.f32 %v435, 0.06451613
        %v563 = vmul.f32 %v438, 0.06451613
        %v564 = vmul.f32 %v441, 0.9354839
        %v565 = vmul.f32 %v444, 0.9354839
        %v566 = vadd.f32 %v562, %v564
        %v567 = vadd.f32 %v563, %v565
        %v568 = vpack.c.bf16 %v566, %v566
        %v569 = vpack.c.bf16 %v567, %v567
        %570 = vst [vmem:[#allocation2 + $0x18] sm:$0xf] %v568
        %571 = vst [vmem:[#allocation2 + $0xa8] sm:$0xf] %v569
        %v572 = vmul.f32 %v441, 0.58064514
        %v573 = vmul.f32 %v444, 0.58064514
        %v574 = vmul.f32 %v447, 0.41935483
        %v575 = vmul.f32 %v450, 0.41935483
        %v576 = vadd.f32 %v572, %v574
        %v577 = vadd.f32 %v573, %v575
        %v578 = vpack.c.bf16 %v576, %v576
        %v579 = vpack.c.bf16 %v577, %v577
        %580 = vst [vmem:[#allocation2 + $0x1c] sm:$0xf] %v578
        %581 = vst [vmem:[#allocation2 + $0xac] sm:$0xf] %v579
        %v582 = vmul.f32 %v441, 0.09677419
        %v583 = vmul.f32 %v444, 0.09677419
        %v584 = vmul.f32 %v447, 0.9032258
        %v585 = vmul.f32 %v450, 0.9032258
        %v586 = vadd.f32 %v582, %v584
        %v587 = vadd.f32 %v583, %v585
        %v588 = vpack.c.bf16 %v586, %v586
        %v589 = vpack.c.bf16 %v587, %v587
        %590 = vst [vmem:[#allocation2 + $0x20] sm:$0xf] %v588
        %591 = vst [vmem:[#allocation2 + $0xb0] sm:$0xf] %v589
        %v592 = vmul.f32 %v447, 0.61290324
        %v593 = vmul.f32 %v450, 0.61290324
        %v594 = vmul.f32 %v453, 0.38709676
        %v595 = vmul.f32 %v456, 0.38709676
        %v596 = vadd.f32 %v592, %v594
        %v597 = vadd.f32 %v593, %v595
        %v598 = vpack.c.bf16 %v596, %v596
        %v599 = vpack.c.bf16 %v597, %v597
        %600 = vst [vmem:[#allocation2 + $0x24] sm:$0xf] %v598
        %601 = vst [vmem:[#allocation2 + $0xb4] sm:$0xf] %v599
        %v602 = vmul.f32 %v447, 0.12903225
        %v603 = vmul.f32 %v450, 0.12903225
        %v604 = vmul.f32 %v453, 0.87096775
        %v605 = vmul.f32 %v456, 0.87096775
        %v606 = vadd.f32 %v602, %v604
        %v607 = vadd.f32 %v603, %v605
        %v608 = vpack.c.bf16 %v606, %v606
        %v609 = vpack.c.bf16 %v607, %v607
        %610 = vst [vmem:[#allocation2 + $0x28] sm:$0xf] %v608
        %611 = vst [vmem:[#allocation2 + $0xb8] sm:$0xf] %v609
        %v612 = vmul.f32 %v453, 0.6451613
        %v613 = vmul.f32 %v456, 0.6451613
        %v614 = vmul.f32 %v459, 0.3548387
        %v615 = vmul.f32 %v462, 0.3548387
        %v616 = vadd.f32 %v612, %v614
        %v617 = vadd.f32 %v613, %v615
        %v618 = vpack.c.bf16 %v616, %v616
        %v619 = vpack.c.bf16 %v617, %v617
        %620 = vst [vmem:[#allocation2 + $0x2c] sm:$0xf] %v618
        %621 = vst [vmem:[#allocation2 + $0xbc] sm:$0xf] %v619
        %v622 = vmul.f32 %v453, 0.16129032
        %v623 = vmul.f32 %v456, 0.16129032
        %v624 = vmul.f32 %v459, 0.83870965
        %v625 = vmul.f32 %v462, 0.83870965
        %v626 = vadd.f32 %v622, %v624
        %v627 = vadd.f32 %v623, %v625
        %v628 = vpack.c.bf16 %v626, %v626
        %v629 = vpack.c.bf16 %v627, %v627
        %630 = vst [vmem:[#allocation2 + $0x30] sm:$0xf] %v628
        %631 = vst [vmem:[#allocation2 + $0xc0] sm:$0xf] %v629
        %v632 = vmul.f32 %v459, 0.67741936
        %v633 = vmul.f32 %v462, 0.67741936
        %v634 = vmul.f32 %v465, 0.32258064
        %v635 = vmul.f32 %v468, 0.32258064
        %v636 = vadd.f32 %v632, %v634
        %v637 = vadd.f32 %v633, %v635
        %v638 = vpack.c.bf16 %v636, %v636
        %v639 = vpack.c.bf16 %v637, %v637
        %640 = vst [vmem:[#allocation2 + $0x34] sm:$0xf] %v638
        %641 = vst [vmem:[#allocation2 + $0xc4] sm:$0xf] %v639
        %v642 = vmul.f32 %v459, 0.19354838
        %v643 = vmul.f32 %v462, 0.19354838
        %v644 = vmul.f32 %v465, 0.8064516
        %v645 = vmul.f32 %v468, 0.8064516
        %v646 = vadd.f32 %v642, %v644
        %v647 = vadd.f32 %v643, %v645
        %v648 = vpack.c.bf16 %v646, %v646
        %v649 = vpack.c.bf16 %v647, %v647
        %650 = vst [vmem:[#allocation2 + $0x38] sm:$0xf] %v648
        %651 = vst [vmem:[#allocation2 + $0xc8] sm:$0xf] %v649
        %v652 = vmul.f32 %v465, 0.7096774
        %v653 = vmul.f32 %v468, 0.7096774
        %v654 = vmul.f32 %v471, 0.29032257
        %v655 = vmul.f32 %v474, 0.29032257
        %v656 = vadd.f32 %v652, %v654
        %v657 = vadd.f32 %v653, %v655
        %v658 = vpack.c.bf16 %v656, %v656
        %v659 = vpack.c.bf16 %v657, %v657
        %660 = vst [vmem:[#allocation2 + $0x3c] sm:$0xf] %v658
        %661 = vst [vmem:[#allocation2 + $0xcc] sm:$0xf] %v659
        %v662 = vmul.f32 %v465, 0.22580644
        %v663 = vmul.f32 %v468, 0.22580644
        %v664 = vmul.f32 %v471, 0.7741935
        %v665 = vmul.f32 %v474, 0.7741935
        %v666 = vadd.f32 %v662, %v664
        %v667 = vadd.f32 %v663, %v665
        %v668 = vpack.c.bf16 %v666, %v666
        %v669 = vpack.c.bf16 %v667, %v667
        %670 = vst [vmem:[#allocation2 + $0x40] sm:$0xf] %v668
        %671 = vst [vmem:[#allocation2 + $0xd0] sm:$0xf] %v669
        %v672 = vmul.f32 %v471, 0.7419355
        %v673 = vmul.f32 %v474, 0.7419355
        %v674 = vmul.f32 %v477, 0.2580645
        %v675 = vmul.f32 %v480, 0.2580645
        %v676 = vadd.f32 %v672, %v674
        %v677 = vadd.f32 %v673, %v675
        %v678 = vpack.c.bf16 %v676, %v676
        %v679 = vpack.c.bf16 %v677, %v677
        %680 = vst [vmem:[#allocation2 + $0x44] sm:$0xf] %v678
        %681 = vst [vmem:[#allocation2 + $0xd4] sm:$0xf] %v679
        %v682 = vmul.f32 %v471, 0.2580645
        %v683 = vmul.f32 %v474, 0.2580645
        %v684 = vmul.f32 %v477, 0.7419355
        %v685 = vmul.f32 %v480, 0.7419355
        %v686 = vadd.f32 %v682, %v684
        %v687 = vadd.f32 %v683, %v685
        %v688 = vpack.c.bf16 %v686, %v686
        %v689 = vpack.c.bf16 %v687, %v687
        %690 = vst [vmem:[#allocation2 + $0x48] sm:$0xf] %v688
        %691 = vst [vmem:[#allocation2 + $0xd8] sm:$0xf] %v689
        %v692 = vmul.f32 %v477, 0.7741935
        %v693 = vmul.f32 %v480, 0.7741935
        %v694 = vmul.f32 %v483, 0.22580644
        %v695 = vmul.f32 %v486, 0.22580644
        %v696 = vadd.f32 %v692, %v694
        %v697 = vadd.f32 %v693, %v695
        %v698 = vpack.c.bf16 %v696, %v696
        %v699 = vpack.c.bf16 %v697, %v697
        %700 = vst [vmem:[#allocation2 + $0x4c] sm:$0xf] %v698
        %701 = vst [vmem:[#allocation2 + $0xdc] sm:$0xf] %v699
        %v702 = vmul.f32 %v477, 0.29032257
        %v703 = vmul.f32 %v480, 0.29032257
        %v704 = vmul.f32 %v483, 0.7096774
        %v705 = vmul.f32 %v486, 0.7096774
        %v706 = vadd.f32 %v702, %v704
        %v707 = vadd.f32 %v703, %v705
        %v708 = vpack.c.bf16 %v706, %v706
        %v709 = vpack.c.bf16 %v707, %v707
        %710 = vst [vmem:[#allocation2 + $0x50] sm:$0xf] %v708
        %711 = vst [vmem:[#allocation2 + $0xe0] sm:$0xf] %v709
        %v712 = vmul.f32 %v483, 0.8064516
        %v713 = vmul.f32 %v486, 0.8064516
        %v714 = vmul.f32 %v489, 0.19354838
        %v715 = vmul.f32 %v492, 0.19354838
        %v716 = vadd.f32 %v712, %v714
        %v717 = vadd.f32 %v713, %v715
        %v718 = vpack.c.bf16 %v716, %v716
        %v719 = vpack.c.bf16 %v717, %v717
        %720 = vst [vmem:[#allocation2 + $0x54] sm:$0xf] %v718
        %721 = vst [vmem:[#allocation2 + $0xe4] sm:$0xf] %v719
        %v722 = vmul.f32 %v483, 0.32258064
        %v723 = vmul.f32 %v486, 0.32258064
        %v724 = vmul.f32 %v489, 0.67741936
        %v725 = vmul.f32 %v492, 0.67741936
        %v726 = vadd.f32 %v722, %v724
        %v727 = vadd.f32 %v723, %v725
        %v728 = vpack.c.bf16 %v726, %v726
        %v729 = vpack.c.bf16 %v727, %v727
        %730 = vst [vmem:[#allocation2 + $0x58] sm:$0xf] %v728
        %731 = vst [vmem:[#allocation2 + $0xe8] sm:$0xf] %v729
        %v732 = vmul.f32 %v489, 0.83870965
        %v733 = vmul.f32 %v492, 0.83870965
        %v734 = vmul.f32 %v495, 0.16129032
        %v735 = vmul.f32 %v498, 0.16129032
        %v736 = vadd.f32 %v732, %v734
        %v737 = vadd.f32 %v733, %v735
        %v738 = vpack.c.bf16 %v736, %v736
        %v739 = vpack.c.bf16 %v737, %v737
        %740 = vst [vmem:[#allocation2 + $0x5c] sm:$0xf] %v738
        %741 = vst [vmem:[#allocation2 + $0xec] sm:$0xf] %v739
        %v742 = vmul.f32 %v489, 0.3548387
        %v743 = vmul.f32 %v492, 0.3548387
        %v744 = vmul.f32 %v495, 0.6451613
        %v745 = vmul.f32 %v498, 0.6451613
        %v746 = vadd.f32 %v742, %v744
        %v747 = vadd.f32 %v743, %v745
        %v748 = vpack.c.bf16 %v746, %v746
        %v749 = vpack.c.bf16 %v747, %v747
        %750 = vst [vmem:[#allocation2 + $0x60] sm:$0xf] %v748
        %751 = vst [vmem:[#allocation2 + $0xf0] sm:$0xf] %v749
        %v752 = vmul.f32 %v495, 0.87096775
        %v753 = vmul.f32 %v498, 0.87096775
        %v754 = vmul.f32 %v501, 0.12903225
        %v755 = vmul.f32 %v504, 0.12903225
        %v756 = vadd.f32 %v752, %v754
        %v757 = vadd.f32 %v753, %v755
        %v758 = vpack.c.bf16 %v756, %v756
        %v759 = vpack.c.bf16 %v757, %v757
        %760 = vst [vmem:[#allocation2 + $0x64] sm:$0xf] %v758
        %761 = vst [vmem:[#allocation2 + $0xf4] sm:$0xf] %v759
        %v762 = vmul.f32 %v495, 0.38709676
        %v763 = vmul.f32 %v498, 0.38709676
        %v764 = vmul.f32 %v501, 0.61290324
        %v765 = vmul.f32 %v504, 0.61290324
        %v766 = vadd.f32 %v762, %v764
        %v767 = vadd.f32 %v763, %v765
        %v768 = vpack.c.bf16 %v766, %v766
        %v769 = vpack.c.bf16 %v767, %v767
        %770 = vst [vmem:[#allocation2 + $0x68] sm:$0xf] %v768
        %771 = vst [vmem:[#allocation2 + $0xf8] sm:$0xf] %v769
        %v772 = vmul.f32 %v501, 0.9032258
        %v773 = vmul.f32 %v504, 0.9032258
        %v774 = vmul.f32 %v507, 0.09677419
        %v775 = vmul.f32 %v510, 0.09677419
        %v776 = vadd.f32 %v772, %v774
        %v777 = vadd.f32 %v773, %v775
        %v778 = vpack.c.bf16 %v776, %v776
        %v779 = vpack.c.bf16 %v777, %v777
        %780 = vst [vmem:[#allocation2 + $0x6c] sm:$0xf] %v778
        %781 = vst [vmem:[#allocation2 + $0xfc] sm:$0xf] %v779
        %v782 = vmul.f32 %v501, 0.41935483
        %v783 = vmul.f32 %v504, 0.41935483
        %v784 = vmul.f32 %v507, 0.58064514
        %v785 = vmul.f32 %v510, 0.58064514
        %v786 = vadd.f32 %v782, %v784
        %v787 = vadd.f32 %v783, %v785
        %v788 = vpack.c.bf16 %v786, %v786
        %v789 = vpack.c.bf16 %v787, %v787
        %790 = vst [vmem:[#allocation2 + $0x70] sm:$0xf] %v788
        %791 = vst [vmem:[#allocation2 + $0x100] sm:$0xf] %v789
        %v792 = vmul.f32 %v507, 0.9354839
        %v793 = vmul.f32 %v510, 0.9354839
        %v794 = vmul.f32 %v513, 0.06451613
        %v795 = vmul.f32 %v516, 0.06451613
        %v796 = vadd.f32 %v792, %v794
        %v797 = vadd.f32 %v793, %v795
        %v798 = vpack.c.bf16 %v796, %v796
        %v799 = vpack.c.bf16 %v797, %v797
        %800 = vst [vmem:[#allocation2 + $0x74] sm:$0xf] %v798
        %801 = vst [vmem:[#allocation2 + $0x104] sm:$0xf] %v799
        %v802 = vmul.f32 %v507, 0.4516129
        %v803 = vmul.f32 %v510, 0.4516129
        %v804 = vmul.f32 %v513, 0.5483871
        %v805 = vmul.f32 %v516, 0.5483871
        %v806 = vadd.f32 %v802, %v804
        %v807 = vadd.f32 %v803, %v805
        %v808 = vpack.c.bf16 %v806, %v806
        %v809 = vpack.c.bf16 %v807, %v807
        %810 = vst [vmem:[#allocation2 + $0x78] sm:$0xf] %v808
        %811 = vst [vmem:[#allocation2 + $0x108] sm:$0xf] %v809
        %v812 = vmul.f32 %v513, 0.9677419
        %v813 = vmul.f32 %v516, 0.9677419
        %v814 = vmul.f32 %v519, 0.032258064
        %v815 = vmul.f32 %v522, 0.032258064
        %v816 = vadd.f32 %v812, %v814
        %v817 = vadd.f32 %v813, %v815
        %v818 = vpack.c.bf16 %v816, %v816
        %v819 = vpack.c.bf16 %v817, %v817
        %820 = vst [vmem:[#allocation2 + $0x7c] sm:$0xf] %v818
        %821 = vst [vmem:[#allocation2 + $0x10c] sm:$0xf] %v819
        %v822 = vmul.f32 %v513, 0.48387095
        %v823 = vmul.f32 %v516, 0.48387095
        %v824 = vmul.f32 %v519, 0.516129
        %v825 = vmul.f32 %v522, 0.516129
        %v826 = vadd.f32 %v822, %v824
        %v827 = vadd.f32 %v823, %v825
        %v828 = vpack.c.bf16 %v826, %v826
        %v829 = vpack.c.bf16 %v827, %v827
        %830 = vst [vmem:[#allocation2 + $0x80] sm:$0xf] %v828
        %831 = vst [vmem:[#allocation2 + $0x110] sm:$0xf] %v829
        %v832 = vpack.c.bf16 %v519, %v519
        %v833 = vpack.c.bf16 %v522, %v522
        %834 = vst [vmem:[#allocation2 + $0x84] sm:$0xf] %v832
        %835 = vst [vmem:[#allocation2 + $0x114] sm:$0xf] %v833
        %836 = vst [vmem:[#allocation2 + $0x88] sm:$0xf] 0
        %837 = vst [vmem:[#allocation2 + $0x118] sm:$0xf] 0
        %838 = vst [vmem:[#allocation2 + $0x8c] sm:$0xf] 0
        %839 = vst [vmem:[#allocation2 + $0x11c] sm:$0xf] 0
        %v840 = vld [vmem:[%s2] sm:$0xff]
        %v841 = vld [vmem:[%s2 + $0x8] sm:$0xff]
        %v842 = vld [vmem:[%s2 + $0x10] sm:$0xff]
        %v843 = vld [vmem:[%s2 + $0x18] sm:$0xff]
        %v844 = vld [vmem:[%s2 + $0x20] sm:$0xf]
        %v845 = vld [vmem:[#allocation2] sm:$0xff]
        %v846 = vld [vmem:[#allocation2 + $0x8] sm:$0xff]
        %v847 = vld [vmem:[#allocation2 + $0x10] sm:$0xff]
        %v848 = vld [vmem:[#allocation2 + $0x18] sm:$0xff]
        %v849 = vld [vmem:[#allocation2 + $0x20] sm:$0xff]
        %v850 = vld [vmem:[#allocation2 + $0x28] sm:$0xff]
        %v851 = vld [vmem:[#allocation2 + $0x30] sm:$0xff]
        %v852 = vld [vmem:[#allocation2 + $0x38] sm:$0xff]
        %v853 = vld [vmem:[#allocation2 + $0x40] sm:$0xff]
        %v854 = vld [vmem:[#allocation2 + $0x48] sm:$0xff]
        %v855 = vld [vmem:[#allocation2 + $0x50] sm:$0xff]
        %v856 = vld [vmem:[#allocation2 + $0x58] sm:$0xff]
        %v857 = vld [vmem:[#allocation2 + $0x60] sm:$0xff]
        %v858 = vld [vmem:[#allocation2 + $0x68] sm:$0xff]
        %v859 = vld [vmem:[#allocation2 + $0x70] sm:$0xff]
        %v860 = vld [vmem:[#allocation2 + $0x78] sm:$0xff]
        %v861 = vld [vmem:[#allocation2 + $0x80] sm:$0xff]
        %v862 = vld [vmem:[#allocation2 + $0x88] sm:$0xff]
        %v863 = vld [vmem:[#allocation2 + $0x90] sm:$0xff]
        %v864 = vld [vmem:[#allocation2 + $0x98] sm:$0xff]
        %v865 = vld [vmem:[#allocation2 + $0xa0] sm:$0xff]
        %v866 = vld [vmem:[#allocation2 + $0xa8] sm:$0xff]
        %v867 = vld [vmem:[#allocation2 + $0xb0] sm:$0xff]
        %v868 = vld [vmem:[#allocation2 + $0xb8] sm:$0xff]
        %v869 = vld [vmem:[#allocation2 + $0xc0] sm:$0xff]
        %v870 = vld [vmem:[#allocation2 + $0xc8] sm:$0xff]
        %v871 = vld [vmem:[#allocation2 + $0xd0] sm:$0xff]
        %v872 = vld [vmem:[#allocation2 + $0xd8] sm:$0xff]
        %v873 = vld [vmem:[#allocation2 + $0xe0] sm:$0xff]
        %v874 = vld [vmem:[#allocation2 + $0xe8] sm:$0xff]
        %v875 = vld [vmem:[#allocation2 + $0xf0] sm:$0xff]
        %v876 = vld [vmem:[#allocation2 + $0xf8] sm:$0xff]
        %v877 = vld [vmem:[#allocation2 + $0x100] sm:$0xff]
        %v878 = vld [vmem:[#allocation2 + $0x108] sm:$0xff]
        %v879 = vld [vmem:[#allocation2 + $0x110] sm:$0xff]
        %v880 = vld [vmem:[#allocation2 + $0x118] sm:$0xff]
        %v881 = vunpack.c.l.bf16 %v845
        %v882 = vunpack.c.h.bf16 %v845
        %v883 = vunpack.c.l.bf16 %v846
        %v884 = vunpack.c.h.bf16 %v846
        %v885 = vunpack.c.l.bf16 %v847
        %v886 = vunpack.c.h.bf16 %v847
        %v887 = vunpack.c.l.bf16 %v848
        %v888 = vunpack.c.h.bf16 %v848
        %v889 = vunpack.c.l.bf16 %v849
        %v890 = vunpack.c.h.bf16 %v849
        %v891 = vunpack.c.l.bf16 %v850
        %v892 = vunpack.c.h.bf16 %v850
        %v893 = vunpack.c.l.bf16 %v851
        %v894 = vunpack.c.h.bf16 %v851
        %v895 = vunpack.c.l.bf16 %v852
        %v896 = vunpack.c.h.bf16 %v852
        %v897 = vunpack.c.l.bf16 %v853
        %v898 = vunpack.c.h.bf16 %v853
        %v899 = vunpack.c.l.bf16 %v854
        %v900 = vunpack.c.h.bf16 %v854
        %v901 = vunpack.c.l.bf16 %v855
        %v902 = vunpack.c.h.bf16 %v855
        %v903 = vunpack.c.l.bf16 %v856
        %v904 = vunpack.c.h.bf16 %v856
        %v905 = vunpack.c.l.bf16 %v857
        %v906 = vunpack.c.h.bf16 %v857
        %v907 = vunpack.c.l.bf16 %v858
        %v908 = vunpack.c.h.bf16 %v858
        %v909 = vunpack.c.l.bf16 %v859
        %v910 = vunpack.c.h.bf16 %v859
        %v911 = vunpack.c.l.bf16 %v860
        %v912 = vunpack.c.h.bf16 %v860
        %v913 = vunpack.c.l.bf16 %v861
        %v914 = vunpack.c.h.bf16 %v861
        %v915 = vunpack.c.l.bf16 %v862
        %v916 = vunpack.c.h.bf16 %v862
        %v917 = vunpack.c.l.bf16 %v863
        %v918 = vunpack.c.h.bf16 %v863
        %v919 = vunpack.c.l.bf16 %v864
        %v920 = vunpack.c.h.bf16 %v864
        %v921 = vunpack.c.l.bf16 %v865
        %v922 = vunpack.c.h.bf16 %v865
        %v923 = vunpack.c.l.bf16 %v866
        %v924 = vunpack.c.h.bf16 %v866
        %v925 = vunpack.c.l.bf16 %v867
        %v926 = vunpack.c.h.bf16 %v867
        %v927 = vunpack.c.l.bf16 %v868
        %v928 = vunpack.c.h.bf16 %v868
        %v929 = vunpack.c.l.bf16 %v869
        %v930 = vunpack.c.h.bf16 %v869
        %v931 = vunpack.c.l.bf16 %v870
        %v932 = vunpack.c.h.bf16 %v870
        %v933 = vunpack.c.l.bf16 %v871
        %v934 = vunpack.c.h.bf16 %v871
        %v935 = vunpack.c.l.bf16 %v872
        %v936 = vunpack.c.h.bf16 %v872
        %v937 = vunpack.c.l.bf16 %v873
        %v938 = vunpack.c.h.bf16 %v873
        %v939 = vunpack.c.l.bf16 %v874
        %v940 = vunpack.c.h.bf16 %v874
        %v941 = vunpack.c.l.bf16 %v875
        %v942 = vunpack.c.h.bf16 %v875
        %v943 = vunpack.c.l.bf16 %v876
        %v944 = vunpack.c.h.bf16 %v876
        %v945 = vunpack.c.l.bf16 %v877
        %v946 = vunpack.c.h.bf16 %v877
        %v947 = vunpack.c.l.bf16 %v878
        %v948 = vunpack.c.h.bf16 %v878
        %v949 = vunpack.c.l.bf16 %v879
        %v950 = vunpack.c.h.bf16 %v879
        %v951 = vunpack.c.l.bf16 %v880
        %v952 = vunpack.c.h.bf16 %v880
        %v953 = vadd.f32 %v881, %v882
        %v954 = vadd.f32 %v953, %v883
        %v955 = vadd.f32 %v954, %v884
        %v956 = vadd.f32 %v955, %v885
        %v957 = vadd.f32 %v956, %v886
        %v958 = vadd.f32 %v957, %v887
        %v959 = vadd.f32 %v958, %v888
        %v960 = vadd.f32 %v959, %v889
        %v961 = vadd.f32 %v960, %v890
        %v962 = vadd.f32 %v961, %v891
        %v963 = vadd.f32 %v962, %v892
        %v964 = vadd.f32 %v963, %v893
        %v965 = vadd.f32 %v964, %v894
        %v966 = vadd.f32 %v965, %v895
        %v967 = vadd.f32 %v966, %v896
        %v968 = vadd.f32 %v967, %v897
        %v969 = vadd.f32 %v968, %v898
        %v970 = vadd.f32 %v969, %v899
        %v971 = vadd.f32 %v970, %v900
        %v972 = vadd.f32 %v971, %v901
        %v973 = vadd.f32 %v972, %v902
        %v974 = vadd.f32 %v973, %v903
        %v975 = vadd.f32 %v974, %v904
        %v976 = vadd.f32 %v975, %v905
        %v977 = vadd.f32 %v976, %v906
        %v978 = vadd.f32 %v977, %v907
        %v979 = vadd.f32 %v978, %v908
        %v980 = vadd.f32 %v979, %v909
        %v981 = vadd.f32 %v980, %v910
        %v982 = vadd.f32 %v981, %v911
        %v983 = vadd.f32 %v982, %v912
        %v984 = vadd.f32 %v983, %v913
        %v985 = vadd.f32 %v984, %v914
        %v986 = vadd.f32 %v985, %v915
        %v987 = vadd.f32 %v986, %v916
        %v988 = vadd.f32 %v987, %v917
        %v989 = vadd.f32 %v988, %v918
        %v990 = vadd.f32 %v989, %v919
        %v991 = vadd.f32 %v990, %v920
        %v992 = vadd.f32 %v991, %v921
        %v993 = vadd.f32 %v992, %v922
        %v994 = vadd.f32 %v993, %v923
        %v995 = vadd.f32 %v994, %v924
        %v996 = vadd.f32 %v995, %v925
        %v997 = vadd.f32 %v996, %v926
        %v998 = vadd.f32 %v997, %v927
        %v999 = vadd.f32 %v998, %v928
        %v1000 = vadd.f32 %v999, %v929
        %v1001 = vadd.f32 %v1000, %v930
        %v1002 = vadd.f32 %v1001, %v931
        %v1003 = vadd.f32 %v1002, %v932
        %v1004 = vadd.f32 %v1003, %v933
        %v1005 = vadd.f32 %v1004, %v934
        %v1006 = vadd.f32 %v1005, %v935
        %v1007 = vadd.f32 %v1006, %v936
        %v1008 = vadd.f32 %v1007, %v937
        %v1009 = vadd.f32 %v1008, %v938
        %v1010 = vadd.f32 %v1009, %v939
        %v1011 = vadd.f32 %v1010, %v940
        %v1012 = vadd.f32 %v1011, %v941
        %v1013 = vadd.f32 %v1012, %v942
        %v1014 = vadd.f32 %v1013, %v943
        %v1015 = vadd.f32 %v1014, %v944
        %v1016 = vadd.f32 %v1015, %v945
        %v1017 = vadd.f32 %v1016, %v946
        %v1018 = vadd.f32 %v1017, %v947
        %v1019 = vadd.f32 %v1018, %v948
        %v1020 = vadd.f32 %v1019, %v949
        %v1021 = vadd.f32 %v1020, %v950
        %v1022 = vadd.f32 %v1021, %v951
        %v1023 = vadd.f32 %v1022, %v952
        %1024 = vadd.xlane.f32.xlu0 %v1023
        %v1025 = vpop.xlane.xlu0 %1024
        %v1026 = vrot.slane %v1025, 4
        %v1027 = vadd.f32 %v1025, %v1026
        %v1028 = vrot.slane %v1027, 2
        %v1029 = vadd.f32 %v1027, %v1028
        %v1030 = vrot.slane %v1029, 1
        %v1031 = vadd.f32 %v1029, %v1030
        %s1032 = vtos %v1031
        %s1033 = smul.f32 %s1032, 0.00024414063
        %v1034 = vmul.f32 %v881, %v881
        %v1035 = vmul.f32 %v882, %v882
        %v1036 = vmul.f32 %v883, %v883
        %v1037 = vmul.f32 %v884, %v884
        %v1038 = vmul.f32 %v885, %v885
        %v1039 = vmul.f32 %v886, %v886
        %v1040 = vmul.f32 %v887, %v887
        %v1041 = vmul.f32 %v888, %v888
        %v1042 = vmul.f32 %v889, %v889
        %v1043 = vmul.f32 %v890, %v890
        %v1044 = vmul.f32 %v891, %v891
        %v1045 = vmul.f32 %v892, %v892
        %v1046 = vmul.f32 %v893, %v893
        %v1047 = vmul.f32 %v894, %v894
        %v1048 = vmul.f32 %v895, %v895
        %v1049 = vmul.f32 %v896, %v896
        %v1050 = vmul.f32 %v897, %v897
        %v1051 = vmul.f32 %v898, %v898
        %v1052 = vmul.f32 %v899, %v899
        %v1053 = vmul.f32 %v900, %v900
        %v1054 = vmul.f32 %v901, %v901
        %v1055 = vmul.f32 %v902, %v902
        %v1056 = vmul.f32 %v903, %v903
        %v1057 = vmul.f32 %v904, %v904
        %v1058 = vmul.f32 %v905, %v905
        %v1059 = vmul.f32 %v906, %v906
        %v1060 = vmul.f32 %v907, %v907
        %v1061 = vmul.f32 %v908, %v908
        %v1062 = vmul.f32 %v909, %v909
        %v1063 = vmul.f32 %v910, %v910
        %v1064 = vmul.f32 %v911, %v911
        %v1065 = vmul.f32 %v912, %v912
        %v1066 = vmul.f32 %v913, %v913
        %v1067 = vmul.f32 %v914, %v914
        %v1068 = vmul.f32 %v915, %v915
        %v1069 = vmul.f32 %v916, %v916
        %v1070 = vmul.f32 %v917, %v917
        %v1071 = vmul.f32 %v918, %v918
        %v1072 = vmul.f32 %v919, %v919
        %v1073 = vmul.f32 %v920, %v920
        %v1074 = vmul.f32 %v921, %v921
        %v1075 = vmul.f32 %v922, %v922
        %v1076 = vmul.f32 %v923, %v923
        %v1077 = vmul.f32 %v924, %v924
        %v1078 = vmul.f32 %v925, %v925
        %v1079 = vmul.f32 %v926, %v926
        %v1080 = vmul.f32 %v927, %v927
        %v1081 = vmul.f32 %v928, %v928
        %v1082 = vmul.f32 %v929, %v929
        %v1083 = vmul.f32 %v930, %v930
        %v1084 = vmul.f32 %v931, %v931
        %v1085 = vmul.f32 %v932, %v932
        %v1086 = vmul.f32 %v933, %v933
        %v1087 = vmul.f32 %v934, %v934
        %v1088 = vmul.f32 %v935, %v935
        %v1089 = vmul.f32 %v936, %v936
        %v1090 = vmul.f32 %v937, %v937
        %v1091 = vmul.f32 %v938, %v938
        %v1092 = vmul.f32 %v939, %v939
        %v1093 = vmul.f32 %v940, %v940
        %v1094 = vmul.f32 %v941, %v941
        %v1095 = vmul.f32 %v942, %v942
        %v1096 = vmul.f32 %v943, %v943
        %v1097 = vmul.f32 %v944, %v944
        %v1098 = vmul.f32 %v945, %v945
        %v1099 = vmul.f32 %v946, %v946
        %v1100 = vmul.f32 %v947, %v947
        %v1101 = vmul.f32 %v948, %v948
        %v1102 = vmul.f32 %v949, %v949
        %v1103 = vmul.f32 %v950, %v950
        %v1104 = vmul.f32 %v951, %v951
        %v1105 = vmul.f32 %v952, %v952
        %v1106 = vadd.f32 %v1034, %v1035
        %v1107 = vadd.f32 %v1106, %v1036
        %v1108 = vadd.f32 %v1107, %v1037
        %v1109 = vadd.f32 %v1108, %v1038
        %v1110 = vadd.f32 %v1109, %v1039
        %v1111 = vadd.f32 %v1110, %v1040
        %v1112 = vadd.f32 %v1111, %v1041
        %v1113 = vadd.f32 %v1112, %v1042
        %v1114 = vadd.f32 %v1113, %v1043
        %v1115 = vadd.f32 %v1114, %v1044
        %v1116 = vadd.f32 %v1115, %v1045
        %v1117 = vadd.f32 %v1116, %v1046
        %v1118 = vadd.f32 %v1117, %v1047
        %v1119 = vadd.f32 %v1118, %v1048
        %v1120 = vadd.f32 %v1119, %v1049
        %v1121 = vadd.f32 %v1120, %v1050
        %v1122 = vadd.f32 %v1121, %v1051
        %v1123 = vadd.f32 %v1122, %v1052
        %v1124 = vadd.f32 %v1123, %v1053
        %v1125 = vadd.f32 %v1124, %v1054
        %v1126 = vadd.f32 %v1125, %v1055
        %v1127 = vadd.f32 %v1126, %v1056
        %v1128 = vadd.f32 %v1127, %v1057
        %v1129 = vadd.f32 %v1128, %v1058
        %v1130 = vadd.f32 %v1129, %v1059
        %v1131 = vadd.f32 %v1130, %v1060
        %v1132 = vadd.f32 %v1131, %v1061
        %v1133 = vadd.f32 %v1132, %v1062
        %v1134 = vadd.f32 %v1133, %v1063
        %v1135 = vadd.f32 %v1134, %v1064
        %v1136 = vadd.f32 %v1135, %v1065
        %v1137 = vadd.f32 %v1136, %v1066
        %v1138 = vadd.f32 %v1137, %v1067
        %v1139 = vadd.f32 %v1138, %v1068
        %v1140 = vadd.f32 %v1139, %v1069
        %v1141 = vadd.f32 %v1140, %v1070
        %v1142 = vadd.f32 %v1141, %v1071
        %v1143 = vadd.f32 %v1142, %v1072
        %v1144 = vadd.f32 %v1143, %v1073
        %v1145 = vadd.f32 %v1144, %v1074
        %v1146 = vadd.f32 %v1145, %v1075
        %v1147 = vadd.f32 %v1146, %v1076
        %v1148 = vadd.f32 %v1147, %v1077
        %v1149 = vadd.f32 %v1148, %v1078
        %v1150 = vadd.f32 %v1149, %v1079
        %v1151 = vadd.f32 %v1150, %v1080
        %v1152 = vadd.f32 %v1151, %v1081
        %v1153 = vadd.f32 %v1152, %v1082
        %v1154 = vadd.f32 %v1153, %v1083
        %v1155 = vadd.f32 %v1154, %v1084
        %v1156 = vadd.f32 %v1155, %v1085
        %v1157 = vadd.f32 %v1156, %v1086
        %v1158 = vadd.f32 %v1157, %v1087
        %v1159 = vadd.f32 %v1158, %v1088
        %v1160 = vadd.f32 %v1159, %v1089
        %v1161 = vadd.f32 %v1160, %v1090
        %v1162 = vadd.f32 %v1161, %v1091
        %v1163 = vadd.f32 %v1162, %v1092
        %v1164 = vadd.f32 %v1163, %v1093
        %v1165 = vadd.f32 %v1164, %v1094
        %v1166 = vadd.f32 %v1165, %v1095
        %v1167 = vadd.f32 %v1166, %v1096
        %v1168 = vadd.f32 %v1167, %v1097
        %v1169 = vadd.f32 %v1168, %v1098
        %v1170 = vadd.f32 %v1169, %v1099
        %v1171 = vadd.f32 %v1170, %v1100
        %v1172 = vadd.f32 %v1171, %v1101
        %v1173 = vadd.f32 %v1172, %v1102
        %v1174 = vadd.f32 %v1173, %v1103
        %v1175 = vadd.f32 %v1174, %v1104
        %v1176 = vadd.f32 %v1175, %v1105
        %1177 = vadd.xlane.f32.xlu0 %v1176
        %v1178 = vpop.xlane.xlu0 %1177
        %v1179 = vrot.slane %v1178, 4
        %v1180 = vadd.f32 %v1178, %v1179
        %v1181 = vrot.slane %v1180, 2
        %v1182 = vadd.f32 %v1180, %v1181
        %v1183 = vrot.slane %v1182, 1
        %v1184 = vadd.f32 %v1182, %v1183
        %s1185 = vtos %v1184
        %s1186 = smul.f32 %s1185, 0.00024414063
        %s1187 = smul.f32 %s1033, %s1033
        %s1188 = ssub.f32 %s1186, %s1187
        %s1189 = smax.f32 %s1188, 0.0
        %s1190 = sadd.f32 %s1189, 1e-05
        %v1191 = vstv %s1190
        %v1192 = vrsqrt.pop %v1191
        %v1193 = vmul.f32 %v1192, %v1191
        %v1194 = vmul.f32 %v1193, %v1192
        %v1195 = vmul.f32 0.5, %v1194
        %v1196 = vsub.f32 1.5, %v1195
        %v1197 = vmul.f32 %v1192, %v1196
        %vm1198 = vweird.f32 %v1191
        %vm1199 = vweird.f32 %v1192
        %vm1200 = vmor %vm1198, %vm1199
        %v1201 = vsel %vm1200, %v1192, %v1197
        %s1202 = vtos %v1201
        %v1203 = vstv %s1202
        %v1204 = vmul.f32 %v881, %v1203
        %v1205 = vmul.f32 %v882, %v1203
        %v1206 = vmul.f32 %v883, %v1203
        %v1207 = vmul.f32 %v884, %v1203
        %v1208 = vmul.f32 %v885, %v1203
        %v1209 = vmul.f32 %v886, %v1203
        %v1210 = vmul.f32 %v887, %v1203
        %v1211 = vmul.f32 %v888, %v1203
        %v1212 = vmul.f32 %v889, %v1203
        %v1213 = vmul.f32 %v890, %v1203
        %v1214 = vmul.f32 %v891, %v1203
        %v1215 = vmul.f32 %v892, %v1203
        %v1216 = vmul.f32 %v893, %v1203
        %v1217 = vmul.f32 %v894, %v1203
        %v1218 = vmul.f32 %v895, %v1203
        %v1219 = vmul.f32 %v896, %v1203
        %v1220 = vmul.f32 %v897, %v1203
        %v1221 = vmul.f32 %v898, %v1203
        %v1222 = vmul.f32 %v899, %v1203
        %v1223 = vmul.f32 %v900, %v1203
        %v1224 = vmul.f32 %v901, %v1203
        %v1225 = vmul.f32 %v902, %v1203
        %v1226 = vmul.f32 %v903, %v1203
        %v1227 = vmul.f32 %v904, %v1203
        %v1228 = vmul.f32 %v905, %v1203
        %v1229 = vmul.f32 %v906, %v1203
        %v1230 = vmul.f32 %v907, %v1203
        %v1231 = vmul.f32 %v908, %v1203
        %v1232 = vmul.f32 %v909, %v1203
        %v1233 = vmul.f32 %v910, %v1203
        %v1234 = vmul.f32 %v911, %v1203
        %v1235 = vmul.f32 %v912, %v1203
        %v1236 = vmul.f32 %v913, %v1203
        %v1237 = vmul.f32 %v914, %v1203
        %v1238 = vmul.f32 %v915, %v1203
        %v1239 = vmul.f32 %v916, %v1203
        %v1240 = vmul.f32 %v917, %v1203
        %v1241 = vmul.f32 %v918, %v1203
        %v1242 = vmul.f32 %v919, %v1203
        %v1243 = vmul.f32 %v920, %v1203
        %v1244 = vmul.f32 %v921, %v1203
        %v1245 = vmul.f32 %v922, %v1203
        %v1246 = vmul.f32 %v923, %v1203
        %v1247 = vmul.f32 %v924, %v1203
        %v1248 = vmul.f32 %v925, %v1203
        %v1249 = vmul.f32 %v926, %v1203
        %v1250 = vmul.f32 %v927, %v1203
        %v1251 = vmul.f32 %v928, %v1203
        %v1252 = vmul.f32 %v929, %v1203
        %v1253 = vmul.f32 %v930, %v1203
        %v1254 = vmul.f32 %v931, %v1203
        %v1255 = vmul.f32 %v932, %v1203
        %v1256 = vmul.f32 %v933, %v1203
        %v1257 = vmul.f32 %v934, %v1203
        %v1258 = vmul.f32 %v935, %v1203
        %v1259 = vmul.f32 %v936, %v1203
        %v1260 = vmul.f32 %v937, %v1203
        %v1261 = vmul.f32 %v938, %v1203
        %v1262 = vmul.f32 %v939, %v1203
        %v1263 = vmul.f32 %v940, %v1203
        %v1264 = vmul.f32 %v941, %v1203
        %v1265 = vmul.f32 %v942, %v1203
        %v1266 = vmul.f32 %v943, %v1203
        %v1267 = vmul.f32 %v944, %v1203
        %v1268 = vmul.f32 %v945, %v1203
        %v1269 = vmul.f32 %v946, %v1203
        %v1270 = vmul.f32 %v947, %v1203
        %v1271 = vmul.f32 %v948, %v1203
        %v1272 = vmul.f32 %v949, %v1203
        %v1273 = vmul.f32 %v950, %v1203
        %v1274 = vmul.f32 %v951, %v1203
        %v1275 = vmul.f32 %v952, %v1203
        %s1276 = smul.f32 %s1033, %s1202
        %v1277 = vstv %s1276
        %v1278 = vmul.f32 %v1277, %v840
        %v1279 = vmul.f32 %v1277, %v841
        %v1280 = vmul.f32 %v1277, %v842
        %v1281 = vmul.f32 %v1277, %v843
        %v1282 = vmul.f32 %v1277, %v844
        %v1288 = vperm.slane %v1278, 0
        %v1289 = vperm.slane %v1278, 1
        %v1290 = vperm.slane %v1278, 2
        %v1291 = vperm.slane %v1278, 3
        %v1292 = vperm.slane %v1278, 4
        %v1293 = vperm.slane %v1278, 5
        %v1294 = vperm.slane %v1278, 6
        %v1295 = vperm.slane %v1278, 7
        %v1296 = vperm.slane %v1279, 0
        %v1297 = vperm.slane %v1279, 1
        %v1298 = vperm.slane %v1279, 2
        %v1299 = vperm.slane %v1279, 3
        %v1300 = vperm.slane %v1279, 4
        %v1301 = vperm.slane %v1279, 5
        %v1302 = vperm.slane %v1279, 6
        %v1303 = vperm.slane %v1279, 7
        %v1304 = vperm.slane %v1280, 0
        %v1305 = vperm.slane %v1280, 1
        %v1306 = vperm.slane %v1280, 2
        %v1307 = vperm.slane %v1280, 3
        %v1308 = vperm.slane %v1280, 4
        %v1309 = vperm.slane %v1280, 5
        %v1310 = vperm.slane %v1280, 6
        %v1311 = vperm.slane %v1280, 7
        %v1312 = vperm.slane %v1281, 0
        %v1313 = vperm.slane %v1281, 1
        %v1314 = vperm.slane %v1281, 2
        %v1315 = vperm.slane %v1281, 3
        %v1316 = vperm.slane %v1281, 4
        %v1317 = vperm.slane %v1281, 5
        %v1318 = vperm.slane %v1281, 6
        %v1319 = vperm.slane %v1281, 7
        %v1320 = vperm.slane %v1282, 0
        %v1321 = vperm.slane %v1282, 1
        %v1322 = vperm.slane %v1282, 2
        %v1323 = vperm.slane %v1282, 3
        %v1360 = vsub.f32 %v1204, %v1288
        %v1361 = vsub.f32 %v1205, %v1289
        %v1362 = vsub.f32 %v1206, %v1290
        %v1363 = vsub.f32 %v1207, %v1291
        %v1364 = vsub.f32 %v1208, %v1292
        %v1365 = vsub.f32 %v1209, %v1293
        %v1366 = vsub.f32 %v1210, %v1294
        %v1367 = vsub.f32 %v1211, %v1295
        %v1368 = vsub.f32 %v1212, %v1296
        %v1369 = vsub.f32 %v1213, %v1297
        %v1370 = vsub.f32 %v1214, %v1298
        %v1371 = vsub.f32 %v1215, %v1299
        %v1372 = vsub.f32 %v1216, %v1300
        %v1373 = vsub.f32 %v1217, %v1301
        %v1374 = vsub.f32 %v1218, %v1302
        %v1375 = vsub.f32 %v1219, %v1303
        %v1376 = vsub.f32 %v1220, %v1304
        %v1377 = vsub.f32 %v1221, %v1305
        %v1378 = vsub.f32 %v1222, %v1306
        %v1379 = vsub.f32 %v1223, %v1307
        %v1380 = vsub.f32 %v1224, %v1308
        %v1381 = vsub.f32 %v1225, %v1309
        %v1382 = vsub.f32 %v1226, %v1310
        %v1383 = vsub.f32 %v1227, %v1311
        %v1384 = vsub.f32 %v1228, %v1312
        %v1385 = vsub.f32 %v1229, %v1313
        %v1386 = vsub.f32 %v1230, %v1314
        %v1387 = vsub.f32 %v1231, %v1315
        %v1388 = vsub.f32 %v1232, %v1316
        %v1389 = vsub.f32 %v1233, %v1317
        %v1390 = vsub.f32 %v1234, %v1318
        %v1391 = vsub.f32 %v1235, %v1319
        %v1392 = vsub.f32 %v1236, %v1320
        %v1393 = vsub.f32 %v1237, %v1321
        %v1394 = vsub.f32 %v1238, %v1322
        %v1395 = vsub.f32 %v1239, %v1323
        %v1396 = vsub.f32 %v1240, %v1288
        %v1397 = vsub.f32 %v1241, %v1289
        %v1398 = vsub.f32 %v1242, %v1290
        %v1399 = vsub.f32 %v1243, %v1291
        %v1400 = vsub.f32 %v1244, %v1292
        %v1401 = vsub.f32 %v1245, %v1293
        %v1402 = vsub.f32 %v1246, %v1294
        %v1403 = vsub.f32 %v1247, %v1295
        %v1404 = vsub.f32 %v1248, %v1296
        %v1405 = vsub.f32 %v1249, %v1297
        %v1406 = vsub.f32 %v1250, %v1298
        %v1407 = vsub.f32 %v1251, %v1299
        %v1408 = vsub.f32 %v1252, %v1300
        %v1409 = vsub.f32 %v1253, %v1301
        %v1410 = vsub.f32 %v1254, %v1302
        %v1411 = vsub.f32 %v1255, %v1303
        %v1412 = vsub.f32 %v1256, %v1304
        %v1413 = vsub.f32 %v1257, %v1305
        %v1414 = vsub.f32 %v1258, %v1306
        %v1415 = vsub.f32 %v1259, %v1307
        %v1416 = vsub.f32 %v1260, %v1308
        %v1417 = vsub.f32 %v1261, %v1309
        %v1418 = vsub.f32 %v1262, %v1310
        %v1419 = vsub.f32 %v1263, %v1311
        %v1420 = vsub.f32 %v1264, %v1312
        %v1421 = vsub.f32 %v1265, %v1313
        %v1422 = vsub.f32 %v1266, %v1314
        %v1423 = vsub.f32 %v1267, %v1315
        %v1424 = vsub.f32 %v1268, %v1316
        %v1425 = vsub.f32 %v1269, %v1317
        %v1426 = vsub.f32 %v1270, %v1318
        %v1427 = vsub.f32 %v1271, %v1319
        %v1428 = vsub.f32 %v1272, %v1320
        %v1429 = vsub.f32 %v1273, %v1321
        %v1430 = vsub.f32 %v1274, %v1322
        %v1431 = vsub.f32 %v1275, %v1323
        %v1432 = vpack.c.bf16 %v1361, %v1360
        %v1433 = vpack.c.bf16 %v1363, %v1362
        %v1434 = vpack.c.bf16 %v1365, %v1364
        %v1435 = vpack.c.bf16 %v1367, %v1366
        %v1436 = vpack.c.bf16 %v1369, %v1368
        %v1437 = vpack.c.bf16 %v1371, %v1370
        %v1438 = vpack.c.bf16 %v1373, %v1372
        %v1439 = vpack.c.bf16 %v1375, %v1374
        %v1440 = vpack.c.bf16 %v1377, %v1376
        %v1441 = vpack.c.bf16 %v1379, %v1378
        %v1442 = vpack.c.bf16 %v1381, %v1380
        %v1443 = vpack.c.bf16 %v1383, %v1382
        %v1444 = vpack.c.bf16 %v1385, %v1384
        %v1445 = vpack.c.bf16 %v1387, %v1386
        %v1446 = vpack.c.bf16 %v1389, %v1388
        %v1447 = vpack.c.bf16 %v1391, %v1390
        %v1448 = vpack.c.bf16 %v1393, %v1392
        %v1449 = vpack.c.bf16 %v1395, %v1394
        %v1450 = vpack.c.bf16 %v1397, %v1396
        %v1451 = vpack.c.bf16 %v1399, %v1398
        %v1452 = vpack.c.bf16 %v1401, %v1400
        %v1453 = vpack.c.bf16 %v1403, %v1402
        %v1454 = vpack.c.bf16 %v1405, %v1404
        %v1455 = vpack.c.bf16 %v1407, %v1406
        %v1456 = vpack.c.bf16 %v1409, %v1408
        %v1457 = vpack.c.bf16 %v1411, %v1410
        %v1458 = vpack.c.bf16 %v1413, %v1412
        %v1459 = vpack.c.bf16 %v1415, %v1414
        %v1460 = vpack.c.bf16 %v1417, %v1416
        %v1461 = vpack.c.bf16 %v1419, %v1418
        %v1462 = vpack.c.bf16 %v1421, %v1420
        %v1463 = vpack.c.bf16 %v1423, %v1422
        %v1464 = vpack.c.bf16 %v1425, %v1424
        %v1465 = vpack.c.bf16 %v1427, %v1426
        %v1466 = vpack.c.bf16 %v1429, %v1428
        %v1467 = vpack.c.bf16 %v1431, %v1430
        %1468 = vst [vmem:[#allocation2] sm:$0xff] %v1432
        %1469 = vst [vmem:[#allocation2 + $0x8] sm:$0xff] %v1433
        %1470 = vst [vmem:[#allocation2 + $0x10] sm:$0xff] %v1434
        %1471 = vst [vmem:[#allocation2 + $0x18] sm:$0xff] %v1435
        %1472 = vst [vmem:[#allocation2 + $0x20] sm:$0xff] %v1436
        %1473 = vst [vmem:[#allocation2 + $0x28] sm:$0xff] %v1437
        %1474 = vst [vmem:[#allocation2 + $0x30] sm:$0xff] %v1438
        %1475 = vst [vmem:[#allocation2 + $0x38] sm:$0xff] %v1439
        %1476 = vst [vmem:[#allocation2 + $0x40] sm:$0xff] %v1440
        %1477 = vst [vmem:[#allocation2 + $0x48] sm:$0xff] %v1441
        %1478 = vst [vmem:[#allocation2 + $0x50] sm:$0xff] %v1442
        %1479 = vst [vmem:[#allocation2 + $0x58] sm:$0xff] %v1443
        %1480 = vst [vmem:[#allocation2 + $0x60] sm:$0xff] %v1444
        %1481 = vst [vmem:[#allocation2 + $0x68] sm:$0xff] %v1445
        %1482 = vst [vmem:[#allocation2 + $0x70] sm:$0xff] %v1446
        %1483 = vst [vmem:[#allocation2 + $0x78] sm:$0xff] %v1447
        %1484 = vst [vmem:[#allocation2 + $0x80] sm:$0xff] %v1448
        %1485 = vst [vmem:[#allocation2 + $0x88] sm:$0xff] %v1449
        %1486 = vst [vmem:[#allocation2 + $0x90] sm:$0xff] %v1450
        %1487 = vst [vmem:[#allocation2 + $0x98] sm:$0xff] %v1451
        %1488 = vst [vmem:[#allocation2 + $0xa0] sm:$0xff] %v1452
        %1489 = vst [vmem:[#allocation2 + $0xa8] sm:$0xff] %v1453
        %1490 = vst [vmem:[#allocation2 + $0xb0] sm:$0xff] %v1454
        %1491 = vst [vmem:[#allocation2 + $0xb8] sm:$0xff] %v1455
        %1492 = vst [vmem:[#allocation2 + $0xc0] sm:$0xff] %v1456
        %1493 = vst [vmem:[#allocation2 + $0xc8] sm:$0xff] %v1457
        %1494 = vst [vmem:[#allocation2 + $0xd0] sm:$0xff] %v1458
        %1495 = vst [vmem:[#allocation2 + $0xd8] sm:$0xff] %v1459
        %1496 = vst [vmem:[#allocation2 + $0xe0] sm:$0xff] %v1460
        %1497 = vst [vmem:[#allocation2 + $0xe8] sm:$0xff] %v1461
        %1498 = vst [vmem:[#allocation2 + $0xf0] sm:$0xff] %v1462
        %1499 = vst [vmem:[#allocation2 + $0xf8] sm:$0xff] %v1463
        %1500 = vst [vmem:[#allocation2 + $0x100] sm:$0xff] %v1464
        %1501 = vst [vmem:[#allocation2 + $0x108] sm:$0xff] %v1465
        %1502 = vst [vmem:[#allocation2 + $0x110] sm:$0xff] %v1466
        %1503 = vst [vmem:[#allocation2 + $0x118] sm:$0xff] %v1467
        %v1504 = vld [vmem:[#allocation2] sm:$0xff]
        %v1505 = vld [vmem:[#allocation2 + $0x8] sm:$0xff]
        %v1506 = vld [vmem:[#allocation2 + $0x10] sm:$0xff]
        %v1507 = vld [vmem:[#allocation2 + $0x18] sm:$0xff]
        %v1508 = vld [vmem:[#allocation2 + $0x20] sm:$0xff]
        %v1509 = vld [vmem:[#allocation2 + $0x28] sm:$0xff]
        %v1510 = vld [vmem:[#allocation2 + $0x30] sm:$0xff]
        %v1511 = vld [vmem:[#allocation2 + $0x38] sm:$0xff]
        %v1512 = vld [vmem:[#allocation2 + $0x40] sm:$0xff]
        %v1513 = vld [vmem:[#allocation2 + $0x48] sm:$0xff]
        %v1514 = vld [vmem:[#allocation2 + $0x50] sm:$0xff]
        %v1515 = vld [vmem:[#allocation2 + $0x58] sm:$0xff]
        %v1516 = vld [vmem:[#allocation2 + $0x60] sm:$0xff]
        %v1517 = vld [vmem:[#allocation2 + $0x68] sm:$0xff]
        %v1518 = vld [vmem:[#allocation2 + $0x70] sm:$0xff]
        %v1519 = vld [vmem:[#allocation2 + $0x78] sm:$0xff]
        %v1520 = vld [vmem:[#allocation2 + $0x80] sm:$0xff]
        %v1521 = vld [vmem:[#allocation2 + $0x88] sm:$0xff]
        %v1522 = vld [vmem:[#allocation2 + $0x90] sm:$0xff]
        %v1523 = vld [vmem:[#allocation2 + $0x98] sm:$0xff]
        %v1524 = vld [vmem:[#allocation2 + $0xa0] sm:$0xff]
        %v1525 = vld [vmem:[#allocation2 + $0xa8] sm:$0xff]
        %v1526 = vld [vmem:[#allocation2 + $0xb0] sm:$0xff]
        %v1527 = vld [vmem:[#allocation2 + $0xb8] sm:$0xff]
        %v1528 = vld [vmem:[#allocation2 + $0xc0] sm:$0xff]
        %v1529 = vld [vmem:[#allocation2 + $0xc8] sm:$0xff]
        %v1530 = vld [vmem:[#allocation2 + $0xd0] sm:$0xff]
        %v1531 = vld [vmem:[#allocation2 + $0xd8] sm:$0xff]
        %v1532 = vld [vmem:[#allocation2 + $0xe0] sm:$0xff]
        %v1533 = vld [vmem:[#allocation2 + $0xe8] sm:$0xff]
        %v1534 = vld [vmem:[#allocation2 + $0xf0] sm:$0xff]
        %v1535 = vld [vmem:[#allocation2 + $0xf8] sm:$0xff]
        %v1536 = vld [vmem:[#allocation2 + $0x100] sm:$0xff]
        %v1537 = vld [vmem:[#allocation2 + $0x108] sm:$0xff]
        %v1538 = vld [vmem:[#allocation2 + $0x110] sm:$0xff]
        %v1539 = vld [vmem:[#allocation2 + $0x118] sm:$0xff]
        %v1540 = vunpack.c.l.bf16 %v1504
        %v1541 = vunpack.c.h.bf16 %v1504
        %v1542 = vunpack.c.l.bf16 %v1505
        %v1543 = vunpack.c.h.bf16 %v1505
        %v1544 = vunpack.c.l.bf16 %v1506
        %v1545 = vunpack.c.h.bf16 %v1506
        %v1546 = vunpack.c.l.bf16 %v1507
        %v1547 = vunpack.c.h.bf16 %v1507
        %v1548 = vunpack.c.l.bf16 %v1508
        %v1549 = vunpack.c.h.bf16 %v1508
        %v1550 = vunpack.c.l.bf16 %v1509
        %v1551 = vunpack.c.h.bf16 %v1509
        %v1552 = vunpack.c.l.bf16 %v1510
        %v1553 = vunpack.c.h.bf16 %v1510
        %v1554 = vunpack.c.l.bf16 %v1511
        %v1555 = vunpack.c.h.bf16 %v1511
        %v1556 = vunpack.c.l.bf16 %v1512
        %v1557 = vunpack.c.h.bf16 %v1512
        %v1558 = vunpack.c.l.bf16 %v1513
        %v1559 = vunpack.c.h.bf16 %v1513
        %v1560 = vunpack.c.l.bf16 %v1514
        %v1561 = vunpack.c.h.bf16 %v1514
        %v1562 = vunpack.c.l.bf16 %v1515
        %v1563 = vunpack.c.h.bf16 %v1515
        %v1564 = vunpack.c.l.bf16 %v1516
        %v1565 = vunpack.c.h.bf16 %v1516
        %v1566 = vunpack.c.l.bf16 %v1517
        %v1567 = vunpack.c.h.bf16 %v1517
        %v1568 = vunpack.c.l.bf16 %v1518
        %v1569 = vunpack.c.h.bf16 %v1518
        %v1570 = vunpack.c.l.bf16 %v1519
        %v1571 = vunpack.c.h.bf16 %v1519
        %v1572 = vunpack.c.l.bf16 %v1520
        %v1573 = vunpack.c.h.bf16 %v1520
        %v1574 = vunpack.c.l.bf16 %v1521
        %v1575 = vunpack.c.h.bf16 %v1521
        %v1576 = vunpack.c.l.bf16 %v1522
        %v1577 = vunpack.c.h.bf16 %v1522
        %v1578 = vunpack.c.l.bf16 %v1523
        %v1579 = vunpack.c.h.bf16 %v1523
        %v1580 = vunpack.c.l.bf16 %v1524
        %v1581 = vunpack.c.h.bf16 %v1524
        %v1582 = vunpack.c.l.bf16 %v1525
        %v1583 = vunpack.c.h.bf16 %v1525
        %v1584 = vunpack.c.l.bf16 %v1526
        %v1585 = vunpack.c.h.bf16 %v1526
        %v1586 = vunpack.c.l.bf16 %v1527
        %v1587 = vunpack.c.h.bf16 %v1527
        %v1588 = vunpack.c.l.bf16 %v1528
        %v1589 = vunpack.c.h.bf16 %v1528
        %v1590 = vunpack.c.l.bf16 %v1529
        %v1591 = vunpack.c.h.bf16 %v1529
        %v1592 = vunpack.c.l.bf16 %v1530
        %v1593 = vunpack.c.h.bf16 %v1530
        %v1594 = vunpack.c.l.bf16 %v1531
        %v1595 = vunpack.c.h.bf16 %v1531
        %v1596 = vunpack.c.l.bf16 %v1532
        %v1597 = vunpack.c.h.bf16 %v1532
        %v1598 = vunpack.c.l.bf16 %v1533
        %v1599 = vunpack.c.h.bf16 %v1533
        %v1600 = vunpack.c.l.bf16 %v1534
        %v1601 = vunpack.c.h.bf16 %v1534
        %v1602 = vunpack.c.l.bf16 %v1535
        %v1603 = vunpack.c.h.bf16 %v1535
        %v1604 = vunpack.c.l.bf16 %v1536
        %v1605 = vunpack.c.h.bf16 %v1536
        %v1606 = vunpack.c.l.bf16 %v1537
        %v1607 = vunpack.c.h.bf16 %v1537
        %v1608 = vunpack.c.l.bf16 %v1538
        %v1609 = vunpack.c.h.bf16 %v1538
        %v1610 = vunpack.c.l.bf16 %v1539
        %v1611 = vunpack.c.h.bf16 %v1539
        %1612 = vrot.lane.b32.xlu0 %v1540, 127
        %v1613 = vpop.permute.xlu0 %1612
        %1614 = vrot.lane.b32.xlu0 %v1576, 127
        %v1615 = vpop.permute.xlu0 %1614
        %1616 = vrot.lane.b32.xlu0 %v1541, 127
        %v1617 = vpop.permute.xlu0 %1616
        %1618 = vrot.lane.b32.xlu0 %v1577, 127
        %v1619 = vpop.permute.xlu0 %1618
        %1620 = vrot.lane.b32.xlu0 %v1542, 127
        %v1621 = vpop.permute.xlu0 %1620
        %1622 = vrot.lane.b32.xlu0 %v1578, 127
        %v1623 = vpop.permute.xlu0 %1622
        %1624 = vrot.lane.b32.xlu0 %v1543, 127
        %v1625 = vpop.permute.xlu0 %1624
        %1626 = vrot.lane.b32.xlu0 %v1579, 127
        %v1627 = vpop.permute.xlu0 %1626
        %1628 = vrot.lane.b32.xlu0 %v1544, 127
        %v1629 = vpop.permute.xlu0 %1628
        %1630 = vrot.lane.b32.xlu0 %v1580, 127
        %v1631 = vpop.permute.xlu0 %1630
        %1632 = vrot.lane.b32.xlu0 %v1545, 127
        %v1633 = vpop.permute.xlu0 %1632
        %1634 = vrot.lane.b32.xlu0 %v1581, 127
        %v1635 = vpop.permute.xlu0 %1634
        %1636 = vrot.lane.b32.xlu0 %v1546, 127
        %v1637 = vpop.permute.xlu0 %1636
        %1638 = vrot.lane.b32.xlu0 %v1582, 127
        %v1639 = vpop.permute.xlu0 %1638
        %1640 = vrot.lane.b32.xlu0 %v1547, 127
        %v1641 = vpop.permute.xlu0 %1640
        %1642 = vrot.lane.b32.xlu0 %v1583, 127
        %v1643 = vpop.permute.xlu0 %1642
        %1644 = vrot.lane.b32.xlu0 %v1548, 127
        %v1645 = vpop.permute.xlu0 %1644
        %1646 = vrot.lane.b32.xlu0 %v1584, 127
        %v1647 = vpop.permute.xlu0 %1646
        %1648 = vrot.lane.b32.xlu0 %v1549, 127
        %v1649 = vpop.permute.xlu0 %1648
        %1650 = vrot.lane.b32.xlu0 %v1585, 127
        %v1651 = vpop.permute.xlu0 %1650
        %1652 = vrot.lane.b32.xlu0 %v1550, 127
        %v1653 = vpop.permute.xlu0 %1652
        %1654 = vrot.lane.b32.xlu0 %v1586, 127
        %v1655 = vpop.permute.xlu0 %1654
        %1656 = vrot.lane.b32.xlu0 %v1551, 127
        %v1657 = vpop.permute.xlu0 %1656
        %1658 = vrot.lane.b32.xlu0 %v1587, 127
        %v1659 = vpop.permute.xlu0 %1658
        %1660 = vrot.lane.b32.xlu0 %v1552, 127
        %v1661 = vpop.permute.xlu0 %1660
        %1662 = vrot.lane.b32.xlu0 %v1588, 127
        %v1663 = vpop.permute.xlu0 %1662
        %1664 = vrot.lane.b32.xlu0 %v1553, 127
        %v1665 = vpop.permute.xlu0 %1664
        %1666 = vrot.lane.b32.xlu0 %v1589, 127
        %v1667 = vpop.permute.xlu0 %1666
        %1668 = vrot.lane.b32.xlu0 %v1554, 127
        %v1669 = vpop.permute.xlu0 %1668
        %1670 = vrot.lane.b32.xlu0 %v1590, 127
        %v1671 = vpop.permute.xlu0 %1670
        %1672 = vrot.lane.b32.xlu0 %v1555, 127
        %v1673 = vpop.permute.xlu0 %1672
        %1674 = vrot.lane.b32.xlu0 %v1591, 127
        %v1675 = vpop.permute.xlu0 %1674
        %1676 = vrot.lane.b32.xlu0 %v1556, 127
        %v1677 = vpop.permute.xlu0 %1676
        %1678 = vrot.lane.b32.xlu0 %v1592, 127
        %v1679 = vpop.permute.xlu0 %1678
        %1680 = vrot.lane.b32.xlu0 %v1557, 127
        %v1681 = vpop.permute.xlu0 %1680
        %1682 = vrot.lane.b32.xlu0 %v1593, 127
        %v1683 = vpop.permute.xlu0 %1682
        %1684 = vrot.lane.b32.xlu0 %v1558, 127
        %v1685 = vpop.permute.xlu0 %1684
        %1686 = vrot.lane.b32.xlu0 %v1594, 127
        %v1687 = vpop.permute.xlu0 %1686
        %1688 = vrot.lane.b32.xlu0 %v1559, 127
        %v1689 = vpop.permute.xlu0 %1688
        %1690 = vrot.lane.b32.xlu0 %v1595, 127
        %v1691 = vpop.permute.xlu0 %1690
        %1692 = vrot.lane.b32.xlu0 %v1560, 127
        %v1693 = vpop.permute.xlu0 %1692
        %1694 = vrot.lane.b32.xlu0 %v1596, 127
        %v1695 = vpop.permute.xlu0 %1694
        %1696 = vrot.lane.b32.xlu0 %v1561, 127
        %v1697 = vpop.permute.xlu0 %1696
        %1698 = vrot.lane.b32.xlu0 %v1597, 127
        %v1699 = vpop.permute.xlu0 %1698
        %1700 = vrot.lane.b32.xlu0 %v1562, 127
        %v1701 = vpop.permute.xlu0 %1700
        %1702 = vrot.lane.b32.xlu0 %v1598, 127
        %v1703 = vpop.permute.xlu0 %1702
        %1704 = vrot.lane.b32.xlu0 %v1563, 127
        %v1705 = vpop.permute.xlu0 %1704
        %1706 = vrot.lane.b32.xlu0 %v1599, 127
        %v1707 = vpop.permute.xlu0 %1706
        %1708 = vrot.lane.b32.xlu0 %v1564, 127
        %v1709 = vpop.permute.xlu0 %1708
        %1710 = vrot.lane.b32.xlu0 %v1600, 127
        %v1711 = vpop.permute.xlu0 %1710
        %1712 = vrot.lane.b32.xlu0 %v1565, 127
        %v1713 = vpop.permute.xlu0 %1712
        %1714 = vrot.lane.b32.xlu0 %v1601, 127
        %v1715 = vpop.permute.xlu0 %1714
        %1716 = vrot.lane.b32.xlu0 %v1566, 127
        %v1717 = vpop.permute.xlu0 %1716
        %1718 = vrot.lane.b32.xlu0 %v1602, 127
        %v1719 = vpop.permute.xlu0 %1718
        %1720 = vrot.lane.b32.xlu0 %v1567, 127
        %v1721 = vpop.permute.xlu0 %1720
        %1722 = vrot.lane.b32.xlu0 %v1603, 127
        %v1723 = vpop.permute.xlu0 %1722
        %1724 = vrot.lane.b32.xlu0 %v1568, 127
        %v1725 = vpop.permute.xlu0 %1724
        %1726 = vrot.lane.b32.xlu0 %v1604, 127
        %v1727 = vpop.permute.xlu0 %1726
        %1728 = vrot.lane.b32.xlu0 %v1569, 127
        %v1729 = vpop.permute.xlu0 %1728
        %1730 = vrot.lane.b32.xlu0 %v1605, 127
        %v1731 = vpop.permute.xlu0 %1730
        %1732 = vrot.lane.b32.xlu0 %v1570, 127
        %v1733 = vpop.permute.xlu0 %1732
        %1734 = vrot.lane.b32.xlu0 %v1606, 127
        %v1735 = vpop.permute.xlu0 %1734
        %1736 = vrot.lane.b32.xlu0 %v1571, 127
        %v1737 = vpop.permute.xlu0 %1736
        %1738 = vrot.lane.b32.xlu0 %v1607, 127
        %v1739 = vpop.permute.xlu0 %1738
        %1740 = vrot.lane.b32.xlu0 %v1572, 127
        %v1741 = vpop.permute.xlu0 %1740
        %1742 = vrot.lane.b32.xlu0 %v1608, 127
        %v1743 = vpop.permute.xlu0 %1742
        %1744 = vrot.lane.b32.xlu0 %v1573, 127
        %v1745 = vpop.permute.xlu0 %1744
        %1746 = vrot.lane.b32.xlu0 %v1609, 127
        %v1747 = vpop.permute.xlu0 %1746
        %1748 = vrot.lane.b32.xlu0 %v1574, 127
        %v1749 = vpop.permute.xlu0 %1748
        %1750 = vrot.lane.b32.xlu0 %v1610, 127
        %v1751 = vpop.permute.xlu0 %1750
        %1752 = vrot.lane.b32.xlu0 %v1575, 127
        %v1753 = vpop.permute.xlu0 %1752
        %1754 = vrot.lane.b32.xlu0 %v1611, 127
        %v1755 = vpop.permute.xlu0 %1754
        %v1756 = vlaneseq
        %v1757 = vand.u32 %v1756, 127
        %vm1758 = vcmp.lt.s32.totalorder %v1757, 127
        %v1759 = vsel %vm1758, %v1749, %v1753
        %v1760 = vsel %vm1758, %v1751, %v1755
        %v1761 = vsel %vm1758, %v1745, %v1749
        %v1762 = vsel %vm1758, %v1747, %v1751
        %v1763 = vsel %vm1758, %v1741, %v1745
        %v1764 = vsel %vm1758, %v1743, %v1747
        %v1765 = vsel %vm1758, %v1737, %v1741
        %v1766 = vsel %vm1758, %v1739, %v1743
        %v1767 = vsel %vm1758, %v1733, %v1737
        %v1768 = vsel %vm1758, %v1735, %v1739
        %v1769 = vsel %vm1758, %v1729, %v1733
        %v1770 = vsel %vm1758, %v1731, %v1735
        %v1771 = vsel %vm1758, %v1725, %v1729
        %v1772 = vsel %vm1758, %v1727, %v1731
        %v1773 = vsel %vm1758, %v1721, %v1725
        %v1774 = vsel %vm1758, %v1723, %v1727
        %v1775 = vsel %vm1758, %v1717, %v1721
        %v1776 = vsel %vm1758, %v1719, %v1723
        %v1777 = vsel %vm1758, %v1713, %v1717
        %v1778 = vsel %vm1758, %v1715, %v1719
        %v1779 = vsel %vm1758, %v1709, %v1713
        %v1780 = vsel %vm1758, %v1711, %v1715
        %v1781 = vsel %vm1758, %v1705, %v1709
        %v1782 = vsel %vm1758, %v1707, %v1711
        %v1783 = vsel %vm1758, %v1701, %v1705
        %v1784 = vsel %vm1758, %v1703, %v1707
        %v1785 = vsel %vm1758, %v1697, %v1701
        %v1786 = vsel %vm1758, %v1699, %v1703
        %v1787 = vsel %vm1758, %v1693, %v1697
        %v1788 = vsel %vm1758, %v1695, %v1699
        %v1789 = vsel %vm1758, %v1689, %v1693
        %v1790 = vsel %vm1758, %v1691, %v1695
        %v1791 = vsel %vm1758, %v1685, %v1689
        %v1792 = vsel %vm1758, %v1687, %v1691
        %v1793 = vsel %vm1758, %v1681, %v1685
        %v1794 = vsel %vm1758, %v1683, %v1687
        %v1795 = vsel %vm1758, %v1677, %v1681
        %v1796 = vsel %vm1758, %v1679, %v1683
        %v1797 = vsel %vm1758, %v1673, %v1677
        %v1798 = vsel %vm1758, %v1675, %v1679
        %v1799 = vsel %vm1758, %v1669, %v1673
        %v1800 = vsel %vm1758, %v1671, %v1675
        %v1801 = vsel %vm1758, %v1665, %v1669
        %v1802 = vsel %vm1758, %v1667, %v1671
        %v1803 = vsel %vm1758, %v1661, %v1665
        %v1804 = vsel %vm1758, %v1663, %v1667
        %v1805 = vsel %vm1758, %v1657, %v1661
        %v1806 = vsel %vm1758, %v1659, %v1663
        %v1807 = vsel %vm1758, %v1653, %v1657
        %v1808 = vsel %vm1758, %v1655, %v1659
        %v1809 = vsel %vm1758, %v1649, %v1653
        %v1810 = vsel %vm1758, %v1651, %v1655
        %v1811 = vsel %vm1758, %v1645, %v1649
        %v1812 = vsel %vm1758, %v1647, %v1651
        %v1813 = vsel %vm1758, %v1641, %v1645
        %v1814 = vsel %vm1758, %v1643, %v1647
        %v1815 = vsel %vm1758, %v1637, %v1641
        %v1816 = vsel %vm1758, %v1639, %v1643
        %v1817 = vsel %vm1758, %v1633, %v1637
        %v1818 = vsel %vm1758, %v1635, %v1639
        %v1819 = vsel %vm1758, %v1629, %v1633
        %v1820 = vsel %vm1758, %v1631, %v1635
        %v1821 = vsel %vm1758, %v1625, %v1629
        %v1822 = vsel %vm1758, %v1627, %v1631
        %v1823 = vsel %vm1758, %v1621, %v1625
        %v1824 = vsel %vm1758, %v1623, %v1627
        %v1825 = vsel %vm1758, %v1617, %v1621
        %v1826 = vsel %vm1758, %v1619, %v1623
        %v1827 = vsel %vm1758, %v1613, %v1617
        %v1828 = vsel %vm1758, %v1615, %v1619
        %v1829 = vsel %vm1758, %v1753, %v1613
        %v1830 = vsel %vm1758, %v1755, %v1615
        %v1831 = vpack.c.bf16 %v1825, %v1827
        %v1832 = vpack.c.bf16 %v1821, %v1823
        %v1833 = vpack.c.bf16 %v1817, %v1819
        %v1834 = vpack.c.bf16 %v1813, %v1815
        %v1835 = vpack.c.bf16 %v1809, %v1811
        %v1836 = vpack.c.bf16 %v1805, %v1807
        %v1837 = vpack.c.bf16 %v1801, %v1803
        %v1838 = vpack.c.bf16 %v1797, %v1799
        %v1839 = vpack.c.bf16 %v1793, %v1795
        %v1840 = vpack.c.bf16 %v1789, %v1791
        %v1841 = vpack.c.bf16 %v1785, %v1787
        %v1842 = vpack.c.bf16 %v1781, %v1783
        %v1843 = vpack.c.bf16 %v1777, %v1779
        %v1844 = vpack.c.bf16 %v1773, %v1775
        %v1845 = vpack.c.bf16 %v1769, %v1771
        %v1846 = vpack.c.bf16 %v1765, %v1767
        %v1847 = vpack.c.bf16 %v1761, %v1763
        %v1848 = vpack.c.bf16 %v1829, %v1759
        %v1849 = vpack.c.bf16 %v1826, %v1828
        %v1850 = vpack.c.bf16 %v1822, %v1824
        %v1851 = vpack.c.bf16 %v1818, %v1820
        %v1852 = vpack.c.bf16 %v1814, %v1816
        %v1853 = vpack.c.bf16 %v1810, %v1812
        %v1854 = vpack.c.bf16 %v1806, %v1808
        %v1855 = vpack.c.bf16 %v1802, %v1804
        %v1856 = vpack.c.bf16 %v1798, %v1800
        %v1857 = vpack.c.bf16 %v1794, %v1796
        %v1858 = vpack.c.bf16 %v1790, %v1792
        %v1859 = vpack.c.bf16 %v1786, %v1788
        %v1860 = vpack.c.bf16 %v1782, %v1784
        %v1861 = vpack.c.bf16 %v1778, %v1780
        %v1862 = vpack.c.bf16 %v1774, %v1776
        %v1863 = vpack.c.bf16 %v1770, %v1772
        %v1864 = vpack.c.bf16 %v1766, %v1768
        %v1865 = vpack.c.bf16 %v1762, %v1764
        %v1866 = vpack.c.bf16 %v1830, %v1760
        %1867 = vst [vmem:[#allocation2 + $0x120] sm:$0xff] %v1831
        %1868 = vst [vmem:[#allocation2 + $0x128] sm:$0xff] %v1832
        %1869 = vst [vmem:[#allocation2 + $0x130] sm:$0xff] %v1833
        %1870 = vst [vmem:[#allocation2 + $0x138] sm:$0xff] %v1834
        %1871 = vst [vmem:[#allocation2 + $0x140] sm:$0xff] %v1835
        %1872 = vst [vmem:[#allocation2 + $0x148] sm:$0xff] %v1836
        %1873 = vst [vmem:[#allocation2 + $0x150] sm:$0xff] %v1837
        %1874 = vst [vmem:[#allocation2 + $0x158] sm:$0xff] %v1838
        %1875 = vst [vmem:[#allocation2 + $0x160] sm:$0xff] %v1839
        %1876 = vst [vmem:[#allocation2 + $0x168] sm:$0xff] %v1840
        %1877 = vst [vmem:[#allocation2 + $0x170] sm:$0xff] %v1841
        %1878 = vst [vmem:[#allocation2 + $0x178] sm:$0xff] %v1842
        %1879 = vst [vmem:[#allocation2 + $0x180] sm:$0xff] %v1843
        %1880 = vst [vmem:[#allocation2 + $0x188] sm:$0xff] %v1844
        %1881 = vst [vmem:[#allocation2 + $0x190] sm:$0xff] %v1845
        %1882 = vst [vmem:[#allocation2 + $0x198] sm:$0xff] %v1846
        %1883 = vst [vmem:[#allocation2 + $0x1a0] sm:$0xff] %v1847
        %1884 = vst [vmem:[#allocation2 + $0x1a8] sm:$0xff] %v1848
        %1885 = vst [vmem:[#allocation2 + $0x1b0] sm:$0xff] %v1849
        %1886 = vst [vmem:[#allocation2 + $0x1b8] sm:$0xff] %v1850
        %1887 = vst [vmem:[#allocation2 + $0x1c0] sm:$0xff] %v1851
        %1888 = vst [vmem:[#allocation2 + $0x1c8] sm:$0xff] %v1852
        %1889 = vst [vmem:[#allocation2 + $0x1d0] sm:$0xff] %v1853
        %1890 = vst [vmem:[#allocation2 + $0x1d8] sm:$0xff] %v1854
        %1891 = vst [vmem:[#allocation2 + $0x1e0] sm:$0xff] %v1855
        %1892 = vst [vmem:[#allocation2 + $0x1e8] sm:$0xff] %v1856
        %1893 = vst [vmem:[#allocation2 + $0x1f0] sm:$0xff] %v1857
        %1894 = vst [vmem:[#allocation2 + $0x1f8] sm:$0xff] %v1858
        %1895 = vst [vmem:[#allocation2 + $0x200] sm:$0xff] %v1859
        %1896 = vst [vmem:[#allocation2 + $0x208] sm:$0xff] %v1860
        %1897 = vst [vmem:[#allocation2 + $0x210] sm:$0xff] %v1861
        %1898 = vst [vmem:[#allocation2 + $0x218] sm:$0xff] %v1862
        %1899 = vst [vmem:[#allocation2 + $0x220] sm:$0xff] %v1863
        %1900 = vst [vmem:[#allocation2 + $0x228] sm:$0xff] %v1864
        %1901 = vst [vmem:[#allocation2 + $0x230] sm:$0xff] %v1865
        %1902 = vst [vmem:[#allocation2 + $0x238] sm:$0xff] %v1866
        %1903 = vrot.lane.b32.xlu0 %v1540, 126
        %v1904 = vpop.permute.xlu0 %1903
        %1905 = vrot.lane.b32.xlu0 %v1576, 126
        %v1906 = vpop.permute.xlu0 %1905
        %1907 = vrot.lane.b32.xlu0 %v1541, 126
        %v1908 = vpop.permute.xlu0 %1907
        %1909 = vrot.lane.b32.xlu0 %v1577, 126
        %v1910 = vpop.permute.xlu0 %1909
        %1911 = vrot.lane.b32.xlu0 %v1542, 126
        %v1912 = vpop.permute.xlu0 %1911
        %1913 = vrot.lane.b32.xlu0 %v1578, 126
        %v1914 = vpop.permute.xlu0 %1913
        %1915 = vrot.lane.b32.xlu0 %v1543, 126
        %v1916 = vpop.permute.xlu0 %1915
        %1917 = vrot.lane.b32.xlu0 %v1579, 126
        %v1918 = vpop.permute.xlu0 %1917
        %1919 = vrot.lane.b32.xlu0 %v1544, 126
        %v1920 = vpop.permute.xlu0 %1919
        %1921 = vrot.lane.b32.xlu0 %v1580, 126
        %v1922 = vpop.permute.xlu0 %1921
        %1923 = vrot.lane.b32.xlu0 %v1545, 126
        %v1924 = vpop.permute.xlu0 %1923
        %1925 = vrot.lane.b32.xlu0 %v1581, 126
        %v1926 = vpop.permute.xlu0 %1925
        %1927 = vrot.lane.b32.xlu0 %v1546, 126
        %v1928 = vpop.permute.xlu0 %1927
        %1929 = vrot.lane.b32.xlu0 %v1582, 126
        %v1930 = vpop.permute.xlu0 %1929
        %1931 = vrot.lane.b32.xlu0 %v1547, 126
        %v1932 = vpop.permute.xlu0 %1931
        %1933 = vrot.lane.b32.xlu0 %v1583, 126
        %v1934 = vpop.permute.xlu0 %1933
        %1935 = vrot.lane.b32.xlu0 %v1548, 126
        %v1936 = vpop.permute.xlu0 %1935
        %1937 = vrot.lane.b32.xlu0 %v1584, 126
        %v1938 = vpop.permute.xlu0 %1937
        %1939 = vrot.lane.b32.xlu0 %v1549, 126
        %v1940 = vpop.permute.xlu0 %1939
        %1941 = vrot.lane.b32.xlu0 %v1585, 126
        %v1942 = vpop.permute.xlu0 %1941
        %1943 = vrot.lane.b32.xlu0 %v1550, 126
        %v1944 = vpop.permute.xlu0 %1943
        %1945 = vrot.lane.b32.xlu0 %v1586, 126
        %v1946 = vpop.permute.xlu0 %1945
        %1947 = vrot.lane.b32.xlu0 %v1551, 126
        %v1948 = vpop.permute.xlu0 %1947
        %1949 = vrot.lane.b32.xlu0 %v1587, 126
        %v1950 = vpop.permute.xlu0 %1949
        %1951 = vrot.lane.b32.xlu0 %v1552, 126
        %v1952 = vpop.permute.xlu0 %1951
        %1953 = vrot.lane.b32.xlu0 %v1588, 126
        %v1954 = vpop.permute.xlu0 %1953
        %1955 = vrot.lane.b32.xlu0 %v1553, 126
        %v1956 = vpop.permute.xlu0 %1955
        %1957 = vrot.lane.b32.xlu0 %v1589, 126
        %v1958 = vpop.permute.xlu0 %1957
        %1959 = vrot.lane.b32.xlu0 %v1554, 126
        %v1960 = vpop.permute.xlu0 %1959
        %1961 = vrot.lane.b32.xlu0 %v1590, 126
        %v1962 = vpop.permute.xlu0 %1961
        %1963 = vrot.lane.b32.xlu0 %v1555, 126
        %v1964 = vpop.permute.xlu0 %1963
        %1965 = vrot.lane.b32.xlu0 %v1591, 126
        %v1966 = vpop.permute.xlu0 %1965
        %1967 = vrot.lane.b32.xlu0 %v1556, 126
        %v1968 = vpop.permute.xlu0 %1967
        %1969 = vrot.lane.b32.xlu0 %v1592, 126
        %v1970 = vpop.permute.xlu0 %1969
        %1971 = vrot.lane.b32.xlu0 %v1557, 126
        %v1972 = vpop.permute.xlu0 %1971
        %1973 = vrot.lane.b32.xlu0 %v1593, 126
        %v1974 = vpop.permute.xlu0 %1973
        %1975 = vrot.lane.b32.xlu0 %v1558, 126
        %v1976 = vpop.permute.xlu0 %1975
        %1977 = vrot.lane.b32.xlu0 %v1594, 126
        %v1978 = vpop.permute.xlu0 %1977
        %1979 = vrot.lane.b32.xlu0 %v1559, 126
        %v1980 = vpop.permute.xlu0 %1979
        %1981 = vrot.lane.b32.xlu0 %v1595, 126
        %v1982 = vpop.permute.xlu0 %1981
        %1983 = vrot.lane.b32.xlu0 %v1560, 126
        %v1984 = vpop.permute.xlu0 %1983
        %1985 = vrot.lane.b32.xlu0 %v1596, 126
        %v1986 = vpop.permute.xlu0 %1985
        %1987 = vrot.lane.b32.xlu0 %v1561, 126
        %v1988 = vpop.permute.xlu0 %1987
        %1989 = vrot.lane.b32.xlu0 %v1597, 126
        %v1990 = vpop.permute.xlu0 %1989
        %1991 = vrot.lane.b32.xlu0 %v1562, 126
        %v1992 = vpop.permute.xlu0 %1991
        %1993 = vrot.lane.b32.xlu0 %v1598, 126
        %v1994 = vpop.permute.xlu0 %1993
        %1995 = vrot.lane.b32.xlu0 %v1563, 126
        %v1996 = vpop.permute.xlu0 %1995
        %1997 = vrot.lane.b32.xlu0 %v1599, 126
        %v1998 = vpop.permute.xlu0 %1997
        %1999 = vrot.lane.b32.xlu0 %v1564, 126
        %v2000 = vpop.permute.xlu0 %1999
        %2001 = vrot.lane.b32.xlu0 %v1600, 126
        %v2002 = vpop.permute.xlu0 %2001
        %2003 = vrot.lane.b32.xlu0 %v1565, 126
        %v2004 = vpop.permute.xlu0 %2003
        %2005 = vrot.lane.b32.xlu0 %v1601, 126
        %v2006 = vpop.permute.xlu0 %2005
        %2007 = vrot.lane.b32.xlu0 %v1566, 126
        %v2008 = vpop.permute.xlu0 %2007
        %2009 = vrot.lane.b32.xlu0 %v1602, 126
        %v2010 = vpop.permute.xlu0 %2009
        %2011 = vrot.lane.b32.xlu0 %v1567, 126
        %v2012 = vpop.permute.xlu0 %2011
        %2013 = vrot.lane.b32.xlu0 %v1603, 126
        %v2014 = vpop.permute.xlu0 %2013
        %2015 = vrot.lane.b32.xlu0 %v1568, 126
        %v2016 = vpop.permute.xlu0 %2015
        %2017 = vrot.lane.b32.xlu0 %v1604, 126
        %v2018 = vpop.permute.xlu0 %2017
        %2019 = vrot.lane.b32.xlu0 %v1569, 126
        %v2020 = vpop.permute.xlu0 %2019
        %2021 = vrot.lane.b32.xlu0 %v1605, 126
        %v2022 = vpop.permute.xlu0 %2021
        %2023 = vrot.lane.b32.xlu0 %v1570, 126
        %v2024 = vpop.permute.xlu0 %2023
        %2025 = vrot.lane.b32.xlu0 %v1606, 126
        %v2026 = vpop.permute.xlu0 %2025
        %2027 = vrot.lane.b32.xlu0 %v1571, 126
        %v2028 = vpop.permute.xlu0 %2027
        %2029 = vrot.lane.b32.xlu0 %v1607, 126
        %v2030 = vpop.permute.xlu0 %2029
        %2031 = vrot.lane.b32.xlu0 %v1572, 126
        %v2032 = vpop.permute.xlu0 %2031
        %2033 = vrot.lane.b32.xlu0 %v1608, 126
        %v2034 = vpop.permute.xlu0 %2033
        %2035 = vrot.lane.b32.xlu0 %v1573, 126
        %v2036 = vpop.permute.xlu0 %2035
        %2037 = vrot.lane.b32.xlu0 %v1609, 126
        %v2038 = vpop.permute.xlu0 %2037
        %2039 = vrot.lane.b32.xlu0 %v1574, 126
        %v2040 = vpop.permute.xlu0 %2039
        %2041 = vrot.lane.b32.xlu0 %v1610, 126
        %v2042 = vpop.permute.xlu0 %2041
        %2043 = vrot.lane.b32.xlu0 %v1575, 126
        %v2044 = vpop.permute.xlu0 %2043
        %2045 = vrot.lane.b32.xlu0 %v1611, 126
        %v2046 = vpop.permute.xlu0 %2045
        %vm2047 = vcmp.lt.s32.totalorder %v1757, 126
        %v2048 = vsel %vm2047, %v2040, %v2044
        %v2049 = vsel %vm2047, %v2042, %v2046
        %v2050 = vsel %vm2047, %v2036, %v2040
        %v2051 = vsel %vm2047, %v2038, %v2042
        %v2052 = vsel %vm2047, %v2032, %v2036
        %v2053 = vsel %vm2047, %v2034, %v2038
        %v2054 = vsel %vm2047, %v2028, %v2032
        %v2055 = vsel %vm2047, %v2030, %v2034
        %v2056 = vsel %vm2047, %v2024, %v2028
        %v2057 = vsel %vm2047, %v2026, %v2030
        %v2058 = vsel %vm2047, %v2020, %v2024
        %v2059 = vsel %vm2047, %v2022, %v2026
        %v2060 = vsel %vm2047, %v2016, %v2020
        %v2061 = vsel %vm2047, %v2018, %v2022
        %v2062 = vsel %vm2047, %v2012, %v2016
        %v2063 = vsel %vm2047, %v2014, %v2018
        %v2064 = vsel %vm2047, %v2008, %v2012
        %v2065 = vsel %vm2047, %v2010, %v2014
        %v2066 = vsel %vm2047, %v2004, %v2008
        %v2067 = vsel %vm2047, %v2006, %v2010
        %v2068 = vsel %vm2047, %v2000, %v2004
        %v2069 = vsel %vm2047, %v2002, %v2006
        %v2070 = vsel %vm2047, %v1996, %v2000
        %v2071 = vsel %vm2047, %v1998, %v2002
        %v2072 = vsel %vm2047, %v1992, %v1996
        %v2073 = vsel %vm2047, %v1994, %v1998
        %v2074 = vsel %vm2047, %v1988, %v1992
        %v2075 = vsel %vm2047, %v1990, %v1994
        %v2076 = vsel %vm2047, %v1984, %v1988
        %v2077 = vsel %vm2047, %v1986, %v1990
        %v2078 = vsel %vm2047, %v1980, %v1984
        %v2079 = vsel %vm2047, %v1982, %v1986
        %v2080 = vsel %vm2047, %v1976, %v1980
        %v2081 = vsel %vm2047, %v1978, %v1982
        %v2082 = vsel %vm2047, %v1972, %v1976
        %v2083 = vsel %vm2047, %v1974, %v1978
        %v2084 = vsel %vm2047, %v1968, %v1972
        %v2085 = vsel %vm2047, %v1970, %v1974
        %v2086 = vsel %vm2047, %v1964, %v1968
        %v2087 = vsel %vm2047, %v1966, %v1970
        %v2088 = vsel %vm2047, %v1960, %v1964
        %v2089 = vsel %vm2047, %v1962, %v1966
        %v2090 = vsel %vm2047, %v1956, %v1960
        %v2091 = vsel %vm2047, %v1958, %v1962
        %v2092 = vsel %vm2047, %v1952, %v1956
        %v2093 = vsel %vm2047, %v1954, %v1958
        %v2094 = vsel %vm2047, %v1948, %v1952
        %v2095 = vsel %vm2047, %v1950, %v1954
        %v2096 = vsel %vm2047, %v1944, %v1948
        %v2097 = vsel %vm2047, %v1946, %v1950
        %v2098 = vsel %vm2047, %v1940, %v1944
        %v2099 = vsel %vm2047, %v1942, %v1946
        %v2100 = vsel %vm2047, %v1936, %v1940
        %v2101 = vsel %vm2047, %v1938, %v1942
        %v2102 = vsel %vm2047, %v1932, %v1936
        %v2103 = vsel %vm2047, %v1934, %v1938
        %v2104 = vsel %vm2047, %v1928, %v1932
        %v2105 = vsel %vm2047, %v1930, %v1934
        %v2106 = vsel %vm2047, %v1924, %v1928
        %v2107 = vsel %vm2047, %v1926, %v1930
        %v2108 = vsel %vm2047, %v1920, %v1924
        %v2109 = vsel %vm2047, %v1922, %v1926
        %v2110 = vsel %vm2047, %v1916, %v1920
        %v2111 = vsel %vm2047, %v1918, %v1922
        %v2112 = vsel %vm2047, %v1912, %v1916
        %v2113 = vsel %vm2047, %v1914, %v1918
        %v2114 = vsel %vm2047, %v1908, %v1912
        %v2115 = vsel %vm2047, %v1910, %v1914
        %v2116 = vsel %vm2047, %v1904, %v1908
        %v2117 = vsel %vm2047, %v1906, %v1910
        %v2118 = vsel %vm2047, %v2044, %v1904
        %v2119 = vsel %vm2047, %v2046, %v1906
        %v2120 = vpack.c.bf16 %v2114, %v2116
        %v2121 = vpack.c.bf16 %v2110, %v2112
        %v2122 = vpack.c.bf16 %v2106, %v2108
        %v2123 = vpack.c.bf16 %v2102, %v2104
        %v2124 = vpack.c.bf16 %v2098, %v2100
        %v2125 = vpack.c.bf16 %v2094, %v2096
        %v2126 = vpack.c.bf16 %v2090, %v2092
        %v2127 = vpack.c.bf16 %v2086, %v2088
        %v2128 = vpack.c.bf16 %v2082, %v2084
        %v2129 = vpack.c.bf16 %v2078, %v2080
        %v2130 = vpack.c.bf16 %v2074, %v2076
        %v2131 = vpack.c.bf16 %v2070, %v2072
        %v2132 = vpack.c.bf16 %v2066, %v2068
        %v2133 = vpack.c.bf16 %v2062, %v2064
        %v2134 = vpack.c.bf16 %v2058, %v2060
        %v2135 = vpack.c.bf16 %v2054, %v2056
        %v2136 = vpack.c.bf16 %v2050, %v2052
        %v2137 = vpack.c.bf16 %v2118, %v2048
        %v2138 = vpack.c.bf16 %v2115, %v2117
        %v2139 = vpack.c.bf16 %v2111, %v2113
        %v2140 = vpack.c.bf16 %v2107, %v2109
        %v2141 = vpack.c.bf16 %v2103, %v2105
        %v2142 = vpack.c.bf16 %v2099, %v2101
        %v2143 = vpack.c.bf16 %v2095, %v2097
        %v2144 = vpack.c.bf16 %v2091, %v2093
        %v2145 = vpack.c.bf16 %v2087, %v2089
        %v2146 = vpack.c.bf16 %v2083, %v2085
        %v2147 = vpack.c.bf16 %v2079, %v2081
        %v2148 = vpack.c.bf16 %v2075, %v2077
        %v2149 = vpack.c.bf16 %v2071, %v2073
        %v2150 = vpack.c.bf16 %v2067, %v2069
        %v2151 = vpack.c.bf16 %v2063, %v2065
        %v2152 = vpack.c.bf16 %v2059, %v2061
        %v2153 = vpack.c.bf16 %v2055, %v2057
        %v2154 = vpack.c.bf16 %v2051, %v2053
        %v2155 = vpack.c.bf16 %v2119, %v2049
        %2156 = vst [vmem:[#allocation2 + $0x240] sm:$0xff] %v2120
        %2157 = vst [vmem:[#allocation2 + $0x248] sm:$0xff] %v2121
        %2158 = vst [vmem:[#allocation2 + $0x250] sm:$0xff] %v2122
        %2159 = vst [vmem:[#allocation2 + $0x258] sm:$0xff] %v2123
        %2160 = vst [vmem:[#allocation2 + $0x260] sm:$0xff] %v2124
        %2161 = vst [vmem:[#allocation2 + $0x268] sm:$0xff] %v2125
        %2162 = vst [vmem:[#allocation2 + $0x270] sm:$0xff] %v2126
        %2163 = vst [vmem:[#allocation2 + $0x278] sm:$0xff] %v2127
        %2164 = vst [vmem:[#allocation2 + $0x280] sm:$0xff] %v2128
        %2165 = vst [vmem:[#allocation2 + $0x288] sm:$0xff] %v2129
        %2166 = vst [vmem:[#allocation2 + $0x290] sm:$0xff] %v2130
        %2167 = vst [vmem:[#allocation2 + $0x298] sm:$0xff] %v2131
        %2168 = vst [vmem:[#allocation2 + $0x2a0] sm:$0xff] %v2132
        %2169 = vst [vmem:[#allocation2 + $0x2a8] sm:$0xff] %v2133
        %2170 = vst [vmem:[#allocation2 + $0x2b0] sm:$0xff] %v2134
        %2171 = vst [vmem:[#allocation2 + $0x2b8] sm:$0xff] %v2135
        %2172 = vst [vmem:[#allocation2 + $0x2c0] sm:$0xff] %v2136
        %2173 = vst [vmem:[#allocation2 + $0x2c8] sm:$0xff] %v2137
        %2174 = vst [vmem:[#allocation2 + $0x2d0] sm:$0xff] %v2138
        %2175 = vst [vmem:[#allocation2 + $0x2d8] sm:$0xff] %v2139
        %2176 = vst [vmem:[#allocation2 + $0x2e0] sm:$0xff] %v2140
        %2177 = vst [vmem:[#allocation2 + $0x2e8] sm:$0xff] %v2141
        %2178 = vst [vmem:[#allocation2 + $0x2f0] sm:$0xff] %v2142
        %2179 = vst [vmem:[#allocation2 + $0x2f8] sm:$0xff] %v2143
        %2180 = vst [vmem:[#allocation2 + $0x300] sm:$0xff] %v2144
        %2181 = vst [vmem:[#allocation2 + $0x308] sm:$0xff] %v2145
        %2182 = vst [vmem:[#allocation2 + $0x310] sm:$0xff] %v2146
        %2183 = vst [vmem:[#allocation2 + $0x318] sm:$0xff] %v2147
        %2184 = vst [vmem:[#allocation2 + $0x320] sm:$0xff] %v2148
        %2185 = vst [vmem:[#allocation2 + $0x328] sm:$0xff] %v2149
        %2186 = vst [vmem:[#allocation2 + $0x330] sm:$0xff] %v2150
        %2187 = vst [vmem:[#allocation2 + $0x338] sm:$0xff] %v2151
        %2188 = vst [vmem:[#allocation2 + $0x340] sm:$0xff] %v2152
        %2189 = vst [vmem:[#allocation2 + $0x348] sm:$0xff] %v2153
        %2190 = vst [vmem:[#allocation2 + $0x350] sm:$0xff] %v2154
        %2191 = vst [vmem:[#allocation2 + $0x358] sm:$0xff] %v2155
        %2192 = vrot.lane.b32.xlu0 %v1540, 125
        %v2193 = vpop.permute.xlu0 %2192
        %2194 = vrot.lane.b32.xlu0 %v1576, 125
        %v2195 = vpop.permute.xlu0 %2194
        %2196 = vrot.lane.b32.xlu0 %v1541, 125
        %v2197 = vpop.permute.xlu0 %2196
        %2198 = vrot.lane.b32.xlu0 %v1577, 125
        %v2199 = vpop.permute.xlu0 %2198
        %2200 = vrot.lane.b32.xlu0 %v1542, 125
        %v2201 = vpop.permute.xlu0 %2200
        %2202 = vrot.lane.b32.xlu0 %v1578, 125
        %v2203 = vpop.permute.xlu0 %2202
        %2204 = vrot.lane.b32.xlu0 %v1543, 125
        %v2205 = vpop.permute.xlu0 %2204
        %2206 = vrot.lane.b32.xlu0 %v1579, 125
        %v2207 = vpop.permute.xlu0 %2206
        %2208 = vrot.lane.b32.xlu0 %v1544, 125
        %v2209 = vpop.permute.xlu0 %2208
        %2210 = vrot.lane.b32.xlu0 %v1580, 125
        %v2211 = vpop.permute.xlu0 %2210
        %2212 = vrot.lane.b32.xlu0 %v1545, 125
        %v2213 = vpop.permute.xlu0 %2212
        %2214 = vrot.lane.b32.xlu0 %v1581, 125
        %v2215 = vpop.permute.xlu0 %2214
        %2216 = vrot.lane.b32.xlu0 %v1546, 125
        %v2217 = vpop.permute.xlu0 %2216
        %2218 = vrot.lane.b32.xlu0 %v1582, 125
        %v2219 = vpop.permute.xlu0 %2218
        %2220 = vrot.lane.b32.xlu0 %v1547, 125
        %v2221 = vpop.permute.xlu0 %2220
        %2222 = vrot.lane.b32.xlu0 %v1583, 125
        %v2223 = vpop.permute.xlu0 %2222
        %2224 = vrot.lane.b32.xlu0 %v1548, 125
        %v2225 = vpop.permute.xlu0 %2224
        %2226 = vrot.lane.b32.xlu0 %v1584, 125
        %v2227 = vpop.permute.xlu0 %2226
        %2228 = vrot.lane.b32.xlu0 %v1549, 125
        %v2229 = vpop.permute.xlu0 %2228
        %2230 = vrot.lane.b32.xlu0 %v1585, 125
        %v2231 = vpop.permute.xlu0 %2230
        %2232 = vrot.lane.b32.xlu0 %v1550, 125
        %v2233 = vpop.permute.xlu0 %2232
        %2234 = vrot.lane.b32.xlu0 %v1586, 125
        %v2235 = vpop.permute.xlu0 %2234
        %2236 = vrot.lane.b32.xlu0 %v1551, 125
        %v2237 = vpop.permute.xlu0 %2236
        %2238 = vrot.lane.b32.xlu0 %v1587, 125
        %v2239 = vpop.permute.xlu0 %2238
        %2240 = vrot.lane.b32.xlu0 %v1552, 125
        %v2241 = vpop.permute.xlu0 %2240
        %2242 = vrot.lane.b32.xlu0 %v1588, 125
        %v2243 = vpop.permute.xlu0 %2242
        %2244 = vrot.lane.b32.xlu0 %v1553, 125
        %v2245 = vpop.permute.xlu0 %2244
        %2246 = vrot.lane.b32.xlu0 %v1589, 125
        %v2247 = vpop.permute.xlu0 %2246
        %2248 = vrot.lane.b32.xlu0 %v1554, 125
        %v2249 = vpop.permute.xlu0 %2248
        %2250 = vrot.lane.b32.xlu0 %v1590, 125
        %v2251 = vpop.permute.xlu0 %2250
        %2252 = vrot.lane.b32.xlu0 %v1555, 125
        %v2253 = vpop.permute.xlu0 %2252
        %2254 = vrot.lane.b32.xlu0 %v1591, 125
        %v2255 = vpop.permute.xlu0 %2254
        %2256 = vrot.lane.b32.xlu0 %v1556, 125
        %v2257 = vpop.permute.xlu0 %2256
        %2258 = vrot.lane.b32.xlu0 %v1592, 125
        %v2259 = vpop.permute.xlu0 %2258
        %2260 = vrot.lane.b32.xlu0 %v1557, 125
        %v2261 = vpop.permute.xlu0 %2260
        %2262 = vrot.lane.b32.xlu0 %v1593, 125
        %v2263 = vpop.permute.xlu0 %2262
        %2264 = vrot.lane.b32.xlu0 %v1558, 125
        %v2265 = vpop.permute.xlu0 %2264
        %2266 = vrot.lane.b32.xlu0 %v1594, 125
        %v2267 = vpop.permute.xlu0 %2266
        %2268 = vrot.lane.b32.xlu0 %v1559, 125
        %v2269 = vpop.permute.xlu0 %2268
        %2270 = vrot.lane.b32.xlu0 %v1595, 125
        %v2271 = vpop.permute.xlu0 %2270
        %2272 = vrot.lane.b32.xlu0 %v1560, 125
        %v2273 = vpop.permute.xlu0 %2272
        %2274 = vrot.lane.b32.xlu0 %v1596, 125
        %v2275 = vpop.permute.xlu0 %2274
        %2276 = vrot.lane.b32.xlu0 %v1561, 125
        %v2277 = vpop.permute.xlu0 %2276
        %2278 = vrot.lane.b32.xlu0 %v1597, 125
        %v2279 = vpop.permute.xlu0 %2278
        %2280 = vrot.lane.b32.xlu0 %v1562, 125
        %v2281 = vpop.permute.xlu0 %2280
        %2282 = vrot.lane.b32.xlu0 %v1598, 125
        %v2283 = vpop.permute.xlu0 %2282
        %2284 = vrot.lane.b32.xlu0 %v1563, 125
        %v2285 = vpop.permute.xlu0 %2284
        %2286 = vrot.lane.b32.xlu0 %v1599, 125
        %v2287 = vpop.permute.xlu0 %2286
        %2288 = vrot.lane.b32.xlu0 %v1564, 125
        %v2289 = vpop.permute.xlu0 %2288
        %2290 = vrot.lane.b32.xlu0 %v1600, 125
        %v2291 = vpop.permute.xlu0 %2290
        %2292 = vrot.lane.b32.xlu0 %v1565, 125
        %v2293 = vpop.permute.xlu0 %2292
        %2294 = vrot.lane.b32.xlu0 %v1601, 125
        %v2295 = vpop.permute.xlu0 %2294
        %2296 = vrot.lane.b32.xlu0 %v1566, 125
        %v2297 = vpop.permute.xlu0 %2296
        %2298 = vrot.lane.b32.xlu0 %v1602, 125
        %v2299 = vpop.permute.xlu0 %2298
        %2300 = vrot.lane.b32.xlu0 %v1567, 125
        %v2301 = vpop.permute.xlu0 %2300
        %2302 = vrot.lane.b32.xlu0 %v1603, 125
        %v2303 = vpop.permute.xlu0 %2302
        %2304 = vrot.lane.b32.xlu0 %v1568, 125
        %v2305 = vpop.permute.xlu0 %2304
        %2306 = vrot.lane.b32.xlu0 %v1604, 125
        %v2307 = vpop.permute.xlu0 %2306
        %2308 = vrot.lane.b32.xlu0 %v1569, 125
        %v2309 = vpop.permute.xlu0 %2308
        %2310 = vrot.lane.b32.xlu0 %v1605, 125
        %v2311 = vpop.permute.xlu0 %2310
        %2312 = vrot.lane.b32.xlu0 %v1570, 125
        %v2313 = vpop.permute.xlu0 %2312
        %2314 = vrot.lane.b32.xlu0 %v1606, 125
        %v2315 = vpop.permute.xlu0 %2314
        %2316 = vrot.lane.b32.xlu0 %v1571, 125
        %v2317 = vpop.permute.xlu0 %2316
        %2318 = vrot.lane.b32.xlu0 %v1607, 125
        %v2319 = vpop.permute.xlu0 %2318
        %2320 = vrot.lane.b32.xlu0 %v1572, 125
        %v2321 = vpop.permute.xlu0 %2320
        %2322 = vrot.lane.b32.xlu0 %v1608, 125
        %v2323 = vpop.permute.xlu0 %2322
        %2324 = vrot.lane.b32.xlu0 %v1573, 125
        %v2325 = vpop.permute.xlu0 %2324
        %2326 = vrot.lane.b32.xlu0 %v1609, 125
        %v2327 = vpop.permute.xlu0 %2326
        %2328 = vrot.lane.b32.xlu0 %v1574, 125
        %v2329 = vpop.permute.xlu0 %2328
        %2330 = vrot.lane.b32.xlu0 %v1610, 125
        %v2331 = vpop.permute.xlu0 %2330
        %2332 = vrot.lane.b32.xlu0 %v1575, 125
        %v2333 = vpop.permute.xlu0 %2332
        %2334 = vrot.lane.b32.xlu0 %v1611, 125
        %v2335 = vpop.permute.xlu0 %2334
        %vm2336 = vcmp.lt.s32.totalorder %v1757, 125
        %v2337 = vsel %vm2336, %v2329, %v2333
        %v2338 = vsel %vm2336, %v2331, %v2335
        %v2339 = vsel %vm2336, %v2325, %v2329
        %v2340 = vsel %vm2336, %v2327, %v2331
        %v2341 = vsel %vm2336, %v2321, %v2325
        %v2342 = vsel %vm2336, %v2323, %v2327
        %v2343 = vsel %vm2336, %v2317, %v2321
        %v2344 = vsel %vm2336, %v2319, %v2323
        %v2345 = vsel %vm2336, %v2313, %v2317
        %v2346 = vsel %vm2336, %v2315, %v2319
        %v2347 = vsel %vm2336, %v2309, %v2313
        %v2348 = vsel %vm2336, %v2311, %v2315
        %v2349 = vsel %vm2336, %v2305, %v2309
        %v2350 = vsel %vm2336, %v2307, %v2311
        %v2351 = vsel %vm2336, %v2301, %v2305
        %v2352 = vsel %vm2336, %v2303, %v2307
        %v2353 = vsel %vm2336, %v2297, %v2301
        %v2354 = vsel %vm2336, %v2299, %v2303
        %v2355 = vsel %vm2336, %v2293, %v2297
        %v2356 = vsel %vm2336, %v2295, %v2299
        %v2357 = vsel %vm2336, %v2289, %v2293
        %v2358 = vsel %vm2336, %v2291, %v2295
        %v2359 = vsel %vm2336, %v2285, %v2289
        %v2360 = vsel %vm2336, %v2287, %v2291
        %v2361 = vsel %vm2336, %v2281, %v2285
        %v2362 = vsel %vm2336, %v2283, %v2287
        %v2363 = vsel %vm2336, %v2277, %v2281
        %v2364 = vsel %vm2336, %v2279, %v2283
        %v2365 = vsel %vm2336, %v2273, %v2277
        %v2366 = vsel %vm2336, %v2275, %v2279
        %v2367 = vsel %vm2336, %v2269, %v2273
        %v2368 = vsel %vm2336, %v2271, %v2275
        %v2369 = vsel %vm2336, %v2265, %v2269
        %v2370 = vsel %vm2336, %v2267, %v2271
        %v2371 = vsel %vm2336, %v2261, %v2265
        %v2372 = vsel %vm2336, %v2263, %v2267
        %v2373 = vsel %vm2336, %v2257, %v2261
        %v2374 = vsel %vm2336, %v2259, %v2263
        %v2375 = vsel %vm2336, %v2253, %v2257
        %v2376 = vsel %vm2336, %v2255, %v2259
        %v2377 = vsel %vm2336, %v2249, %v2253
        %v2378 = vsel %vm2336, %v2251, %v2255
        %v2379 = vsel %vm2336, %v2245, %v2249
        %v2380 = vsel %vm2336, %v2247, %v2251
        %v2381 = vsel %vm2336, %v2241, %v2245
        %v2382 = vsel %vm2336, %v2243, %v2247
        %v2383 = vsel %vm2336, %v2237, %v2241
        %v2384 = vsel %vm2336, %v2239, %v2243
        %v2385 = vsel %vm2336, %v2233, %v2237
        %v2386 = vsel %vm2336, %v2235, %v2239
        %v2387 = vsel %vm2336, %v2229, %v2233
        %v2388 = vsel %vm2336, %v2231, %v2235
        %v2389 = vsel %vm2336, %v2225, %v2229
        %v2390 = vsel %vm2336, %v2227, %v2231
        %v2391 = vsel %vm2336, %v2221, %v2225
        %v2392 = vsel %vm2336, %v2223, %v2227
        %v2393 = vsel %vm2336, %v2217, %v2221
        %v2394 = vsel %vm2336, %v2219, %v2223
        %v2395 = vsel %vm2336, %v2213, %v2217
        %v2396 = vsel %vm2336, %v2215, %v2219
        %v2397 = vsel %vm2336, %v2209, %v2213
        %v2398 = vsel %vm2336, %v2211, %v2215
        %v2399 = vsel %vm2336, %v2205, %v2209
        %v2400 = vsel %vm2336, %v2207, %v2211
        %v2401 = vsel %vm2336, %v2201, %v2205
        %v2402 = vsel %vm2336, %v2203, %v2207
        %v2403 = vsel %vm2336, %v2197, %v2201
        %v2404 = vsel %vm2336, %v2199, %v2203
        %v2405 = vsel %vm2336, %v2193, %v2197
        %v2406 = vsel %vm2336, %v2195, %v2199
        %v2407 = vsel %vm2336, %v2333, %v2193
        %v2408 = vsel %vm2336, %v2335, %v2195
        %v2409 = vpack.c.bf16 %v2403, %v2405
        %v2410 = vpack.c.bf16 %v2399, %v2401
        %v2411 = vpack.c.bf16 %v2395, %v2397
        %v2412 = vpack.c.bf16 %v2391, %v2393
        %v2413 = vpack.c.bf16 %v2387, %v2389
        %v2414 = vpack.c.bf16 %v2383, %v2385
        %v2415 = vpack.c.bf16 %v2379, %v2381
        %v2416 = vpack.c.bf16 %v2375, %v2377
        %v2417 = vpack.c.bf16 %v2371, %v2373
        %v2418 = vpack.c.bf16 %v2367, %v2369
        %v2419 = vpack.c.bf16 %v2363, %v2365
        %v2420 = vpack.c.bf16 %v2359, %v2361
        %v2421 = vpack.c.bf16 %v2355, %v2357
        %v2422 = vpack.c.bf16 %v2351, %v2353
        %v2423 = vpack.c.bf16 %v2347, %v2349
        %v2424 = vpack.c.bf16 %v2343, %v2345
        %v2425 = vpack.c.bf16 %v2339, %v2341
        %v2426 = vpack.c.bf16 %v2407, %v2337
        %v2427 = vpack.c.bf16 %v2404, %v2406
        %v2428 = vpack.c.bf16 %v2400, %v2402
        %v2429 = vpack.c.bf16 %v2396, %v2398
        %v2430 = vpack.c.bf16 %v2392, %v2394
        %v2431 = vpack.c.bf16 %v2388, %v2390
        %v2432 = vpack.c.bf16 %v2384, %v2386
        %v2433 = vpack.c.bf16 %v2380, %v2382
        %v2434 = vpack.c.bf16 %v2376, %v2378
        %v2435 = vpack.c.bf16 %v2372, %v2374
        %v2436 = vpack.c.bf16 %v2368, %v2370
        %v2437 = vpack.c.bf16 %v2364, %v2366
        %v2438 = vpack.c.bf16 %v2360, %v2362
        %v2439 = vpack.c.bf16 %v2356, %v2358
        %v2440 = vpack.c.bf16 %v2352, %v2354
        %v2441 = vpack.c.bf16 %v2348, %v2350
        %v2442 = vpack.c.bf16 %v2344, %v2346
        %v2443 = vpack.c.bf16 %v2340, %v2342
        %v2444 = vpack.c.bf16 %v2408, %v2338
        %2445 = vst [vmem:[#allocation2 + $0x360] sm:$0xff] %v2409
        %2446 = vst [vmem:[#allocation2 + $0x368] sm:$0xff] %v2410
        %2447 = vst [vmem:[#allocation2 + $0x370] sm:$0xff] %v2411
        %2448 = vst [vmem:[#allocation2 + $0x378] sm:$0xff] %v2412
        %2449 = vst [vmem:[#allocation2 + $0x380] sm:$0xff] %v2413
        %2450 = vst [vmem:[#allocation2 + $0x388] sm:$0xff] %v2414
        %2451 = vst [vmem:[#allocation2 + $0x390] sm:$0xff] %v2415
        %2452 = vst [vmem:[#allocation2 + $0x398] sm:$0xff] %v2416
        %2453 = vst [vmem:[#allocation2 + $0x3a0] sm:$0xff] %v2417
        %2454 = vst [vmem:[#allocation2 + $0x3a8] sm:$0xff] %v2418
        %2455 = vst [vmem:[#allocation2 + $0x3b0] sm:$0xff] %v2419
        %2456 = vst [vmem:[#allocation2 + $0x3b8] sm:$0xff] %v2420
        %2457 = vst [vmem:[#allocation2 + $0x3c0] sm:$0xff] %v2421
        %2458 = vst [vmem:[#allocation2 + $0x3c8] sm:$0xff] %v2422
        %2459 = vst [vmem:[#allocation2 + $0x3d0] sm:$0xff] %v2423
        %2460 = vst [vmem:[#allocation2 + $0x3d8] sm:$0xff] %v2424
        %2461 = vst [vmem:[#allocation2 + $0x3e0] sm:$0xff] %v2425
        %2462 = vst [vmem:[#allocation2 + $0x3e8] sm:$0xff] %v2426
        %2463 = vst [vmem:[#allocation2 + $0x3f0] sm:$0xff] %v2427
        %2464 = vst [vmem:[#allocation2 + $0x3f8] sm:$0xff] %v2428
        %2465 = vst [vmem:[#allocation2 + $0x400] sm:$0xff] %v2429
        %2466 = vst [vmem:[#allocation2 + $0x408] sm:$0xff] %v2430
        %2467 = vst [vmem:[#allocation2 + $0x410] sm:$0xff] %v2431
        %2468 = vst [vmem:[#allocation2 + $0x418] sm:$0xff] %v2432
        %2469 = vst [vmem:[#allocation2 + $0x420] sm:$0xff] %v2433
        %2470 = vst [vmem:[#allocation2 + $0x428] sm:$0xff] %v2434
        %2471 = vst [vmem:[#allocation2 + $0x430] sm:$0xff] %v2435
        %2472 = vst [vmem:[#allocation2 + $0x438] sm:$0xff] %v2436
        %2473 = vst [vmem:[#allocation2 + $0x440] sm:$0xff] %v2437
        %2474 = vst [vmem:[#allocation2 + $0x448] sm:$0xff] %v2438
        %2475 = vst [vmem:[#allocation2 + $0x450] sm:$0xff] %v2439
        %2476 = vst [vmem:[#allocation2 + $0x458] sm:$0xff] %v2440
        %2477 = vst [vmem:[#allocation2 + $0x460] sm:$0xff] %v2441
        %2478 = vst [vmem:[#allocation2 + $0x468] sm:$0xff] %v2442
        %2479 = vst [vmem:[#allocation2 + $0x470] sm:$0xff] %v2443
        %2480 = vst [vmem:[#allocation2 + $0x478] sm:$0xff] %v2444
        %2481 = vrot.lane.b32.xlu0 %v1540, 124
        %v2482 = vpop.permute.xlu0 %2481
        %2483 = vrot.lane.b32.xlu0 %v1576, 124
        %v2484 = vpop.permute.xlu0 %2483
        %2485 = vrot.lane.b32.xlu0 %v1541, 124
        %v2486 = vpop.permute.xlu0 %2485
        %2487 = vrot.lane.b32.xlu0 %v1577, 124
        %v2488 = vpop.permute.xlu0 %2487
        %2489 = vrot.lane.b32.xlu0 %v1542, 124
        %v2490 = vpop.permute.xlu0 %2489
        %2491 = vrot.lane.b32.xlu0 %v1578, 124
        %v2492 = vpop.permute.xlu0 %2491
        %2493 = vrot.lane.b32.xlu0 %v1543, 124
        %v2494 = vpop.permute.xlu0 %2493
        %2495 = vrot.lane.b32.xlu0 %v1579, 124
        %v2496 = vpop.permute.xlu0 %2495
        %2497 = vrot.lane.b32.xlu0 %v1544, 124
        %v2498 = vpop.permute.xlu0 %2497
        %2499 = vrot.lane.b32.xlu0 %v1580, 124
        %v2500 = vpop.permute.xlu0 %2499
        %2501 = vrot.lane.b32.xlu0 %v1545, 124
        %v2502 = vpop.permute.xlu0 %2501
        %2503 = vrot.lane.b32.xlu0 %v1581, 124
        %v2504 = vpop.permute.xlu0 %2503
        %2505 = vrot.lane.b32.xlu0 %v1546, 124
        %v2506 = vpop.permute.xlu0 %2505
        %2507 = vrot.lane.b32.xlu0 %v1582, 124
        %v2508 = vpop.permute.xlu0 %2507
        %2509 = vrot.lane.b32.xlu0 %v1547, 124
        %v2510 = vpop.permute.xlu0 %2509
        %2511 = vrot.lane.b32.xlu0 %v1583, 124
        %v2512 = vpop.permute.xlu0 %2511
        %2513 = vrot.lane.b32.xlu0 %v1548, 124
        %v2514 = vpop.permute.xlu0 %2513
        %2515 = vrot.lane.b32.xlu0 %v1584, 124
        %v2516 = vpop.permute.xlu0 %2515
        %2517 = vrot.lane.b32.xlu0 %v1549, 124
        %v2518 = vpop.permute.xlu0 %2517
        %2519 = vrot.lane.b32.xlu0 %v1585, 124
        %v2520 = vpop.permute.xlu0 %2519
        %2521 = vrot.lane.b32.xlu0 %v1550, 124
        %v2522 = vpop.permute.xlu0 %2521
        %2523 = vrot.lane.b32.xlu0 %v1586, 124
        %v2524 = vpop.permute.xlu0 %2523
        %2525 = vrot.lane.b32.xlu0 %v1551, 124
        %v2526 = vpop.permute.xlu0 %2525
        %2527 = vrot.lane.b32.xlu0 %v1587, 124
        %v2528 = vpop.permute.xlu0 %2527
        %2529 = vrot.lane.b32.xlu0 %v1552, 124
        %v2530 = vpop.permute.xlu0 %2529
        %2531 = vrot.lane.b32.xlu0 %v1588, 124
        %v2532 = vpop.permute.xlu0 %2531
        %2533 = vrot.lane.b32.xlu0 %v1553, 124
        %v2534 = vpop.permute.xlu0 %2533
        %2535 = vrot.lane.b32.xlu0 %v1589, 124
        %v2536 = vpop.permute.xlu0 %2535
        %2537 = vrot.lane.b32.xlu0 %v1554, 124
        %v2538 = vpop.permute.xlu0 %2537
        %2539 = vrot.lane.b32.xlu0 %v1590, 124
        %v2540 = vpop.permute.xlu0 %2539
        %2541 = vrot.lane.b32.xlu0 %v1555, 124
        %v2542 = vpop.permute.xlu0 %2541
        %2543 = vrot.lane.b32.xlu0 %v1591, 124
        %v2544 = vpop.permute.xlu0 %2543
        %2545 = vrot.lane.b32.xlu0 %v1556, 124
        %v2546 = vpop.permute.xlu0 %2545
        %2547 = vrot.lane.b32.xlu0 %v1592, 124
        %v2548 = vpop.permute.xlu0 %2547
        %2549 = vrot.lane.b32.xlu0 %v1557, 124
        %v2550 = vpop.permute.xlu0 %2549
        %2551 = vrot.lane.b32.xlu0 %v1593, 124
        %v2552 = vpop.permute.xlu0 %2551
        %2553 = vrot.lane.b32.xlu0 %v1558, 124
        %v2554 = vpop.permute.xlu0 %2553
        %2555 = vrot.lane.b32.xlu0 %v1594, 124
        %v2556 = vpop.permute.xlu0 %2555
        %2557 = vrot.lane.b32.xlu0 %v1559, 124
        %v2558 = vpop.permute.xlu0 %2557
        %2559 = vrot.lane.b32.xlu0 %v1595, 124
        %v2560 = vpop.permute.xlu0 %2559
        %2561 = vrot.lane.b32.xlu0 %v1560, 124
        %v2562 = vpop.permute.xlu0 %2561
        %2563 = vrot.lane.b32.xlu0 %v1596, 124
        %v2564 = vpop.permute.xlu0 %2563
        %2565 = vrot.lane.b32.xlu0 %v1561, 124
        %v2566 = vpop.permute.xlu0 %2565
        %2567 = vrot.lane.b32.xlu0 %v1597, 124
        %v2568 = vpop.permute.xlu0 %2567
        %2569 = vrot.lane.b32.xlu0 %v1562, 124
        %v2570 = vpop.permute.xlu0 %2569
        %2571 = vrot.lane.b32.xlu0 %v1598, 124
        %v2572 = vpop.permute.xlu0 %2571
        %2573 = vrot.lane.b32.xlu0 %v1563, 124
        %v2574 = vpop.permute.xlu0 %2573
        %2575 = vrot.lane.b32.xlu0 %v1599, 124
        %v2576 = vpop.permute.xlu0 %2575
        %2577 = vrot.lane.b32.xlu0 %v1564, 124
        %v2578 = vpop.permute.xlu0 %2577
        %2579 = vrot.lane.b32.xlu0 %v1600, 124
        %v2580 = vpop.permute.xlu0 %2579
        %2581 = vrot.lane.b32.xlu0 %v1565, 124
        %v2582 = vpop.permute.xlu0 %2581
        %2583 = vrot.lane.b32.xlu0 %v1601, 124
        %v2584 = vpop.permute.xlu0 %2583
        %2585 = vrot.lane.b32.xlu0 %v1566, 124
        %v2586 = vpop.permute.xlu0 %2585
        %2587 = vrot.lane.b32.xlu0 %v1602, 124
        %v2588 = vpop.permute.xlu0 %2587
        %2589 = vrot.lane.b32.xlu0 %v1567, 124
        %v2590 = vpop.permute.xlu0 %2589
        %2591 = vrot.lane.b32.xlu0 %v1603, 124
        %v2592 = vpop.permute.xlu0 %2591
        %2593 = vrot.lane.b32.xlu0 %v1568, 124
        %v2594 = vpop.permute.xlu0 %2593
        %2595 = vrot.lane.b32.xlu0 %v1604, 124
        %v2596 = vpop.permute.xlu0 %2595
        %2597 = vrot.lane.b32.xlu0 %v1569, 124
        %v2598 = vpop.permute.xlu0 %2597
        %2599 = vrot.lane.b32.xlu0 %v1605, 124
        %v2600 = vpop.permute.xlu0 %2599
        %2601 = vrot.lane.b32.xlu0 %v1570, 124
        %v2602 = vpop.permute.xlu0 %2601
        %2603 = vrot.lane.b32.xlu0 %v1606, 124
        %v2604 = vpop.permute.xlu0 %2603
        %2605 = vrot.lane.b32.xlu0 %v1571, 124
        %v2606 = vpop.permute.xlu0 %2605
        %2607 = vrot.lane.b32.xlu0 %v1607, 124
        %v2608 = vpop.permute.xlu0 %2607
        %2609 = vrot.lane.b32.xlu0 %v1572, 124
        %v2610 = vpop.permute.xlu0 %2609
        %2611 = vrot.lane.b32.xlu0 %v1608, 124
        %v2612 = vpop.permute.xlu0 %2611
        %2613 = vrot.lane.b32.xlu0 %v1573, 124
        %v2614 = vpop.permute.xlu0 %2613
        %2615 = vrot.lane.b32.xlu0 %v1609, 124
        %v2616 = vpop.permute.xlu0 %2615
        %2617 = vrot.lane.b32.xlu0 %v1574, 124
        %v2618 = vpop.permute.xlu0 %2617
        %2619 = vrot.lane.b32.xlu0 %v1610, 124
        %v2620 = vpop.permute.xlu0 %2619
        %2621 = vrot.lane.b32.xlu0 %v1575, 124
        %v2622 = vpop.permute.xlu0 %2621
        %2623 = vrot.lane.b32.xlu0 %v1611, 124
        %v2624 = vpop.permute.xlu0 %2623
        %vm2625 = vcmp.lt.s32.totalorder %v1757, 124
        %v2626 = vsel %vm2625, %v2618, %v2622
        %v2627 = vsel %vm2625, %v2620, %v2624
        %v2628 = vsel %vm2625, %v2614, %v2618
        %v2629 = vsel %vm2625, %v2616, %v2620
        %v2630 = vsel %vm2625, %v2610, %v2614
        %v2631 = vsel %vm2625, %v2612, %v2616
        %v2632 = vsel %vm2625, %v2606, %v2610
        %v2633 = vsel %vm2625, %v2608, %v2612
        %v2634 = vsel %vm2625, %v2602, %v2606
        %v2635 = vsel %vm2625, %v2604, %v2608
        %v2636 = vsel %vm2625, %v2598, %v2602
        %v2637 = vsel %vm2625, %v2600, %v2604
        %v2638 = vsel %vm2625, %v2594, %v2598
        %v2639 = vsel %vm2625, %v2596, %v2600
        %v2640 = vsel %vm2625, %v2590, %v2594
        %v2641 = vsel %vm2625, %v2592, %v2596
        %v2642 = vsel %vm2625, %v2586, %v2590
        %v2643 = vsel %vm2625, %v2588, %v2592
        %v2644 = vsel %vm2625, %v2582, %v2586
        %v2645 = vsel %vm2625, %v2584, %v2588
        %v2646 = vsel %vm2625, %v2578, %v2582
        %v2647 = vsel %vm2625, %v2580, %v2584
        %v2648 = vsel %vm2625, %v2574, %v2578
        %v2649 = vsel %vm2625, %v2576, %v2580
        %v2650 = vsel %vm2625, %v2570, %v2574
        %v2651 = vsel %vm2625, %v2572, %v2576
        %v2652 = vsel %vm2625, %v2566, %v2570
        %v2653 = vsel %vm2625, %v2568, %v2572
        %v2654 = vsel %vm2625, %v2562, %v2566
        %v2655 = vsel %vm2625, %v2564, %v2568
        %v2656 = vsel %vm2625, %v2558, %v2562
        %v2657 = vsel %vm2625, %v2560, %v2564
        %v2658 = vsel %vm2625, %v2554, %v2558
        %v2659 = vsel %vm2625, %v2556, %v2560
        %v2660 = vsel %vm2625, %v2550, %v2554
        %v2661 = vsel %vm2625, %v2552, %v2556
        %v2662 = vsel %vm2625, %v2546, %v2550
        %v2663 = vsel %vm2625, %v2548, %v2552
        %v2664 = vsel %vm2625, %v2542, %v2546
        %v2665 = vsel %vm2625, %v2544, %v2548
        %v2666 = vsel %vm2625, %v2538, %v2542
        %v2667 = vsel %vm2625, %v2540, %v2544
        %v2668 = vsel %vm2625, %v2534, %v2538
        %v2669 = vsel %vm2625, %v2536, %v2540
        %v2670 = vsel %vm2625, %v2530, %v2534
        %v2671 = vsel %vm2625, %v2532, %v2536
        %v2672 = vsel %vm2625, %v2526, %v2530
        %v2673 = vsel %vm2625, %v2528, %v2532
        %v2674 = vsel %vm2625, %v2522, %v2526
        %v2675 = vsel %vm2625, %v2524, %v2528
        %v2676 = vsel %vm2625, %v2518, %v2522
        %v2677 = vsel %vm2625, %v2520, %v2524
        %v2678 = vsel %vm2625, %v2514, %v2518
        %v2679 = vsel %vm2625, %v2516, %v2520
        %v2680 = vsel %vm2625, %v2510, %v2514
        %v2681 = vsel %vm2625, %v2512, %v2516
        %v2682 = vsel %vm2625, %v2506, %v2510
        %v2683 = vsel %vm2625, %v2508, %v2512
        %v2684 = vsel %vm2625, %v2502, %v2506
        %v2685 = vsel %vm2625, %v2504, %v2508
        %v2686 = vsel %vm2625, %v2498, %v2502
        %v2687 = vsel %vm2625, %v2500, %v2504
        %v2688 = vsel %vm2625, %v2494, %v2498
        %v2689 = vsel %vm2625, %v2496, %v2500
        %v2690 = vsel %vm2625, %v2490, %v2494
        %v2691 = vsel %vm2625, %v2492, %v2496
        %v2692 = vsel %vm2625, %v2486, %v2490
        %v2693 = vsel %vm2625, %v2488, %v2492
        %v2694 = vsel %vm2625, %v2482, %v2486
        %v2695 = vsel %vm2625, %v2484, %v2488
        %v2696 = vsel %vm2625, %v2622, %v2482
        %v2697 = vsel %vm2625, %v2624, %v2484
        %v2698 = vpack.c.bf16 %v2692, %v2694
        %v2699 = vpack.c.bf16 %v2688, %v2690
        %v2700 = vpack.c.bf16 %v2684, %v2686
        %v2701 = vpack.c.bf16 %v2680, %v2682
        %v2702 = vpack.c.bf16 %v2676, %v2678
        %v2703 = vpack.c.bf16 %v2672, %v2674
        %v2704 = vpack.c.bf16 %v2668, %v2670
        %v2705 = vpack.c.bf16 %v2664, %v2666
        %v2706 = vpack.c.bf16 %v2660, %v2662
        %v2707 = vpack.c.bf16 %v2656, %v2658
        %v2708 = vpack.c.bf16 %v2652, %v2654
        %v2709 = vpack.c.bf16 %v2648, %v2650
        %v2710 = vpack.c.bf16 %v2644, %v2646
        %v2711 = vpack.c.bf16 %v2640, %v2642
        %v2712 = vpack.c.bf16 %v2636, %v2638
        %v2713 = vpack.c.bf16 %v2632, %v2634
        %v2714 = vpack.c.bf16 %v2628, %v2630
        %v2715 = vpack.c.bf16 %v2696, %v2626
        %v2716 = vpack.c.bf16 %v2693, %v2695
        %v2717 = vpack.c.bf16 %v2689, %v2691
        %v2718 = vpack.c.bf16 %v2685, %v2687
        %v2719 = vpack.c.bf16 %v2681, %v2683
        %v2720 = vpack.c.bf16 %v2677, %v2679
        %v2721 = vpack.c.bf16 %v2673, %v2675
        %v2722 = vpack.c.bf16 %v2669, %v2671
        %v2723 = vpack.c.bf16 %v2665, %v2667
        %v2724 = vpack.c.bf16 %v2661, %v2663
        %v2725 = vpack.c.bf16 %v2657, %v2659
        %v2726 = vpack.c.bf16 %v2653, %v2655
        %v2727 = vpack.c.bf16 %v2649, %v2651
        %v2728 = vpack.c.bf16 %v2645, %v2647
        %v2729 = vpack.c.bf16 %v2641, %v2643
        %v2730 = vpack.c.bf16 %v2637, %v2639
        %v2731 = vpack.c.bf16 %v2633, %v2635
        %v2732 = vpack.c.bf16 %v2629, %v2631
        %v2733 = vpack.c.bf16 %v2697, %v2627
        %2734 = vst [vmem:[#allocation2 + $0x480] sm:$0xff] %v2698
        %2735 = vst [vmem:[#allocation2 + $0x488] sm:$0xff] %v2699
        %2736 = vst [vmem:[#allocation2 + $0x490] sm:$0xff] %v2700
        %2737 = vst [vmem:[#allocation2 + $0x498] sm:$0xff] %v2701
        %2738 = vst [vmem:[#allocation2 + $0x4a0] sm:$0xff] %v2702
        %2739 = vst [vmem:[#allocation2 + $0x4a8] sm:$0xff] %v2703
        %2740 = vst [vmem:[#allocation2 + $0x4b0] sm:$0xff] %v2704
        %2741 = vst [vmem:[#allocation2 + $0x4b8] sm:$0xff] %v2705
        %2742 = vst [vmem:[#allocation2 + $0x4c0] sm:$0xff] %v2706
        %2743 = vst [vmem:[#allocation2 + $0x4c8] sm:$0xff] %v2707
        %2744 = vst [vmem:[#allocation2 + $0x4d0] sm:$0xff] %v2708
        %2745 = vst [vmem:[#allocation2 + $0x4d8] sm:$0xff] %v2709
        %2746 = vst [vmem:[#allocation2 + $0x4e0] sm:$0xff] %v2710
        %2747 = vst [vmem:[#allocation2 + $0x4e8] sm:$0xff] %v2711
        %2748 = vst [vmem:[#allocation2 + $0x4f0] sm:$0xff] %v2712
        %2749 = vst [vmem:[#allocation2 + $0x4f8] sm:$0xff] %v2713
        %2750 = vst [vmem:[#allocation2 + $0x500] sm:$0xff] %v2714
        %2751 = vst [vmem:[#allocation2 + $0x508] sm:$0xff] %v2715
        %2752 = vst [vmem:[#allocation2 + $0x510] sm:$0xff] %v2716
        %2753 = vst [vmem:[#allocation2 + $0x518] sm:$0xff] %v2717
        %2754 = vst [vmem:[#allocation2 + $0x520] sm:$0xff] %v2718
        %2755 = vst [vmem:[#allocation2 + $0x528] sm:$0xff] %v2719
        %2756 = vst [vmem:[#allocation2 + $0x530] sm:$0xff] %v2720
        %2757 = vst [vmem:[#allocation2 + $0x538] sm:$0xff] %v2721
        %2758 = vst [vmem:[#allocation2 + $0x540] sm:$0xff] %v2722
        %2759 = vst [vmem:[#allocation2 + $0x548] sm:$0xff] %v2723
        %2760 = vst [vmem:[#allocation2 + $0x550] sm:$0xff] %v2724
        %2761 = vst [vmem:[#allocation2 + $0x558] sm:$0xff] %v2725
        %2762 = vst [vmem:[#allocation2 + $0x560] sm:$0xff] %v2726
        %2763 = vst [vmem:[#allocation2 + $0x568] sm:$0xff] %v2727
        %2764 = vst [vmem:[#allocation2 + $0x570] sm:$0xff] %v2728
        %2765 = vst [vmem:[#allocation2 + $0x578] sm:$0xff] %v2729
        %2766 = vst [vmem:[#allocation2 + $0x580] sm:$0xff] %v2730
        %2767 = vst [vmem:[#allocation2 + $0x588] sm:$0xff] %v2731
        %2768 = vst [vmem:[#allocation2 + $0x590] sm:$0xff] %v2732
        %2769 = vst [vmem:[#allocation2 + $0x598] sm:$0xff] %v2733
        %v2770 = vld [vmem:[%s3] sm:$0xf]
        %v2771 = vld [vmem:[%s3 + $0x4] sm:$0xf]
        %v2772 = vld [vmem:[#allocation2] sm:$0xff]
        %v2773 = vld [vmem:[#allocation2 + $0x8] sm:$0xff]
        %v2774 = vld [vmem:[#allocation2 + $0x10] sm:$0xff]
        %v2775 = vld [vmem:[#allocation2 + $0x18] sm:$0xff]
        %v2776 = vld [vmem:[#allocation2 + $0x20] sm:$0xff]
        %v2777 = vld [vmem:[#allocation2 + $0x28] sm:$0xff]
        %v2778 = vld [vmem:[#allocation2 + $0x30] sm:$0xff]
        %v2779 = vld [vmem:[#allocation2 + $0x38] sm:$0xff]
        %v2780 = vld [vmem:[#allocation2 + $0x40] sm:$0xff]
        %v2781 = vld [vmem:[#allocation2 + $0x48] sm:$0xff]
        %v2782 = vld [vmem:[#allocation2 + $0x50] sm:$0xff]
        %v2783 = vld [vmem:[#allocation2 + $0x58] sm:$0xff]
        %v2784 = vld [vmem:[#allocation2 + $0x60] sm:$0xff]
        %v2785 = vld [vmem:[#allocation2 + $0x68] sm:$0xff]
        %v2786 = vld [vmem:[#allocation2 + $0x70] sm:$0xff]
        %v2787 = vld [vmem:[#allocation2 + $0x78] sm:$0xff]
        %v2788 = vld [vmem:[#allocation2 + $0x90] sm:$0xff]
        %v2789 = vld [vmem:[#allocation2 + $0x98] sm:$0xff]
        %v2790 = vld [vmem:[#allocation2 + $0xa0] sm:$0xff]
        %v2791 = vld [vmem:[#allocation2 + $0xa8] sm:$0xff]
        %v2792 = vld [vmem:[#allocation2 + $0xb0] sm:$0xff]
        %v2793 = vld [vmem:[#allocation2 + $0xb8] sm:$0xff]
        %v2794 = vld [vmem:[#allocation2 + $0xc0] sm:$0xff]
        %v2795 = vld [vmem:[#allocation2 + $0xc8] sm:$0xff]
        %v2796 = vld [vmem:[#allocation2 + $0xd0] sm:$0xff]
        %v2797 = vld [vmem:[#allocation2 + $0xd8] sm:$0xff]
        %v2798 = vld [vmem:[#allocation2 + $0xe0] sm:$0xff]
        %v2799 = vld [vmem:[#allocation2 + $0xe8] sm:$0xff]
        %v2800 = vld [vmem:[#allocation2 + $0xf0] sm:$0xff]
        %v2801 = vld [vmem:[#allocation2 + $0xf8] sm:$0xff]
        %v2802 = vld [vmem:[#allocation2 + $0x100] sm:$0xff]
        %v2803 = vld [vmem:[#allocation2 + $0x108] sm:$0xff]
        %v2804 = vld [vmem:[#allocation2 + $0x120] sm:$0xff]
        %v2805 = vld [vmem:[#allocation2 + $0x128] sm:$0xff]
        %v2806 = vld [vmem:[#allocation2 + $0x130] sm:$0xff]
        %v2807 = vld [vmem:[#allocation2 + $0x138] sm:$0xff]
        %v2808 = vld [vmem:[#allocation2 + $0x140] sm:$0xff]
        %v2809 = vld [vmem:[#allocation2 + $0x148] sm:$0xff]
        %v2810 = vld [vmem:[#allocation2 + $0x150] sm:$0xff]
        %v2811 = vld [vmem:[#allocation2 + $0x158] sm:$0xff]
        %v2812 = vld [vmem:[#allocation2 + $0x160] sm:$0xff]
        %v2813 = vld [vmem:[#allocation2 + $0x168] sm:$0xff]
        %v2814 = vld [vmem:[#allocation2 + $0x170] sm:$0xff]
        %v2815 = vld [vmem:[#allocation2 + $0x178] sm:$0xff]
        %v2816 = vld [vmem:[#allocation2 + $0x180] sm:$0xff]
        %v2817 = vld [vmem:[#allocation2 + $0x188] sm:$0xff]
        %v2818 = vld [vmem:[#allocation2 + $0x190] sm:$0xff]
        %v2819 = vld [vmem:[#allocation2 + $0x198] sm:$0xff]
        %v2820 = vld [vmem:[#allocation2 + $0x1b0] sm:$0xff]
        %v2821 = vld [vmem:[#allocation2 + $0x1b8] sm:$0xff]
        %v2822 = vld [vmem:[#allocation2 + $0x1c0] sm:$0xff]
        %v2823 = vld [vmem:[#allocation2 + $0x1c8] sm:$0xff]
        %v2824 = vld [vmem:[#allocation2 + $0x1d0] sm:$0xff]
        %v2825 = vld [vmem:[#allocation2 + $0x1d8] sm:$0xff]
        %v2826 = vld [vmem:[#allocation2 + $0x1e0] sm:$0xff]
        %v2827 = vld [vmem:[#allocation2 + $0x1e8] sm:$0xff]
        %v2828 = vld [vmem:[#allocation2 + $0x1f0] sm:$0xff]
        %v2829 = vld [vmem:[#allocation2 + $0x1f8] sm:$0xff]
        %v2830 = vld [vmem:[#allocation2 + $0x200] sm:$0xff]
        %v2831 = vld [vmem:[#allocation2 + $0x208] sm:$0xff]
        %v2832 = vld [vmem:[#allocation2 + $0x210] sm:$0xff]
        %v2833 = vld [vmem:[#allocation2 + $0x218] sm:$0xff]
        %v2834 = vld [vmem:[#allocation2 + $0x220] sm:$0xff]
        %v2835 = vld [vmem:[#allocation2 + $0x228] sm:$0xff]
        %v2836 = vld [vmem:[#allocation2 + $0x240] sm:$0xff]
        %v2837 = vld [vmem:[#allocation2 + $0x248] sm:$0xff]
        %v2838 = vld [vmem:[#allocation2 + $0x250] sm:$0xff]
        %v2839 = vld [vmem:[#allocation2 + $0x258] sm:$0xff]
        %v2840 = vld [vmem:[#allocation2 + $0x260] sm:$0xff]
        %v2841 = vld [vmem:[#allocation2 + $0x268] sm:$0xff]
        %v2842 = vld [vmem:[#allocation2 + $0x270] sm:$0xff]
        %v2843 = vld [vmem:[#allocation2 + $0x278] sm:$0xff]
        %v2844 = vld [vmem:[#allocation2 + $0x280] sm:$0xff]
        %v2845 = vld [vmem:[#allocation2 + $0x288] sm:$0xff]
        %v2846 = vld [vmem:[#allocation2 + $0x290] sm:$0xff]
        %v2847 = vld [vmem:[#allocation2 + $0x298] sm:$0xff]
        %v2848 = vld [vmem:[#allocation2 + $0x2a0] sm:$0xff]
        %v2849 = vld [vmem:[#allocation2 + $0x2a8] sm:$0xff]
        %v2850 = vld [vmem:[#allocation2 + $0x2b0] sm:$0xff]
        %v2851 = vld [vmem:[#allocation2 + $0x2b8] sm:$0xff]
        %v2852 = vld [vmem:[#allocation2 + $0x2d0] sm:$0xff]
        %v2853 = vld [vmem:[#allocation2 + $0x2d8] sm:$0xff]
        %v2854 = vld [vmem:[#allocation2 + $0x2e0] sm:$0xff]
        %v2855 = vld [vmem:[#allocation2 + $0x2e8] sm:$0xff]
        %v2856 = vld [vmem:[#allocation2 + $0x2f0] sm:$0xff]
        %v2857 = vld [vmem:[#allocation2 + $0x2f8] sm:$0xff]
        %v2858 = vld [vmem:[#allocation2 + $0x300] sm:$0xff]
        %v2859 = vld [vmem:[#allocation2 + $0x308] sm:$0xff]
        %v2860 = vld [vmem:[#allocation2 + $0x310] sm:$0xff]
        %v2861 = vld [vmem:[#allocation2 + $0x318] sm:$0xff]
        %v2862 = vld [vmem:[#allocation2 + $0x320] sm:$0xff]
        %v2863 = vld [vmem:[#allocation2 + $0x328] sm:$0xff]
        %v2864 = vld [vmem:[#allocation2 + $0x330] sm:$0xff]
        %v2865 = vld [vmem:[#allocation2 + $0x338] sm:$0xff]
        %v2866 = vld [vmem:[#allocation2 + $0x340] sm:$0xff]
        %v2867 = vld [vmem:[#allocation2 + $0x348] sm:$0xff]
        %v2868 = vld [vmem:[#allocation2 + $0x360] sm:$0xff]
        %v2869 = vld [vmem:[#allocation2 + $0x368] sm:$0xff]
        %v2870 = vld [vmem:[#allocation2 + $0x370] sm:$0xff]
        %v2871 = vld [vmem:[#allocation2 + $0x378] sm:$0xff]
        %v2872 = vld [vmem:[#allocation2 + $0x380] sm:$0xff]
        %v2873 = vld [vmem:[#allocation2 + $0x388] sm:$0xff]
        %v2874 = vld [vmem:[#allocation2 + $0x390] sm:$0xff]
        %v2875 = vld [vmem:[#allocation2 + $0x398] sm:$0xff]
        %v2876 = vld [vmem:[#allocation2 + $0x3a0] sm:$0xff]
        %v2877 = vld [vmem:[#allocation2 + $0x3a8] sm:$0xff]
        %v2878 = vld [vmem:[#allocation2 + $0x3b0] sm:$0xff]
        %v2879 = vld [vmem:[#allocation2 + $0x3b8] sm:$0xff]
        %v2880 = vld [vmem:[#allocation2 + $0x3c0] sm:$0xff]
        %v2881 = vld [vmem:[#allocation2 + $0x3c8] sm:$0xff]
        %v2882 = vld [vmem:[#allocation2 + $0x3d0] sm:$0xff]
        %v2883 = vld [vmem:[#allocation2 + $0x3d8] sm:$0xff]
        %v2884 = vld [vmem:[#allocation2 + $0x3f0] sm:$0xff]
        %v2885 = vld [vmem:[#allocation2 + $0x3f8] sm:$0xff]
        %v2886 = vld [vmem:[#allocation2 + $0x400] sm:$0xff]
        %v2887 = vld [vmem:[#allocation2 + $0x408] sm:$0xff]
        %v2888 = vld [vmem:[#allocation2 + $0x410] sm:$0xff]
        %v2889 = vld [vmem:[#allocation2 + $0x418] sm:$0xff]
        %v2890 = vld [vmem:[#allocation2 + $0x420] sm:$0xff]
        %v2891 = vld [vmem:[#allocation2 + $0x428] sm:$0xff]
        %v2892 = vld [vmem:[#allocation2 + $0x430] sm:$0xff]
        %v2893 = vld [vmem:[#allocation2 + $0x438] sm:$0xff]
        %v2894 = vld [vmem:[#allocation2 + $0x440] sm:$0xff]
        %v2895 = vld [vmem:[#allocation2 + $0x448] sm:$0xff]
        %v2896 = vld [vmem:[#allocation2 + $0x450] sm:$0xff]
        %v2897 = vld [vmem:[#allocation2 + $0x458] sm:$0xff]
        %v2898 = vld [vmem:[#allocation2 + $0x460] sm:$0xff]
        %v2899 = vld [vmem:[#allocation2 + $0x468] sm:$0xff]
        %v2900 = vld [vmem:[#allocation2 + $0x480] sm:$0xff]
        %v2901 = vld [vmem:[#allocation2 + $0x488] sm:$0xff]
        %v2902 = vld [vmem:[#allocation2 + $0x490] sm:$0xff]
        %v2903 = vld [vmem:[#allocation2 + $0x498] sm:$0xff]
        %v2904 = vld [vmem:[#allocation2 + $0x4a0] sm:$0xff]
        %v2905 = vld [vmem:[#allocation2 + $0x4a8] sm:$0xff]
        %v2906 = vld [vmem:[#allocation2 + $0x4b0] sm:$0xff]
        %v2907 = vld [vmem:[#allocation2 + $0x4b8] sm:$0xff]
        %v2908 = vld [vmem:[#allocation2 + $0x4c0] sm:$0xff]
        %v2909 = vld [vmem:[#allocation2 + $0x4c8] sm:$0xff]
        %v2910 = vld [vmem:[#allocation2 + $0x4d0] sm:$0xff]
        %v2911 = vld [vmem:[#allocation2 + $0x4d8] sm:$0xff]
        %v2912 = vld [vmem:[#allocation2 + $0x4e0] sm:$0xff]
        %v2913 = vld [vmem:[#allocation2 + $0x4e8] sm:$0xff]
        %v2914 = vld [vmem:[#allocation2 + $0x4f0] sm:$0xff]
        %v2915 = vld [vmem:[#allocation2 + $0x4f8] sm:$0xff]
        %v2916 = vld [vmem:[#allocation2 + $0x510] sm:$0xff]
        %v2917 = vld [vmem:[#allocation2 + $0x518] sm:$0xff]
        %v2918 = vld [vmem:[#allocation2 + $0x520] sm:$0xff]
        %v2919 = vld [vmem:[#allocation2 + $0x528] sm:$0xff]
        %v2920 = vld [vmem:[#allocation2 + $0x530] sm:$0xff]
        %v2921 = vld [vmem:[#allocation2 + $0x538] sm:$0xff]
        %v2922 = vld [vmem:[#allocation2 + $0x540] sm:$0xff]
        %v2923 = vld [vmem:[#allocation2 + $0x548] sm:$0xff]
        %v2924 = vld [vmem:[#allocation2 + $0x550] sm:$0xff]
        %v2925 = vld [vmem:[#allocation2 + $0x558] sm:$0xff]
        %v2926 = vld [vmem:[#allocation2 + $0x560] sm:$0xff]
        %v2927 = vld [vmem:[#allocation2 + $0x568] sm:$0xff]
        %v2928 = vld [vmem:[#allocation2 + $0x570] sm:$0xff]
        %v2929 = vld [vmem:[#allocation2 + $0x578] sm:$0xff]
        %v2930 = vld [vmem:[#allocation2 + $0x580] sm:$0xff]
        %v2931 = vld [vmem:[#allocation2 + $0x588] sm:$0xff]
        %s2932 = scalar_lea.vmem %s3, 8
        %v2933 = vld [vmem:[%s2932] sm:$0xf]
        %v2934 = vld [vmem:[%s2932 + $0x4] sm:$0xf]
        %v2935 = vld [vmem:[#allocation2 + $0x4] sm:$0xff]
        %v2936 = vld [vmem:[#allocation2 + $0xc] sm:$0xff]
        %v2937 = vld [vmem:[#allocation2 + $0x14] sm:$0xff]
        %v2938 = vld [vmem:[#allocation2 + $0x1c] sm:$0xff]
        %v2939 = vld [vmem:[#allocation2 + $0x24] sm:$0xff]
        %v2940 = vld [vmem:[#allocation2 + $0x2c] sm:$0xff]
        %v2941 = vld [vmem:[#allocation2 + $0x34] sm:$0xff]
        %v2942 = vld [vmem:[#allocation2 + $0x3c] sm:$0xff]
        %v2943 = vld [vmem:[#allocation2 + $0x44] sm:$0xff]
        %v2944 = vld [vmem:[#allocation2 + $0x4c] sm:$0xff]
        %v2945 = vld [vmem:[#allocation2 + $0x54] sm:$0xff]
        %v2946 = vld [vmem:[#allocation2 + $0x5c] sm:$0xff]
        %v2947 = vld [vmem:[#allocation2 + $0x64] sm:$0xff]
        %v2948 = vld [vmem:[#allocation2 + $0x6c] sm:$0xff]
        %v2949 = vld [vmem:[#allocation2 + $0x74] sm:$0xff]
        %v2950 = vld [vmem:[#allocation2 + $0x7c] sm:$0xff]
        %v2951 = vld [vmem:[#allocation2 + $0x94] sm:$0xff]
        %v2952 = vld [vmem:[#allocation2 + $0x9c] sm:$0xff]
        %v2953 = vld [vmem:[#allocation2 + $0xa4] sm:$0xff]
        %v2954 = vld [vmem:[#allocation2 + $0xac] sm:$0xff]
        %v2955 = vld [vmem:[#allocation2 + $0xb4] sm:$0xff]
        %v2956 = vld [vmem:[#allocation2 + $0xbc] sm:$0xff]
        %v2957 = vld [vmem:[#allocation2 + $0xc4] sm:$0xff]
        %v2958 = vld [vmem:[#allocation2 + $0xcc] sm:$0xff]
        %v2959 = vld [vmem:[#allocation2 + $0xd4] sm:$0xff]
        %v2960 = vld [vmem:[#allocation2 + $0xdc] sm:$0xff]
        %v2961 = vld [vmem:[#allocation2 + $0xe4] sm:$0xff]
        %v2962 = vld [vmem:[#allocation2 + $0xec] sm:$0xff]
        %v2963 = vld [vmem:[#allocation2 + $0xf4] sm:$0xff]
        %v2964 = vld [vmem:[#allocation2 + $0xfc] sm:$0xff]
        %v2965 = vld [vmem:[#allocation2 + $0x104] sm:$0xff]
        %v2966 = vld [vmem:[#allocation2 + $0x10c] sm:$0xff]
        %v2967 = vld [vmem:[#allocation2 + $0x124] sm:$0xff]
        %v2968 = vld [vmem:[#allocation2 + $0x12c] sm:$0xff]
        %v2969 = vld [vmem:[#allocation2 + $0x134] sm:$0xff]
        %v2970 = vld [vmem:[#allocation2 + $0x13c] sm:$0xff]
        %v2971 = vld [vmem:[#allocation2 + $0x144] sm:$0xff]
        %v2972 = vld [vmem:[#allocation2 + $0x14c] sm:$0xff]
        %v2973 = vld [vmem:[#allocation2 + $0x154] sm:$0xff]
        %v2974 = vld [vmem:[#allocation2 + $0x15c] sm:$0xff]
        %v2975 = vld [vmem:[#allocation2 + $0x164] sm:$0xff]
        %v2976 = vld [vmem:[#allocation2 + $0x16c] sm:$0xff]
        %v2977 = vld [vmem:[#allocation2 + $0x174] sm:$0xff]
        %v2978 = vld [vmem:[#allocation2 + $0x17c] sm:$0xff]
        %v2979 = vld [vmem:[#allocation2 + $0x184] sm:$0xff]
        %v2980 = vld [vmem:[#allocation2 + $0x18c] sm:$0xff]
        %v2981 = vld [vmem:[#allocation2 + $0x194] sm:$0xff]
        %v2982 = vld [vmem:[#allocation2 + $0x19c] sm:$0xff]
        %v2983 = vld [vmem:[#allocation2 + $0x1b4] sm:$0xff]
        %v2984 = vld [vmem:[#allocation2 + $0x1bc] sm:$0xff]
        %v2985 = vld [vmem:[#allocation2 + $0x1c4] sm:$0xff]
        %v2986 = vld [vmem:[#allocation2 + $0x1cc] sm:$0xff]
        %v2987 = vld [vmem:[#allocation2 + $0x1d4] sm:$0xff]
        %v2988 = vld [vmem:[#allocation2 + $0x1dc] sm:$0xff]
        %v2989 = vld [vmem:[#allocation2 + $0x1e4] sm:$0xff]
        %v2990 = vld [vmem:[#allocation2 + $0x1ec] sm:$0xff]
        %v2991 = vld [vmem:[#allocation2 + $0x1f4] sm:$0xff]
        %v2992 = vld [vmem:[#allocation2 + $0x1fc] sm:$0xff]
        %v2993 = vld [vmem:[#allocation2 + $0x204] sm:$0xff]
        %v2994 = vld [vmem:[#allocation2 + $0x20c] sm:$0xff]
        %v2995 = vld [vmem:[#allocation2 + $0x214] sm:$0xff]
        %v2996 = vld [vmem:[#allocation2 + $0x21c] sm:$0xff]
        %v2997 = vld [vmem:[#allocation2 + $0x224] sm:$0xff]
        %v2998 = vld [vmem:[#allocation2 + $0x22c] sm:$0xff]
        %v2999 = vld [vmem:[#allocation2 + $0x244] sm:$0xff]
        %v3000 = vld [vmem:[#allocation2 + $0x24c] sm:$0xff]
        %v3001 = vld [vmem:[#allocation2 + $0x254] sm:$0xff]
        %v3002 = vld [vmem:[#allocation2 + $0x25c] sm:$0xff]
        %v3003 = vld [vmem:[#allocation2 + $0x264] sm:$0xff]
        %v3004 = vld [vmem:[#allocation2 + $0x26c] sm:$0xff]
        %v3005 = vld [vmem:[#allocation2 + $0x274] sm:$0xff]
        %v3006 = vld [vmem:[#allocation2 + $0x27c] sm:$0xff]
        %v3007 = vld [vmem:[#allocation2 + $0x284] sm:$0xff]
        %v3008 = vld [vmem:[#allocation2 + $0x28c] sm:$0xff]
        %v3009 = vld [vmem:[#allocation2 + $0x294] sm:$0xff]
        %v3010 = vld [vmem:[#allocation2 + $0x29c] sm:$0xff]
        %v3011 = vld [vmem:[#allocation2 + $0x2a4] sm:$0xff]
        %v3012 = vld [vmem:[#allocation2 + $0x2ac] sm:$0xff]
        %v3013 = vld [vmem:[#allocation2 + $0x2b4] sm:$0xff]
        %v3014 = vld [vmem:[#allocation2 + $0x2bc] sm:$0xff]
        %v3015 = vld [vmem:[#allocation2 + $0x2d4] sm:$0xff]
        %v3016 = vld [vmem:[#allocation2 + $0x2dc] sm:$0xff]
        %v3017 = vld [vmem:[#allocation2 + $0x2e4] sm:$0xff]
        %v3018 = vld [vmem:[#allocation2 + $0x2ec] sm:$0xff]
        %v3019 = vld [vmem:[#allocation2 + $0x2f4] sm:$0xff]
        %v3020 = vld [vmem:[#allocation2 + $0x2fc] sm:$0xff]
        %v3021 = vld [vmem:[#allocation2 + $0x304] sm:$0xff]
        %v3022 = vld [vmem:[#allocation2 + $0x30c] sm:$0xff]
        %v3023 = vld [vmem:[#allocation2 + $0x314] sm:$0xff]
        %v3024 = vld [vmem:[#allocation2 + $0x31c] sm:$0xff]
        %v3025 = vld [vmem:[#allocation2 + $0x324] sm:$0xff]
        %v3026 = vld [vmem:[#allocation2 + $0x32c] sm:$0xff]
        %v3027 = vld [vmem:[#allocation2 + $0x334] sm:$0xff]
        %v3028 = vld [vmem:[#allocation2 + $0x33c] sm:$0xff]
        %v3029 = vld [vmem:[#allocation2 + $0x344] sm:$0xff]
        %v3030 = vld [vmem:[#allocation2 + $0x34c] sm:$0xff]
        %v3031 = vld [vmem:[#allocation2 + $0x364] sm:$0xff]
        %v3032 = vld [vmem:[#allocation2 + $0x36c] sm:$0xff]
        %v3033 = vld [vmem:[#allocation2 + $0x374] sm:$0xff]
        %v3034 = vld [vmem:[#allocation2 + $0x37c] sm:$0xff]
        %v3035 = vld [vmem:[#allocation2 + $0x384] sm:$0xff]
        %v3036 = vld [vmem:[#allocation2 + $0x38c] sm:$0xff]
        %v3037 = vld [vmem:[#allocation2 + $0x394] sm:$0xff]
        %v3038 = vld [vmem:[#allocation2 + $0x39c] sm:$0xff]
        %v3039 = vld [vmem:[#allocation2 + $0x3a4] sm:$0xff]
        %v3040 = vld [vmem:[#allocation2 + $0x3ac] sm:$0xff]
        %v3041 = vld [vmem:[#allocation2 + $0x3b4] sm:$0xff]
        %v3042 = vld [vmem:[#allocation2 + $0x3bc] sm:$0xff]
        %v3043 = vld [vmem:[#allocation2 + $0x3c4] sm:$0xff]
        %v3044 = vld [vmem:[#allocation2 + $0x3cc] sm:$0xff]
        %v3045 = vld [vmem:[#allocation2 + $0x3d4] sm:$0xff]
        %v3046 = vld [vmem:[#allocation2 + $0x3dc] sm:$0xff]
        %v3047 = vld [vmem:[#allocation2 + $0x3f4] sm:$0xff]
        %v3048 = vld [vmem:[#allocation2 + $0x3fc] sm:$0xff]
        %v3049 = vld [vmem:[#allocation2 + $0x404] sm:$0xff]
        %v3050 = vld [vmem:[#allocation2 + $0x40c] sm:$0xff]
        %v3051 = vld [vmem:[#allocation2 + $0x414] sm:$0xff]
        %v3052 = vld [vmem:[#allocation2 + $0x41c] sm:$0xff]
        %v3053 = vld [vmem:[#allocation2 + $0x424] sm:$0xff]
        %v3054 = vld [vmem:[#allocation2 + $0x42c] sm:$0xff]
        %v3055 = vld [vmem:[#allocation2 + $0x434] sm:$0xff]
        %v3056 = vld [vmem:[#allocation2 + $0x43c] sm:$0xff]
        %v3057 = vld [vmem:[#allocation2 + $0x444] sm:$0xff]
        %v3058 = vld [vmem:[#allocation2 + $0x44c] sm:$0xff]
        %v3059 = vld [vmem:[#allocation2 + $0x454] sm:$0xff]
        %v3060 = vld [vmem:[#allocation2 + $0x45c] sm:$0xff]
        %v3061 = vld [vmem:[#allocation2 + $0x464] sm:$0xff]
        %v3062 = vld [vmem:[#allocation2 + $0x46c] sm:$0xff]
        %v3063 = vld [vmem:[#allocation2 + $0x484] sm:$0xff]
        %v3064 = vld [vmem:[#allocation2 + $0x48c] sm:$0xff]
        %v3065 = vld [vmem:[#allocation2 + $0x494] sm:$0xff]
        %v3066 = vld [vmem:[#allocation2 + $0x49c] sm:$0xff]
        %v3067 = vld [vmem:[#allocation2 + $0x4a4] sm:$0xff]
        %v3068 = vld [vmem:[#allocation2 + $0x4ac] sm:$0xff]
        %v3069 = vld [vmem:[#allocation2 + $0x4b4] sm:$0xff]
        %v3070 = vld [vmem:[#allocation2 + $0x4bc] sm:$0xff]
        %v3071 = vld [vmem:[#allocation2 + $0x4c4] sm:$0xff]
        %v3072 = vld [vmem:[#allocation2 + $0x4cc] sm:$0xff]
        %v3073 = vld [vmem:[#allocation2 + $0x4d4] sm:$0xff]
        %v3074 = vld [vmem:[#allocation2 + $0x4dc] sm:$0xff]
        %v3075 = vld [vmem:[#allocation2 + $0x4e4] sm:$0xff]
        %v3076 = vld [vmem:[#allocation2 + $0x4ec] sm:$0xff]
        %v3077 = vld [vmem:[#allocation2 + $0x4f4] sm:$0xff]
        %v3078 = vld [vmem:[#allocation2 + $0x4fc] sm:$0xff]
        %v3079 = vld [vmem:[#allocation2 + $0x514] sm:$0xff]
        %v3080 = vld [vmem:[#allocation2 + $0x51c] sm:$0xff]
        %v3081 = vld [vmem:[#allocation2 + $0x524] sm:$0xff]
        %v3082 = vld [vmem:[#allocation2 + $0x52c] sm:$0xff]
        %v3083 = vld [vmem:[#allocation2 + $0x534] sm:$0xff]
        %v3084 = vld [vmem:[#allocation2 + $0x53c] sm:$0xff]
        %v3085 = vld [vmem:[#allocation2 + $0x544] sm:$0xff]
        %v3086 = vld [vmem:[#allocation2 + $0x54c] sm:$0xff]
        %v3087 = vld [vmem:[#allocation2 + $0x554] sm:$0xff]
        %v3088 = vld [vmem:[#allocation2 + $0x55c] sm:$0xff]
        %v3089 = vld [vmem:[#allocation2 + $0x564] sm:$0xff]
        %v3090 = vld [vmem:[#allocation2 + $0x56c] sm:$0xff]
        %v3091 = vld [vmem:[#allocation2 + $0x574] sm:$0xff]
        %v3092 = vld [vmem:[#allocation2 + $0x57c] sm:$0xff]
        %v3093 = vld [vmem:[#allocation2 + $0x584] sm:$0xff]
        %v3094 = vld [vmem:[#allocation2 + $0x58c] sm:$0xff]
        %v3097 = vunpack.c.l.b16 %v2933
        %v3098 = vunpack.c.l.b16 %v2934
        %v3099 = vpack.c.b16 %v3098, %v3097
        %v3260 = vunpack.c.l.b16 %v2935
        %v3261 = vunpack.c.h.b16 %v2935
        %v3262 = vunpack.c.l.b16 %v2936
        %v3263 = vunpack.c.h.b16 %v2936
        %v3264 = vunpack.c.l.b16 %v2937
        %v3265 = vunpack.c.h.b16 %v2937
        %v3266 = vunpack.c.l.b16 %v2938
        %v3267 = vunpack.c.h.b16 %v2938
        %v3268 = vunpack.c.l.b16 %v2939
        %v3269 = vunpack.c.h.b16 %v2939
        %v3270 = vunpack.c.l.b16 %v2940
        %v3271 = vunpack.c.h.b16 %v2940
        %v3272 = vunpack.c.l.b16 %v2941
        %v3273 = vunpack.c.h.b16 %v2941
        %v3274 = vunpack.c.l.b16 %v2942
        %v3275 = vunpack.c.h.b16 %v2942
        %v3276 = vunpack.c.l.b16 %v2943
        %v3277 = vunpack.c.h.b16 %v2943
        %v3278 = vunpack.c.l.b16 %v2944
        %v3279 = vunpack.c.h.b16 %v2944
        %v3280 = vunpack.c.l.b16 %v2945
        %v3281 = vunpack.c.h.b16 %v2945
        %v3282 = vunpack.c.l.b16 %v2946
        %v3283 = vunpack.c.h.b16 %v2946
        %v3284 = vunpack.c.l.b16 %v2947
        %v3285 = vunpack.c.h.b16 %v2947
        %v3286 = vunpack.c.l.b16 %v2948
        %v3287 = vunpack.c.h.b16 %v2948
        %v3288 = vunpack.c.l.b16 %v2949
        %v3289 = vunpack.c.h.b16 %v2949
        %v3290 = vunpack.c.l.b16 %v2950
        %v3291 = vunpack.c.h.b16 %v2950
        %v3292 = vunpack.c.l.b16 %v2951
        %v3293 = vunpack.c.h.b16 %v2951
        %v3294 = vunpack.c.l.b16 %v2952
        %v3295 = vunpack.c.h.b16 %v2952
        %v3296 = vunpack.c.l.b16 %v2953
        %v3297 = vunpack.c.h.b16 %v2953
        %v3298 = vunpack.c.l.b16 %v2954
        %v3299 = vunpack.c.h.b16 %v2954
        %v3300 = vunpack.c.l.b16 %v2955
        %v3301 = vunpack.c.h.b16 %v2955
        %v3302 = vunpack.c.l.b16 %v2956
        %v3303 = vunpack.c.h.b16 %v2956
        %v3304 = vunpack.c.l.b16 %v2957
        %v3305 = vunpack.c.h.b16 %v2957
        %v3306 = vunpack.c.l.b16 %v2958
        %v3307 = vunpack.c.h.b16 %v2958
        %v3308 = vunpack.c.l.b16 %v2959
        %v3309 = vunpack.c.h.b16 %v2959
        %v3310 = vunpack.c.l.b16 %v2960
        %v3311 = vunpack.c.h.b16 %v2960
        %v3312 = vunpack.c.l.b16 %v2961
        %v3313 = vunpack.c.h.b16 %v2961
        %v3314 = vunpack.c.l.b16 %v2962
        %v3315 = vunpack.c.h.b16 %v2962
        %v3316 = vunpack.c.l.b16 %v2963
        %v3317 = vunpack.c.h.b16 %v2963
        %v3318 = vunpack.c.l.b16 %v2964
        %v3319 = vunpack.c.h.b16 %v2964
        %v3320 = vunpack.c.l.b16 %v2965
        %v3321 = vunpack.c.h.b16 %v2965
        %v3322 = vunpack.c.l.b16 %v2966
        %v3323 = vunpack.c.h.b16 %v2966
        %v3324 = vunpack.c.l.b16 %v2967
        %v3325 = vunpack.c.h.b16 %v2967
        %v3326 = vunpack.c.l.b16 %v2968
        %v3327 = vunpack.c.h.b16 %v2968
        %v3328 = vunpack.c.l.b16 %v2969
        %v3329 = vunpack.c.h.b16 %v2969
        %v3330 = vunpack.c.l.b16 %v2970
        %v3331 = vunpack.c.h.b16 %v2970
        %v3332 = vunpack.c.l.b16 %v2971
        %v3333 = vunpack.c.h.b16 %v2971
        %v3334 = vunpack.c.l.b16 %v2972
        %v3335 = vunpack.c.h.b16 %v2972
        %v3336 = vunpack.c.l.b16 %v2973
        %v3337 = vunpack.c.h.b16 %v2973
        %v3338 = vunpack.c.l.b16 %v2974
        %v3339 = vunpack.c.h.b16 %v2974
        %v3340 = vunpack.c.l.b16 %v2975
        %v3341 = vunpack.c.h.b16 %v2975
        %v3342 = vunpack.c.l.b16 %v2976
        %v3343 = vunpack.c.h.b16 %v2976
        %v3344 = vunpack.c.l.b16 %v2977
        %v3345 = vunpack.c.h.b16 %v2977
        %v3346 = vunpack.c.l.b16 %v2978
        %v3347 = vunpack.c.h.b16 %v2978
        %v3348 = vunpack.c.l.b16 %v2979
        %v3349 = vunpack.c.h.b16 %v2979
        %v3350 = vunpack.c.l.b16 %v2980
        %v3351 = vunpack.c.h.b16 %v2980
        %v3352 = vunpack.c.l.b16 %v2981
        %v3353 = vunpack.c.h.b16 %v2981
        %v3354 = vunpack.c.l.b16 %v2982
        %v3355 = vunpack.c.h.b16 %v2982
        %v3356 = vunpack.c.l.b16 %v2983
        %v3357 = vunpack.c.h.b16 %v2983
        %v3358 = vunpack.c.l.b16 %v2984
        %v3359 = vunpack.c.h.b16 %v2984
        %v3360 = vunpack.c.l.b16 %v2985
        %v3361 = vunpack.c.h.b16 %v2985
        %v3362 = vunpack.c.l.b16 %v2986
        %v3363 = vunpack.c.h.b16 %v2986
        %v3364 = vunpack.c.l.b16 %v2987
        %v3365 = vunpack.c.h.b16 %v2987
        %v3366 = vunpack.c.l.b16 %v2988
        %v3367 = vunpack.c.h.b16 %v2988
        %v3368 = vunpack.c.l.b16 %v2989
        %v3369 = vunpack.c.h.b16 %v2989
        %v3370 = vunpack.c.l.b16 %v2990
        %v3371 = vunpack.c.h.b16 %v2990
        %v3372 = vunpack.c.l.b16 %v2991
        %v3373 = vunpack.c.h.b16 %v2991
        %v3374 = vunpack.c.l.b16 %v2992
        %v3375 = vunpack.c.h.b16 %v2992
        %v3376 = vunpack.c.l.b16 %v2993
        %v3377 = vunpack.c.h.b16 %v2993
        %v3378 = vunpack.c.l.b16 %v2994
        %v3379 = vunpack.c.h.b16 %v2994
        %v3380 = vunpack.c.l.b16 %v2995
        %v3381 = vunpack.c.h.b16 %v2995
        %v3382 = vunpack.c.l.b16 %v2996
        %v3383 = vunpack.c.h.b16 %v2996
        %v3384 = vunpack.c.l.b16 %v2997
        %v3385 = vunpack.c.h.b16 %v2997
        %v3386 = vunpack.c.l.b16 %v2998
        %v3387 = vunpack.c.h.b16 %v2998
        %v3388 = vunpack.c.l.b16 %v2999
        %v3389 = vunpack.c.h.b16 %v2999
        %v3390 = vunpack.c.l.b16 %v3000
        %v3391 = vunpack.c.h.b16 %v3000
        %v3392 = vunpack.c.l.b16 %v3001
        %v3393 = vunpack.c.h.b16 %v3001
        %v3394 = vunpack.c.l.b16 %v3002
        %v3395 = vunpack.c.h.b16 %v3002
        %v3396 = vunpack.c.l.b16 %v3003
        %v3397 = vunpack.c.h.b16 %v3003
        %v3398 = vunpack.c.l.b16 %v3004
        %v3399 = vunpack.c.h.b16 %v3004
        %v3400 = vunpack.c.l.b16 %v3005
        %v3401 = vunpack.c.h.b16 %v3005
        %v3402 = vunpack.c.l.b16 %v3006
        %v3403 = vunpack.c.h.b16 %v3006
        %v3404 = vunpack.c.l.b16 %v3007
        %v3405 = vunpack.c.h.b16 %v3007
        %v3406 = vunpack.c.l.b16 %v3008
        %v3407 = vunpack.c.h.b16 %v3008
        %v3408 = vunpack.c.l.b16 %v3009
        %v3409 = vunpack.c.h.b16 %v3009
        %v3410 = vunpack.c.l.b16 %v3010
        %v3411 = vunpack.c.h.b16 %v3010
        %v3412 = vunpack.c.l.b16 %v3011
        %v3413 = vunpack.c.h.b16 %v3011
        %v3414 = vunpack.c.l.b16 %v3012
        %v3415 = vunpack.c.h.b16 %v3012
        %v3416 = vunpack.c.l.b16 %v3013
        %v3417 = vunpack.c.h.b16 %v3013
        %v3418 = vunpack.c.l.b16 %v3014
        %v3419 = vunpack.c.h.b16 %v3014
        %v3420 = vunpack.c.l.b16 %v3015
        %v3421 = vunpack.c.h.b16 %v3015
        %v3422 = vunpack.c.l.b16 %v3016
        %v3423 = vunpack.c.h.b16 %v3016
        %v3424 = vunpack.c.l.b16 %v3017
        %v3425 = vunpack.c.h.b16 %v3017
        %v3426 = vunpack.c.l.b16 %v3018
        %v3427 = vunpack.c.h.b16 %v3018
        %v3428 = vunpack.c.l.b16 %v3019
        %v3429 = vunpack.c.h.b16 %v3019
        %v3430 = vunpack.c.l.b16 %v3020
        %v3431 = vunpack.c.h.b16 %v3020
        %v3432 = vunpack.c.l.b16 %v3021
        %v3433 = vunpack.c.h.b16 %v3021
        %v3434 = vunpack.c.l.b16 %v3022
        %v3435 = vunpack.c.h.b16 %v3022
        %v3436 = vunpack.c.l.b16 %v3023
        %v3437 = vunpack.c.h.b16 %v3023
        %v3438 = vunpack.c.l.b16 %v3024
        %v3439 = vunpack.c.h.b16 %v3024
        %v3440 = vunpack.c.l.b16 %v3025
        %v3441 = vunpack.c.h.b16 %v3025
        %v3442 = vunpack.c.l.b16 %v3026
        %v3443 = vunpack.c.h.b16 %v3026
        %v3444 = vunpack.c.l.b16 %v3027
        %v3445 = vunpack.c.h.b16 %v3027
        %v3446 = vunpack.c.l.b16 %v3028
        %v3447 = vunpack.c.h.b16 %v3028
        %v3448 = vunpack.c.l.b16 %v3029
        %v3449 = vunpack.c.h.b16 %v3029
        %v3450 = vunpack.c.l.b16 %v3030
        %v3451 = vunpack.c.h.b16 %v3030
        %v3452 = vunpack.c.l.b16 %v3031
        %v3453 = vunpack.c.h.b16 %v3031
        %v3454 = vunpack.c.l.b16 %v3032
        %v3455 = vunpack.c.h.b16 %v3032
        %v3456 = vunpack.c.l.b16 %v3033
        %v3457 = vunpack.c.h.b16 %v3033
        %v3458 = vunpack.c.l.b16 %v3034
        %v3459 = vunpack.c.h.b16 %v3034
        %v3460 = vunpack.c.l.b16 %v3035
        %v3461 = vunpack.c.h.b16 %v3035
        %v3462 = vunpack.c.l.b16 %v3036
        %v3463 = vunpack.c.h.b16 %v3036
        %v3464 = vunpack.c.l.b16 %v3037
        %v3465 = vunpack.c.h.b16 %v3037
        %v3466 = vunpack.c.l.b16 %v3038
        %v3467 = vunpack.c.h.b16 %v3038
        %v3468 = vunpack.c.l.b16 %v3039
        %v3469 = vunpack.c.h.b16 %v3039
        %v3470 = vunpack.c.l.b16 %v3040
        %v3471 = vunpack.c.h.b16 %v3040
        %v3472 = vunpack.c.l.b16 %v3041
        %v3473 = vunpack.c.h.b16 %v3041
        %v3474 = vunpack.c.l.b16 %v3042
        %v3475 = vunpack.c.h.b16 %v3042
        %v3476 = vunpack.c.l.b16 %v3043
        %v3477 = vunpack.c.h.b16 %v3043
        %v3478 = vunpack.c.l.b16 %v3044
        %v3479 = vunpack.c.h.b16 %v3044
        %v3480 = vunpack.c.l.b16 %v3045
        %v3481 = vunpack.c.h.b16 %v3045
        %v3482 = vunpack.c.l.b16 %v3046
        %v3483 = vunpack.c.h.b16 %v3046
        %v3484 = vunpack.c.l.b16 %v3047
        %v3485 = vunpack.c.h.b16 %v3047
        %v3486 = vunpack.c.l.b16 %v3048
        %v3487 = vunpack.c.h.b16 %v3048
        %v3488 = vunpack.c.l.b16 %v3049
        %v3489 = vunpack.c.h.b16 %v3049
        %v3490 = vunpack.c.l.b16 %v3050
        %v3491 = vunpack.c.h.b16 %v3050
        %v3492 = vunpack.c.l.b16 %v3051
        %v3493 = vunpack.c.h.b16 %v3051
        %v3494 = vunpack.c.l.b16 %v3052
        %v3495 = vunpack.c.h.b16 %v3052
        %v3496 = vunpack.c.l.b16 %v3053
        %v3497 = vunpack.c.h.b16 %v3053
        %v3498 = vunpack.c.l.b16 %v3054
        %v3499 = vunpack.c.h.b16 %v3054
        %v3500 = vunpack.c.l.b16 %v3055
        %v3501 = vunpack.c.h.b16 %v3055
        %v3502 = vunpack.c.l.b16 %v3056
        %v3503 = vunpack.c.h.b16 %v3056
        %v3504 = vunpack.c.l.b16 %v3057
        %v3505 = vunpack.c.h.b16 %v3057
        %v3506 = vunpack.c.l.b16 %v3058
        %v3507 = vunpack.c.h.b16 %v3058
        %v3508 = vunpack.c.l.b16 %v3059
        %v3509 = vunpack.c.h.b16 %v3059
        %v3510 = vunpack.c.l.b16 %v3060
        %v3511 = vunpack.c.h.b16 %v3060
        %v3512 = vunpack.c.l.b16 %v3061
        %v3513 = vunpack.c.h.b16 %v3061
        %v3514 = vunpack.c.l.b16 %v3062
        %v3515 = vunpack.c.h.b16 %v3062
        %v3516 = vunpack.c.l.b16 %v3063
        %v3517 = vunpack.c.h.b16 %v3063
        %v3518 = vunpack.c.l.b16 %v3064
        %v3519 = vunpack.c.h.b16 %v3064
        %v3520 = vunpack.c.l.b16 %v3065
        %v3521 = vunpack.c.h.b16 %v3065
        %v3522 = vunpack.c.l.b16 %v3066
        %v3523 = vunpack.c.h.b16 %v3066
        %v3524 = vunpack.c.l.b16 %v3067
        %v3525 = vunpack.c.h.b16 %v3067
        %v3526 = vunpack.c.l.b16 %v3068
        %v3527 = vunpack.c.h.b16 %v3068
        %v3528 = vunpack.c.l.b16 %v3069
        %v3529 = vunpack.c.h.b16 %v3069
        %v3530 = vunpack.c.l.b16 %v3070
        %v3531 = vunpack.c.h.b16 %v3070
        %v3532 = vunpack.c.l.b16 %v3071
        %v3533 = vunpack.c.h.b16 %v3071
        %v3534 = vunpack.c.l.b16 %v3072
        %v3535 = vunpack.c.h.b16 %v3072
        %v3536 = vunpack.c.l.b16 %v3073
        %v3537 = vunpack.c.h.b16 %v3073
        %v3538 = vunpack.c.l.b16 %v3074
        %v3539 = vunpack.c.h.b16 %v3074
        %v3540 = vunpack.c.l.b16 %v3075
        %v3541 = vunpack.c.h.b16 %v3075
        %v3542 = vunpack.c.l.b16 %v3076
        %v3543 = vunpack.c.h.b16 %v3076
        %v3544 = vunpack.c.l.b16 %v3077
        %v3545 = vunpack.c.h.b16 %v3077
        %v3546 = vunpack.c.l.b16 %v3078
        %v3547 = vunpack.c.h.b16 %v3078
        %v3548 = vunpack.c.l.b16 %v3079
        %v3549 = vunpack.c.h.b16 %v3079
        %v3550 = vunpack.c.l.b16 %v3080
        %v3551 = vunpack.c.h.b16 %v3080
        %v3552 = vunpack.c.l.b16 %v3081
        %v3553 = vunpack.c.h.b16 %v3081
        %v3554 = vunpack.c.l.b16 %v3082
        %v3555 = vunpack.c.h.b16 %v3082
        %v3556 = vunpack.c.l.b16 %v3083
        %v3557 = vunpack.c.h.b16 %v3083
        %v3558 = vunpack.c.l.b16 %v3084
        %v3559 = vunpack.c.h.b16 %v3084
        %v3560 = vunpack.c.l.b16 %v3085
        %v3561 = vunpack.c.h.b16 %v3085
        %v3562 = vunpack.c.l.b16 %v3086
        %v3563 = vunpack.c.h.b16 %v3086
        %v3564 = vunpack.c.l.b16 %v3087
        %v3565 = vunpack.c.h.b16 %v3087
        %v3566 = vunpack.c.l.b16 %v3088
        %v3567 = vunpack.c.h.b16 %v3088
        %v3568 = vunpack.c.l.b16 %v3089
        %v3569 = vunpack.c.h.b16 %v3089
        %v3570 = vunpack.c.l.b16 %v3090
        %v3571 = vunpack.c.h.b16 %v3090
        %v3572 = vunpack.c.l.b16 %v3091
        %v3573 = vunpack.c.h.b16 %v3091
        %v3574 = vunpack.c.l.b16 %v3092
        %v3575 = vunpack.c.h.b16 %v3092
        %v3576 = vunpack.c.l.b16 %v3093
        %v3577 = vunpack.c.h.b16 %v3093
        %v3578 = vunpack.c.l.b16 %v3094
        %v3579 = vunpack.c.h.b16 %v3094
        %v3580 = vpack.c.b16 %v3292, %v3260
        %v3581 = vpack.c.b16 %v3293, %v3261
        %v3582 = vpack.c.b16 %v3294, %v3262
        %v3583 = vpack.c.b16 %v3295, %v3263
        %v3584 = vpack.c.b16 %v3296, %v3264
        %v3585 = vpack.c.b16 %v3297, %v3265
        %v3586 = vpack.c.b16 %v3298, %v3266
        %v3587 = vpack.c.b16 %v3299, %v3267
        %v3588 = vpack.c.b16 %v3300, %v3268
        %v3589 = vpack.c.b16 %v3301, %v3269
        %v3590 = vpack.c.b16 %v3302, %v3270
        %v3591 = vpack.c.b16 %v3303, %v3271
        %v3592 = vpack.c.b16 %v3304, %v3272
        %v3593 = vpack.c.b16 %v3305, %v3273
        %v3594 = vpack.c.b16 %v3306, %v3274
        %v3595 = vpack.c.b16 %v3307, %v3275
        %v3596 = vpack.c.b16 %v3308, %v3276
        %v3597 = vpack.c.b16 %v3309, %v3277
        %v3598 = vpack.c.b16 %v3310, %v3278
        %v3599 = vpack.c.b16 %v3311, %v3279
        %v3600 = vpack.c.b16 %v3312, %v3280
        %v3601 = vpack.c.b16 %v3313, %v3281
        %v3602 = vpack.c.b16 %v3314, %v3282
        %v3603 = vpack.c.b16 %v3315, %v3283
        %v3604 = vpack.c.b16 %v3316, %v3284
        %v3605 = vpack.c.b16 %v3317, %v3285
        %v3606 = vpack.c.b16 %v3318, %v3286
        %v3607 = vpack.c.b16 %v3319, %v3287
        %v3608 = vpack.c.b16 %v3320, %v3288
        %v3609 = vpack.c.b16 %v3321, %v3289
        %v3610 = vpack.c.b16 %v3322, %v3290
        %v3611 = vpack.c.b16 %v3323, %v3291
        %v3612 = vpack.c.b16 %v3356, %v3324
        %v3613 = vpack.c.b16 %v3357, %v3325
        %v3614 = vpack.c.b16 %v3358, %v3326
        %v3615 = vpack.c.b16 %v3359, %v3327
        %v3616 = vpack.c.b16 %v3360, %v3328
        %v3617 = vpack.c.b16 %v3361, %v3329
        %v3618 = vpack.c.b16 %v3362, %v3330
        %v3619 = vpack.c.b16 %v3363, %v3331
        %v3620 = vpack.c.b16 %v3364, %v3332
        %v3621 = vpack.c.b16 %v3365, %v3333
        %v3622 = vpack.c.b16 %v3366, %v3334
        %v3623 = vpack.c.b16 %v3367, %v3335
        %v3624 = vpack.c.b16 %v3368, %v3336
        %v3625 = vpack.c.b16 %v3369, %v3337
        %v3626 = vpack.c.b16 %v3370, %v3338
        %v3627 = vpack.c.b16 %v3371, %v3339
        %v3628 = vpack.c.b16 %v3372, %v3340
        %v3629 = vpack.c.b16 %v3373, %v3341
        %v3630 = vpack.c.b16 %v3374, %v3342
        %v3631 = vpack.c.b16 %v3375, %v3343
        %v3632 = vpack.c.b16 %v3376, %v3344
        %v3633 = vpack.c.b16 %v3377, %v3345
        %v3634 = vpack.c.b16 %v3378, %v3346
        %v3635 = vpack.c.b16 %v3379, %v3347
        %v3636 = vpack.c.b16 %v3380, %v3348
        %v3637 = vpack.c.b16 %v3381, %v3349
        %v3638 = vpack.c.b16 %v3382, %v3350
        %v3639 = vpack.c.b16 %v3383, %v3351
        %v3640 = vpack.c.b16 %v3384, %v3352
        %v3641 = vpack.c.b16 %v3385, %v3353
        %v3642 = vpack.c.b16 %v3386, %v3354
        %v3643 = vpack.c.b16 %v3387, %v3355
        %v3644 = vpack.c.b16 %v3420, %v3388
        %v3645 = vpack.c.b16 %v3421, %v3389
        %v3646 = vpack.c.b16 %v3422, %v3390
        %v3647 = vpack.c.b16 %v3423, %v3391
        %v3648 = vpack.c.b16 %v3424, %v3392
        %v3649 = vpack.c.b16 %v3425, %v3393
        %v3650 = vpack.c.b16 %v3426, %v3394
        %v3651 = vpack.c.b16 %v3427, %v3395
        %v3652 = vpack.c.b16 %v3428, %v3396
        %v3653 = vpack.c.b16 %v3429, %v3397
        %v3654 = vpack.c.b16 %v3430, %v3398
        %v3655 = vpack.c.b16 %v3431, %v3399
        %v3656 = vpack.c.b16 %v3432, %v3400
        %v3657 = vpack.c.b16 %v3433, %v3401
        %v3658 = vpack.c.b16 %v3434, %v3402
        %v3659 = vpack.c.b16 %v3435, %v3403
        %v3660 = vpack.c.b16 %v3436, %v3404
        %v3661 = vpack.c.b16 %v3437, %v3405
        %v3662 = vpack.c.b16 %v3438, %v3406
        %v3663 = vpack.c.b16 %v3439, %v3407
        %v3664 = vpack.c.b16 %v3440, %v3408
        %v3665 = vpack.c.b16 %v3441, %v3409
        %v3666 = vpack.c.b16 %v3442, %v3410
        %v3667 = vpack.c.b16 %v3443, %v3411
        %v3668 = vpack.c.b16 %v3444, %v3412
        %v3669 = vpack.c.b16 %v3445, %v3413
        %v3670 = vpack.c.b16 %v3446, %v3414
        %v3671 = vpack.c.b16 %v3447, %v3415
        %v3672 = vpack.c.b16 %v3448, %v3416
        %v3673 = vpack.c.b16 %v3449, %v3417
        %v3674 = vpack.c.b16 %v3450, %v3418
        %v3675 = vpack.c.b16 %v3451, %v3419
        %v3676 = vpack.c.b16 %v3484, %v3452
        %v3677 = vpack.c.b16 %v3485, %v3453
        %v3678 = vpack.c.b16 %v3486, %v3454
        %v3679 = vpack.c.b16 %v3487, %v3455
        %v3680 = vpack.c.b16 %v3488, %v3456
        %v3681 = vpack.c.b16 %v3489, %v3457
        %v3682 = vpack.c.b16 %v3490, %v3458
        %v3683 = vpack.c.b16 %v3491, %v3459
        %v3684 = vpack.c.b16 %v3492, %v3460
        %v3685 = vpack.c.b16 %v3493, %v3461
        %v3686 = vpack.c.b16 %v3494, %v3462
        %v3687 = vpack.c.b16 %v3495, %v3463
        %v3688 = vpack.c.b16 %v3496, %v3464
        %v3689 = vpack.c.b16 %v3497, %v3465
        %v3690 = vpack.c.b16 %v3498, %v3466
        %v3691 = vpack.c.b16 %v3499, %v3467
        %v3692 = vpack.c.b16 %v3500, %v3468
        %v3693 = vpack.c.b16 %v3501, %v3469
        %v3694 = vpack.c.b16 %v3502, %v3470
        %v3695 = vpack.c.b16 %v3503, %v3471
        %v3696 = vpack.c.b16 %v3504, %v3472
        %v3697 = vpack.c.b16 %v3505, %v3473
        %v3698 = vpack.c.b16 %v3506, %v3474
        %v3699 = vpack.c.b16 %v3507, %v3475
        %v3700 = vpack.c.b16 %v3508, %v3476
        %v3701 = vpack.c.b16 %v3509, %v3477
        %v3702 = vpack.c.b16 %v3510, %v3478
        %v3703 = vpack.c.b16 %v3511, %v3479
        %v3704 = vpack.c.b16 %v3512, %v3480
        %v3705 = vpack.c.b16 %v3513, %v3481
        %v3706 = vpack.c.b16 %v3514, %v3482
        %v3707 = vpack.c.b16 %v3515, %v3483
        %v3708 = vpack.c.b16 %v3548, %v3516
        %v3709 = vpack.c.b16 %v3549, %v3517
        %v3710 = vpack.c.b16 %v3550, %v3518
        %v3711 = vpack.c.b16 %v3551, %v3519
        %v3712 = vpack.c.b16 %v3552, %v3520
        %v3713 = vpack.c.b16 %v3553, %v3521
        %v3714 = vpack.c.b16 %v3554, %v3522
        %v3715 = vpack.c.b16 %v3555, %v3523
        %v3716 = vpack.c.b16 %v3556, %v3524
        %v3717 = vpack.c.b16 %v3557, %v3525
        %v3718 = vpack.c.b16 %v3558, %v3526
        %v3719 = vpack.c.b16 %v3559, %v3527
        %v3720 = vpack.c.b16 %v3560, %v3528
        %v3721 = vpack.c.b16 %v3561, %v3529
        %v3722 = vpack.c.b16 %v3562, %v3530
        %v3723 = vpack.c.b16 %v3563, %v3531
        %v3724 = vpack.c.b16 %v3564, %v3532
        %v3725 = vpack.c.b16 %v3565, %v3533
        %v3726 = vpack.c.b16 %v3566, %v3534
        %v3727 = vpack.c.b16 %v3567, %v3535
        %v3728 = vpack.c.b16 %v3568, %v3536
        %v3729 = vpack.c.b16 %v3569, %v3537
        %v3730 = vpack.c.b16 %v3570, %v3538
        %v3731 = vpack.c.b16 %v3571, %v3539
        %v3732 = vpack.c.b16 %v3572, %v3540
        %v3733 = vpack.c.b16 %v3573, %v3541
        %v3734 = vpack.c.b16 %v3574, %v3542
        %v3735 = vpack.c.b16 %v3575, %v3543
        %v3736 = vpack.c.b16 %v3576, %v3544
        %v3737 = vpack.c.b16 %v3577, %v3545
        %v3738 = vpack.c.b16 %v3578, %v3546
        %v3739 = vpack.c.b16 %v3579, %v3547
        %vm3900 = vcmask 654336
        %v3902 = vsel %vm3900, %v3099, 0
        %3904 = vmatpush.bf16.msra.mxu0 0
        %3905 = vmatpush.bf16.msra.mxu0 0
        %3906 = vmatpush.bf16.msra.mxu0 0
        %3907 = vmatpush.bf16.msra.mxu0 %v3708
        %3908 = vmatpush.bf16.msra.mxu0 %v3676
        %3909 = vmatpush.bf16.msra.mxu0 %v3644
        %3910 = vmatpush.bf16.msra.mxu0 %v3612
        %3911 = vmatpush.bf16.msra.mxu0 %v3580
        %3912 = vmatmul.bf16.gmra.mxu0 %v3902
        %v3913 = vpop.f32.mrf.mxu0
        %v3914 = vadd.f32 0.0, %v3913
        %v3915 = vpop.f32.mrf.mxu0
        %v3916 = vadd.f32 0.0, %v3915
        %3917 = vdwg.mxu0
        %3918 = vmatpush.bf16.msra.mxu0 0
        %3919 = vmatpush.bf16.msra.mxu0 0
        %3920 = vmatpush.bf16.msra.mxu0 0
        %3921 = vmatpush.bf16.msra.mxu0 %v3709
        %3922 = vmatpush.bf16.msra.mxu0 %v3677
        %3923 = vmatpush.bf16.msra.mxu0 %v3645
        %3924 = vmatpush.bf16.msra.mxu0 %v3613
        %3925 = vmatpush.bf16.msra.mxu0 %v3581
        %3926 = vmatmul.bf16.gmra.mxu0 %v3902
        %v3927 = vpop.f32.mrf.mxu0
        %v3928 = vadd.f32 0.0, %v3927
        %v3929 = vpop.f32.mrf.mxu0
        %v3930 = vadd.f32 0.0, %v3929
        %3931 = vdwg.mxu0
        %3932 = vmatpush.bf16.msra.mxu0 0
        %3933 = vmatpush.bf16.msra.mxu0 0
        %3934 = vmatpush.bf16.msra.mxu0 0
        %3935 = vmatpush.bf16.msra.mxu0 %v3710
        %3936 = vmatpush.bf16.msra.mxu0 %v3678
        %3937 = vmatpush.bf16.msra.mxu0 %v3646
        %3938 = vmatpush.bf16.msra.mxu0 %v3614
        %3939 = vmatpush.bf16.msra.mxu0 %v3582
        %3940 = vmatmul.bf16.gmra.mxu0 %v3902
        %v3941 = vpop.f32.mrf.mxu0
        %v3942 = vadd.f32 0.0, %v3941
        %v3943 = vpop.f32.mrf.mxu0
        %v3944 = vadd.f32 0.0, %v3943
        %3945 = vdwg.mxu0
        %3946 = vmatpush.bf16.msra.mxu0 0
        %3947 = vmatpush.bf16.msra.mxu0 0
        %3948 = vmatpush.bf16.msra.mxu0 0
        %3949 = vmatpush.bf16.msra.mxu0 %v3711
        %3950 = vmatpush.bf16.msra.mxu0 %v3679
        %3951 = vmatpush.bf16.msra.mxu0 %v3647
        %3952 = vmatpush.bf16.msra.mxu0 %v3615
        %3953 = vmatpush.bf16.msra.mxu0 %v3583
        %3954 = vmatmul.bf16.gmra.mxu0 %v3902
        %v3955 = vpop.f32.mrf.mxu0
        %v3956 = vadd.f32 0.0, %v3955
        %v3957 = vpop.f32.mrf.mxu0
        %v3958 = vadd.f32 0.0, %v3957
        %3959 = vdwg.mxu0
        %3960 = vmatpush.bf16.msra.mxu0 0
        %3961 = vmatpush.bf16.msra.mxu0 0
        %3962 = vmatpush.bf16.msra.mxu0 0
        %3963 = vmatpush.bf16.msra.mxu0 %v3712
        %3964 = vmatpush.bf16.msra.mxu0 %v3680
        %3965 = vmatpush.bf16.msra.mxu0 %v3648
        %3966 = vmatpush.bf16.msra.mxu0 %v3616
        %3967 = vmatpush.bf16.msra.mxu0 %v3584
        %3968 = vmatmul.bf16.gmra.mxu0 %v3902
        %v3969 = vpop.f32.mrf.mxu0
        %v3970 = vadd.f32 0.0, %v3969
        %v3971 = vpop.f32.mrf.mxu0
        %v3972 = vadd.f32 0.0, %v3971
        %3973 = vdwg.mxu0
        %3974 = vmatpush.bf16.msra.mxu0 0
        %3975 = vmatpush.bf16.msra.mxu0 0
        %3976 = vmatpush.bf16.msra.mxu0 0
        %3977 = vmatpush.bf16.msra.mxu0 %v3713
        %3978 = vmatpush.bf16.msra.mxu0 %v3681
        %3979 = vmatpush.bf16.msra.mxu0 %v3649
        %3980 = vmatpush.bf16.msra.mxu0 %v3617
        %3981 = vmatpush.bf16.msra.mxu0 %v3585
        %3982 = vmatmul.bf16.gmra.mxu0 %v3902
        %v3983 = vpop.f32.mrf.mxu0
        %v3984 = vadd.f32 0.0, %v3983
        %v3985 = vpop.f32.mrf.mxu0
        %v3986 = vadd.f32 0.0, %v3985
        %3987 = vdwg.mxu0
        %3988 = vmatpush.bf16.msra.mxu0 0
        %3989 = vmatpush.bf16.msra.mxu0 0
        %3990 = vmatpush.bf16.msra.mxu0 0
        %3991 = vmatpush.bf16.msra.mxu0 %v3714
        %3992 = vmatpush.bf16.msra.mxu0 %v3682
        %3993 = vmatpush.bf16.msra.mxu0 %v3650
        %3994 = vmatpush.bf16.msra.mxu0 %v3618
        %3995 = vmatpush.bf16.msra.mxu0 %v3586
        %3996 = vmatmul.bf16.gmra.mxu0 %v3902
        %v3997 = vpop.f32.mrf.mxu0
        %v3998 = vadd.f32 0.0, %v3997
        %v3999 = vpop.f32.mrf.mxu0
        %v4000 = vadd.f32 0.0, %v3999
        %4001 = vdwg.mxu0
        %4002 = vmatpush.bf16.msra.mxu0 0
        %4003 = vmatpush.bf16.msra.mxu0 0
        %4004 = vmatpush.bf16.msra.mxu0 0
        %4005 = vmatpush.bf16.msra.mxu0 %v3715
        %4006 = vmatpush.bf16.msra.mxu0 %v3683
        %4007 = vmatpush.bf16.msra.mxu0 %v3651
        %4008 = vmatpush.bf16.msra.mxu0 %v3619
        %4009 = vmatpush.bf16.msra.mxu0 %v3587
        %4010 = vmatmul.bf16.gmra.mxu0 %v3902
        %v4011 = vpop.f32.mrf.mxu0
        %v4012 = vadd.f32 0.0, %v4011
        %v4013 = vpop.f32.mrf.mxu0
        %v4014 = vadd.f32 0.0, %v4013
        %4015 = vdwg.mxu0
        %4016 = vmatpush.bf16.msra.mxu0 0
        %4017 = vmatpush.bf16.msra.mxu0 0
        %4018 = vmatpush.bf16.msra.mxu0 0
        %4019 = vmatpush.bf16.msra.mxu0 %v3716
        %4020 = vmatpush.bf16.msra.mxu0 %v3684
        %4021 = vmatpush.bf16.msra.mxu0 %v3652
        %4022 = vmatpush.bf16.msra.mxu0 %v3620
        %4023 = vmatpush.bf16.msra.mxu0 %v3588
        %4024 = vmatmul.bf16.gmra.mxu0 %v3902
        %v4025 = vpop.f32.mrf.mxu0
        %v4026 = vadd.f32 0.0, %v4025
        %v4027 = vpop.f32.mrf.mxu0
        %v4028 = vadd.f32 0.0, %v4027
        %4029 = vdwg.mxu0
        %4030 = vmatpush.bf16.msra.mxu0 0
        %4031 = vmatpush.bf16.msra.mxu0 0
        %4032 = vmatpush.bf16.msra.mxu0 0
        %4033 = vmatpush.bf16.msra.mxu0 %v3717
        %4034 = vmatpush.bf16.msra.mxu0 %v3685
        %4035 = vmatpush.bf16.msra.mxu0 %v3653
        %4036 = vmatpush.bf16.msra.mxu0 %v3621
        %4037 = vmatpush.bf16.msra.mxu0 %v3589
        %4038 = vmatmul.bf16.gmra.mxu0 %v3902
        %v4039 = vpop.f32.mrf.mxu0
        %v4040 = vadd.f32 0.0, %v4039
        %v4041 = vpop.f32.mrf.mxu0
        %v4042 = vadd.f32 0.0, %v4041
        %4043 = vdwg.mxu0
        %4044 = vmatpush.bf16.msra.mxu0 0
        %4045 = vmatpush.bf16.msra.mxu0 0
        %4046 = vmatpush.bf16.msra.mxu0 0
        %4047 = vmatpush.bf16.msra.mxu0 %v3718
        %4048 = vmatpush.bf16.msra.mxu0 %v3686
        %4049 = vmatpush.bf16.msra.mxu0 %v3654
        %4050 = vmatpush.bf16.msra.mxu0 %v3622
        %4051 = vmatpush.bf16.msra.mxu0 %v3590
        %4052 = vmatmul.bf16.gmra.mxu0 %v3902
        %v4053 = vpop.f32.mrf.mxu0
        %v4054 = vadd.f32 0.0, %v4053
        %v4055 = vpop.f32.mrf.mxu0
        %v4056 = vadd.f32 0.0, %v4055
        %4057 = vdwg.mxu0
        %4058 = vmatpush.bf16.msra.mxu0 0
        %4059 = vmatpush.bf16.msra.mxu0 0
        %4060 = vmatpush.bf16.msra.mxu0 0
        %4061 = vmatpush.bf16.msra.mxu0 %v3719
        %4062 = vmatpush.bf16.msra.mxu0 %v3687
        %4063 = vmatpush.bf16.msra.mxu0 %v3655
        %4064 = vmatpush.bf16.msra.mxu0 %v3623
        %4065 = vmatpush.bf16.msra.mxu0 %v3591
        %4066 = vmatmul.bf16.gmra.mxu0 %v3902
        %v4067 = vpop.f32.mrf.mxu0
        %v4068 = vadd.f32 0.0, %v4067
        %v4069 = vpop.f32.mrf.mxu0
        %v4070 = vadd.f32 0.0, %v4069
        %4071 = vdwg.mxu0
        %4072 = vmatpush.bf16.msra.mxu0 0
        %4073 = vmatpush.bf16.msra.mxu0 0
        %4074 = vmatpush.bf16.msra.mxu0 0
        %4075 = vmatpush.bf16.msra.mxu0 %v3720
        %4076 = vmatpush.bf16.msra.mxu0 %v3688
        %4077 = vmatpush.bf16.msra.mxu0 %v3656
        %4078 = vmatpush.bf16.msra.mxu0 %v3624
        %4079 = vmatpush.bf16.msra.mxu0 %v3592
        %4080 = vmatmul.bf16.gmra.mxu0 %v3902
        %v4081 = vpop.f32.mrf.mxu0
        %v4082 = vadd.f32 0.0, %v4081
        %v4083 = vpop.f32.mrf.mxu0
        %v4084 = vadd.f32 0.0, %v4083
        %4085 = vdwg.mxu0
        %4086 = vmatpush.bf16.msra.mxu0 0
        %4087 = vmatpush.bf16.msra.mxu0 0
        %4088 = vmatpush.bf16.msra.mxu0 0
        %4089 = vmatpush.bf16.msra.mxu0 %v3721
        %4090 = vmatpush.bf16.msra.mxu0 %v3689
        %4091 = vmatpush.bf16.msra.mxu0 %v3657
        %4092 = vmatpush.bf16.msra.mxu0 %v3625
        %4093 = vmatpush.bf16.msra.mxu0 %v3593
        %4094 = vmatmul.bf16.gmra.mxu0 %v3902
        %v4095 = vpop.f32.mrf.mxu0
        %v4096 = vadd.f32 0.0, %v4095
        %v4097 = vpop.f32.mrf.mxu0
        %v4098 = vadd.f32 0.0, %v4097
        %4099 = vdwg.mxu0
        %4100 = vmatpush.bf16.msra.mxu0 0
        %4101 = vmatpush.bf16.msra.mxu0 0
        %4102 = vmatpush.bf16.msra.mxu0 0
        %4103 = vmatpush.bf16.msra.mxu0 %v3722
        %4104 = vmatpush.bf16.msra.mxu0 %v3690
        %4105 = vmatpush.bf16.msra.mxu0 %v3658
        %4106 = vmatpush.bf16.msra.mxu0 %v3626
        %4107 = vmatpush.bf16.msra.mxu0 %v3594
        %4108 = vmatmul.bf16.gmra.mxu0 %v3902
        %v4109 = vpop.f32.mrf.mxu0
        %v4110 = vadd.f32 0.0, %v4109
        %v4111 = vpop.f32.mrf.mxu0
        %v4112 = vadd.f32 0.0, %v4111
        %4113 = vdwg.mxu0
        %4114 = vmatpush.bf16.msra.mxu0 0
        %4115 = vmatpush.bf16.msra.mxu0 0
        %4116 = vmatpush.bf16.msra.mxu0 0
        %4117 = vmatpush.bf16.msra.mxu0 %v3723
        %4118 = vmatpush.bf16.msra.mxu0 %v3691
        %4119 = vmatpush.bf16.msra.mxu0 %v3659
        %4120 = vmatpush.bf16.msra.mxu0 %v3627
        %4121 = vmatpush.bf16.msra.mxu0 %v3595
        %4122 = vmatmul.bf16.gmra.mxu0 %v3902
        %v4123 = vpop.f32.mrf.mxu0
        %v4124 = vadd.f32 0.0, %v4123
        %v4125 = vpop.f32.mrf.mxu0
        %v4126 = vadd.f32 0.0, %v4125
        %4127 = vdwg.mxu0
        %4128 = vmatpush.bf16.msra.mxu0 0
        %4129 = vmatpush.bf16.msra.mxu0 0
        %4130 = vmatpush.bf16.msra.mxu0 0
        %4131 = vmatpush.bf16.msra.mxu0 %v3724
        %4132 = vmatpush.bf16.msra.mxu0 %v3692
        %4133 = vmatpush.bf16.msra.mxu0 %v3660
        %4134 = vmatpush.bf16.msra.mxu0 %v3628
        %4135 = vmatpush.bf16.msra.mxu0 %v3596
        %4136 = vmatmul.bf16.gmra.mxu0 %v3902
        %v4137 = vpop.f32.mrf.mxu0
        %v4138 = vadd.f32 0.0, %v4137
        %v4139 = vpop.f32.mrf.mxu0
        %v4140 = vadd.f32 0.0, %v4139
        %4141 = vdwg.mxu0
        %4142 = vmatpush.bf16.msra.mxu0 0
        %4143 = vmatpush.bf16.msra.mxu0 0
        %4144 = vmatpush.bf16.msra.mxu0 0
        %4145 = vmatpush.bf16.msra.mxu0 %v3725
        %4146 = vmatpush.bf16.msra.mxu0 %v3693
        %4147 = vmatpush.bf16.msra.mxu0 %v3661
        %4148 = vmatpush.bf16.msra.mxu0 %v3629
        %4149 = vmatpush.bf16.msra.mxu0 %v3597
        %4150 = vmatmul.bf16.gmra.mxu0 %v3902
        %v4151 = vpop.f32.mrf.mxu0
        %v4152 = vadd.f32 0.0, %v4151
        %v4153 = vpop.f32.mrf.mxu0
        %v4154 = vadd.f32 0.0, %v4153
        %4155 = vdwg.mxu0
        %4156 = vmatpush.bf16.msra.mxu0 0
        %4157 = vmatpush.bf16.msra.mxu0 0
        %4158 = vmatpush.bf16.msra.mxu0 0
        %4159 = vmatpush.bf16.msra.mxu0 %v3726
        %4160 = vmatpush.bf16.msra.mxu0 %v3694
        %4161 = vmatpush.bf16.msra.mxu0 %v3662
        %4162 = vmatpush.bf16.msra.mxu0 %v3630
        %4163 = vmatpush.bf16.msra.mxu0 %v3598
        %4164 = vmatmul.bf16.gmra.mxu0 %v3902
        %v4165 = vpop.f32.mrf.mxu0
        %v4166 = vadd.f32 0.0, %v4165
        %v4167 = vpop.f32.mrf.mxu0
        %v4168 = vadd.f32 0.0, %v4167
        %4169 = vdwg.mxu0
        %4170 = vmatpush.bf16.msra.mxu0 0
        %4171 = vmatpush.bf16.msra.mxu0 0
        %4172 = vmatpush.bf16.msra.mxu0 0
        %4173 = vmatpush.bf16.msra.mxu0 %v3727
        %4174 = vmatpush.bf16.msra.mxu0 %v3695
        %4175 = vmatpush.bf16.msra.mxu0 %v3663
        %4176 = vmatpush.bf16.msra.mxu0 %v3631
        %4177 = vmatpush.bf16.msra.mxu0 %v3599
        %4178 = vmatmul.bf16.gmra.mxu0 %v3902
        %v4179 = vpop.f32.mrf.mxu0
        %v4180 = vadd.f32 0.0, %v4179
        %v4181 = vpop.f32.mrf.mxu0
        %v4182 = vadd.f32 0.0, %v4181
        %4183 = vdwg.mxu0
        %4184 = vmatpush.bf16.msra.mxu0 0
        %4185 = vmatpush.bf16.msra.mxu0 0
        %4186 = vmatpush.bf16.msra.mxu0 0
        %4187 = vmatpush.bf16.msra.mxu0 %v3728
        %4188 = vmatpush.bf16.msra.mxu0 %v3696
        %4189 = vmatpush.bf16.msra.mxu0 %v3664
        %4190 = vmatpush.bf16.msra.mxu0 %v3632
        %4191 = vmatpush.bf16.msra.mxu0 %v3600
        %4192 = vmatmul.bf16.gmra.mxu0 %v3902
        %v4193 = vpop.f32.mrf.mxu0
        %v4194 = vadd.f32 0.0, %v4193
        %v4195 = vpop.f32.mrf.mxu0
        %v4196 = vadd.f32 0.0, %v4195
        %4197 = vdwg.mxu0
        %4198 = vmatpush.bf16.msra.mxu0 0
        %4199 = vmatpush.bf16.msra.mxu0 0
        %4200 = vmatpush.bf16.msra.mxu0 0
        %4201 = vmatpush.bf16.msra.mxu0 %v3729
        %4202 = vmatpush.bf16.msra.mxu0 %v3697
        %4203 = vmatpush.bf16.msra.mxu0 %v3665
        %4204 = vmatpush.bf16.msra.mxu0 %v3633
        %4205 = vmatpush.bf16.msra.mxu0 %v3601
        %4206 = vmatmul.bf16.gmra.mxu0 %v3902
        %v4207 = vpop.f32.mrf.mxu0
        %v4208 = vadd.f32 0.0, %v4207
        %v4209 = vpop.f32.mrf.mxu0
        %v4210 = vadd.f32 0.0, %v4209
        %4211 = vdwg.mxu0
        %4212 = vmatpush.bf16.msra.mxu0 0
        %4213 = vmatpush.bf16.msra.mxu0 0
        %4214 = vmatpush.bf16.msra.mxu0 0
        %4215 = vmatpush.bf16.msra.mxu0 %v3730
        %4216 = vmatpush.bf16.msra.mxu0 %v3698
        %4217 = vmatpush.bf16.msra.mxu0 %v3666
        %4218 = vmatpush.bf16.msra.mxu0 %v3634
        %4219 = vmatpush.bf16.msra.mxu0 %v3602
        %4220 = vmatmul.bf16.gmra.mxu0 %v3902
        %v4221 = vpop.f32.mrf.mxu0
        %v4222 = vadd.f32 0.0, %v4221
        %v4223 = vpop.f32.mrf.mxu0
        %v4224 = vadd.f32 0.0, %v4223
        %4225 = vdwg.mxu0
        %4226 = vmatpush.bf16.msra.mxu0 0
        %4227 = vmatpush.bf16.msra.mxu0 0
        %4228 = vmatpush.bf16.msra.mxu0 0
        %4229 = vmatpush.bf16.msra.mxu0 %v3731
        %4230 = vmatpush.bf16.msra.mxu0 %v3699
        %4231 = vmatpush.bf16.msra.mxu0 %v3667
        %4232 = vmatpush.bf16.msra.mxu0 %v3635
        %4233 = vmatpush.bf16.msra.mxu0 %v3603
        %4234 = vmatmul.bf16.gmra.mxu0 %v3902
        %v4235 = vpop.f32.mrf.mxu0
        %v4236 = vadd.f32 0.0, %v4235
        %v4237 = vpop.f32.mrf.mxu0
        %v4238 = vadd.f32 0.0, %v4237
        %4239 = vdwg.mxu0
        %4240 = vmatpush.bf16.msra.mxu0 0
        %4241 = vmatpush.bf16.msra.mxu0 0
        %4242 = vmatpush.bf16.msra.mxu0 0
        %4243 = vmatpush.bf16.msra.mxu0 %v3732
        %4244 = vmatpush.bf16.msra.mxu0 %v3700
        %4245 = vmatpush.bf16.msra.mxu0 %v3668
        %4246 = vmatpush.bf16.msra.mxu0 %v3636
        %4247 = vmatpush.bf16.msra.mxu0 %v3604
        %4248 = vmatmul.bf16.gmra.mxu0 %v3902
        %v4249 = vpop.f32.mrf.mxu0
        %v4250 = vadd.f32 0.0, %v4249
        %v4251 = vpop.f32.mrf.mxu0
        %v4252 = vadd.f32 0.0, %v4251
        %4253 = vdwg.mxu0
        %4254 = vmatpush.bf16.msra.mxu0 0
        %4255 = vmatpush.bf16.msra.mxu0 0
        %4256 = vmatpush.bf16.msra.mxu0 0
        %4257 = vmatpush.bf16.msra.mxu0 %v3733
        %4258 = vmatpush.bf16.msra.mxu0 %v3701
        %4259 = vmatpush.bf16.msra.mxu0 %v3669
        %4260 = vmatpush.bf16.msra.mxu0 %v3637
        %4261 = vmatpush.bf16.msra.mxu0 %v3605
        %4262 = vmatmul.bf16.gmra.mxu0 %v3902
        %v4263 = vpop.f32.mrf.mxu0
        %v4264 = vadd.f32 0.0, %v4263
        %v4265 = vpop.f32.mrf.mxu0
        %v4266 = vadd.f32 0.0, %v4265
        %4267 = vdwg.mxu0
        %4268 = vmatpush.bf16.msra.mxu0 0
        %4269 = vmatpush.bf16.msra.mxu0 0
        %4270 = vmatpush.bf16.msra.mxu0 0
        %4271 = vmatpush.bf16.msra.mxu0 %v3734
        %4272 = vmatpush.bf16.msra.mxu0 %v3702
        %4273 = vmatpush.bf16.msra.mxu0 %v3670
        %4274 = vmatpush.bf16.msra.mxu0 %v3638
        %4275 = vmatpush.bf16.msra.mxu0 %v3606
        %4276 = vmatmul.bf16.gmra.mxu0 %v3902
        %v4277 = vpop.f32.mrf.mxu0
        %v4278 = vadd.f32 0.0, %v4277
        %v4279 = vpop.f32.mrf.mxu0
        %v4280 = vadd.f32 0.0, %v4279
        %4281 = vdwg.mxu0
        %4282 = vmatpush.bf16.msra.mxu0 0
        %4283 = vmatpush.bf16.msra.mxu0 0
        %4284 = vmatpush.bf16.msra.mxu0 0
        %4285 = vmatpush.bf16.msra.mxu0 %v3735
        %4286 = vmatpush.bf16.msra.mxu0 %v3703
        %4287 = vmatpush.bf16.msra.mxu0 %v3671
        %4288 = vmatpush.bf16.msra.mxu0 %v3639
        %4289 = vmatpush.bf16.msra.mxu0 %v3607
        %4290 = vmatmul.bf16.gmra.mxu0 %v3902
        %v4291 = vpop.f32.mrf.mxu0
        %v4292 = vadd.f32 0.0, %v4291
        %v4293 = vpop.f32.mrf.mxu0
        %v4294 = vadd.f32 0.0, %v4293
        %4295 = vdwg.mxu0
        %4296 = vmatpush.bf16.msra.mxu0 0
        %4297 = vmatpush.bf16.msra.mxu0 0
        %4298 = vmatpush.bf16.msra.mxu0 0
        %4299 = vmatpush.bf16.msra.mxu0 %v3736
        %4300 = vmatpush.bf16.msra.mxu0 %v3704
        %4301 = vmatpush.bf16.msra.mxu0 %v3672
        %4302 = vmatpush.bf16.msra.mxu0 %v3640
        %4303 = vmatpush.bf16.msra.mxu0 %v3608
        %4304 = vmatmul.bf16.gmra.mxu0 %v3902
        %v4305 = vpop.f32.mrf.mxu0
        %v4306 = vadd.f32 0.0, %v4305
        %v4307 = vpop.f32.mrf.mxu0
        %v4308 = vadd.f32 0.0, %v4307
        %4309 = vdwg.mxu0
        %4310 = vmatpush.bf16.msra.mxu0 0
        %4311 = vmatpush.bf16.msra.mxu0 0
        %4312 = vmatpush.bf16.msra.mxu0 0
        %4313 = vmatpush.bf16.msra.mxu0 %v3737
        %4314 = vmatpush.bf16.msra.mxu0 %v3705
        %4315 = vmatpush.bf16.msra.mxu0 %v3673
        %4316 = vmatpush.bf16.msra.mxu0 %v3641
        %4317 = vmatpush.bf16.msra.mxu0 %v3609
        %4318 = vmatmul.bf16.gmra.mxu0 %v3902
        %v4319 = vpop.f32.mrf.mxu0
        %v4320 = vadd.f32 0.0, %v4319
        %v4321 = vpop.f32.mrf.mxu0
        %v4322 = vadd.f32 0.0, %v4321
        %4323 = vdwg.mxu0
        %4324 = vmatpush.bf16.msra.mxu0 0
        %4325 = vmatpush.bf16.msra.mxu0 0
        %4326 = vmatpush.bf16.msra.mxu0 0
        %4327 = vmatpush.bf16.msra.mxu0 %v3738
        %4328 = vmatpush.bf16.msra.mxu0 %v3706
        %4329 = vmatpush.bf16.msra.mxu0 %v3674
        %4330 = vmatpush.bf16.msra.mxu0 %v3642
        %4331 = vmatpush.bf16.msra.mxu0 %v3610
        %4332 = vmatmul.bf16.gmra.mxu0 %v3902
        %v4333 = vpop.f32.mrf.mxu0
        %v4334 = vadd.f32 0.0, %v4333
        %v4335 = vpop.f32.mrf.mxu0
        %v4336 = vadd.f32 0.0, %v4335
        %4337 = vdwg.mxu0
        %4338 = vmatpush.bf16.msra.mxu0 0
        %4339 = vmatpush.bf16.msra.mxu0 0
        %4340 = vmatpush.bf16.msra.mxu0 0
        %4341 = vmatpush.bf16.msra.mxu0 %v3739
        %4342 = vmatpush.bf16.msra.mxu0 %v3707
        %4343 = vmatpush.bf16.msra.mxu0 %v3675
        %4344 = vmatpush.bf16.msra.mxu0 %v3643
        %4345 = vmatpush.bf16.msra.mxu0 %v3611
        %4346 = vmatmul.bf16.gmra.mxu0 %v3902
        %v4347 = vpop.f32.mrf.mxu0
        %v4348 = vadd.f32 0.0, %v4347
        %v4349 = vpop.f32.mrf.mxu0
        %v4350 = vadd.f32 0.0, %v4349
        %4351 = vdwg.mxu0
        %v4354 = vunpack.c.l.b16 %v2770
        %v4355 = vunpack.c.l.b16 %v2771
        %v4356 = vpack.c.b16 %v4355, %v4354
        %v4517 = vunpack.c.l.b16 %v2772
        %v4518 = vunpack.c.h.b16 %v2772
        %v4519 = vunpack.c.l.b16 %v2773
        %v4520 = vunpack.c.h.b16 %v2773
        %v4521 = vunpack.c.l.b16 %v2774
        %v4522 = vunpack.c.h.b16 %v2774
        %v4523 = vunpack.c.l.b16 %v2775
        %v4524 = vunpack.c.h.b16 %v2775
        %v4525 = vunpack.c.l.b16 %v2776
        %v4526 = vunpack.c.h.b16 %v2776
        %v4527 = vunpack.c.l.b16 %v2777
        %v4528 = vunpack.c.h.b16 %v2777
        %v4529 = vunpack.c.l.b16 %v2778
        %v4530 = vunpack.c.h.b16 %v2778
        %v4531 = vunpack.c.l.b16 %v2779
        %v4532 = vunpack.c.h.b16 %v2779
        %v4533 = vunpack.c.l.b16 %v2780
        %v4534 = vunpack.c.h.b16 %v2780
        %v4535 = vunpack.c.l.b16 %v2781
        %v4536 = vunpack.c.h.b16 %v2781
        %v4537 = vunpack.c.l.b16 %v2782
        %v4538 = vunpack.c.h.b16 %v2782
        %v4539 = vunpack.c.l.b16 %v2783
        %v4540 = vunpack.c.h.b16 %v2783
        %v4541 = vunpack.c.l.b16 %v2784
        %v4542 = vunpack.c.h.b16 %v2784
        %v4543 = vunpack.c.l.b16 %v2785
        %v4544 = vunpack.c.h.b16 %v2785
        %v4545 = vunpack.c.l.b16 %v2786
        %v4546 = vunpack.c.h.b16 %v2786
        %v4547 = vunpack.c.l.b16 %v2787
        %v4548 = vunpack.c.h.b16 %v2787
        %v4549 = vunpack.c.l.b16 %v2788
        %v4550 = vunpack.c.h.b16 %v2788
        %v4551 = vunpack.c.l.b16 %v2789
        %v4552 = vunpack.c.h.b16 %v2789
        %v4553 = vunpack.c.l.b16 %v2790
        %v4554 = vunpack.c.h.b16 %v2790
        %v4555 = vunpack.c.l.b16 %v2791
        %v4556 = vunpack.c.h.b16 %v2791
        %v4557 = vunpack.c.l.b16 %v2792
        %v4558 = vunpack.c.h.b16 %v2792
        %v4559 = vunpack.c.l.b16 %v2793
        %v4560 = vunpack.c.h.b16 %v2793
        %v4561 = vunpack.c.l.b16 %v2794
        %v4562 = vunpack.c.h.b16 %v2794
        %v4563 = vunpack.c.l.b16 %v2795
        %v4564 = vunpack.c.h.b16 %v2795
        %v4565 = vunpack.c.l.b16 %v2796
        %v4566 = vunpack.c.h.b16 %v2796
        %v4567 = vunpack.c.l.b16 %v2797
        %v4568 = vunpack.c.h.b16 %v2797
        %v4569 = vunpack.c.l.b16 %v2798
        %v4570 = vunpack.c.h.b16 %v2798
        %v4571 = vunpack.c.l.b16 %v2799
        %v4572 = vunpack.c.h.b16 %v2799
        %v4573 = vunpack.c.l.b16 %v2800
        %v4574 = vunpack.c.h.b16 %v2800
        %v4575 = vunpack.c.l.b16 %v2801
        %v4576 = vunpack.c.h.b16 %v2801
        %v4577 = vunpack.c.l.b16 %v2802
        %v4578 = vunpack.c.h.b16 %v2802
        %v4579 = vunpack.c.l.b16 %v2803
        %v4580 = vunpack.c.h.b16 %v2803
        %v4581 = vunpack.c.l.b16 %v2804
        %v4582 = vunpack.c.h.b16 %v2804
        %v4583 = vunpack.c.l.b16 %v2805
        %v4584 = vunpack.c.h.b16 %v2805
        %v4585 = vunpack.c.l.b16 %v2806
        %v4586 = vunpack.c.h.b16 %v2806
        %v4587 = vunpack.c.l.b16 %v2807
        %v4588 = vunpack.c.h.b16 %v2807
        %v4589 = vunpack.c.l.b16 %v2808
        %v4590 = vunpack.c.h.b16 %v2808
        %v4591 = vunpack.c.l.b16 %v2809
        %v4592 = vunpack.c.h.b16 %v2809
        %v4593 = vunpack.c.l.b16 %v2810
        %v4594 = vunpack.c.h.b16 %v2810
        %v4595 = vunpack.c.l.b16 %v2811
        %v4596 = vunpack.c.h.b16 %v2811
        %v4597 = vunpack.c.l.b16 %v2812
        %v4598 = vunpack.c.h.b16 %v2812
        %v4599 = vunpack.c.l.b16 %v2813
        %v4600 = vunpack.c.h.b16 %v2813
        %v4601 = vunpack.c.l.b16 %v2814
        %v4602 = vunpack.c.h.b16 %v2814
        %v4603 = vunpack.c.l.b16 %v2815
        %v4604 = vunpack.c.h.b16 %v2815
        %v4605 = vunpack.c.l.b16 %v2816
        %v4606 = vunpack.c.h.b16 %v2816
        %v4607 = vunpack.c.l.b16 %v2817
        %v4608 = vunpack.c.h.b16 %v2817
        %v4609 = vunpack.c.l.b16 %v2818
        %v4610 = vunpack.c.h.b16 %v2818
        %v4611 = vunpack.c.l.b16 %v2819
        %v4612 = vunpack.c.h.b16 %v2819
        %v4613 = vunpack.c.l.b16 %v2820
        %v4614 = vunpack.c.h.b16 %v2820
        %v4615 = vunpack.c.l.b16 %v2821
        %v4616 = vunpack.c.h.b16 %v2821
        %v4617 = vunpack.c.l.b16 %v2822
        %v4618 = vunpack.c.h.b16 %v2822
        %v4619 = vunpack.c.l.b16 %v2823
        %v4620 = vunpack.c.h.b16 %v2823
        %v4621 = vunpack.c.l.b16 %v2824
        %v4622 = vunpack.c.h.b16 %v2824
        %v4623 = vunpack.c.l.b16 %v2825
        %v4624 = vunpack.c.h.b16 %v2825
        %v4625 = vunpack.c.l.b16 %v2826
        %v4626 = vunpack.c.h.b16 %v2826
        %v4627 = vunpack.c.l.b16 %v2827
        %v4628 = vunpack.c.h.b16 %v2827
        %v4629 = vunpack.c.l.b16 %v2828
        %v4630 = vunpack.c.h.b16 %v2828
        %v4631 = vunpack.c.l.b16 %v2829
        %v4632 = vunpack.c.h.b16 %v2829
        %v4633 = vunpack.c.l.b16 %v2830
        %v4634 = vunpack.c.h.b16 %v2830
        %v4635 = vunpack.c.l.b16 %v2831
        %v4636 = vunpack.c.h.b16 %v2831
        %v4637 = vunpack.c.l.b16 %v2832
        %v4638 = vunpack.c.h.b16 %v2832
        %v4639 = vunpack.c.l.b16 %v2833
        %v4640 = vunpack.c.h.b16 %v2833
        %v4641 = vunpack.c.l.b16 %v2834
        %v4642 = vunpack.c.h.b16 %v2834
        %v4643 = vunpack.c.l.b16 %v2835
        %v4644 = vunpack.c.h.b16 %v2835
        %v4645 = vunpack.c.l.b16 %v2836
        %v4646 = vunpack.c.h.b16 %v2836
        %v4647 = vunpack.c.l.b16 %v2837
        %v4648 = vunpack.c.h.b16 %v2837
        %v4649 = vunpack.c.l.b16 %v2838
        %v4650 = vunpack.c.h.b16 %v2838
        %v4651 = vunpack.c.l.b16 %v2839
        %v4652 = vunpack.c.h.b16 %v2839
        %v4653 = vunpack.c.l.b16 %v2840
        %v4654 = vunpack.c.h.b16 %v2840
        %v4655 = vunpack.c.l.b16 %v2841
        %v4656 = vunpack.c.h.b16 %v2841
        %v4657 = vunpack.c.l.b16 %v2842
        %v4658 = vunpack.c.h.b16 %v2842
        %v4659 = vunpack.c.l.b16 %v2843
        %v4660 = vunpack.c.h.b16 %v2843
        %v4661 = vunpack.c.l.b16 %v2844
        %v4662 = vunpack.c.h.b16 %v2844
        %v4663 = vunpack.c.l.b16 %v2845
        %v4664 = vunpack.c.h.b16 %v2845
        %v4665 = vunpack.c.l.b16 %v2846
        %v4666 = vunpack.c.h.b16 %v2846
        %v4667 = vunpack.c.l.b16 %v2847
        %v4668 = vunpack.c.h.b16 %v2847
        %v4669 = vunpack.c.l.b16 %v2848
        %v4670 = vunpack.c.h.b16 %v2848
        %v4671 = vunpack.c.l.b16 %v2849
        %v4672 = vunpack.c.h.b16 %v2849
        %v4673 = vunpack.c.l.b16 %v2850
        %v4674 = vunpack.c.h.b16 %v2850
        %v4675 = vunpack.c.l.b16 %v2851
        %v4676 = vunpack.c.h.b16 %v2851
        %v4677 = vunpack.c.l.b16 %v2852
        %v4678 = vunpack.c.h.b16 %v2852
        %v4679 = vunpack.c.l.b16 %v2853
        %v4680 = vunpack.c.h.b16 %v2853
        %v4681 = vunpack.c.l.b16 %v2854
        %v4682 = vunpack.c.h.b16 %v2854
        %v4683 = vunpack.c.l.b16 %v2855
        %v4684 = vunpack.c.h.b16 %v2855
        %v4685 = vunpack.c.l.b16 %v2856
        %v4686 = vunpack.c.h.b16 %v2856
        %v4687 = vunpack.c.l.b16 %v2857
        %v4688 = vunpack.c.h.b16 %v2857
        %v4689 = vunpack.c.l.b16 %v2858
        %v4690 = vunpack.c.h.b16 %v2858
        %v4691 = vunpack.c.l.b16 %v2859
        %v4692 = vunpack.c.h.b16 %v2859
        %v4693 = vunpack.c.l.b16 %v2860
        %v4694 = vunpack.c.h.b16 %v2860
        %v4695 = vunpack.c.l.b16 %v2861
        %v4696 = vunpack.c.h.b16 %v2861
        %v4697 = vunpack.c.l.b16 %v2862
        %v4698 = vunpack.c.h.b16 %v2862
        %v4699 = vunpack.c.l.b16 %v2863
        %v4700 = vunpack.c.h.b16 %v2863
        %v4701 = vunpack.c.l.b16 %v2864
        %v4702 = vunpack.c.h.b16 %v2864
        %v4703 = vunpack.c.l.b16 %v2865
        %v4704 = vunpack.c.h.b16 %v2865
        %v4705 = vunpack.c.l.b16 %v2866
        %v4706 = vunpack.c.h.b16 %v2866
        %v4707 = vunpack.c.l.b16 %v2867
        %v4708 = vunpack.c.h.b16 %v2867
        %v4709 = vunpack.c.l.b16 %v2868
        %v4710 = vunpack.c.h.b16 %v2868
        %v4711 = vunpack.c.l.b16 %v2869
        %v4712 = vunpack.c.h.b16 %v2869
        %v4713 = vunpack.c.l.b16 %v2870
        %v4714 = vunpack.c.h.b16 %v2870
        %v4715 = vunpack.c.l.b16 %v2871
        %v4716 = vunpack.c.h.b16 %v2871
        %v4717 = vunpack.c.l.b16 %v2872
        %v4718 = vunpack.c.h.b16 %v2872
        %v4719 = vunpack.c.l.b16 %v2873
        %v4720 = vunpack.c.h.b16 %v2873
        %v4721 = vunpack.c.l.b16 %v2874
        %v4722 = vunpack.c.h.b16 %v2874
        %v4723 = vunpack.c.l.b16 %v2875
        %v4724 = vunpack.c.h.b16 %v2875
        %v4725 = vunpack.c.l.b16 %v2876
        %v4726 = vunpack.c.h.b16 %v2876
        %v4727 = vunpack.c.l.b16 %v2877
        %v4728 = vunpack.c.h.b16 %v2877
        %v4729 = vunpack.c.l.b16 %v2878
        %v4730 = vunpack.c.h.b16 %v2878
        %v4731 = vunpack.c.l.b16 %v2879
        %v4732 = vunpack.c.h.b16 %v2879
        %v4733 = vunpack.c.l.b16 %v2880
        %v4734 = vunpack.c.h.b16 %v2880
        %v4735 = vunpack.c.l.b16 %v2881
        %v4736 = vunpack.c.h.b16 %v2881
        %v4737 = vunpack.c.l.b16 %v2882
        %v4738 = vunpack.c.h.b16 %v2882
        %v4739 = vunpack.c.l.b16 %v2883
        %v4740 = vunpack.c.h.b16 %v2883
        %v4741 = vunpack.c.l.b16 %v2884
        %v4742 = vunpack.c.h.b16 %v2884
        %v4743 = vunpack.c.l.b16 %v2885
        %v4744 = vunpack.c.h.b16 %v2885
        %v4745 = vunpack.c.l.b16 %v2886
        %v4746 = vunpack.c.h.b16 %v2886
        %v4747 = vunpack.c.l.b16 %v2887
        %v4748 = vunpack.c.h.b16 %v2887
        %v4749 = vunpack.c.l.b16 %v2888
        %v4750 = vunpack.c.h.b16 %v2888
        %v4751 = vunpack.c.l.b16 %v2889
        %v4752 = vunpack.c.h.b16 %v2889
        %v4753 = vunpack.c.l.b16 %v2890
        %v4754 = vunpack.c.h.b16 %v2890
        %v4755 = vunpack.c.l.b16 %v2891
        %v4756 = vunpack.c.h.b16 %v2891
        %v4757 = vunpack.c.l.b16 %v2892
        %v4758 = vunpack.c.h.b16 %v2892
        %v4759 = vunpack.c.l.b16 %v2893
        %v4760 = vunpack.c.h.b16 %v2893
        %v4761 = vunpack.c.l.b16 %v2894
        %v4762 = vunpack.c.h.b16 %v2894
        %v4763 = vunpack.c.l.b16 %v2895
        %v4764 = vunpack.c.h.b16 %v2895
        %v4765 = vunpack.c.l.b16 %v2896
        %v4766 = vunpack.c.h.b16 %v2896
        %v4767 = vunpack.c.l.b16 %v2897
        %v4768 = vunpack.c.h.b16 %v2897
        %v4769 = vunpack.c.l.b16 %v2898
        %v4770 = vunpack.c.h.b16 %v2898
        %v4771 = vunpack.c.l.b16 %v2899
        %v4772 = vunpack.c.h.b16 %v2899
        %v4773 = vunpack.c.l.b16 %v2900
        %v4774 = vunpack.c.h.b16 %v2900
        %v4775 = vunpack.c.l.b16 %v2901
        %v4776 = vunpack.c.h.b16 %v2901
        %v4777 = vunpack.c.l.b16 %v2902
        %v4778 = vunpack.c.h.b16 %v2902
        %v4779 = vunpack.c.l.b16 %v2903
        %v4780 = vunpack.c.h.b16 %v2903
        %v4781 = vunpack.c.l.b16 %v2904
        %v4782 = vunpack.c.h.b16 %v2904
        %v4783 = vunpack.c.l.b16 %v2905
        %v4784 = vunpack.c.h.b16 %v2905
        %v4785 = vunpack.c.l.b16 %v2906
        %v4786 = vunpack.c.h.b16 %v2906
        %v4787 = vunpack.c.l.b16 %v2907
        %v4788 = vunpack.c.h.b16 %v2907
        %v4789 = vunpack.c.l.b16 %v2908
        %v4790 = vunpack.c.h.b16 %v2908
        %v4791 = vunpack.c.l.b16 %v2909
        %v4792 = vunpack.c.h.b16 %v2909
        %v4793 = vunpack.c.l.b16 %v2910
        %v4794 = vunpack.c.h.b16 %v2910
        %v4795 = vunpack.c.l.b16 %v2911
        %v4796 = vunpack.c.h.b16 %v2911
        %v4797 = vunpack.c.l.b16 %v2912
        %v4798 = vunpack.c.h.b16 %v2912
        %v4799 = vunpack.c.l.b16 %v2913
        %v4800 = vunpack.c.h.b16 %v2913
        %v4801 = vunpack.c.l.b16 %v2914
        %v4802 = vunpack.c.h.b16 %v2914
        %v4803 = vunpack.c.l.b16 %v2915
        %v4804 = vunpack.c.h.b16 %v2915
        %v4805 = vunpack.c.l.b16 %v2916
        %v4806 = vunpack.c.h.b16 %v2916
        %v4807 = vunpack.c.l.b16 %v2917
        %v4808 = vunpack.c.h.b16 %v2917
        %v4809 = vunpack.c.l.b16 %v2918
        %v4810 = vunpack.c.h.b16 %v2918
        %v4811 = vunpack.c.l.b16 %v2919
        %v4812 = vunpack.c.h.b16 %v2919
        %v4813 = vunpack.c.l.b16 %v2920
        %v4814 = vunpack.c.h.b16 %v2920
        %v4815 = vunpack.c.l.b16 %v2921
        %v4816 = vunpack.c.h.b16 %v2921
        %v4817 = vunpack.c.l.b16 %v2922
        %v4818 = vunpack.c.h.b16 %v2922
        %v4819 = vunpack.c.l.b16 %v2923
        %v4820 = vunpack.c.h.b16 %v2923
        %v4821 = vunpack.c.l.b16 %v2924
        %v4822 = vunpack.c.h.b16 %v2924
        %v4823 = vunpack.c.l.b16 %v2925
        %v4824 = vunpack.c.h.b16 %v2925
        %v4825 = vunpack.c.l.b16 %v2926
        %v4826 = vunpack.c.h.b16 %v2926
        %v4827 = vunpack.c.l.b16 %v2927
        %v4828 = vunpack.c.h.b16 %v2927
        %v4829 = vunpack.c.l.b16 %v2928
        %v4830 = vunpack.c.h.b16 %v2928
        %v4831 = vunpack.c.l.b16 %v2929
        %v4832 = vunpack.c.h.b16 %v2929
        %v4833 = vunpack.c.l.b16 %v2930
        %v4834 = vunpack.c.h.b16 %v2930
        %v4835 = vunpack.c.l.b16 %v2931
        %v4836 = vunpack.c.h.b16 %v2931
        %v4837 = vpack.c.b16 %v4549, %v4517
        %v4838 = vpack.c.b16 %v4550, %v4518
        %v4839 = vpack.c.b16 %v4551, %v4519
        %v4840 = vpack.c.b16 %v4552, %v4520
        %v4841 = vpack.c.b16 %v4553, %v4521
        %v4842 = vpack.c.b16 %v4554, %v4522
        %v4843 = vpack.c.b16 %v4555, %v4523
        %v4844 = vpack.c.b16 %v4556, %v4524
        %v4845 = vpack.c.b16 %v4557, %v4525
        %v4846 = vpack.c.b16 %v4558, %v4526
        %v4847 = vpack.c.b16 %v4559, %v4527
        %v4848 = vpack.c.b16 %v4560, %v4528
        %v4849 = vpack.c.b16 %v4561, %v4529
        %v4850 = vpack.c.b16 %v4562, %v4530
        %v4851 = vpack.c.b16 %v4563, %v4531
        %v4852 = vpack.c.b16 %v4564, %v4532
        %v4853 = vpack.c.b16 %v4565, %v4533
        %v4854 = vpack.c.b16 %v4566, %v4534
        %v4855 = vpack.c.b16 %v4567, %v4535
        %v4856 = vpack.c.b16 %v4568, %v4536
        %v4857 = vpack.c.b16 %v4569, %v4537
        %v4858 = vpack.c.b16 %v4570, %v4538
        %v4859 = vpack.c.b16 %v4571, %v4539
        %v4860 = vpack.c.b16 %v4572, %v4540
        %v4861 = vpack.c.b16 %v4573, %v4541
        %v4862 = vpack.c.b16 %v4574, %v4542
        %v4863 = vpack.c.b16 %v4575, %v4543
        %v4864 = vpack.c.b16 %v4576, %v4544
        %v4865 = vpack.c.b16 %v4577, %v4545
        %v4866 = vpack.c.b16 %v4578, %v4546
        %v4867 = vpack.c.b16 %v4579, %v4547
        %v4868 = vpack.c.b16 %v4580, %v4548
        %v4869 = vpack.c.b16 %v4613, %v4581
        %v4870 = vpack.c.b16 %v4614, %v4582
        %v4871 = vpack.c.b16 %v4615, %v4583
        %v4872 = vpack.c.b16 %v4616, %v4584
        %v4873 = vpack.c.b16 %v4617, %v4585
        %v4874 = vpack.c.b16 %v4618, %v4586
        %v4875 = vpack.c.b16 %v4619, %v4587
        %v4876 = vpack.c.b16 %v4620, %v4588
        %v4877 = vpack.c.b16 %v4621, %v4589
        %v4878 = vpack.c.b16 %v4622, %v4590
        %v4879 = vpack.c.b16 %v4623, %v4591
        %v4880 = vpack.c.b16 %v4624, %v4592
        %v4881 = vpack.c.b16 %v4625, %v4593
        %v4882 = vpack.c.b16 %v4626, %v4594
        %v4883 = vpack.c.b16 %v4627, %v4595
        %v4884 = vpack.c.b16 %v4628, %v4596
        %v4885 = vpack.c.b16 %v4629, %v4597
        %v4886 = vpack.c.b16 %v4630, %v4598
        %v4887 = vpack.c.b16 %v4631, %v4599
        %v4888 = vpack.c.b16 %v4632, %v4600
        %v4889 = vpack.c.b16 %v4633, %v4601
        %v4890 = vpack.c.b16 %v4634, %v4602
        %v4891 = vpack.c.b16 %v4635, %v4603
        %v4892 = vpack.c.b16 %v4636, %v4604
        %v4893 = vpack.c.b16 %v4637, %v4605
        %v4894 = vpack.c.b16 %v4638, %v4606
        %v4895 = vpack.c.b16 %v4639, %v4607
        %v4896 = vpack.c.b16 %v4640, %v4608
        %v4897 = vpack.c.b16 %v4641, %v4609
        %v4898 = vpack.c.b16 %v4642, %v4610
        %v4899 = vpack.c.b16 %v4643, %v4611
        %v4900 = vpack.c.b16 %v4644, %v4612
        %v4901 = vpack.c.b16 %v4677, %v4645
        %v4902 = vpack.c.b16 %v4678, %v4646
        %v4903 = vpack.c.b16 %v4679, %v4647
        %v4904 = vpack.c.b16 %v4680, %v4648
        %v4905 = vpack.c.b16 %v4681, %v4649
        %v4906 = vpack.c.b16 %v4682, %v4650
        %v4907 = vpack.c.b16 %v4683, %v4651
        %v4908 = vpack.c.b16 %v4684, %v4652
        %v4909 = vpack.c.b16 %v4685, %v4653
        %v4910 = vpack.c.b16 %v4686, %v4654
        %v4911 = vpack.c.b16 %v4687, %v4655
        %v4912 = vpack.c.b16 %v4688, %v4656
        %v4913 = vpack.c.b16 %v4689, %v4657
        %v4914 = vpack.c.b16 %v4690, %v4658
        %v4915 = vpack.c.b16 %v4691, %v4659
        %v4916 = vpack.c.b16 %v4692, %v4660
        %v4917 = vpack.c.b16 %v4693, %v4661
        %v4918 = vpack.c.b16 %v4694, %v4662
        %v4919 = vpack.c.b16 %v4695, %v4663
        %v4920 = vpack.c.b16 %v4696, %v4664
        %v4921 = vpack.c.b16 %v4697, %v4665
        %v4922 = vpack.c.b16 %v4698, %v4666
        %v4923 = vpack.c.b16 %v4699, %v4667
        %v4924 = vpack.c.b16 %v4700, %v4668
        %v4925 = vpack.c.b16 %v4701, %v4669
        %v4926 = vpack.c.b16 %v4702, %v4670
        %v4927 = vpack.c.b16 %v4703, %v4671
        %v4928 = vpack.c.b16 %v4704, %v4672
        %v4929 = vpack.c.b16 %v4705, %v4673
        %v4930 = vpack.c.b16 %v4706, %v4674
        %v4931 = vpack.c.b16 %v4707, %v4675
        %v4932 = vpack.c.b16 %v4708, %v4676
        %v4933 = vpack.c.b16 %v4741, %v4709
        %v4934 = vpack.c.b16 %v4742, %v4710
        %v4935 = vpack.c.b16 %v4743, %v4711
        %v4936 = vpack.c.b16 %v4744, %v4712
        %v4937 = vpack.c.b16 %v4745, %v4713
        %v4938 = vpack.c.b16 %v4746, %v4714
        %v4939 = vpack.c.b16 %v4747, %v4715
        %v4940 = vpack.c.b16 %v4748, %v4716
        %v4941 = vpack.c.b16 %v4749, %v4717
        %v4942 = vpack.c.b16 %v4750, %v4718
        %v4943 = vpack.c.b16 %v4751, %v4719
        %v4944 = vpack.c.b16 %v4752, %v4720
        %v4945 = vpack.c.b16 %v4753, %v4721
        %v4946 = vpack.c.b16 %v4754, %v4722
        %v4947 = vpack.c.b16 %v4755, %v4723
        %v4948 = vpack.c.b16 %v4756, %v4724
        %v4949 = vpack.c.b16 %v4757, %v4725
        %v4950 = vpack.c.b16 %v4758, %v4726
        %v4951 = vpack.c.b16 %v4759, %v4727
        %v4952 = vpack.c.b16 %v4760, %v4728
        %v4953 = vpack.c.b16 %v4761, %v4729
        %v4954 = vpack.c.b16 %v4762, %v4730
        %v4955 = vpack.c.b16 %v4763, %v4731
        %v4956 = vpack.c.b16 %v4764, %v4732
        %v4957 = vpack.c.b16 %v4765, %v4733
        %v4958 = vpack.c.b16 %v4766, %v4734
        %v4959 = vpack.c.b16 %v4767, %v4735
        %v4960 = vpack.c.b16 %v4768, %v4736
        %v4961 = vpack.c.b16 %v4769, %v4737
        %v4962 = vpack.c.b16 %v4770, %v4738
        %v4963 = vpack.c.b16 %v4771, %v4739
        %v4964 = vpack.c.b16 %v4772, %v4740
        %v4965 = vpack.c.b16 %v4805, %v4773
        %v4966 = vpack.c.b16 %v4806, %v4774
        %v4967 = vpack.c.b16 %v4807, %v4775
        %v4968 = vpack.c.b16 %v4808, %v4776
        %v4969 = vpack.c.b16 %v4809, %v4777
        %v4970 = vpack.c.b16 %v4810, %v4778
        %v4971 = vpack.c.b16 %v4811, %v4779
        %v4972 = vpack.c.b16 %v4812, %v4780
        %v4973 = vpack.c.b16 %v4813, %v4781
        %v4974 = vpack.c.b16 %v4814, %v4782
        %v4975 = vpack.c.b16 %v4815, %v4783
        %v4976 = vpack.c.b16 %v4816, %v4784
        %v4977 = vpack.c.b16 %v4817, %v4785
        %v4978 = vpack.c.b16 %v4818, %v4786
        %v4979 = vpack.c.b16 %v4819, %v4787
        %v4980 = vpack.c.b16 %v4820, %v4788
        %v4981 = vpack.c.b16 %v4821, %v4789
        %v4982 = vpack.c.b16 %v4822, %v4790
        %v4983 = vpack.c.b16 %v4823, %v4791
        %v4984 = vpack.c.b16 %v4824, %v4792
        %v4985 = vpack.c.b16 %v4825, %v4793
        %v4986 = vpack.c.b16 %v4826, %v4794
        %v4987 = vpack.c.b16 %v4827, %v4795
        %v4988 = vpack.c.b16 %v4828, %v4796
        %v4989 = vpack.c.b16 %v4829, %v4797
        %v4990 = vpack.c.b16 %v4830, %v4798
        %v4991 = vpack.c.b16 %v4831, %v4799
        %v4992 = vpack.c.b16 %v4832, %v4800
        %v4993 = vpack.c.b16 %v4833, %v4801
        %v4994 = vpack.c.b16 %v4834, %v4802
        %v4995 = vpack.c.b16 %v4835, %v4803
        %v4996 = vpack.c.b16 %v4836, %v4804
        %v5158 = vsel %vm3900, %v4356, 0
        %5160 = vmatpush.bf16.msra.mxu0 0
        %5161 = vmatpush.bf16.msra.mxu0 0
        %5162 = vmatpush.bf16.msra.mxu0 0
        %5163 = vmatpush.bf16.msra.mxu0 %v4965
        %5164 = vmatpush.bf16.msra.mxu0 %v4933
        %5165 = vmatpush.bf16.msra.mxu0 %v4901
        %5166 = vmatpush.bf16.msra.mxu0 %v4869
        %5167 = vmatpush.bf16.msra.mxu0 %v4837
        %5168 = vmatmul.bf16.gmra.mxu0 %v5158
        %v5169 = vpop.f32.mrf.mxu0
        %v5170 = vadd.f32 %v3914, %v5169
        %v5171 = vpop.f32.mrf.mxu0
        %v5172 = vadd.f32 %v3916, %v5171
        %5173 = vdwg.mxu0
        %5174 = vmatpush.bf16.msra.mxu0 0
        %5175 = vmatpush.bf16.msra.mxu0 0
        %5176 = vmatpush.bf16.msra.mxu0 0
        %5177 = vmatpush.bf16.msra.mxu0 %v4966
        %5178 = vmatpush.bf16.msra.mxu0 %v4934
        %5179 = vmatpush.bf16.msra.mxu0 %v4902
        %5180 = vmatpush.bf16.msra.mxu0 %v4870
        %5181 = vmatpush.bf16.msra.mxu0 %v4838
        %5182 = vmatmul.bf16.gmra.mxu0 %v5158
        %v5183 = vpop.f32.mrf.mxu0
        %v5184 = vadd.f32 %v3928, %v5183
        %v5185 = vpop.f32.mrf.mxu0
        %v5186 = vadd.f32 %v3930, %v5185
        %5187 = vdwg.mxu0
        %5188 = vmatpush.bf16.msra.mxu0 0
        %5189 = vmatpush.bf16.msra.mxu0 0
        %5190 = vmatpush.bf16.msra.mxu0 0
        %5191 = vmatpush.bf16.msra.mxu0 %v4967
        %5192 = vmatpush.bf16.msra.mxu0 %v4935
        %5193 = vmatpush.bf16.msra.mxu0 %v4903
        %5194 = vmatpush.bf16.msra.mxu0 %v4871
        %5195 = vmatpush.bf16.msra.mxu0 %v4839
        %5196 = vmatmul.bf16.gmra.mxu0 %v5158
        %v5197 = vpop.f32.mrf.mxu0
        %v5198 = vadd.f32 %v3942, %v5197
        %v5199 = vpop.f32.mrf.mxu0
        %v5200 = vadd.f32 %v3944, %v5199
        %5201 = vdwg.mxu0
        %5202 = vmatpush.bf16.msra.mxu0 0
        %5203 = vmatpush.bf16.msra.mxu0 0
        %5204 = vmatpush.bf16.msra.mxu0 0
        %5205 = vmatpush.bf16.msra.mxu0 %v4968
        %5206 = vmatpush.bf16.msra.mxu0 %v4936
        %5207 = vmatpush.bf16.msra.mxu0 %v4904
        %5208 = vmatpush.bf16.msra.mxu0 %v4872
        %5209 = vmatpush.bf16.msra.mxu0 %v4840
        %5210 = vmatmul.bf16.gmra.mxu0 %v5158
        %v5211 = vpop.f32.mrf.mxu0
        %v5212 = vadd.f32 %v3956, %v5211
        %v5213 = vpop.f32.mrf.mxu0
        %v5214 = vadd.f32 %v3958, %v5213
        %5215 = vdwg.mxu0
        %5216 = vmatpush.bf16.msra.mxu0 0
        %5217 = vmatpush.bf16.msra.mxu0 0
        %5218 = vmatpush.bf16.msra.mxu0 0
        %5219 = vmatpush.bf16.msra.mxu0 %v4969
        %5220 = vmatpush.bf16.msra.mxu0 %v4937
        %5221 = vmatpush.bf16.msra.mxu0 %v4905
        %5222 = vmatpush.bf16.msra.mxu0 %v4873
        %5223 = vmatpush.bf16.msra.mxu0 %v4841
        %5224 = vmatmul.bf16.gmra.mxu0 %v5158
        %v5225 = vpop.f32.mrf.mxu0
        %v5226 = vadd.f32 %v3970, %v5225
        %v5227 = vpop.f32.mrf.mxu0
        %v5228 = vadd.f32 %v3972, %v5227
        %5229 = vdwg.mxu0
        %5230 = vmatpush.bf16.msra.mxu0 0
        %5231 = vmatpush.bf16.msra.mxu0 0
        %5232 = vmatpush.bf16.msra.mxu0 0
        %5233 = vmatpush.bf16.msra.mxu0 %v4970
        %5234 = vmatpush.bf16.msra.mxu0 %v4938
        %5235 = vmatpush.bf16.msra.mxu0 %v4906
        %5236 = vmatpush.bf16.msra.mxu0 %v4874
        %5237 = vmatpush.bf16.msra.mxu0 %v4842
        %5238 = vmatmul.bf16.gmra.mxu0 %v5158
        %v5239 = vpop.f32.mrf.mxu0
        %v5240 = vadd.f32 %v3984, %v5239
        %v5241 = vpop.f32.mrf.mxu0
        %v5242 = vadd.f32 %v3986, %v5241
        %5243 = vdwg.mxu0
        %5244 = vmatpush.bf16.msra.mxu0 0
        %5245 = vmatpush.bf16.msra.mxu0 0
        %5246 = vmatpush.bf16.msra.mxu0 0
        %5247 = vmatpush.bf16.msra.mxu0 %v4971
        %5248 = vmatpush.bf16.msra.mxu0 %v4939
        %5249 = vmatpush.bf16.msra.mxu0 %v4907
        %5250 = vmatpush.bf16.msra.mxu0 %v4875
        %5251 = vmatpush.bf16.msra.mxu0 %v4843
        %5252 = vmatmul.bf16.gmra.mxu0 %v5158
        %v5253 = vpop.f32.mrf.mxu0
        %v5254 = vadd.f32 %v3998, %v5253
        %v5255 = vpop.f32.mrf.mxu0
        %v5256 = vadd.f32 %v4000, %v5255
        %5257 = vdwg.mxu0
        %5258 = vmatpush.bf16.msra.mxu0 0
        %5259 = vmatpush.bf16.msra.mxu0 0
        %5260 = vmatpush.bf16.msra.mxu0 0
        %5261 = vmatpush.bf16.msra.mxu0 %v4972
        %5262 = vmatpush.bf16.msra.mxu0 %v4940
        %5263 = vmatpush.bf16.msra.mxu0 %v4908
        %5264 = vmatpush.bf16.msra.mxu0 %v4876
        %5265 = vmatpush.bf16.msra.mxu0 %v4844
        %5266 = vmatmul.bf16.gmra.mxu0 %v5158
        %v5267 = vpop.f32.mrf.mxu0
        %v5268 = vadd.f32 %v4012, %v5267
        %v5269 = vpop.f32.mrf.mxu0
        %v5270 = vadd.f32 %v4014, %v5269
        %5271 = vdwg.mxu0
        %5272 = vmatpush.bf16.msra.mxu0 0
        %5273 = vmatpush.bf16.msra.mxu0 0
        %5274 = vmatpush.bf16.msra.mxu0 0
        %5275 = vmatpush.bf16.msra.mxu0 %v4973
        %5276 = vmatpush.bf16.msra.mxu0 %v4941
        %5277 = vmatpush.bf16.msra.mxu0 %v4909
        %5278 = vmatpush.bf16.msra.mxu0 %v4877
        %5279 = vmatpush.bf16.msra.mxu0 %v4845
        %5280 = vmatmul.bf16.gmra.mxu0 %v5158
        %v5281 = vpop.f32.mrf.mxu0
        %v5282 = vadd.f32 %v4026, %v5281
        %v5283 = vpop.f32.mrf.mxu0
        %v5284 = vadd.f32 %v4028, %v5283
        %5285 = vdwg.mxu0
        %5286 = vmatpush.bf16.msra.mxu0 0
        %5287 = vmatpush.bf16.msra.mxu0 0
        %5288 = vmatpush.bf16.msra.mxu0 0
        %5289 = vmatpush.bf16.msra.mxu0 %v4974
        %5290 = vmatpush.bf16.msra.mxu0 %v4942
        %5291 = vmatpush.bf16.msra.mxu0 %v4910
        %5292 = vmatpush.bf16.msra.mxu0 %v4878
        %5293 = vmatpush.bf16.msra.mxu0 %v4846
        %5294 = vmatmul.bf16.gmra.mxu0 %v5158
        %v5295 = vpop.f32.mrf.mxu0
        %v5296 = vadd.f32 %v4040, %v5295
        %v5297 = vpop.f32.mrf.mxu0
        %v5298 = vadd.f32 %v4042, %v5297
        %5299 = vdwg.mxu0
        %5300 = vmatpush.bf16.msra.mxu0 0
        %5301 = vmatpush.bf16.msra.mxu0 0
        %5302 = vmatpush.bf16.msra.mxu0 0
        %5303 = vmatpush.bf16.msra.mxu0 %v4975
        %5304 = vmatpush.bf16.msra.mxu0 %v4943
        %5305 = vmatpush.bf16.msra.mxu0 %v4911
        %5306 = vmatpush.bf16.msra.mxu0 %v4879
        %5307 = vmatpush.bf16.msra.mxu0 %v4847
        %5308 = vmatmul.bf16.gmra.mxu0 %v5158
        %v5309 = vpop.f32.mrf.mxu0
        %v5310 = vadd.f32 %v4054, %v5309
        %v5311 = vpop.f32.mrf.mxu0
        %v5312 = vadd.f32 %v4056, %v5311
        %5313 = vdwg.mxu0
        %5314 = vmatpush.bf16.msra.mxu0 0
        %5315 = vmatpush.bf16.msra.mxu0 0
        %5316 = vmatpush.bf16.msra.mxu0 0
        %5317 = vmatpush.bf16.msra.mxu0 %v4976
        %5318 = vmatpush.bf16.msra.mxu0 %v4944
        %5319 = vmatpush.bf16.msra.mxu0 %v4912
        %5320 = vmatpush.bf16.msra.mxu0 %v4880
        %5321 = vmatpush.bf16.msra.mxu0 %v4848
        %5322 = vmatmul.bf16.gmra.mxu0 %v5158
        %v5323 = vpop.f32.mrf.mxu0
        %v5324 = vadd.f32 %v4068, %v5323
        %v5325 = vpop.f32.mrf.mxu0
        %v5326 = vadd.f32 %v4070, %v5325
        %5327 = vdwg.mxu0
        %5328 = vmatpush.bf16.msra.mxu0 0
        %5329 = vmatpush.bf16.msra.mxu0 0
        %5330 = vmatpush.bf16.msra.mxu0 0
        %5331 = vmatpush.bf16.msra.mxu0 %v4977
        %5332 = vmatpush.bf16.msra.mxu0 %v4945
        %5333 = vmatpush.bf16.msra.mxu0 %v4913
        %5334 = vmatpush.bf16.msra.mxu0 %v4881
        %5335 = vmatpush.bf16.msra.mxu0 %v4849
        %5336 = vmatmul.bf16.gmra.mxu0 %v5158
        %v5337 = vpop.f32.mrf.mxu0
        %v5338 = vadd.f32 %v4082, %v5337
        %v5339 = vpop.f32.mrf.mxu0
        %v5340 = vadd.f32 %v4084, %v5339
        %5341 = vdwg.mxu0
        %5342 = vmatpush.bf16.msra.mxu0 0
        %5343 = vmatpush.bf16.msra.mxu0 0
        %5344 = vmatpush.bf16.msra.mxu0 0
        %5345 = vmatpush.bf16.msra.mxu0 %v4978
        %5346 = vmatpush.bf16.msra.mxu0 %v4946
        %5347 = vmatpush.bf16.msra.mxu0 %v4914
        %5348 = vmatpush.bf16.msra.mxu0 %v4882
        %5349 = vmatpush.bf16.msra.mxu0 %v4850
        %5350 = vmatmul.bf16.gmra.mxu0 %v5158
        %v5351 = vpop.f32.mrf.mxu0
        %v5352 = vadd.f32 %v4096, %v5351
        %v5353 = vpop.f32.mrf.mxu0
        %v5354 = vadd.f32 %v4098, %v5353
        %5355 = vdwg.mxu0
        %5356 = vmatpush.bf16.msra.mxu0 0
        %5357 = vmatpush.bf16.msra.mxu0 0
        %5358 = vmatpush.bf16.msra.mxu0 0
        %5359 = vmatpush.bf16.msra.mxu0 %v4979
        %5360 = vmatpush.bf16.msra.mxu0 %v4947
        %5361 = vmatpush.bf16.msra.mxu0 %v4915
        %5362 = vmatpush.bf16.msra.mxu0 %v4883
        %5363 = vmatpush.bf16.msra.mxu0 %v4851
        %5364 = vmatmul.bf16.gmra.mxu0 %v5158
        %v5365 = vpop.f32.mrf.mxu0
        %v5366 = vadd.f32 %v4110, %v5365
        %v5367 = vpop.f32.mrf.mxu0
        %v5368 = vadd.f32 %v4112, %v5367
        %5369 = vdwg.mxu0
        %5370 = vmatpush.bf16.msra.mxu0 0
        %5371 = vmatpush.bf16.msra.mxu0 0
        %5372 = vmatpush.bf16.msra.mxu0 0
        %5373 = vmatpush.bf16.msra.mxu0 %v4980
        %5374 = vmatpush.bf16.msra.mxu0 %v4948
        %5375 = vmatpush.bf16.msra.mxu0 %v4916
        %5376 = vmatpush.bf16.msra.mxu0 %v4884
        %5377 = vmatpush.bf16.msra.mxu0 %v4852
        %5378 = vmatmul.bf16.gmra.mxu0 %v5158
        %v5379 = vpop.f32.mrf.mxu0
        %v5380 = vadd.f32 %v4124, %v5379
        %v5381 = vpop.f32.mrf.mxu0
        %v5382 = vadd.f32 %v4126, %v5381
        %5383 = vdwg.mxu0
        %5384 = vmatpush.bf16.msra.mxu0 0
        %5385 = vmatpush.bf16.msra.mxu0 0
        %5386 = vmatpush.bf16.msra.mxu0 0
        %5387 = vmatpush.bf16.msra.mxu0 %v4981
        %5388 = vmatpush.bf16.msra.mxu0 %v4949
        %5389 = vmatpush.bf16.msra.mxu0 %v4917
        %5390 = vmatpush.bf16.msra.mxu0 %v4885
        %5391 = vmatpush.bf16.msra.mxu0 %v4853
        %5392 = vmatmul.bf16.gmra.mxu0 %v5158
        %v5393 = vpop.f32.mrf.mxu0
        %v5394 = vadd.f32 %v4138, %v5393
        %v5395 = vpop.f32.mrf.mxu0
        %v5396 = vadd.f32 %v4140, %v5395
        %5397 = vdwg.mxu0
        %5398 = vmatpush.bf16.msra.mxu0 0
        %5399 = vmatpush.bf16.msra.mxu0 0
        %5400 = vmatpush.bf16.msra.mxu0 0
        %5401 = vmatpush.bf16.msra.mxu0 %v4982
        %5402 = vmatpush.bf16.msra.mxu0 %v4950
        %5403 = vmatpush.bf16.msra.mxu0 %v4918
        %5404 = vmatpush.bf16.msra.mxu0 %v4886
        %5405 = vmatpush.bf16.msra.mxu0 %v4854
        %5406 = vmatmul.bf16.gmra.mxu0 %v5158
        %v5407 = vpop.f32.mrf.mxu0
        %v5408 = vadd.f32 %v4152, %v5407
        %v5409 = vpop.f32.mrf.mxu0
        %v5410 = vadd.f32 %v4154, %v5409
        %5411 = vdwg.mxu0
        %5412 = vmatpush.bf16.msra.mxu0 0
        %5413 = vmatpush.bf16.msra.mxu0 0
        %5414 = vmatpush.bf16.msra.mxu0 0
        %5415 = vmatpush.bf16.msra.mxu0 %v4983
        %5416 = vmatpush.bf16.msra.mxu0 %v4951
        %5417 = vmatpush.bf16.msra.mxu0 %v4919
        %5418 = vmatpush.bf16.msra.mxu0 %v4887
        %5419 = vmatpush.bf16.msra.mxu0 %v4855
        %5420 = vmatmul.bf16.gmra.mxu0 %v5158
        %v5421 = vpop.f32.mrf.mxu0
        %v5422 = vadd.f32 %v4166, %v5421
        %v5423 = vpop.f32.mrf.mxu0
        %v5424 = vadd.f32 %v4168, %v5423
        %5425 = vdwg.mxu0
        %5426 = vmatpush.bf16.msra.mxu0 0
        %5427 = vmatpush.bf16.msra.mxu0 0
        %5428 = vmatpush.bf16.msra.mxu0 0
        %5429 = vmatpush.bf16.msra.mxu0 %v4984
        %5430 = vmatpush.bf16.msra.mxu0 %v4952
        %5431 = vmatpush.bf16.msra.mxu0 %v4920
        %5432 = vmatpush.bf16.msra.mxu0 %v4888
        %5433 = vmatpush.bf16.msra.mxu0 %v4856
        %5434 = vmatmul.bf16.gmra.mxu0 %v5158
        %v5435 = vpop.f32.mrf.mxu0
        %v5436 = vadd.f32 %v4180, %v5435
        %v5437 = vpop.f32.mrf.mxu0
        %v5438 = vadd.f32 %v4182, %v5437
        %5439 = vdwg.mxu0
        %5440 = vmatpush.bf16.msra.mxu0 0
        %5441 = vmatpush.bf16.msra.mxu0 0
        %5442 = vmatpush.bf16.msra.mxu0 0
        %5443 = vmatpush.bf16.msra.mxu0 %v4985
        %5444 = vmatpush.bf16.msra.mxu0 %v4953
        %5445 = vmatpush.bf16.msra.mxu0 %v4921
        %5446 = vmatpush.bf16.msra.mxu0 %v4889
        %5447 = vmatpush.bf16.msra.mxu0 %v4857
        %5448 = vmatmul.bf16.gmra.mxu0 %v5158
        %v5449 = vpop.f32.mrf.mxu0
        %v5450 = vadd.f32 %v4194, %v5449
        %v5451 = vpop.f32.mrf.mxu0
        %v5452 = vadd.f32 %v4196, %v5451
        %5453 = vdwg.mxu0
        %5454 = vmatpush.bf16.msra.mxu0 0
        %5455 = vmatpush.bf16.msra.mxu0 0
        %5456 = vmatpush.bf16.msra.mxu0 0
        %5457 = vmatpush.bf16.msra.mxu0 %v4986
        %5458 = vmatpush.bf16.msra.mxu0 %v4954
        %5459 = vmatpush.bf16.msra.mxu0 %v4922
        %5460 = vmatpush.bf16.msra.mxu0 %v4890
        %5461 = vmatpush.bf16.msra.mxu0 %v4858
        %5462 = vmatmul.bf16.gmra.mxu0 %v5158
        %v5463 = vpop.f32.mrf.mxu0
        %v5464 = vadd.f32 %v4208, %v5463
        %v5465 = vpop.f32.mrf.mxu0
        %v5466 = vadd.f32 %v4210, %v5465
        %5467 = vdwg.mxu0
        %5468 = vmatpush.bf16.msra.mxu0 0
        %5469 = vmatpush.bf16.msra.mxu0 0
        %5470 = vmatpush.bf16.msra.mxu0 0
        %5471 = vmatpush.bf16.msra.mxu0 %v4987
        %5472 = vmatpush.bf16.msra.mxu0 %v4955
        %5473 = vmatpush.bf16.msra.mxu0 %v4923
        %5474 = vmatpush.bf16.msra.mxu0 %v4891
        %5475 = vmatpush.bf16.msra.mxu0 %v4859
        %5476 = vmatmul.bf16.gmra.mxu0 %v5158
        %v5477 = vpop.f32.mrf.mxu0
        %v5478 = vadd.f32 %v4222, %v5477
        %v5479 = vpop.f32.mrf.mxu0
        %v5480 = vadd.f32 %v4224, %v5479
        %5481 = vdwg.mxu0
        %5482 = vmatpush.bf16.msra.mxu0 0
        %5483 = vmatpush.bf16.msra.mxu0 0
        %5484 = vmatpush.bf16.msra.mxu0 0
        %5485 = vmatpush.bf16.msra.mxu0 %v4988
        %5486 = vmatpush.bf16.msra.mxu0 %v4956
        %5487 = vmatpush.bf16.msra.mxu0 %v4924
        %5488 = vmatpush.bf16.msra.mxu0 %v4892
        %5489 = vmatpush.bf16.msra.mxu0 %v4860
        %5490 = vmatmul.bf16.gmra.mxu0 %v5158
        %v5491 = vpop.f32.mrf.mxu0
        %v5492 = vadd.f32 %v4236, %v5491
        %v5493 = vpop.f32.mrf.mxu0
        %v5494 = vadd.f32 %v4238, %v5493
        %5495 = vdwg.mxu0
        %5496 = vmatpush.bf16.msra.mxu0 0
        %5497 = vmatpush.bf16.msra.mxu0 0
        %5498 = vmatpush.bf16.msra.mxu0 0
        %5499 = vmatpush.bf16.msra.mxu0 %v4989
        %5500 = vmatpush.bf16.msra.mxu0 %v4957
        %5501 = vmatpush.bf16.msra.mxu0 %v4925
        %5502 = vmatpush.bf16.msra.mxu0 %v4893
        %5503 = vmatpush.bf16.msra.mxu0 %v4861
        %5504 = vmatmul.bf16.gmra.mxu0 %v5158
        %v5505 = vpop.f32.mrf.mxu0
        %v5506 = vadd.f32 %v4250, %v5505
        %v5507 = vpop.f32.mrf.mxu0
        %v5508 = vadd.f32 %v4252, %v5507
        %5509 = vdwg.mxu0
        %5510 = vmatpush.bf16.msra.mxu0 0
        %5511 = vmatpush.bf16.msra.mxu0 0
        %5512 = vmatpush.bf16.msra.mxu0 0
        %5513 = vmatpush.bf16.msra.mxu0 %v4990
        %5514 = vmatpush.bf16.msra.mxu0 %v4958
        %5515 = vmatpush.bf16.msra.mxu0 %v4926
        %5516 = vmatpush.bf16.msra.mxu0 %v4894
        %5517 = vmatpush.bf16.msra.mxu0 %v4862
        %5518 = vmatmul.bf16.gmra.mxu0 %v5158
        %v5519 = vpop.f32.mrf.mxu0
        %v5520 = vadd.f32 %v4264, %v5519
        %v5521 = vpop.f32.mrf.mxu0
        %v5522 = vadd.f32 %v4266, %v5521
        %5523 = vdwg.mxu0
        %5524 = vmatpush.bf16.msra.mxu0 0
        %5525 = vmatpush.bf16.msra.mxu0 0
        %5526 = vmatpush.bf16.msra.mxu0 0
        %5527 = vmatpush.bf16.msra.mxu0 %v4991
        %5528 = vmatpush.bf16.msra.mxu0 %v4959
        %5529 = vmatpush.bf16.msra.mxu0 %v4927
        %5530 = vmatpush.bf16.msra.mxu0 %v4895
        %5531 = vmatpush.bf16.msra.mxu0 %v4863
        %5532 = vmatmul.bf16.gmra.mxu0 %v5158
        %v5533 = vpop.f32.mrf.mxu0
        %v5534 = vadd.f32 %v4278, %v5533
        %v5535 = vpop.f32.mrf.mxu0
        %v5536 = vadd.f32 %v4280, %v5535
        %5537 = vdwg.mxu0
        %5538 = vmatpush.bf16.msra.mxu0 0
        %5539 = vmatpush.bf16.msra.mxu0 0
        %5540 = vmatpush.bf16.msra.mxu0 0
        %5541 = vmatpush.bf16.msra.mxu0 %v4992
        %5542 = vmatpush.bf16.msra.mxu0 %v4960
        %5543 = vmatpush.bf16.msra.mxu0 %v4928
        %5544 = vmatpush.bf16.msra.mxu0 %v4896
        %5545 = vmatpush.bf16.msra.mxu0 %v4864
        %5546 = vmatmul.bf16.gmra.mxu0 %v5158
        %v5547 = vpop.f32.mrf.mxu0
        %v5548 = vadd.f32 %v4292, %v5547
        %v5549 = vpop.f32.mrf.mxu0
        %v5550 = vadd.f32 %v4294, %v5549
        %5551 = vdwg.mxu0
        %5552 = vmatpush.bf16.msra.mxu0 0
        %5553 = vmatpush.bf16.msra.mxu0 0
        %5554 = vmatpush.bf16.msra.mxu0 0
        %5555 = vmatpush.bf16.msra.mxu0 %v4993
        %5556 = vmatpush.bf16.msra.mxu0 %v4961
        %5557 = vmatpush.bf16.msra.mxu0 %v4929
        %5558 = vmatpush.bf16.msra.mxu0 %v4897
        %5559 = vmatpush.bf16.msra.mxu0 %v4865
        %5560 = vmatmul.bf16.gmra.mxu0 %v5158
        %v5561 = vpop.f32.mrf.mxu0
        %v5562 = vadd.f32 %v4306, %v5561
        %v5563 = vpop.f32.mrf.mxu0
        %v5564 = vadd.f32 %v4308, %v5563
        %5565 = vdwg.mxu0
        %5566 = vmatpush.bf16.msra.mxu0 0
        %5567 = vmatpush.bf16.msra.mxu0 0
        %5568 = vmatpush.bf16.msra.mxu0 0
        %5569 = vmatpush.bf16.msra.mxu0 %v4994
        %5570 = vmatpush.bf16.msra.mxu0 %v4962
        %5571 = vmatpush.bf16.msra.mxu0 %v4930
        %5572 = vmatpush.bf16.msra.mxu0 %v4898
        %5573 = vmatpush.bf16.msra.mxu0 %v4866
        %5574 = vmatmul.bf16.gmra.mxu0 %v5158
        %v5575 = vpop.f32.mrf.mxu0
        %v5576 = vadd.f32 %v4320, %v5575
        %v5577 = vpop.f32.mrf.mxu0
        %v5578 = vadd.f32 %v4322, %v5577
        %5579 = vdwg.mxu0
        %5580 = vmatpush.bf16.msra.mxu0 0
        %5581 = vmatpush.bf16.msra.mxu0 0
        %5582 = vmatpush.bf16.msra.mxu0 0
        %5583 = vmatpush.bf16.msra.mxu0 %v4995
        %5584 = vmatpush.bf16.msra.mxu0 %v4963
        %5585 = vmatpush.bf16.msra.mxu0 %v4931
        %5586 = vmatpush.bf16.msra.mxu0 %v4899
        %5587 = vmatpush.bf16.msra.mxu0 %v4867
        %5588 = vmatmul.bf16.gmra.mxu0 %v5158
        %v5589 = vpop.f32.mrf.mxu0
        %v5590 = vadd.f32 %v4334, %v5589
        %v5591 = vpop.f32.mrf.mxu0
        %v5592 = vadd.f32 %v4336, %v5591
        %5593 = vdwg.mxu0
        %5594 = vmatpush.bf16.msra.mxu0 0
        %5595 = vmatpush.bf16.msra.mxu0 0
        %5596 = vmatpush.bf16.msra.mxu0 0
        %5597 = vmatpush.bf16.msra.mxu0 %v4996
        %5598 = vmatpush.bf16.msra.mxu0 %v4964
        %5599 = vmatpush.bf16.msra.mxu0 %v4932
        %5600 = vmatpush.bf16.msra.mxu0 %v4900
        %5601 = vmatpush.bf16.msra.mxu0 %v4868
        %5602 = vmatmul.bf16.gmra.mxu0 %v5158
        %v5603 = vpop.f32.mrf.mxu0
        %v5604 = vadd.f32 %v4348, %v5603
        %v5605 = vpop.f32.mrf.mxu0
        %v5606 = vadd.f32 %v4350, %v5605
        %5607 = vdwg.mxu0
        %s5608 = scalar_lea.vmem %s3, 16
        %v5609 = vld [vmem:[%s5608] sm:$0xf]
        %v5610 = vld [vmem:[%s5608 + $0x4] sm:$0xf]
        %v5611 = vld [vmem:[#allocation2 + $0x8] sm:$0xff]
        %v5612 = vld [vmem:[#allocation2 + $0x10] sm:$0xff]
        %v5613 = vld [vmem:[#allocation2 + $0x18] sm:$0xff]
        %v5614 = vld [vmem:[#allocation2 + $0x20] sm:$0xff]
        %v5615 = vld [vmem:[#allocation2 + $0x28] sm:$0xff]
        %v5616 = vld [vmem:[#allocation2 + $0x30] sm:$0xff]
        %v5617 = vld [vmem:[#allocation2 + $0x38] sm:$0xff]
        %v5618 = vld [vmem:[#allocation2 + $0x40] sm:$0xff]
        %v5619 = vld [vmem:[#allocation2 + $0x48] sm:$0xff]
        %v5620 = vld [vmem:[#allocation2 + $0x50] sm:$0xff]
        %v5621 = vld [vmem:[#allocation2 + $0x58] sm:$0xff]
        %v5622 = vld [vmem:[#allocation2 + $0x60] sm:$0xff]
        %v5623 = vld [vmem:[#allocation2 + $0x68] sm:$0xff]
        %v5624 = vld [vmem:[#allocation2 + $0x70] sm:$0xff]
        %v5625 = vld [vmem:[#allocation2 + $0x78] sm:$0xff]
        %v5626 = vld [vmem:[#allocation2 + $0x80] sm:$0xff]
        %v5627 = vld [vmem:[#allocation2 + $0x98] sm:$0xff]
        %v5628 = vld [vmem:[#allocation2 + $0xa0] sm:$0xff]
        %v5629 = vld [vmem:[#allocation2 + $0xa8] sm:$0xff]
        %v5630 = vld [vmem:[#allocation2 + $0xb0] sm:$0xff]
        %v5631 = vld [vmem:[#allocation2 + $0xb8] sm:$0xff]
        %v5632 = vld [vmem:[#allocation2 + $0xc0] sm:$0xff]
        %v5633 = vld [vmem:[#allocation2 + $0xc8] sm:$0xff]
        %v5634 = vld [vmem:[#allocation2 + $0xd0] sm:$0xff]
        %v5635 = vld [vmem:[#allocation2 + $0xd8] sm:$0xff]
        %v5636 = vld [vmem:[#allocation2 + $0xe0] sm:$0xff]
        %v5637 = vld [vmem:[#allocation2 + $0xe8] sm:$0xff]
        %v5638 = vld [vmem:[#allocation2 + $0xf0] sm:$0xff]
        %v5639 = vld [vmem:[#allocation2 + $0xf8] sm:$0xff]
        %v5640 = vld [vmem:[#allocation2 + $0x100] sm:$0xff]
        %v5641 = vld [vmem:[#allocation2 + $0x108] sm:$0xff]
        %v5642 = vld [vmem:[#allocation2 + $0x110] sm:$0xff]
        %v5643 = vld [vmem:[#allocation2 + $0x128] sm:$0xff]
        %v5644 = vld [vmem:[#allocation2 + $0x130] sm:$0xff]
        %v5645 = vld [vmem:[#allocation2 + $0x138] sm:$0xff]
        %v5646 = vld [vmem:[#allocation2 + $0x140] sm:$0xff]
        %v5647 = vld [vmem:[#allocation2 + $0x148] sm:$0xff]
        %v5648 = vld [vmem:[#allocation2 + $0x150] sm:$0xff]
        %v5649 = vld [vmem:[#allocation2 + $0x158] sm:$0xff]
        %v5650 = vld [vmem:[#allocation2 + $0x160] sm:$0xff]
        %v5651 = vld [vmem:[#allocation2 + $0x168] sm:$0xff]
        %v5652 = vld [vmem:[#allocation2 + $0x170] sm:$0xff]
        %v5653 = vld [vmem:[#allocation2 + $0x178] sm:$0xff]
        %v5654 = vld [vmem:[#allocation2 + $0x180] sm:$0xff]
        %v5655 = vld [vmem:[#allocation2 + $0x188] sm:$0xff]
        %v5656 = vld [vmem:[#allocation2 + $0x190] sm:$0xff]
        %v5657 = vld [vmem:[#allocation2 + $0x198] sm:$0xff]
        %v5658 = vld [vmem:[#allocation2 + $0x1a0] sm:$0xff]
        %v5659 = vld [vmem:[#allocation2 + $0x1b8] sm:$0xff]
        %v5660 = vld [vmem:[#allocation2 + $0x1c0] sm:$0xff]
        %v5661 = vld [vmem:[#allocation2 + $0x1c8] sm:$0xff]
        %v5662 = vld [vmem:[#allocation2 + $0x1d0] sm:$0xff]
        %v5663 = vld [vmem:[#allocation2 + $0x1d8] sm:$0xff]
        %v5664 = vld [vmem:[#allocation2 + $0x1e0] sm:$0xff]
        %v5665 = vld [vmem:[#allocation2 + $0x1e8] sm:$0xff]
        %v5666 = vld [vmem:[#allocation2 + $0x1f0] sm:$0xff]
        %v5667 = vld [vmem:[#allocation2 + $0x1f8] sm:$0xff]
        %v5668 = vld [vmem:[#allocation2 + $0x200] sm:$0xff]
        %v5669 = vld [vmem:[#allocation2 + $0x208] sm:$0xff]
        %v5670 = vld [vmem:[#allocation2 + $0x210] sm:$0xff]
        %v5671 = vld [vmem:[#allocation2 + $0x218] sm:$0xff]
        %v5672 = vld [vmem:[#allocation2 + $0x220] sm:$0xff]
        %v5673 = vld [vmem:[#allocation2 + $0x228] sm:$0xff]
        %v5674 = vld [vmem:[#allocation2 + $0x230] sm:$0xff]
        %v5675 = vld [vmem:[#allocation2 + $0x248] sm:$0xff]
        %v5676 = vld [vmem:[#allocation2 + $0x250] sm:$0xff]
        %v5677 = vld [vmem:[#allocation2 + $0x258] sm:$0xff]
        %v5678 = vld [vmem:[#allocation2 + $0x260] sm:$0xff]
        %v5679 = vld [vmem:[#allocation2 + $0x268] sm:$0xff]
        %v5680 = vld [vmem:[#allocation2 + $0x270] sm:$0xff]
        %v5681 = vld [vmem:[#allocation2 + $0x278] sm:$0xff]
        %v5682 = vld [vmem:[#allocation2 + $0x280] sm:$0xff]
        %v5683 = vld [vmem:[#allocation2 + $0x288] sm:$0xff]
        %v5684 = vld [vmem:[#allocation2 + $0x290] sm:$0xff]
        %v5685 = vld [vmem:[#allocation2 + $0x298] sm:$0xff]
        %v5686 = vld [vmem:[#allocation2 + $0x2a0] sm:$0xff]
        %v5687 = vld [vmem:[#allocation2 + $0x2a8] sm:$0xff]
        %v5688 = vld [vmem:[#allocation2 + $0x2b0] sm:$0xff]
        %v5689 = vld [vmem:[#allocation2 + $0x2b8] sm:$0xff]
        %v5690 = vld [vmem:[#allocation2 + $0x2c0] sm:$0xff]
        %v5691 = vld [vmem:[#allocation2 + $0x2d8] sm:$0xff]
        %v5692 = vld [vmem:[#allocation2 + $0x2e0] sm:$0xff]
        %v5693 = vld [vmem:[#allocation2 + $0x2e8] sm:$0xff]
        %v5694 = vld [vmem:[#allocation2 + $0x2f0] sm:$0xff]
        %v5695 = vld [vmem:[#allocation2 + $0x2f8] sm:$0xff]
        %v5696 = vld [vmem:[#allocation2 + $0x300] sm:$0xff]
        %v5697 = vld [vmem:[#allocation2 + $0x308] sm:$0xff]
        %v5698 = vld [vmem:[#allocation2 + $0x310] sm:$0xff]
        %v5699 = vld [vmem:[#allocation2 + $0x318] sm:$0xff]
        %v5700 = vld [vmem:[#allocation2 + $0x320] sm:$0xff]
        %v5701 = vld [vmem:[#allocation2 + $0x328] sm:$0xff]
        %v5702 = vld [vmem:[#allocation2 + $0x330] sm:$0xff]
        %v5703 = vld [vmem:[#allocation2 + $0x338] sm:$0xff]
        %v5704 = vld [vmem:[#allocation2 + $0x340] sm:$0xff]
        %v5705 = vld [vmem:[#allocation2 + $0x348] sm:$0xff]
        %v5706 = vld [vmem:[#allocation2 + $0x350] sm:$0xff]
        %v5707 = vld [vmem:[#allocation2 + $0x368] sm:$0xff]
        %v5708 = vld [vmem:[#allocation2 + $0x370] sm:$0xff]
        %v5709 = vld [vmem:[#allocation2 + $0x378] sm:$0xff]
        %v5710 = vld [vmem:[#allocation2 + $0x380] sm:$0xff]
        %v5711 = vld [vmem:[#allocation2 + $0x388] sm:$0xff]
        %v5712 = vld [vmem:[#allocation2 + $0x390] sm:$0xff]
        %v5713 = vld [vmem:[#allocation2 + $0x398] sm:$0xff]
        %v5714 = vld [vmem:[#allocation2 + $0x3a0] sm:$0xff]
        %v5715 = vld [vmem:[#allocation2 + $0x3a8] sm:$0xff]
        %v5716 = vld [vmem:[#allocation2 + $0x3b0] sm:$0xff]
        %v5717 = vld [vmem:[#allocation2 + $0x3b8] sm:$0xff]
        %v5718 = vld [vmem:[#allocation2 + $0x3c0] sm:$0xff]
        %v5719 = vld [vmem:[#allocation2 + $0x3c8] sm:$0xff]
        %v5720 = vld [vmem:[#allocation2 + $0x3d0] sm:$0xff]
        %v5721 = vld [vmem:[#allocation2 + $0x3d8] sm:$0xff]
        %v5722 = vld [vmem:[#allocation2 + $0x3e0] sm:$0xff]
        %v5723 = vld [vmem:[#allocation2 + $0x3f8] sm:$0xff]
        %v5724 = vld [vmem:[#allocation2 + $0x400] sm:$0xff]
        %v5725 = vld [vmem:[#allocation2 + $0x408] sm:$0xff]
        %v5726 = vld [vmem:[#allocation2 + $0x410] sm:$0xff]
        %v5727 = vld [vmem:[#allocation2 + $0x418] sm:$0xff]
        %v5728 = vld [vmem:[#allocation2 + $0x420] sm:$0xff]
        %v5729 = vld [vmem:[#allocation2 + $0x428] sm:$0xff]
        %v5730 = vld [vmem:[#allocation2 + $0x430] sm:$0xff]
        %v5731 = vld [vmem:[#allocation2 + $0x438] sm:$0xff]
        %v5732 = vld [vmem:[#allocation2 + $0x440] sm:$0xff]
        %v5733 = vld [vmem:[#allocation2 + $0x448] sm:$0xff]
        %v5734 = vld [vmem:[#allocation2 + $0x450] sm:$0xff]
        %v5735 = vld [vmem:[#allocation2 + $0x458] sm:$0xff]
        %v5736 = vld [vmem:[#allocation2 + $0x460] sm:$0xff]
        %v5737 = vld [vmem:[#allocation2 + $0x468] sm:$0xff]
        %v5738 = vld [vmem:[#allocation2 + $0x470] sm:$0xff]
        %v5739 = vld [vmem:[#allocation2 + $0x488] sm:$0xff]
        %v5740 = vld [vmem:[#allocation2 + $0x490] sm:$0xff]
        %v5741 = vld [vmem:[#allocation2 + $0x498] sm:$0xff]
        %v5742 = vld [vmem:[#allocation2 + $0x4a0] sm:$0xff]
        %v5743 = vld [vmem:[#allocation2 + $0x4a8] sm:$0xff]
        %v5744 = vld [vmem:[#allocation2 + $0x4b0] sm:$0xff]
        %v5745 = vld [vmem:[#allocation2 + $0x4b8] sm:$0xff]
        %v5746 = vld [vmem:[#allocation2 + $0x4c0] sm:$0xff]
        %v5747 = vld [vmem:[#allocation2 + $0x4c8] sm:$0xff]
        %v5748 = vld [vmem:[#allocation2 + $0x4d0] sm:$0xff]
        %v5749 = vld [vmem:[#allocation2 + $0x4d8] sm:$0xff]
        %v5750 = vld [vmem:[#allocation2 + $0x4e0] sm:$0xff]
        %v5751 = vld [vmem:[#allocation2 + $0x4e8] sm:$0xff]
        %v5752 = vld [vmem:[#allocation2 + $0x4f0] sm:$0xff]
        %v5753 = vld [vmem:[#allocation2 + $0x4f8] sm:$0xff]
        %v5754 = vld [vmem:[#allocation2 + $0x500] sm:$0xff]
        %v5755 = vld [vmem:[#allocation2 + $0x518] sm:$0xff]
        %v5756 = vld [vmem:[#allocation2 + $0x520] sm:$0xff]
        %v5757 = vld [vmem:[#allocation2 + $0x528] sm:$0xff]
        %v5758 = vld [vmem:[#allocation2 + $0x530] sm:$0xff]
        %v5759 = vld [vmem:[#allocation2 + $0x538] sm:$0xff]
        %v5760 = vld [vmem:[#allocation2 + $0x540] sm:$0xff]
        %v5761 = vld [vmem:[#allocation2 + $0x548] sm:$0xff]
        %v5762 = vld [vmem:[#allocation2 + $0x550] sm:$0xff]
        %v5763 = vld [vmem:[#allocation2 + $0x558] sm:$0xff]
        %v5764 = vld [vmem:[#allocation2 + $0x560] sm:$0xff]
        %v5765 = vld [vmem:[#allocation2 + $0x568] sm:$0xff]
        %v5766 = vld [vmem:[#allocation2 + $0x570] sm:$0xff]
        %v5767 = vld [vmem:[#allocation2 + $0x578] sm:$0xff]
        %v5768 = vld [vmem:[#allocation2 + $0x580] sm:$0xff]
        %v5769 = vld [vmem:[#allocation2 + $0x588] sm:$0xff]
        %v5770 = vld [vmem:[#allocation2 + $0x590] sm:$0xff]
        %v5773 = vunpack.c.l.b16 %v5609
        %v5774 = vunpack.c.l.b16 %v5610
        %v5775 = vpack.c.b16 %v5774, %v5773
        %v5936 = vunpack.c.l.b16 %v5611
        %v5937 = vunpack.c.h.b16 %v5611
        %v5938 = vunpack.c.l.b16 %v5612
        %v5939 = vunpack.c.h.b16 %v5612
        %v5940 = vunpack.c.l.b16 %v5613
        %v5941 = vunpack.c.h.b16 %v5613
        %v5942 = vunpack.c.l.b16 %v5614
        %v5943 = vunpack.c.h.b16 %v5614
        %v5944 = vunpack.c.l.b16 %v5615
        %v5945 = vunpack.c.h.b16 %v5615
        %v5946 = vunpack.c.l.b16 %v5616
        %v5947 = vunpack.c.h.b16 %v5616
        %v5948 = vunpack.c.l.b16 %v5617
        %v5949 = vunpack.c.h.b16 %v5617
        %v5950 = vunpack.c.l.b16 %v5618
        %v5951 = vunpack.c.h.b16 %v5618
        %v5952 = vunpack.c.l.b16 %v5619
        %v5953 = vunpack.c.h.b16 %v5619
        %v5954 = vunpack.c.l.b16 %v5620
        %v5955 = vunpack.c.h.b16 %v5620
        %v5956 = vunpack.c.l.b16 %v5621
        %v5957 = vunpack.c.h.b16 %v5621
        %v5958 = vunpack.c.l.b16 %v5622
        %v5959 = vunpack.c.h.b16 %v5622
        %v5960 = vunpack.c.l.b16 %v5623
        %v5961 = vunpack.c.h.b16 %v5623
        %v5962 = vunpack.c.l.b16 %v5624
        %v5963 = vunpack.c.h.b16 %v5624
        %v5964 = vunpack.c.l.b16 %v5625
        %v5965 = vunpack.c.h.b16 %v5625
        %v5966 = vunpack.c.l.b16 %v5626
        %v5967 = vunpack.c.h.b16 %v5626
        %v5968 = vunpack.c.l.b16 %v5627
        %v5969 = vunpack.c.h.b16 %v5627
        %v5970 = vunpack.c.l.b16 %v5628
        %v5971 = vunpack.c.h.b16 %v5628
        %v5972 = vunpack.c.l.b16 %v5629
        %v5973 = vunpack.c.h.b16 %v5629
        %v5974 = vunpack.c.l.b16 %v5630
        %v5975 = vunpack.c.h.b16 %v5630
        %v5976 = vunpack.c.l.b16 %v5631
        %v5977 = vunpack.c.h.b16 %v5631
        %v5978 = vunpack.c.l.b16 %v5632
        %v5979 = vunpack.c.h.b16 %v5632
        %v5980 = vunpack.c.l.b16 %v5633
        %v5981 = vunpack.c.h.b16 %v5633
        %v5982 = vunpack.c.l.b16 %v5634
        %v5983 = vunpack.c.h.b16 %v5634
        %v5984 = vunpack.c.l.b16 %v5635
        %v5985 = vunpack.c.h.b16 %v5635
        %v5986 = vunpack.c.l.b16 %v5636
        %v5987 = vunpack.c.h.b16 %v5636
        %v5988 = vunpack.c.l.b16 %v5637
        %v5989 = vunpack.c.h.b16 %v5637
        %v5990 = vunpack.c.l.b16 %v5638
        %v5991 = vunpack.c.h.b16 %v5638
        %v5992 = vunpack.c.l.b16 %v5639
        %v5993 = vunpack.c.h.b16 %v5639
        %v5994 = vunpack.c.l.b16 %v5640
        %v5995 = vunpack.c.h.b16 %v5640
        %v5996 = vunpack.c.l.b16 %v5641
        %v5997 = vunpack.c.h.b16 %v5641
        %v5998 = vunpack.c.l.b16 %v5642
        %v5999 = vunpack.c.h.b16 %v5642
        %v6000 = vunpack.c.l.b16 %v5643
        %v6001 = vunpack.c.h.b16 %v5643
        %v6002 = vunpack.c.l.b16 %v5644
        %v6003 = vunpack.c.h.b16 %v5644
        %v6004 = vunpack.c.l.b16 %v5645
        %v6005 = vunpack.c.h.b16 %v5645
        %v6006 = vunpack.c.l.b16 %v5646
        %v6007 = vunpack.c.h.b16 %v5646
        %v6008 = vunpack.c.l.b16 %v5647
        %v6009 = vunpack.c.h.b16 %v5647
        %v6010 = vunpack.c.l.b16 %v5648
        %v6011 = vunpack.c.h.b16 %v5648
        %v6012 = vunpack.c.l.b16 %v5649
        %v6013 = vunpack.c.h.b16 %v5649
        %v6014 = vunpack.c.l.b16 %v5650
        %v6015 = vunpack.c.h.b16 %v5650
        %v6016 = vunpack.c.l.b16 %v5651
        %v6017 = vunpack.c.h.b16 %v5651
        %v6018 = vunpack.c.l.b16 %v5652
        %v6019 = vunpack.c.h.b16 %v5652
        %v6020 = vunpack.c.l.b16 %v5653
        %v6021 = vunpack.c.h.b16 %v5653
        %v6022 = vunpack.c.l.b16 %v5654
        %v6023 = vunpack.c.h.b16 %v5654
        %v6024 = vunpack.c.l.b16 %v5655
        %v6025 = vunpack.c.h.b16 %v5655
        %v6026 = vunpack.c.l.b16 %v5656
        %v6027 = vunpack.c.h.b16 %v5656
        %v6028 = vunpack.c.l.b16 %v5657
        %v6029 = vunpack.c.h.b16 %v5657
        %v6030 = vunpack.c.l.b16 %v5658
        %v6031 = vunpack.c.h.b16 %v5658
        %v6032 = vunpack.c.l.b16 %v5659
        %v6033 = vunpack.c.h.b16 %v5659
        %v6034 = vunpack.c.l.b16 %v5660
        %v6035 = vunpack.c.h.b16 %v5660
        %v6036 = vunpack.c.l.b16 %v5661
        %v6037 = vunpack.c.h.b16 %v5661
        %v6038 = vunpack.c.l.b16 %v5662
        %v6039 = vunpack.c.h.b16 %v5662
        %v6040 = vunpack.c.l.b16 %v5663
        %v6041 = vunpack.c.h.b16 %v5663
        %v6042 = vunpack.c.l.b16 %v5664
        %v6043 = vunpack.c.h.b16 %v5664
        %v6044 = vunpack.c.l.b16 %v5665
        %v6045 = vunpack.c.h.b16 %v5665
        %v6046 = vunpack.c.l.b16 %v5666
        %v6047 = vunpack.c.h.b16 %v5666
        %v6048 = vunpack.c.l.b16 %v5667
        %v6049 = vunpack.c.h.b16 %v5667
        %v6050 = vunpack.c.l.b16 %v5668
        %v6051 = vunpack.c.h.b16 %v5668
        %v6052 = vunpack.c.l.b16 %v5669
        %v6053 = vunpack.c.h.b16 %v5669
        %v6054 = vunpack.c.l.b16 %v5670
        %v6055 = vunpack.c.h.b16 %v5670
        %v6056 = vunpack.c.l.b16 %v5671
        %v6057 = vunpack.c.h.b16 %v5671
        %v6058 = vunpack.c.l.b16 %v5672
        %v6059 = vunpack.c.h.b16 %v5672
        %v6060 = vunpack.c.l.b16 %v5673
        %v6061 = vunpack.c.h.b16 %v5673
        %v6062 = vunpack.c.l.b16 %v5674
        %v6063 = vunpack.c.h.b16 %v5674
        %v6064 = vunpack.c.l.b16 %v5675
        %v6065 = vunpack.c.h.b16 %v5675
        %v6066 = vunpack.c.l.b16 %v5676
        %v6067 = vunpack.c.h.b16 %v5676
        %v6068 = vunpack.c.l.b16 %v5677
        %v6069 = vunpack.c.h.b16 %v5677
        %v6070 = vunpack.c.l.b16 %v5678
        %v6071 = vunpack.c.h.b16 %v5678
        %v6072 = vunpack.c.l.b16 %v5679
        %v6073 = vunpack.c.h.b16 %v5679
        %v6074 = vunpack.c.l.b16 %v5680
        %v6075 = vunpack.c.h.b16 %v5680
        %v6076 = vunpack.c.l.b16 %v5681
        %v6077 = vunpack.c.h.b16 %v5681
        %v6078 = vunpack.c.l.b16 %v5682
        %v6079 = vunpack.c.h.b16 %v5682
        %v6080 = vunpack.c.l.b16 %v5683
        %v6081 = vunpack.c.h.b16 %v5683
        %v6082 = vunpack.c.l.b16 %v5684
        %v6083 = vunpack.c.h.b16 %v5684
        %v6084 = vunpack.c.l.b16 %v5685
        %v6085 = vunpack.c.h.b16 %v5685
        %v6086 = vunpack.c.l.b16 %v5686
        %v6087 = vunpack.c.h.b16 %v5686
        %v6088 = vunpack.c.l.b16 %v5687
        %v6089 = vunpack.c.h.b16 %v5687
        %v6090 = vunpack.c.l.b16 %v5688
        %v6091 = vunpack.c.h.b16 %v5688
        %v6092 = vunpack.c.l.b16 %v5689
        %v6093 = vunpack.c.h.b16 %v5689
        %v6094 = vunpack.c.l.b16 %v5690
        %v6095 = vunpack.c.h.b16 %v5690
        %v6096 = vunpack.c.l.b16 %v5691
        %v6097 = vunpack.c.h.b16 %v5691
        %v6098 = vunpack.c.l.b16 %v5692
        %v6099 = vunpack.c.h.b16 %v5692
        %v6100 = vunpack.c.l.b16 %v5693
        %v6101 = vunpack.c.h.b16 %v5693
        %v6102 = vunpack.c.l.b16 %v5694
        %v6103 = vunpack.c.h.b16 %v5694
        %v6104 = vunpack.c.l.b16 %v5695
        %v6105 = vunpack.c.h.b16 %v5695
        %v6106 = vunpack.c.l.b16 %v5696
        %v6107 = vunpack.c.h.b16 %v5696
        %v6108 = vunpack.c.l.b16 %v5697
        %v6109 = vunpack.c.h.b16 %v5697
        %v6110 = vunpack.c.l.b16 %v5698
        %v6111 = vunpack.c.h.b16 %v5698
        %v6112 = vunpack.c.l.b16 %v5699
        %v6113 = vunpack.c.h.b16 %v5699
        %v6114 = vunpack.c.l.b16 %v5700
        %v6115 = vunpack.c.h.b16 %v5700
        %v6116 = vunpack.c.l.b16 %v5701
        %v6117 = vunpack.c.h.b16 %v5701
        %v6118 = vunpack.c.l.b16 %v5702
        %v6119 = vunpack.c.h.b16 %v5702
        %v6120 = vunpack.c.l.b16 %v5703
        %v6121 = vunpack.c.h.b16 %v5703
        %v6122 = vunpack.c.l.b16 %v5704
        %v6123 = vunpack.c.h.b16 %v5704
        %v6124 = vunpack.c.l.b16 %v5705
        %v6125 = vunpack.c.h.b16 %v5705
        %v6126 = vunpack.c.l.b16 %v5706
        %v6127 = vunpack.c.h.b16 %v5706
        %v6128 = vunpack.c.l.b16 %v5707
        %v6129 = vunpack.c.h.b16 %v5707
        %v6130 = vunpack.c.l.b16 %v5708
        %v6131 = vunpack.c.h.b16 %v5708
        %v6132 = vunpack.c.l.b16 %v5709
        %v6133 = vunpack.c.h.b16 %v5709
        %v6134 = vunpack.c.l.b16 %v5710
        %v6135 = vunpack.c.h.b16 %v5710
        %v6136 = vunpack.c.l.b16 %v5711
        %v6137 = vunpack.c.h.b16 %v5711
        %v6138 = vunpack.c.l.b16 %v5712
        %v6139 = vunpack.c.h.b16 %v5712
        %v6140 = vunpack.c.l.b16 %v5713
        %v6141 = vunpack.c.h.b16 %v5713
        %v6142 = vunpack.c.l.b16 %v5714
        %v6143 = vunpack.c.h.b16 %v5714
        %v6144 = vunpack.c.l.b16 %v5715
        %v6145 = vunpack.c.h.b16 %v5715
        %v6146 = vunpack.c.l.b16 %v5716
        %v6147 = vunpack.c.h.b16 %v5716
        %v6148 = vunpack.c.l.b16 %v5717
        %v6149 = vunpack.c.h.b16 %v5717
        %v6150 = vunpack.c.l.b16 %v5718
        %v6151 = vunpack.c.h.b16 %v5718
        %v6152 = vunpack.c.l.b16 %v5719
        %v6153 = vunpack.c.h.b16 %v5719
        %v6154 = vunpack.c.l.b16 %v5720
        %v6155 = vunpack.c.h.b16 %v5720
        %v6156 = vunpack.c.l.b16 %v5721
        %v6157 = vunpack.c.h.b16 %v5721
        %v6158 = vunpack.c.l.b16 %v5722
        %v6159 = vunpack.c.h.b16 %v5722
        %v6160 = vunpack.c.l.b16 %v5723
        %v6161 = vunpack.c.h.b16 %v5723
        %v6162 = vunpack.c.l.b16 %v5724
        %v6163 = vunpack.c.h.b16 %v5724
        %v6164 = vunpack.c.l.b16 %v5725
        %v6165 = vunpack.c.h.b16 %v5725
        %v6166 = vunpack.c.l.b16 %v5726
        %v6167 = vunpack.c.h.b16 %v5726
        %v6168 = vunpack.c.l.b16 %v5727
        %v6169 = vunpack.c.h.b16 %v5727
        %v6170 = vunpack.c.l.b16 %v5728
        %v6171 = vunpack.c.h.b16 %v5728
        %v6172 = vunpack.c.l.b16 %v5729
        %v6173 = vunpack.c.h.b16 %v5729
        %v6174 = vunpack.c.l.b16 %v5730
        %v6175 = vunpack.c.h.b16 %v5730
        %v6176 = vunpack.c.l.b16 %v5731
        %v6177 = vunpack.c.h.b16 %v5731
        %v6178 = vunpack.c.l.b16 %v5732
        %v6179 = vunpack.c.h.b16 %v5732
        %v6180 = vunpack.c.l.b16 %v5733
        %v6181 = vunpack.c.h.b16 %v5733
        %v6182 = vunpack.c.l.b16 %v5734
        %v6183 = vunpack.c.h.b16 %v5734
        %v6184 = vunpack.c.l.b16 %v5735
        %v6185 = vunpack.c.h.b16 %v5735
        %v6186 = vunpack.c.l.b16 %v5736
        %v6187 = vunpack.c.h.b16 %v5736
        %v6188 = vunpack.c.l.b16 %v5737
        %v6189 = vunpack.c.h.b16 %v5737
        %v6190 = vunpack.c.l.b16 %v5738
        %v6191 = vunpack.c.h.b16 %v5738
        %v6192 = vunpack.c.l.b16 %v5739
        %v6193 = vunpack.c.h.b16 %v5739
        %v6194 = vunpack.c.l.b16 %v5740
        %v6195 = vunpack.c.h.b16 %v5740
        %v6196 = vunpack.c.l.b16 %v5741
        %v6197 = vunpack.c.h.b16 %v5741
        %v6198 = vunpack.c.l.b16 %v5742
        %v6199 = vunpack.c.h.b16 %v5742
        %v6200 = vunpack.c.l.b16 %v5743
        %v6201 = vunpack.c.h.b16 %v5743
        %v6202 = vunpack.c.l.b16 %v5744
        %v6203 = vunpack.c.h.b16 %v5744
        %v6204 = vunpack.c.l.b16 %v5745
        %v6205 = vunpack.c.h.b16 %v5745
        %v6206 = vunpack.c.l.b16 %v5746
        %v6207 = vunpack.c.h.b16 %v5746
        %v6208 = vunpack.c.l.b16 %v5747
        %v6209 = vunpack.c.h.b16 %v5747
        %v6210 = vunpack.c.l.b16 %v5748
        %v6211 = vunpack.c.h.b16 %v5748
        %v6212 = vunpack.c.l.b16 %v5749
        %v6213 = vunpack.c.h.b16 %v5749
        %v6214 = vunpack.c.l.b16 %v5750
        %v6215 = vunpack.c.h.b16 %v5750
        %v6216 = vunpack.c.l.b16 %v5751
        %v6217 = vunpack.c.h.b16 %v5751
        %v6218 = vunpack.c.l.b16 %v5752
        %v6219 = vunpack.c.h.b16 %v5752
        %v6220 = vunpack.c.l.b16 %v5753
        %v6221 = vunpack.c.h.b16 %v5753
        %v6222 = vunpack.c.l.b16 %v5754
        %v6223 = vunpack.c.h.b16 %v5754
        %v6224 = vunpack.c.l.b16 %v5755
        %v6225 = vunpack.c.h.b16 %v5755
        %v6226 = vunpack.c.l.b16 %v5756
        %v6227 = vunpack.c.h.b16 %v5756
        %v6228 = vunpack.c.l.b16 %v5757
        %v6229 = vunpack.c.h.b16 %v5757
        %v6230 = vunpack.c.l.b16 %v5758
        %v6231 = vunpack.c.h.b16 %v5758
        %v6232 = vunpack.c.l.b16 %v5759
        %v6233 = vunpack.c.h.b16 %v5759
        %v6234 = vunpack.c.l.b16 %v5760
        %v6235 = vunpack.c.h.b16 %v5760
        %v6236 = vunpack.c.l.b16 %v5761
        %v6237 = vunpack.c.h.b16 %v5761
        %v6238 = vunpack.c.l.b16 %v5762
        %v6239 = vunpack.c.h.b16 %v5762
        %v6240 = vunpack.c.l.b16 %v5763
        %v6241 = vunpack.c.h.b16 %v5763
        %v6242 = vunpack.c.l.b16 %v5764
        %v6243 = vunpack.c.h.b16 %v5764
        %v6244 = vunpack.c.l.b16 %v5765
        %v6245 = vunpack.c.h.b16 %v5765
        %v6246 = vunpack.c.l.b16 %v5766
        %v6247 = vunpack.c.h.b16 %v5766
        %v6248 = vunpack.c.l.b16 %v5767
        %v6249 = vunpack.c.h.b16 %v5767
        %v6250 = vunpack.c.l.b16 %v5768
        %v6251 = vunpack.c.h.b16 %v5768
        %v6252 = vunpack.c.l.b16 %v5769
        %v6253 = vunpack.c.h.b16 %v5769
        %v6254 = vunpack.c.l.b16 %v5770
        %v6255 = vunpack.c.h.b16 %v5770
        %v6256 = vpack.c.b16 %v5968, %v5936
        %v6257 = vpack.c.b16 %v5969, %v5937
        %v6258 = vpack.c.b16 %v5970, %v5938
        %v6259 = vpack.c.b16 %v5971, %v5939
        %v6260 = vpack.c.b16 %v5972, %v5940
        %v6261 = vpack.c.b16 %v5973, %v5941
        %v6262 = vpack.c.b16 %v5974, %v5942
        %v6263 = vpack.c.b16 %v5975, %v5943
        %v6264 = vpack.c.b16 %v5976, %v5944
        %v6265 = vpack.c.b16 %v5977, %v5945
        %v6266 = vpack.c.b16 %v5978, %v5946
        %v6267 = vpack.c.b16 %v5979, %v5947
        %v6268 = vpack.c.b16 %v5980, %v5948
        %v6269 = vpack.c.b16 %v5981, %v5949
        %v6270 = vpack.c.b16 %v5982, %v5950
        %v6271 = vpack.c.b16 %v5983, %v5951
        %v6272 = vpack.c.b16 %v5984, %v5952
        %v6273 = vpack.c.b16 %v5985, %v5953
        %v6274 = vpack.c.b16 %v5986, %v5954
        %v6275 = vpack.c.b16 %v5987, %v5955
        %v6276 = vpack.c.b16 %v5988, %v5956
        %v6277 = vpack.c.b16 %v5989, %v5957
        %v6278 = vpack.c.b16 %v5990, %v5958
        %v6279 = vpack.c.b16 %v5991, %v5959
        %v6280 = vpack.c.b16 %v5992, %v5960
        %v6281 = vpack.c.b16 %v5993, %v5961
        %v6282 = vpack.c.b16 %v5994, %v5962
        %v6283 = vpack.c.b16 %v5995, %v5963
        %v6284 = vpack.c.b16 %v5996, %v5964
        %v6285 = vpack.c.b16 %v5997, %v5965
        %v6286 = vpack.c.b16 %v5998, %v5966
        %v6287 = vpack.c.b16 %v5999, %v5967
        %v6288 = vpack.c.b16 %v6032, %v6000
        %v6289 = vpack.c.b16 %v6033, %v6001
        %v6290 = vpack.c.b16 %v6034, %v6002
        %v6291 = vpack.c.b16 %v6035, %v6003
        %v6292 = vpack.c.b16 %v6036, %v6004
        %v6293 = vpack.c.b16 %v6037, %v6005
        %v6294 = vpack.c.b16 %v6038, %v6006
        %v6295 = vpack.c.b16 %v6039, %v6007
        %v6296 = vpack.c.b16 %v6040, %v6008
        %v6297 = vpack.c.b16 %v6041, %v6009
        %v6298 = vpack.c.b16 %v6042, %v6010
        %v6299 = vpack.c.b16 %v6043, %v6011
        %v6300 = vpack.c.b16 %v6044, %v6012
        %v6301 = vpack.c.b16 %v6045, %v6013
        %v6302 = vpack.c.b16 %v6046, %v6014
        %v6303 = vpack.c.b16 %v6047, %v6015
        %v6304 = vpack.c.b16 %v6048, %v6016
        %v6305 = vpack.c.b16 %v6049, %v6017
        %v6306 = vpack.c.b16 %v6050, %v6018
        %v6307 = vpack.c.b16 %v6051, %v6019
        %v6308 = vpack.c.b16 %v6052, %v6020
        %v6309 = vpack.c.b16 %v6053, %v6021
        %v6310 = vpack.c.b16 %v6054, %v6022
        %v6311 = vpack.c.b16 %v6055, %v6023
        %v6312 = vpack.c.b16 %v6056, %v6024
        %v6313 = vpack.c.b16 %v6057, %v6025
        %v6314 = vpack.c.b16 %v6058, %v6026
        %v6315 = vpack.c.b16 %v6059, %v6027
        %v6316 = vpack.c.b16 %v6060, %v6028
        %v6317 = vpack.c.b16 %v6061, %v6029
        %v6318 = vpack.c.b16 %v6062, %v6030
        %v6319 = vpack.c.b16 %v6063, %v6031
        %v6320 = vpack.c.b16 %v6096, %v6064
        %v6321 = vpack.c.b16 %v6097, %v6065
        %v6322 = vpack.c.b16 %v6098, %v6066
        %v6323 = vpack.c.b16 %v6099, %v6067
        %v6324 = vpack.c.b16 %v6100, %v6068
        %v6325 = vpack.c.b16 %v6101, %v6069
        %v6326 = vpack.c.b16 %v6102, %v6070
        %v6327 = vpack.c.b16 %v6103, %v6071
        %v6328 = vpack.c.b16 %v6104, %v6072
        %v6329 = vpack.c.b16 %v6105, %v6073
        %v6330 = vpack.c.b16 %v6106, %v6074
        %v6331 = vpack.c.b16 %v6107, %v6075
        %v6332 = vpack.c.b16 %v6108, %v6076
        %v6333 = vpack.c.b16 %v6109, %v6077
        %v6334 = vpack.c.b16 %v6110, %v6078
        %v6335 = vpack.c.b16 %v6111, %v6079
        %v6336 = vpack.c.b16 %v6112, %v6080
        %v6337 = vpack.c.b16 %v6113, %v6081
        %v6338 = vpack.c.b16 %v6114, %v6082
        %v6339 = vpack.c.b16 %v6115, %v6083
        %v6340 = vpack.c.b16 %v6116, %v6084
        %v6341 = vpack.c.b16 %v6117, %v6085
        %v6342 = vpack.c.b16 %v6118, %v6086
        %v6343 = vpack.c.b16 %v6119, %v6087
        %v6344 = vpack.c.b16 %v6120, %v6088
        %v6345 = vpack.c.b16 %v6121, %v6089
        %v6346 = vpack.c.b16 %v6122, %v6090
        %v6347 = vpack.c.b16 %v6123, %v6091
        %v6348 = vpack.c.b16 %v6124, %v6092
        %v6349 = vpack.c.b16 %v6125, %v6093
        %v6350 = vpack.c.b16 %v6126, %v6094
        %v6351 = vpack.c.b16 %v6127, %v6095
        %v6352 = vpack.c.b16 %v6160, %v6128
        %v6353 = vpack.c.b16 %v6161, %v6129
        %v6354 = vpack.c.b16 %v6162, %v6130
        %v6355 = vpack.c.b16 %v6163, %v6131
        %v6356 = vpack.c.b16 %v6164, %v6132
        %v6357 = vpack.c.b16 %v6165, %v6133
        %v6358 = vpack.c.b16 %v6166, %v6134
        %v6359 = vpack.c.b16 %v6167, %v6135
        %v6360 = vpack.c.b16 %v6168, %v6136
        %v6361 = vpack.c.b16 %v6169, %v6137
        %v6362 = vpack.c.b16 %v6170, %v6138
        %v6363 = vpack.c.b16 %v6171, %v6139
        %v6364 = vpack.c.b16 %v6172, %v6140
        %v6365 = vpack.c.b16 %v6173, %v6141
        %v6366 = vpack.c.b16 %v6174, %v6142
        %v6367 = vpack.c.b16 %v6175, %v6143
        %v6368 = vpack.c.b16 %v6176, %v6144
        %v6369 = vpack.c.b16 %v6177, %v6145
        %v6370 = vpack.c.b16 %v6178, %v6146
        %v6371 = vpack.c.b16 %v6179, %v6147
        %v6372 = vpack.c.b16 %v6180, %v6148
        %v6373 = vpack.c.b16 %v6181, %v6149
        %v6374 = vpack.c.b16 %v6182, %v6150
        %v6375 = vpack.c.b16 %v6183, %v6151
        %v6376 = vpack.c.b16 %v6184, %v6152
        %v6377 = vpack.c.b16 %v6185, %v6153
        %v6378 = vpack.c.b16 %v6186, %v6154
        %v6379 = vpack.c.b16 %v6187, %v6155
        %v6380 = vpack.c.b16 %v6188, %v6156
        %v6381 = vpack.c.b16 %v6189, %v6157
        %v6382 = vpack.c.b16 %v6190, %v6158
        %v6383 = vpack.c.b16 %v6191, %v6159
        %v6384 = vpack.c.b16 %v6224, %v6192
        %v6385 = vpack.c.b16 %v6225, %v6193
        %v6386 = vpack.c.b16 %v6226, %v6194
        %v6387 = vpack.c.b16 %v6227, %v6195
        %v6388 = vpack.c.b16 %v6228, %v6196
        %v6389 = vpack.c.b16 %v6229, %v6197
        %v6390 = vpack.c.b16 %v6230, %v6198
        %v6391 = vpack.c.b16 %v6231, %v6199
        %v6392 = vpack.c.b16 %v6232, %v6200
        %v6393 = vpack.c.b16 %v6233, %v6201
        %v6394 = vpack.c.b16 %v6234, %v6202
        %v6395 = vpack.c.b16 %v6235, %v6203
        %v6396 = vpack.c.b16 %v6236, %v6204
        %v6397 = vpack.c.b16 %v6237, %v6205
        %v6398 = vpack.c.b16 %v6238, %v6206
        %v6399 = vpack.c.b16 %v6239, %v6207
        %v6400 = vpack.c.b16 %v6240, %v6208
        %v6401 = vpack.c.b16 %v6241, %v6209
        %v6402 = vpack.c.b16 %v6242, %v6210
        %v6403 = vpack.c.b16 %v6243, %v6211
        %v6404 = vpack.c.b16 %v6244, %v6212
        %v6405 = vpack.c.b16 %v6245, %v6213
        %v6406 = vpack.c.b16 %v6246, %v6214
        %v6407 = vpack.c.b16 %v6247, %v6215
        %v6408 = vpack.c.b16 %v6248, %v6216
        %v6409 = vpack.c.b16 %v6249, %v6217
        %v6410 = vpack.c.b16 %v6250, %v6218
        %v6411 = vpack.c.b16 %v6251, %v6219
        %v6412 = vpack.c.b16 %v6252, %v6220
        %v6413 = vpack.c.b16 %v6253, %v6221
        %v6414 = vpack.c.b16 %v6254, %v6222
        %v6415 = vpack.c.b16 %v6255, %v6223
        %v6577 = vsel %vm3900, %v5775, 0
        %6579 = vmatpush.bf16.msra.mxu0 0
        %6580 = vmatpush.bf16.msra.mxu0 0
        %6581 = vmatpush.bf16.msra.mxu0 0
        %6582 = vmatpush.bf16.msra.mxu0 %v6384
        %6583 = vmatpush.bf16.msra.mxu0 %v6352
        %6584 = vmatpush.bf16.msra.mxu0 %v6320
        %6585 = vmatpush.bf16.msra.mxu0 %v6288
        %6586 = vmatpush.bf16.msra.mxu0 %v6256
        %6587 = vmatmul.bf16.gmra.mxu0 %v6577
        %v6588 = vpop.f32.mrf.mxu0
        %v6589 = vadd.f32 0.0, %v6588
        %v6590 = vpop.f32.mrf.mxu0
        %v6591 = vadd.f32 0.0, %v6590
        %6592 = vdwg.mxu0
        %6593 = vmatpush.bf16.msra.mxu0 0
        %6594 = vmatpush.bf16.msra.mxu0 0
        %6595 = vmatpush.bf16.msra.mxu0 0
        %6596 = vmatpush.bf16.msra.mxu0 %v6385
        %6597 = vmatpush.bf16.msra.mxu0 %v6353
        %6598 = vmatpush.bf16.msra.mxu0 %v6321
        %6599 = vmatpush.bf16.msra.mxu0 %v6289
        %6600 = vmatpush.bf16.msra.mxu0 %v6257
        %6601 = vmatmul.bf16.gmra.mxu0 %v6577
        %v6602 = vpop.f32.mrf.mxu0
        %v6603 = vadd.f32 0.0, %v6602
        %v6604 = vpop.f32.mrf.mxu0
        %v6605 = vadd.f32 0.0, %v6604
        %6606 = vdwg.mxu0
        %6607 = vmatpush.bf16.msra.mxu0 0
        %6608 = vmatpush.bf16.msra.mxu0 0
        %6609 = vmatpush.bf16.msra.mxu0 0
        %6610 = vmatpush.bf16.msra.mxu0 %v6386
        %6611 = vmatpush.bf16.msra.mxu0 %v6354
        %6612 = vmatpush.bf16.msra.mxu0 %v6322
        %6613 = vmatpush.bf16.msra.mxu0 %v6290
        %6614 = vmatpush.bf16.msra.mxu0 %v6258
        %6615 = vmatmul.bf16.gmra.mxu0 %v6577
        %v6616 = vpop.f32.mrf.mxu0
        %v6617 = vadd.f32 0.0, %v6616
        %v6618 = vpop.f32.mrf.mxu0
        %v6619 = vadd.f32 0.0, %v6618
        %6620 = vdwg.mxu0
        %6621 = vmatpush.bf16.msra.mxu0 0
        %6622 = vmatpush.bf16.msra.mxu0 0
        %6623 = vmatpush.bf16.msra.mxu0 0
        %6624 = vmatpush.bf16.msra.mxu0 %v6387
        %6625 = vmatpush.bf16.msra.mxu0 %v6355
        %6626 = vmatpush.bf16.msra.mxu0 %v6323
        %6627 = vmatpush.bf16.msra.mxu0 %v6291
        %6628 = vmatpush.bf16.msra.mxu0 %v6259
        %6629 = vmatmul.bf16.gmra.mxu0 %v6577
        %v6630 = vpop.f32.mrf.mxu0
        %v6631 = vadd.f32 0.0, %v6630
        %v6632 = vpop.f32.mrf.mxu0
        %v6633 = vadd.f32 0.0, %v6632
        %6634 = vdwg.mxu0
        %6635 = vmatpush.bf16.msra.mxu0 0
        %6636 = vmatpush.bf16.msra.mxu0 0
        %6637 = vmatpush.bf16.msra.mxu0 0
        %6638 = vmatpush.bf16.msra.mxu0 %v6388
        %6639 = vmatpush.bf16.msra.mxu0 %v6356
        %6640 = vmatpush.bf16.msra.mxu0 %v6324
        %6641 = vmatpush.bf16.msra.mxu0 %v6292
        %6642 = vmatpush.bf16.msra.mxu0 %v6260
        %6643 = vmatmul.bf16.gmra.mxu0 %v6577
        %v6644 = vpop.f32.mrf.mxu0
        %v6645 = vadd.f32 0.0, %v6644
        %v6646 = vpop.f32.mrf.mxu0
        %v6647 = vadd.f32 0.0, %v6646
        %6648 = vdwg.mxu0
        %6649 = vmatpush.bf16.msra.mxu0 0
        %6650 = vmatpush.bf16.msra.mxu0 0
        %6651 = vmatpush.bf16.msra.mxu0 0
        %6652 = vmatpush.bf16.msra.mxu0 %v6389
        %6653 = vmatpush.bf16.msra.mxu0 %v6357
        %6654 = vmatpush.bf16.msra.mxu0 %v6325
        %6655 = vmatpush.bf16.msra.mxu0 %v6293
        %6656 = vmatpush.bf16.msra.mxu0 %v6261
        %6657 = vmatmul.bf16.gmra.mxu0 %v6577
        %v6658 = vpop.f32.mrf.mxu0
        %v6659 = vadd.f32 0.0, %v6658
        %v6660 = vpop.f32.mrf.mxu0
        %v6661 = vadd.f32 0.0, %v6660
        %6662 = vdwg.mxu0
        %6663 = vmatpush.bf16.msra.mxu0 0
        %6664 = vmatpush.bf16.msra.mxu0 0
        %6665 = vmatpush.bf16.msra.mxu0 0
        %6666 = vmatpush.bf16.msra.mxu0 %v6390
        %6667 = vmatpush.bf16.msra.mxu0 %v6358
        %6668 = vmatpush.bf16.msra.mxu0 %v6326
        %6669 = vmatpush.bf16.msra.mxu0 %v6294
        %6670 = vmatpush.bf16.msra.mxu0 %v6262
        %6671 = vmatmul.bf16.gmra.mxu0 %v6577
        %v6672 = vpop.f32.mrf.mxu0
        %v6673 = vadd.f32 0.0, %v6672
        %v6674 = vpop.f32.mrf.mxu0
        %v6675 = vadd.f32 0.0, %v6674
        %6676 = vdwg.mxu0
        %6677 = vmatpush.bf16.msra.mxu0 0
        %6678 = vmatpush.bf16.msra.mxu0 0
        %6679 = vmatpush.bf16.msra.mxu0 0
        %6680 = vmatpush.bf16.msra.mxu0 %v6391
        %6681 = vmatpush.bf16.msra.mxu0 %v6359
        %6682 = vmatpush.bf16.msra.mxu0 %v6327
        %6683 = vmatpush.bf16.msra.mxu0 %v6295
        %6684 = vmatpush.bf16.msra.mxu0 %v6263
        %6685 = vmatmul.bf16.gmra.mxu0 %v6577
        %v6686 = vpop.f32.mrf.mxu0
        %v6687 = vadd.f32 0.0, %v6686
        %v6688 = vpop.f32.mrf.mxu0
        %v6689 = vadd.f32 0.0, %v6688
        %6690 = vdwg.mxu0
        %6691 = vmatpush.bf16.msra.mxu0 0
        %6692 = vmatpush.bf16.msra.mxu0 0
        %6693 = vmatpush.bf16.msra.mxu0 0
        %6694 = vmatpush.bf16.msra.mxu0 %v6392
        %6695 = vmatpush.bf16.msra.mxu0 %v6360
        %6696 = vmatpush.bf16.msra.mxu0 %v6328
        %6697 = vmatpush.bf16.msra.mxu0 %v6296
        %6698 = vmatpush.bf16.msra.mxu0 %v6264
        %6699 = vmatmul.bf16.gmra.mxu0 %v6577
        %v6700 = vpop.f32.mrf.mxu0
        %v6701 = vadd.f32 0.0, %v6700
        %v6702 = vpop.f32.mrf.mxu0
        %v6703 = vadd.f32 0.0, %v6702
        %6704 = vdwg.mxu0
        %6705 = vmatpush.bf16.msra.mxu0 0
        %6706 = vmatpush.bf16.msra.mxu0 0
        %6707 = vmatpush.bf16.msra.mxu0 0
        %6708 = vmatpush.bf16.msra.mxu0 %v6393
        %6709 = vmatpush.bf16.msra.mxu0 %v6361
        %6710 = vmatpush.bf16.msra.mxu0 %v6329
        %6711 = vmatpush.bf16.msra.mxu0 %v6297
        %6712 = vmatpush.bf16.msra.mxu0 %v6265
        %6713 = vmatmul.bf16.gmra.mxu0 %v6577
        %v6714 = vpop.f32.mrf.mxu0
        %v6715 = vadd.f32 0.0, %v6714
        %v6716 = vpop.f32.mrf.mxu0
        %v6717 = vadd.f32 0.0, %v6716
        %6718 = vdwg.mxu0
        %6719 = vmatpush.bf16.msra.mxu0 0
        %6720 = vmatpush.bf16.msra.mxu0 0
        %6721 = vmatpush.bf16.msra.mxu0 0
        %6722 = vmatpush.bf16.msra.mxu0 %v6394
        %6723 = vmatpush.bf16.msra.mxu0 %v6362
        %6724 = vmatpush.bf16.msra.mxu0 %v6330
        %6725 = vmatpush.bf16.msra.mxu0 %v6298
        %6726 = vmatpush.bf16.msra.mxu0 %v6266
        %6727 = vmatmul.bf16.gmra.mxu0 %v6577
        %v6728 = vpop.f32.mrf.mxu0
        %v6729 = vadd.f32 0.0, %v6728
        %v6730 = vpop.f32.mrf.mxu0
        %v6731 = vadd.f32 0.0, %v6730
        %6732 = vdwg.mxu0
        %6733 = vmatpush.bf16.msra.mxu0 0
        %6734 = vmatpush.bf16.msra.mxu0 0
        %6735 = vmatpush.bf16.msra.mxu0 0
        %6736 = vmatpush.bf16.msra.mxu0 %v6395
        %6737 = vmatpush.bf16.msra.mxu0 %v6363
        %6738 = vmatpush.bf16.msra.mxu0 %v6331
        %6739 = vmatpush.bf16.msra.mxu0 %v6299
        %6740 = vmatpush.bf16.msra.mxu0 %v6267
        %6741 = vmatmul.bf16.gmra.mxu0 %v6577
        %v6742 = vpop.f32.mrf.mxu0
        %v6743 = vadd.f32 0.0, %v6742
        %v6744 = vpop.f32.mrf.mxu0
        %v6745 = vadd.f32 0.0, %v6744
        %6746 = vdwg.mxu0
        %6747 = vmatpush.bf16.msra.mxu0 0
        %6748 = vmatpush.bf16.msra.mxu0 0
        %6749 = vmatpush.bf16.msra.mxu0 0
        %6750 = vmatpush.bf16.msra.mxu0 %v6396
        %6751 = vmatpush.bf16.msra.mxu0 %v6364
        %6752 = vmatpush.bf16.msra.mxu0 %v6332
        %6753 = vmatpush.bf16.msra.mxu0 %v6300
        %6754 = vmatpush.bf16.msra.mxu0 %v6268
        %6755 = vmatmul.bf16.gmra.mxu0 %v6577
        %v6756 = vpop.f32.mrf.mxu0
        %v6757 = vadd.f32 0.0, %v6756
        %v6758 = vpop.f32.mrf.mxu0
        %v6759 = vadd.f32 0.0, %v6758
        %6760 = vdwg.mxu0
        %6761 = vmatpush.bf16.msra.mxu0 0
        %6762 = vmatpush.bf16.msra.mxu0 0
        %6763 = vmatpush.bf16.msra.mxu0 0
        %6764 = vmatpush.bf16.msra.mxu0 %v6397
        %6765 = vmatpush.bf16.msra.mxu0 %v6365
        %6766 = vmatpush.bf16.msra.mxu0 %v6333
        %6767 = vmatpush.bf16.msra.mxu0 %v6301
        %6768 = vmatpush.bf16.msra.mxu0 %v6269
        %6769 = vmatmul.bf16.gmra.mxu0 %v6577
        %v6770 = vpop.f32.mrf.mxu0
        %v6771 = vadd.f32 0.0, %v6770
        %v6772 = vpop.f32.mrf.mxu0
        %v6773 = vadd.f32 0.0, %v6772
        %6774 = vdwg.mxu0
        %6775 = vmatpush.bf16.msra.mxu0 0
        %6776 = vmatpush.bf16.msra.mxu0 0
        %6777 = vmatpush.bf16.msra.mxu0 0
        %6778 = vmatpush.bf16.msra.mxu0 %v6398
        %6779 = vmatpush.bf16.msra.mxu0 %v6366
        %6780 = vmatpush.bf16.msra.mxu0 %v6334
        %6781 = vmatpush.bf16.msra.mxu0 %v6302
        %6782 = vmatpush.bf16.msra.mxu0 %v6270
        %6783 = vmatmul.bf16.gmra.mxu0 %v6577
        %v6784 = vpop.f32.mrf.mxu0
        %v6785 = vadd.f32 0.0, %v6784
        %v6786 = vpop.f32.mrf.mxu0
        %v6787 = vadd.f32 0.0, %v6786
        %6788 = vdwg.mxu0
        %6789 = vmatpush.bf16.msra.mxu0 0
        %6790 = vmatpush.bf16.msra.mxu0 0
        %6791 = vmatpush.bf16.msra.mxu0 0
        %6792 = vmatpush.bf16.msra.mxu0 %v6399
        %6793 = vmatpush.bf16.msra.mxu0 %v6367
        %6794 = vmatpush.bf16.msra.mxu0 %v6335
        %6795 = vmatpush.bf16.msra.mxu0 %v6303
        %6796 = vmatpush.bf16.msra.mxu0 %v6271
        %6797 = vmatmul.bf16.gmra.mxu0 %v6577
        %v6798 = vpop.f32.mrf.mxu0
        %v6799 = vadd.f32 0.0, %v6798
        %v6800 = vpop.f32.mrf.mxu0
        %v6801 = vadd.f32 0.0, %v6800
        %6802 = vdwg.mxu0
        %6803 = vmatpush.bf16.msra.mxu0 0
        %6804 = vmatpush.bf16.msra.mxu0 0
        %6805 = vmatpush.bf16.msra.mxu0 0
        %6806 = vmatpush.bf16.msra.mxu0 %v6400
        %6807 = vmatpush.bf16.msra.mxu0 %v6368
        %6808 = vmatpush.bf16.msra.mxu0 %v6336
        %6809 = vmatpush.bf16.msra.mxu0 %v6304
        %6810 = vmatpush.bf16.msra.mxu0 %v6272
        %6811 = vmatmul.bf16.gmra.mxu0 %v6577
        %v6812 = vpop.f32.mrf.mxu0
        %v6813 = vadd.f32 0.0, %v6812
        %v6814 = vpop.f32.mrf.mxu0
        %v6815 = vadd.f32 0.0, %v6814
        %6816 = vdwg.mxu0
        %6817 = vmatpush.bf16.msra.mxu0 0
        %6818 = vmatpush.bf16.msra.mxu0 0
        %6819 = vmatpush.bf16.msra.mxu0 0
        %6820 = vmatpush.bf16.msra.mxu0 %v6401
        %6821 = vmatpush.bf16.msra.mxu0 %v6369
        %6822 = vmatpush.bf16.msra.mxu0 %v6337
        %6823 = vmatpush.bf16.msra.mxu0 %v6305
        %6824 = vmatpush.bf16.msra.mxu0 %v6273
        %6825 = vmatmul.bf16.gmra.mxu0 %v6577
        %v6826 = vpop.f32.mrf.mxu0
        %v6827 = vadd.f32 0.0, %v6826
        %v6828 = vpop.f32.mrf.mxu0
        %v6829 = vadd.f32 0.0, %v6828
        %6830 = vdwg.mxu0
        %6831 = vmatpush.bf16.msra.mxu0 0
        %6832 = vmatpush.bf16.msra.mxu0 0
        %6833 = vmatpush.bf16.msra.mxu0 0
        %6834 = vmatpush.bf16.msra.mxu0 %v6402
        %6835 = vmatpush.bf16.msra.mxu0 %v6370
        %6836 = vmatpush.bf16.msra.mxu0 %v6338
        %6837 = vmatpush.bf16.msra.mxu0 %v6306
        %6838 = vmatpush.bf16.msra.mxu0 %v6274
        %6839 = vmatmul.bf16.gmra.mxu0 %v6577
        %v6840 = vpop.f32.mrf.mxu0
        %v6841 = vadd.f32 0.0, %v6840
        %v6842 = vpop.f32.mrf.mxu0
        %v6843 = vadd.f32 0.0, %v6842
        %6844 = vdwg.mxu0
        %6845 = vmatpush.bf16.msra.mxu0 0
        %6846 = vmatpush.bf16.msra.mxu0 0
        %6847 = vmatpush.bf16.msra.mxu0 0
        %6848 = vmatpush.bf16.msra.mxu0 %v6403
        %6849 = vmatpush.bf16.msra.mxu0 %v6371
        %6850 = vmatpush.bf16.msra.mxu0 %v6339
        %6851 = vmatpush.bf16.msra.mxu0 %v6307
        %6852 = vmatpush.bf16.msra.mxu0 %v6275
        %6853 = vmatmul.bf16.gmra.mxu0 %v6577
        %v6854 = vpop.f32.mrf.mxu0
        %v6855 = vadd.f32 0.0, %v6854
        %v6856 = vpop.f32.mrf.mxu0
        %v6857 = vadd.f32 0.0, %v6856
        %6858 = vdwg.mxu0
        %6859 = vmatpush.bf16.msra.mxu0 0
        %6860 = vmatpush.bf16.msra.mxu0 0
        %6861 = vmatpush.bf16.msra.mxu0 0
        %6862 = vmatpush.bf16.msra.mxu0 %v6404
        %6863 = vmatpush.bf16.msra.mxu0 %v6372
        %6864 = vmatpush.bf16.msra.mxu0 %v6340
        %6865 = vmatpush.bf16.msra.mxu0 %v6308
        %6866 = vmatpush.bf16.msra.mxu0 %v6276
        %6867 = vmatmul.bf16.gmra.mxu0 %v6577
        %v6868 = vpop.f32.mrf.mxu0
        %v6869 = vadd.f32 0.0, %v6868
        %v6870 = vpop.f32.mrf.mxu0
        %v6871 = vadd.f32 0.0, %v6870
        %6872 = vdwg.mxu0
        %6873 = vmatpush.bf16.msra.mxu0 0
        %6874 = vmatpush.bf16.msra.mxu0 0
        %6875 = vmatpush.bf16.msra.mxu0 0
        %6876 = vmatpush.bf16.msra.mxu0 %v6405
        %6877 = vmatpush.bf16.msra.mxu0 %v6373
        %6878 = vmatpush.bf16.msra.mxu0 %v6341
        %6879 = vmatpush.bf16.msra.mxu0 %v6309
        %6880 = vmatpush.bf16.msra.mxu0 %v6277
        %6881 = vmatmul.bf16.gmra.mxu0 %v6577
        %v6882 = vpop.f32.mrf.mxu0
        %v6883 = vadd.f32 0.0, %v6882
        %v6884 = vpop.f32.mrf.mxu0
        %v6885 = vadd.f32 0.0, %v6884
        %6886 = vdwg.mxu0
        %6887 = vmatpush.bf16.msra.mxu0 0
        %6888 = vmatpush.bf16.msra.mxu0 0
        %6889 = vmatpush.bf16.msra.mxu0 0
        %6890 = vmatpush.bf16.msra.mxu0 %v6406
        %6891 = vmatpush.bf16.msra.mxu0 %v6374
        %6892 = vmatpush.bf16.msra.mxu0 %v6342
        %6893 = vmatpush.bf16.msra.mxu0 %v6310
        %6894 = vmatpush.bf16.msra.mxu0 %v6278
        %6895 = vmatmul.bf16.gmra.mxu0 %v6577
        %v6896 = vpop.f32.mrf.mxu0
        %v6897 = vadd.f32 0.0, %v6896
        %v6898 = vpop.f32.mrf.mxu0
        %v6899 = vadd.f32 0.0, %v6898
        %6900 = vdwg.mxu0
        %6901 = vmatpush.bf16.msra.mxu0 0
        %6902 = vmatpush.bf16.msra.mxu0 0
        %6903 = vmatpush.bf16.msra.mxu0 0
        %6904 = vmatpush.bf16.msra.mxu0 %v6407
        %6905 = vmatpush.bf16.msra.mxu0 %v6375
        %6906 = vmatpush.bf16.msra.mxu0 %v6343
        %6907 = vmatpush.bf16.msra.mxu0 %v6311
        %6908 = vmatpush.bf16.msra.mxu0 %v6279
        %6909 = vmatmul.bf16.gmra.mxu0 %v6577
        %v6910 = vpop.f32.mrf.mxu0
        %v6911 = vadd.f32 0.0, %v6910
        %v6912 = vpop.f32.mrf.mxu0
        %v6913 = vadd.f32 0.0, %v6912
        %6914 = vdwg.mxu0
        %6915 = vmatpush.bf16.msra.mxu0 0
        %6916 = vmatpush.bf16.msra.mxu0 0
        %6917 = vmatpush.bf16.msra.mxu0 0
        %6918 = vmatpush.bf16.msra.mxu0 %v6408
        %6919 = vmatpush.bf16.msra.mxu0 %v6376
        %6920 = vmatpush.bf16.msra.mxu0 %v6344
        %6921 = vmatpush.bf16.msra.mxu0 %v6312
        %6922 = vmatpush.bf16.msra.mxu0 %v6280
        %6923 = vmatmul.bf16.gmra.mxu0 %v6577
        %v6924 = vpop.f32.mrf.mxu0
        %v6925 = vadd.f32 0.0, %v6924
        %v6926 = vpop.f32.mrf.mxu0
        %v6927 = vadd.f32 0.0, %v6926
        %6928 = vdwg.mxu0
        %6929 = vmatpush.bf16.msra.mxu0 0
        %6930 = vmatpush.bf16.msra.mxu0 0
        %6931 = vmatpush.bf16.msra.mxu0 0
        %6932 = vmatpush.bf16.msra.mxu0 %v6409
        %6933 = vmatpush.bf16.msra.mxu0 %v6377
        %6934 = vmatpush.bf16.msra.mxu0 %v6345
        %6935 = vmatpush.bf16.msra.mxu0 %v6313
        %6936 = vmatpush.bf16.msra.mxu0 %v6281
        %6937 = vmatmul.bf16.gmra.mxu0 %v6577
        %v6938 = vpop.f32.mrf.mxu0
        %v6939 = vadd.f32 0.0, %v6938
        %v6940 = vpop.f32.mrf.mxu0
        %v6941 = vadd.f32 0.0, %v6940
        %6942 = vdwg.mxu0
        %6943 = vmatpush.bf16.msra.mxu0 0
        %6944 = vmatpush.bf16.msra.mxu0 0
        %6945 = vmatpush.bf16.msra.mxu0 0
        %6946 = vmatpush.bf16.msra.mxu0 %v6410
        %6947 = vmatpush.bf16.msra.mxu0 %v6378
        %6948 = vmatpush.bf16.msra.mxu0 %v6346
        %6949 = vmatpush.bf16.msra.mxu0 %v6314
        %6950 = vmatpush.bf16.msra.mxu0 %v6282
        %6951 = vmatmul.bf16.gmra.mxu0 %v6577
        %v6952 = vpop.f32.mrf.mxu0
        %v6953 = vadd.f32 0.0, %v6952
        %v6954 = vpop.f32.mrf.mxu0
        %v6955 = vadd.f32 0.0, %v6954
        %6956 = vdwg.mxu0
        %6957 = vmatpush.bf16.msra.mxu0 0
        %6958 = vmatpush.bf16.msra.mxu0 0
        %6959 = vmatpush.bf16.msra.mxu0 0
        %6960 = vmatpush.bf16.msra.mxu0 %v6411
        %6961 = vmatpush.bf16.msra.mxu0 %v6379
        %6962 = vmatpush.bf16.msra.mxu0 %v6347
        %6963 = vmatpush.bf16.msra.mxu0 %v6315
        %6964 = vmatpush.bf16.msra.mxu0 %v6283
        %6965 = vmatmul.bf16.gmra.mxu0 %v6577
        %v6966 = vpop.f32.mrf.mxu0
        %v6967 = vadd.f32 0.0, %v6966
        %v6968 = vpop.f32.mrf.mxu0
        %v6969 = vadd.f32 0.0, %v6968
        %6970 = vdwg.mxu0
        %6971 = vmatpush.bf16.msra.mxu0 0
        %6972 = vmatpush.bf16.msra.mxu0 0
        %6973 = vmatpush.bf16.msra.mxu0 0
        %6974 = vmatpush.bf16.msra.mxu0 %v6412
        %6975 = vmatpush.bf16.msra.mxu0 %v6380
        %6976 = vmatpush.bf16.msra.mxu0 %v6348
        %6977 = vmatpush.bf16.msra.mxu0 %v6316
        %6978 = vmatpush.bf16.msra.mxu0 %v6284
        %6979 = vmatmul.bf16.gmra.mxu0 %v6577
        %v6980 = vpop.f32.mrf.mxu0
        %v6981 = vadd.f32 0.0, %v6980
        %v6982 = vpop.f32.mrf.mxu0
        %v6983 = vadd.f32 0.0, %v6982
        %6984 = vdwg.mxu0
        %6985 = vmatpush.bf16.msra.mxu0 0
        %6986 = vmatpush.bf16.msra.mxu0 0
        %6987 = vmatpush.bf16.msra.mxu0 0
        %6988 = vmatpush.bf16.msra.mxu0 %v6413
        %6989 = vmatpush.bf16.msra.mxu0 %v6381
        %6990 = vmatpush.bf16.msra.mxu0 %v6349
        %6991 = vmatpush.bf16.msra.mxu0 %v6317
        %6992 = vmatpush.bf16.msra.mxu0 %v6285
        %6993 = vmatmul.bf16.gmra.mxu0 %v6577
        %v6994 = vpop.f32.mrf.mxu0
        %v6995 = vadd.f32 0.0, %v6994
        %v6996 = vpop.f32.mrf.mxu0
        %v6997 = vadd.f32 0.0, %v6996
        %6998 = vdwg.mxu0
        %6999 = vmatpush.bf16.msra.mxu0 0
        %7000 = vmatpush.bf16.msra.mxu0 0
        %7001 = vmatpush.bf16.msra.mxu0 0
        %7002 = vmatpush.bf16.msra.mxu0 %v6414
        %7003 = vmatpush.bf16.msra.mxu0 %v6382
        %7004 = vmatpush.bf16.msra.mxu0 %v6350
        %7005 = vmatpush.bf16.msra.mxu0 %v6318
        %7006 = vmatpush.bf16.msra.mxu0 %v6286
        %7007 = vmatmul.bf16.gmra.mxu0 %v6577
        %v7008 = vpop.f32.mrf.mxu0
        %v7009 = vadd.f32 0.0, %v7008
        %v7010 = vpop.f32.mrf.mxu0
        %v7011 = vadd.f32 0.0, %v7010
        %7012 = vdwg.mxu0
        %7013 = vmatpush.bf16.msra.mxu0 0
        %7014 = vmatpush.bf16.msra.mxu0 0
        %7015 = vmatpush.bf16.msra.mxu0 0
        %7016 = vmatpush.bf16.msra.mxu0 %v6415
        %7017 = vmatpush.bf16.msra.mxu0 %v6383
        %7018 = vmatpush.bf16.msra.mxu0 %v6351
        %7019 = vmatpush.bf16.msra.mxu0 %v6319
        %7020 = vmatpush.bf16.msra.mxu0 %v6287
        %7021 = vmatmul.bf16.gmra.mxu0 %v6577
        %v7022 = vpop.f32.mrf.mxu0
        %v7023 = vadd.f32 0.0, %v7022
        %v7024 = vpop.f32.mrf.mxu0
        %v7025 = vadd.f32 0.0, %v7024
        %7026 = vdwg.mxu0
        %v7027 = vadd.f32 %v5170, %v6589
        %v7028 = vadd.f32 %v5184, %v6603
        %v7029 = vadd.f32 %v5198, %v6617
        %v7030 = vadd.f32 %v5212, %v6631
        %v7031 = vadd.f32 %v5226, %v6645
        %v7032 = vadd.f32 %v5240, %v6659
        %v7033 = vadd.f32 %v5254, %v6673
        %v7034 = vadd.f32 %v5268, %v6687
        %v7035 = vadd.f32 %v5282, %v6701
        %v7036 = vadd.f32 %v5296, %v6715
        %v7037 = vadd.f32 %v5310, %v6729
        %v7038 = vadd.f32 %v5324, %v6743
        %v7039 = vadd.f32 %v5338, %v6757
        %v7040 = vadd.f32 %v5352, %v6771
        %v7041 = vadd.f32 %v5366, %v6785
        %v7042 = vadd.f32 %v5380, %v6799
        %v7043 = vadd.f32 %v5394, %v6813
        %v7044 = vadd.f32 %v5408, %v6827
        %v7045 = vadd.f32 %v5422, %v6841
        %v7046 = vadd.f32 %v5436, %v6855
        %v7047 = vadd.f32 %v5450, %v6869
        %v7048 = vadd.f32 %v5464, %v6883
        %v7049 = vadd.f32 %v5478, %v6897
        %v7050 = vadd.f32 %v5492, %v6911
        %v7051 = vadd.f32 %v5506, %v6925
        %v7052 = vadd.f32 %v5520, %v6939
        %v7053 = vadd.f32 %v5534, %v6953
        %v7054 = vadd.f32 %v5548, %v6967
        %v7055 = vadd.f32 %v5562, %v6981
        %v7056 = vadd.f32 %v5576, %v6995
        %v7057 = vadd.f32 %v5590, %v7009
        %v7058 = vadd.f32 %v5604, %v7023
        %v7059 = vadd.f32 %v5172, %v6591
        %v7060 = vadd.f32 %v5186, %v6605
        %v7061 = vadd.f32 %v5200, %v6619
        %v7062 = vadd.f32 %v5214, %v6633
        %v7063 = vadd.f32 %v5228, %v6647
        %v7064 = vadd.f32 %v5242, %v6661
        %v7065 = vadd.f32 %v5256, %v6675
        %v7066 = vadd.f32 %v5270, %v6689
        %v7067 = vadd.f32 %v5284, %v6703
        %v7068 = vadd.f32 %v5298, %v6717
        %v7069 = vadd.f32 %v5312, %v6731
        %v7070 = vadd.f32 %v5326, %v6745
        %v7071 = vadd.f32 %v5340, %v6759
        %v7072 = vadd.f32 %v5354, %v6773
        %v7073 = vadd.f32 %v5368, %v6787
        %v7074 = vadd.f32 %v5382, %v6801
        %v7075 = vadd.f32 %v5396, %v6815
        %v7076 = vadd.f32 %v5410, %v6829
        %v7077 = vadd.f32 %v5424, %v6843
        %v7078 = vadd.f32 %v5438, %v6857
        %v7079 = vadd.f32 %v5452, %v6871
        %v7080 = vadd.f32 %v5466, %v6885
        %v7081 = vadd.f32 %v5480, %v6899
        %v7082 = vadd.f32 %v5494, %v6913
        %v7083 = vadd.f32 %v5508, %v6927
        %v7084 = vadd.f32 %v5522, %v6941
        %v7085 = vadd.f32 %v5536, %v6955
        %v7086 = vadd.f32 %v5550, %v6969
        %v7087 = vadd.f32 %v5564, %v6983
        %v7088 = vadd.f32 %v5578, %v6997
        %v7089 = vadd.f32 %v5592, %v7011
        %v7090 = vadd.f32 %v5606, %v7025
        %s7091 = scalar_lea.vmem %s3, 24
        %v7092 = vld [vmem:[%s7091] sm:$0xf]
        %v7093 = vld [vmem:[%s7091 + $0x4] sm:$0xf]
        %v7094 = vld [vmem:[#allocation2 + $0xc] sm:$0xff]
        %v7095 = vld [vmem:[#allocation2 + $0x14] sm:$0xff]
        %v7096 = vld [vmem:[#allocation2 + $0x1c] sm:$0xff]
        %v7097 = vld [vmem:[#allocation2 + $0x24] sm:$0xff]
        %v7098 = vld [vmem:[#allocation2 + $0x2c] sm:$0xff]
        %v7099 = vld [vmem:[#allocation2 + $0x34] sm:$0xff]
        %v7100 = vld [vmem:[#allocation2 + $0x3c] sm:$0xff]
        %v7101 = vld [vmem:[#allocation2 + $0x44] sm:$0xff]
        %v7102 = vld [vmem:[#allocation2 + $0x4c] sm:$0xff]
        %v7103 = vld [vmem:[#allocation2 + $0x54] sm:$0xff]
        %v7104 = vld [vmem:[#allocation2 + $0x5c] sm:$0xff]
        %v7105 = vld [vmem:[#allocation2 + $0x64] sm:$0xff]
        %v7106 = vld [vmem:[#allocation2 + $0x6c] sm:$0xff]
        %v7107 = vld [vmem:[#allocation2 + $0x74] sm:$0xff]
        %v7108 = vld [vmem:[#allocation2 + $0x7c] sm:$0xff]
        %v7109 = vld [vmem:[#allocation2 + $0x84] sm:$0xff]
        %v7110 = vld [vmem:[#allocation2 + $0x9c] sm:$0xff]
        %v7111 = vld [vmem:[#allocation2 + $0xa4] sm:$0xff]
        %v7112 = vld [vmem:[#allocation2 + $0xac] sm:$0xff]
        %v7113 = vld [vmem:[#allocation2 + $0xb4] sm:$0xff]
        %v7114 = vld [vmem:[#allocation2 + $0xbc] sm:$0xff]
        %v7115 = vld [vmem:[#allocation2 + $0xc4] sm:$0xff]
        %v7116 = vld [vmem:[#allocation2 + $0xcc] sm:$0xff]
        %v7117 = vld [vmem:[#allocation2 + $0xd4] sm:$0xff]
        %v7118 = vld [vmem:[#allocation2 + $0xdc] sm:$0xff]
        %v7119 = vld [vmem:[#allocation2 + $0xe4] sm:$0xff]
        %v7120 = vld [vmem:[#allocation2 + $0xec] sm:$0xff]
        %v7121 = vld [vmem:[#allocation2 + $0xf4] sm:$0xff]
        %v7122 = vld [vmem:[#allocation2 + $0xfc] sm:$0xff]
        %v7123 = vld [vmem:[#allocation2 + $0x104] sm:$0xff]
        %v7124 = vld [vmem:[#allocation2 + $0x10c] sm:$0xff]
        %v7125 = vld [vmem:[#allocation2 + $0x114] sm:$0xff]
        %v7126 = vld [vmem:[#allocation2 + $0x12c] sm:$0xff]
        %v7127 = vld [vmem:[#allocation2 + $0x134] sm:$0xff]
        %v7128 = vld [vmem:[#allocation2 + $0x13c] sm:$0xff]
        %v7129 = vld [vmem:[#allocation2 + $0x144] sm:$0xff]
        %v7130 = vld [vmem:[#allocation2 + $0x14c] sm:$0xff]
        %v7131 = vld [vmem:[#allocation2 + $0x154] sm:$0xff]
        %v7132 = vld [vmem:[#allocation2 + $0x15c] sm:$0xff]
        %v7133 = vld [vmem:[#allocation2 + $0x164] sm:$0xff]
        %v7134 = vld [vmem:[#allocation2 + $0x16c] sm:$0xff]
        %v7135 = vld [vmem:[#allocation2 + $0x174] sm:$0xff]
        %v7136 = vld [vmem:[#allocation2 + $0x17c] sm:$0xff]
        %v7137 = vld [vmem:[#allocation2 + $0x184] sm:$0xff]
        %v7138 = vld [vmem:[#allocation2 + $0x18c] sm:$0xff]
        %v7139 = vld [vmem:[#allocation2 + $0x194] sm:$0xff]
        %v7140 = vld [vmem:[#allocation2 + $0x19c] sm:$0xff]
        %v7141 = vld [vmem:[#allocation2 + $0x1a4] sm:$0xff]
        %v7142 = vld [vmem:[#allocation2 + $0x1bc] sm:$0xff]
        %v7143 = vld [vmem:[#allocation2 + $0x1c4] sm:$0xff]
        %v7144 = vld [vmem:[#allocation2 + $0x1cc] sm:$0xff]
        %v7145 = vld [vmem:[#allocation2 + $0x1d4] sm:$0xff]
        %v7146 = vld [vmem:[#allocation2 + $0x1dc] sm:$0xff]
        %v7147 = vld [vmem:[#allocation2 + $0x1e4] sm:$0xff]
        %v7148 = vld [vmem:[#allocation2 + $0x1ec] sm:$0xff]
        %v7149 = vld [vmem:[#allocation2 + $0x1f4] sm:$0xff]
        %v7150 = vld [vmem:[#allocation2 + $0x1fc] sm:$0xff]
        %v7151 = vld [vmem:[#allocation2 + $0x204] sm:$0xff]
        %v7152 = vld [vmem:[#allocation2 + $0x20c] sm:$0xff]
        %v7153 = vld [vmem:[#allocation2 + $0x214] sm:$0xff]
        %v7154 = vld [vmem:[#allocation2 + $0x21c] sm:$0xff]
        %v7155 = vld [vmem:[#allocation2 + $0x224] sm:$0xff]
        %v7156 = vld [vmem:[#allocation2 + $0x22c] sm:$0xff]
        %v7157 = vld [vmem:[#allocation2 + $0x234] sm:$0xff]
        %v7158 = vld [vmem:[#allocation2 + $0x24c] sm:$0xff]
        %v7159 = vld [vmem:[#allocation2 + $0x254] sm:$0xff]
        %v7160 = vld [vmem:[#allocation2 + $0x25c] sm:$0xff]
        %v7161 = vld [vmem:[#allocation2 + $0x264] sm:$0xff]
        %v7162 = vld [vmem:[#allocation2 + $0x26c] sm:$0xff]
        %v7163 = vld [vmem:[#allocation2 + $0x274] sm:$0xff]
        %v7164 = vld [vmem:[#allocation2 + $0x27c] sm:$0xff]
        %v7165 = vld [vmem:[#allocation2 + $0x284] sm:$0xff]
        %v7166 = vld [vmem:[#allocation2 + $0x28c] sm:$0xff]
        %v7167 = vld [vmem:[#allocation2 + $0x294] sm:$0xff]
        %v7168 = vld [vmem:[#allocation2 + $0x29c] sm:$0xff]
        %v7169 = vld [vmem:[#allocation2 + $0x2a4] sm:$0xff]
        %v7170 = vld [vmem:[#allocation2 + $0x2ac] sm:$0xff]
        %v7171 = vld [vmem:[#allocation2 + $0x2b4] sm:$0xff]
        %v7172 = vld [vmem:[#allocation2 + $0x2bc] sm:$0xff]
        %v7173 = vld [vmem:[#allocation2 + $0x2c4] sm:$0xff]
        %v7174 = vld [vmem:[#allocation2 + $0x2dc] sm:$0xff]
        %v7175 = vld [vmem:[#allocation2 + $0x2e4] sm:$0xff]
        %v7176 = vld [vmem:[#allocation2 + $0x2ec] sm:$0xff]
        %v7177 = vld [vmem:[#allocation2 + $0x2f4] sm:$0xff]
        %v7178 = vld [vmem:[#allocation2 + $0x2fc] sm:$0xff]
        %v7179 = vld [vmem:[#allocation2 + $0x304] sm:$0xff]
        %v7180 = vld [vmem:[#allocation2 + $0x30c] sm:$0xff]
        %v7181 = vld [vmem:[#allocation2 + $0x314] sm:$0xff]
        %v7182 = vld [vmem:[#allocation2 + $0x31c] sm:$0xff]
        %v7183 = vld [vmem:[#allocation2 + $0x324] sm:$0xff]
        %v7184 = vld [vmem:[#allocation2 + $0x32c] sm:$0xff]
        %v7185 = vld [vmem:[#allocation2 + $0x334] sm:$0xff]
        %v7186 = vld [vmem:[#allocation2 + $0x33c] sm:$0xff]
        %v7187 = vld [vmem:[#allocation2 + $0x344] sm:$0xff]
        %v7188 = vld [vmem:[#allocation2 + $0x34c] sm:$0xff]
        %v7189 = vld [vmem:[#allocation2 + $0x354] sm:$0xff]
        %v7190 = vld [vmem:[#allocation2 + $0x36c] sm:$0xff]
        %v7191 = vld [vmem:[#allocation2 + $0x374] sm:$0xff]
        %v7192 = vld [vmem:[#allocation2 + $0x37c] sm:$0xff]
        %v7193 = vld [vmem:[#allocation2 + $0x384] sm:$0xff]
        %v7194 = vld [vmem:[#allocation2 + $0x38c] sm:$0xff]
        %v7195 = vld [vmem:[#allocation2 + $0x394] sm:$0xff]
        %v7196 = vld [vmem:[#allocation2 + $0x39c] sm:$0xff]
        %v7197 = vld [vmem:[#allocation2 + $0x3a4] sm:$0xff]
        %v7198 = vld [vmem:[#allocation2 + $0x3ac] sm:$0xff]
        %v7199 = vld [vmem:[#allocation2 + $0x3b4] sm:$0xff]
        %v7200 = vld [vmem:[#allocation2 + $0x3bc] sm:$0xff]
        %v7201 = vld [vmem:[#allocation2 + $0x3c4] sm:$0xff]
        %v7202 = vld [vmem:[#allocation2 + $0x3cc] sm:$0xff]
        %v7203 = vld [vmem:[#allocation2 + $0x3d4] sm:$0xff]
        %v7204 = vld [vmem:[#allocation2 + $0x3dc] sm:$0xff]
        %v7205 = vld [vmem:[#allocation2 + $0x3e4] sm:$0xff]
        %v7206 = vld [vmem:[#allocation2 + $0x3fc] sm:$0xff]
        %v7207 = vld [vmem:[#allocation2 + $0x404] sm:$0xff]
        %v7208 = vld [vmem:[#allocation2 + $0x40c] sm:$0xff]
        %v7209 = vld [vmem:[#allocation2 + $0x414] sm:$0xff]
        %v7210 = vld [vmem:[#allocation2 + $0x41c] sm:$0xff]
        %v7211 = vld [vmem:[#allocation2 + $0x424] sm:$0xff]
        %v7212 = vld [vmem:[#allocation2 + $0x42c] sm:$0xff]
        %v7213 = vld [vmem:[#allocation2 + $0x434] sm:$0xff]
        %v7214 = vld [vmem:[#allocation2 + $0x43c] sm:$0xff]
        %v7215 = vld [vmem:[#allocation2 + $0x444] sm:$0xff]
        %v7216 = vld [vmem:[#allocation2 + $0x44c] sm:$0xff]
        %v7217 = vld [vmem:[#allocation2 + $0x454] sm:$0xff]
        %v7218 = vld [vmem:[#allocation2 + $0x45c] sm:$0xff]
        %v7219 = vld [vmem:[#allocation2 + $0x464] sm:$0xff]
        %v7220 = vld [vmem:[#allocation2 + $0x46c] sm:$0xff]
        %v7221 = vld [vmem:[#allocation2 + $0x474] sm:$0xff]
        %v7222 = vld [vmem:[#allocation2 + $0x48c] sm:$0xff]
        %v7223 = vld [vmem:[#allocation2 + $0x494] sm:$0xff]
        %v7224 = vld [vmem:[#allocation2 + $0x49c] sm:$0xff]
        %v7225 = vld [vmem:[#allocation2 + $0x4a4] sm:$0xff]
        %v7226 = vld [vmem:[#allocation2 + $0x4ac] sm:$0xff]
        %v7227 = vld [vmem:[#allocation2 + $0x4b4] sm:$0xff]
        %v7228 = vld [vmem:[#allocation2 + $0x4bc] sm:$0xff]
        %v7229 = vld [vmem:[#allocation2 + $0x4c4] sm:$0xff]
        %v7230 = vld [vmem:[#allocation2 + $0x4cc] sm:$0xff]
        %v7231 = vld [vmem:[#allocation2 + $0x4d4] sm:$0xff]
        %v7232 = vld [vmem:[#allocation2 + $0x4dc] sm:$0xff]
        %v7233 = vld [vmem:[#allocation2 + $0x4e4] sm:$0xff]
        %v7234 = vld [vmem:[#allocation2 + $0x4ec] sm:$0xff]
        %v7235 = vld [vmem:[#allocation2 + $0x4f4] sm:$0xff]
        %v7236 = vld [vmem:[#allocation2 + $0x4fc] sm:$0xff]
        %v7237 = vld [vmem:[#allocation2 + $0x504] sm:$0xff]
        %v7238 = vld [vmem:[#allocation2 + $0x51c] sm:$0xff]
        %v7239 = vld [vmem:[#allocation2 + $0x524] sm:$0xff]
        %v7240 = vld [vmem:[#allocation2 + $0x52c] sm:$0xff]
        %v7241 = vld [vmem:[#allocation2 + $0x534] sm:$0xff]
        %v7242 = vld [vmem:[#allocation2 + $0x53c] sm:$0xff]
        %v7243 = vld [vmem:[#allocation2 + $0x544] sm:$0xff]
        %v7244 = vld [vmem:[#allocation2 + $0x54c] sm:$0xff]
        %v7245 = vld [vmem:[#allocation2 + $0x554] sm:$0xff]
        %v7246 = vld [vmem:[#allocation2 + $0x55c] sm:$0xff]
        %v7247 = vld [vmem:[#allocation2 + $0x564] sm:$0xff]
        %v7248 = vld [vmem:[#allocation2 + $0x56c] sm:$0xff]
        %v7249 = vld [vmem:[#allocation2 + $0x574] sm:$0xff]
        %v7250 = vld [vmem:[#allocation2 + $0x57c] sm:$0xff]
        %v7251 = vld [vmem:[#allocation2 + $0x584] sm:$0xff]
        %v7252 = vld [vmem:[#allocation2 + $0x58c] sm:$0xff]
        %v7253 = vld [vmem:[#allocation2 + $0x594] sm:$0xff]
        %v7256 = vunpack.c.l.b16 %v7092
        %v7257 = vunpack.c.l.b16 %v7093
        %v7258 = vpack.c.b16 %v7257, %v7256
        %v7419 = vunpack.c.l.b16 %v7094
        %v7420 = vunpack.c.h.b16 %v7094
        %v7421 = vunpack.c.l.b16 %v7095
        %v7422 = vunpack.c.h.b16 %v7095
        %v7423 = vunpack.c.l.b16 %v7096
        %v7424 = vunpack.c.h.b16 %v7096
        %v7425 = vunpack.c.l.b16 %v7097
        %v7426 = vunpack.c.h.b16 %v7097
        %v7427 = vunpack.c.l.b16 %v7098
        %v7428 = vunpack.c.h.b16 %v7098
        %v7429 = vunpack.c.l.b16 %v7099
        %v7430 = vunpack.c.h.b16 %v7099
        %v7431 = vunpack.c.l.b16 %v7100
        %v7432 = vunpack.c.h.b16 %v7100
        %v7433 = vunpack.c.l.b16 %v7101
        %v7434 = vunpack.c.h.b16 %v7101
        %v7435 = vunpack.c.l.b16 %v7102
        %v7436 = vunpack.c.h.b16 %v7102
        %v7437 = vunpack.c.l.b16 %v7103
        %v7438 = vunpack.c.h.b16 %v7103
        %v7439 = vunpack.c.l.b16 %v7104
        %v7440 = vunpack.c.h.b16 %v7104
        %v7441 = vunpack.c.l.b16 %v7105
        %v7442 = vunpack.c.h.b16 %v7105
        %v7443 = vunpack.c.l.b16 %v7106
        %v7444 = vunpack.c.h.b16 %v7106
        %v7445 = vunpack.c.l.b16 %v7107
        %v7446 = vunpack.c.h.b16 %v7107
        %v7447 = vunpack.c.l.b16 %v7108
        %v7448 = vunpack.c.h.b16 %v7108
        %v7449 = vunpack.c.l.b16 %v7109
        %v7450 = vunpack.c.h.b16 %v7109
        %v7451 = vunpack.c.l.b16 %v7110
        %v7452 = vunpack.c.h.b16 %v7110
        %v7453 = vunpack.c.l.b16 %v7111
        %v7454 = vunpack.c.h.b16 %v7111
        %v7455 = vunpack.c.l.b16 %v7112
        %v7456 = vunpack.c.h.b16 %v7112
        %v7457 = vunpack.c.l.b16 %v7113
        %v7458 = vunpack.c.h.b16 %v7113
        %v7459 = vunpack.c.l.b16 %v7114
        %v7460 = vunpack.c.h.b16 %v7114
        %v7461 = vunpack.c.l.b16 %v7115
        %v7462 = vunpack.c.h.b16 %v7115
        %v7463 = vunpack.c.l.b16 %v7116
        %v7464 = vunpack.c.h.b16 %v7116
        %v7465 = vunpack.c.l.b16 %v7117
        %v7466 = vunpack.c.h.b16 %v7117
        %v7467 = vunpack.c.l.b16 %v7118
        %v7468 = vunpack.c.h.b16 %v7118
        %v7469 = vunpack.c.l.b16 %v7119
        %v7470 = vunpack.c.h.b16 %v7119
        %v7471 = vunpack.c.l.b16 %v7120
        %v7472 = vunpack.c.h.b16 %v7120
        %v7473 = vunpack.c.l.b16 %v7121
        %v7474 = vunpack.c.h.b16 %v7121
        %v7475 = vunpack.c.l.b16 %v7122
        %v7476 = vunpack.c.h.b16 %v7122
        %v7477 = vunpack.c.l.b16 %v7123
        %v7478 = vunpack.c.h.b16 %v7123
        %v7479 = vunpack.c.l.b16 %v7124
        %v7480 = vunpack.c.h.b16 %v7124
        %v7481 = vunpack.c.l.b16 %v7125
        %v7482 = vunpack.c.h.b16 %v7125
        %v7483 = vunpack.c.l.b16 %v7126
        %v7484 = vunpack.c.h.b16 %v7126
        %v7485 = vunpack.c.l.b16 %v7127
        %v7486 = vunpack.c.h.b16 %v7127
        %v7487 = vunpack.c.l.b16 %v7128
        %v7488 = vunpack.c.h.b16 %v7128
        %v7489 = vunpack.c.l.b16 %v7129
        %v7490 = vunpack.c.h.b16 %v7129
        %v7491 = vunpack.c.l.b16 %v7130
        %v7492 = vunpack.c.h.b16 %v7130
        %v7493 = vunpack.c.l.b16 %v7131
        %v7494 = vunpack.c.h.b16 %v7131
        %v7495 = vunpack.c.l.b16 %v7132
        %v7496 = vunpack.c.h.b16 %v7132
        %v7497 = vunpack.c.l.b16 %v7133
        %v7498 = vunpack.c.h.b16 %v7133
        %v7499 = vunpack.c.l.b16 %v7134
        %v7500 = vunpack.c.h.b16 %v7134
        %v7501 = vunpack.c.l.b16 %v7135
        %v7502 = vunpack.c.h.b16 %v7135
        %v7503 = vunpack.c.l.b16 %v7136
        %v7504 = vunpack.c.h.b16 %v7136
        %v7505 = vunpack.c.l.b16 %v7137
        %v7506 = vunpack.c.h.b16 %v7137
        %v7507 = vunpack.c.l.b16 %v7138
        %v7508 = vunpack.c.h.b16 %v7138
        %v7509 = vunpack.c.l.b16 %v7139
        %v7510 = vunpack.c.h.b16 %v7139
        %v7511 = vunpack.c.l.b16 %v7140
        %v7512 = vunpack.c.h.b16 %v7140
        %v7513 = vunpack.c.l.b16 %v7141
        %v7514 = vunpack.c.h.b16 %v7141
        %v7515 = vunpack.c.l.b16 %v7142
        %v7516 = vunpack.c.h.b16 %v7142
        %v7517 = vunpack.c.l.b16 %v7143
        %v7518 = vunpack.c.h.b16 %v7143
        %v7519 = vunpack.c.l.b16 %v7144
        %v7520 = vunpack.c.h.b16 %v7144
        %v7521 = vunpack.c.l.b16 %v7145
        %v7522 = vunpack.c.h.b16 %v7145
        %v7523 = vunpack.c.l.b16 %v7146
        %v7524 = vunpack.c.h.b16 %v7146
        %v7525 = vunpack.c.l.b16 %v7147
        %v7526 = vunpack.c.h.b16 %v7147
        %v7527 = vunpack.c.l.b16 %v7148
        %v7528 = vunpack.c.h.b16 %v7148
        %v7529 = vunpack.c.l.b16 %v7149
        %v7530 = vunpack.c.h.b16 %v7149
        %v7531 = vunpack.c.l.b16 %v7150
        %v7532 = vunpack.c.h.b16 %v7150
        %v7533 = vunpack.c.l.b16 %v7151
        %v7534 = vunpack.c.h.b16 %v7151
        %v7535 = vunpack.c.l.b16 %v7152
        %v7536 = vunpack.c.h.b16 %v7152
        %v7537 = vunpack.c.l.b16 %v7153
        %v7538 = vunpack.c.h.b16 %v7153
        %v7539 = vunpack.c.l.b16 %v7154
        %v7540 = vunpack.c.h.b16 %v7154
        %v7541 = vunpack.c.l.b16 %v7155
        %v7542 = vunpack.c.h.b16 %v7155
        %v7543 = vunpack.c.l.b16 %v7156
        %v7544 = vunpack.c.h.b16 %v7156
        %v7545 = vunpack.c.l.b16 %v7157
        %v7546 = vunpack.c.h.b16 %v7157
        %v7547 = vunpack.c.l.b16 %v7158
        %v7548 = vunpack.c.h.b16 %v7158
        %v7549 = vunpack.c.l.b16 %v7159
        %v7550 = vunpack.c.h.b16 %v7159
        %v7551 = vunpack.c.l.b16 %v7160
        %v7552 = vunpack.c.h.b16 %v7160
        %v7553 = vunpack.c.l.b16 %v7161
        %v7554 = vunpack.c.h.b16 %v7161
        %v7555 = vunpack.c.l.b16 %v7162
        %v7556 = vunpack.c.h.b16 %v7162
        %v7557 = vunpack.c.l.b16 %v7163
        %v7558 = vunpack.c.h.b16 %v7163
        %v7559 = vunpack.c.l.b16 %v7164
        %v7560 = vunpack.c.h.b16 %v7164
        %v7561 = vunpack.c.l.b16 %v7165
        %v7562 = vunpack.c.h.b16 %v7165
        %v7563 = vunpack.c.l.b16 %v7166
        %v7564 = vunpack.c.h.b16 %v7166
        %v7565 = vunpack.c.l.b16 %v7167
        %v7566 = vunpack.c.h.b16 %v7167
        %v7567 = vunpack.c.l.b16 %v7168
        %v7568 = vunpack.c.h.b16 %v7168
        %v7569 = vunpack.c.l.b16 %v7169
        %v7570 = vunpack.c.h.b16 %v7169
        %v7571 = vunpack.c.l.b16 %v7170
        %v7572 = vunpack.c.h.b16 %v7170
        %v7573 = vunpack.c.l.b16 %v7171
        %v7574 = vunpack.c.h.b16 %v7171
        %v7575 = vunpack.c.l.b16 %v7172
        %v7576 = vunpack.c.h.b16 %v7172
        %v7577 = vunpack.c.l.b16 %v7173
        %v7578 = vunpack.c.h.b16 %v7173
        %v7579 = vunpack.c.l.b16 %v7174
        %v7580 = vunpack.c.h.b16 %v7174
        %v7581 = vunpack.c.l.b16 %v7175
        %v7582 = vunpack.c.h.b16 %v7175
        %v7583 = vunpack.c.l.b16 %v7176
        %v7584 = vunpack.c.h.b16 %v7176
        %v7585 = vunpack.c.l.b16 %v7177
        %v7586 = vunpack.c.h.b16 %v7177
        %v7587 = vunpack.c.l.b16 %v7178
        %v7588 = vunpack.c.h.b16 %v7178
        %v7589 = vunpack.c.l.b16 %v7179
        %v7590 = vunpack.c.h.b16 %v7179
        %v7591 = vunpack.c.l.b16 %v7180
        %v7592 = vunpack.c.h.b16 %v7180
        %v7593 = vunpack.c.l.b16 %v7181
        %v7594 = vunpack.c.h.b16 %v7181
        %v7595 = vunpack.c.l.b16 %v7182
        %v7596 = vunpack.c.h.b16 %v7182
        %v7597 = vunpack.c.l.b16 %v7183
        %v7598 = vunpack.c.h.b16 %v7183
        %v7599 = vunpack.c.l.b16 %v7184
        %v7600 = vunpack.c.h.b16 %v7184
        %v7601 = vunpack.c.l.b16 %v7185
        %v7602 = vunpack.c.h.b16 %v7185
        %v7603 = vunpack.c.l.b16 %v7186
        %v7604 = vunpack.c.h.b16 %v7186
        %v7605 = vunpack.c.l.b16 %v7187
        %v7606 = vunpack.c.h.b16 %v7187
        %v7607 = vunpack.c.l.b16 %v7188
        %v7608 = vunpack.c.h.b16 %v7188
        %v7609 = vunpack.c.l.b16 %v7189
        %v7610 = vunpack.c.h.b16 %v7189
        %v7611 = vunpack.c.l.b16 %v7190
        %v7612 = vunpack.c.h.b16 %v7190
        %v7613 = vunpack.c.l.b16 %v7191
        %v7614 = vunpack.c.h.b16 %v7191
        %v7615 = vunpack.c.l.b16 %v7192
        %v7616 = vunpack.c.h.b16 %v7192
        %v7617 = vunpack.c.l.b16 %v7193
        %v7618 = vunpack.c.h.b16 %v7193
        %v7619 = vunpack.c.l.b16 %v7194
        %v7620 = vunpack.c.h.b16 %v7194
        %v7621 = vunpack.c.l.b16 %v7195
        %v7622 = vunpack.c.h.b16 %v7195
        %v7623 = vunpack.c.l.b16 %v7196
        %v7624 = vunpack.c.h.b16 %v7196
        %v7625 = vunpack.c.l.b16 %v7197
        %v7626 = vunpack.c.h.b16 %v7197
        %v7627 = vunpack.c.l.b16 %v7198
        %v7628 = vunpack.c.h.b16 %v7198
        %v7629 = vunpack.c.l.b16 %v7199
        %v7630 = vunpack.c.h.b16 %v7199
        %v7631 = vunpack.c.l.b16 %v7200
        %v7632 = vunpack.c.h.b16 %v7200
        %v7633 = vunpack.c.l.b16 %v7201
        %v7634 = vunpack.c.h.b16 %v7201
        %v7635 = vunpack.c.l.b16 %v7202
        %v7636 = vunpack.c.h.b16 %v7202
        %v7637 = vunpack.c.l.b16 %v7203
        %v7638 = vunpack.c.h.b16 %v7203
        %v7639 = vunpack.c.l.b16 %v7204
        %v7640 = vunpack.c.h.b16 %v7204
        %v7641 = vunpack.c.l.b16 %v7205
        %v7642 = vunpack.c.h.b16 %v7205
        %v7643 = vunpack.c.l.b16 %v7206
        %v7644 = vunpack.c.h.b16 %v7206
        %v7645 = vunpack.c.l.b16 %v7207
        %v7646 = vunpack.c.h.b16 %v7207
        %v7647 = vunpack.c.l.b16 %v7208
        %v7648 = vunpack.c.h.b16 %v7208
        %v7649 = vunpack.c.l.b16 %v7209
        %v7650 = vunpack.c.h.b16 %v7209
        %v7651 = vunpack.c.l.b16 %v7210
        %v7652 = vunpack.c.h.b16 %v7210
        %v7653 = vunpack.c.l.b16 %v7211
        %v7654 = vunpack.c.h.b16 %v7211
        %v7655 = vunpack.c.l.b16 %v7212
        %v7656 = vunpack.c.h.b16 %v7212
        %v7657 = vunpack.c.l.b16 %v7213
        %v7658 = vunpack.c.h.b16 %v7213
        %v7659 = vunpack.c.l.b16 %v7214
        %v7660 = vunpack.c.h.b16 %v7214
        %v7661 = vunpack.c.l.b16 %v7215
        %v7662 = vunpack.c.h.b16 %v7215
        %v7663 = vunpack.c.l.b16 %v7216
        %v7664 = vunpack.c.h.b16 %v7216
        %v7665 = vunpack.c.l.b16 %v7217
        %v7666 = vunpack.c.h.b16 %v7217
        %v7667 = vunpack.c.l.b16 %v7218
        %v7668 = vunpack.c.h.b16 %v7218
        %v7669 = vunpack.c.l.b16 %v7219
        %v7670 = vunpack.c.h.b16 %v7219
        %v7671 = vunpack.c.l.b16 %v7220
        %v7672 = vunpack.c.h.b16 %v7220
        %v7673 = vunpack.c.l.b16 %v7221
        %v7674 = vunpack.c.h.b16 %v7221
        %v7675 = vunpack.c.l.b16 %v7222
        %v7676 = vunpack.c.h.b16 %v7222
        %v7677 = vunpack.c.l.b16 %v7223
        %v7678 = vunpack.c.h.b16 %v7223
        %v7679 = vunpack.c.l.b16 %v7224
        %v7680 = vunpack.c.h.b16 %v7224
        %v7681 = vunpack.c.l.b16 %v7225
        %v7682 = vunpack.c.h.b16 %v7225
        %v7683 = vunpack.c.l.b16 %v7226
        %v7684 = vunpack.c.h.b16 %v7226
        %v7685 = vunpack.c.l.b16 %v7227
        %v7686 = vunpack.c.h.b16 %v7227
        %v7687 = vunpack.c.l.b16 %v7228
        %v7688 = vunpack.c.h.b16 %v7228
        %v7689 = vunpack.c.l.b16 %v7229
        %v7690 = vunpack.c.h.b16 %v7229
        %v7691 = vunpack.c.l.b16 %v7230
        %v7692 = vunpack.c.h.b16 %v7230
        %v7693 = vunpack.c.l.b16 %v7231
        %v7694 = vunpack.c.h.b16 %v7231
        %v7695 = vunpack.c.l.b16 %v7232
        %v7696 = vunpack.c.h.b16 %v7232
        %v7697 = vunpack.c.l.b16 %v7233
        %v7698 = vunpack.c.h.b16 %v7233
        %v7699 = vunpack.c.l.b16 %v7234
        %v7700 = vunpack.c.h.b16 %v7234
        %v7701 = vunpack.c.l.b16 %v7235
        %v7702 = vunpack.c.h.b16 %v7235
        %v7703 = vunpack.c.l.b16 %v7236
        %v7704 = vunpack.c.h.b16 %v7236
        %v7705 = vunpack.c.l.b16 %v7237
        %v7706 = vunpack.c.h.b16 %v7237
        %v7707 = vunpack.c.l.b16 %v7238
        %v7708 = vunpack.c.h.b16 %v7238
        %v7709 = vunpack.c.l.b16 %v7239
        %v7710 = vunpack.c.h.b16 %v7239
        %v7711 = vunpack.c.l.b16 %v7240
        %v7712 = vunpack.c.h.b16 %v7240
        %v7713 = vunpack.c.l.b16 %v7241
        %v7714 = vunpack.c.h.b16 %v7241
        %v7715 = vunpack.c.l.b16 %v7242
        %v7716 = vunpack.c.h.b16 %v7242
        %v7717 = vunpack.c.l.b16 %v7243
        %v7718 = vunpack.c.h.b16 %v7243
        %v7719 = vunpack.c.l.b16 %v7244
        %v7720 = vunpack.c.h.b16 %v7244
        %v7721 = vunpack.c.l.b16 %v7245
        %v7722 = vunpack.c.h.b16 %v7245
        %v7723 = vunpack.c.l.b16 %v7246
        %v7724 = vunpack.c.h.b16 %v7246
        %v7725 = vunpack.c.l.b16 %v7247
        %v7726 = vunpack.c.h.b16 %v7247
        %v7727 = vunpack.c.l.b16 %v7248
        %v7728 = vunpack.c.h.b16 %v7248
        %v7729 = vunpack.c.l.b16 %v7249
        %v7730 = vunpack.c.h.b16 %v7249
        %v7731 = vunpack.c.l.b16 %v7250
        %v7732 = vunpack.c.h.b16 %v7250
        %v7733 = vunpack.c.l.b16 %v7251
        %v7734 = vunpack.c.h.b16 %v7251
        %v7735 = vunpack.c.l.b16 %v7252
        %v7736 = vunpack.c.h.b16 %v7252
        %v7737 = vunpack.c.l.b16 %v7253
        %v7738 = vunpack.c.h.b16 %v7253
        %v7739 = vpack.c.b16 %v7451, %v7419
        %v7740 = vpack.c.b16 %v7452, %v7420
        %v7741 = vpack.c.b16 %v7453, %v7421
        %v7742 = vpack.c.b16 %v7454, %v7422
        %v7743 = vpack.c.b16 %v7455, %v7423
        %v7744 = vpack.c.b16 %v7456, %v7424
        %v7745 = vpack.c.b16 %v7457, %v7425
        %v7746 = vpack.c.b16 %v7458, %v7426
        %v7747 = vpack.c.b16 %v7459, %v7427
        %v7748 = vpack.c.b16 %v7460, %v7428
        %v7749 = vpack.c.b16 %v7461, %v7429
        %v7750 = vpack.c.b16 %v7462, %v7430
        %v7751 = vpack.c.b16 %v7463, %v7431
        %v7752 = vpack.c.b16 %v7464, %v7432
        %v7753 = vpack.c.b16 %v7465, %v7433
        %v7754 = vpack.c.b16 %v7466, %v7434
        %v7755 = vpack.c.b16 %v7467, %v7435
        %v7756 = vpack.c.b16 %v7468, %v7436
        %v7757 = vpack.c.b16 %v7469, %v7437
        %v7758 = vpack.c.b16 %v7470, %v7438
        %v7759 = vpack.c.b16 %v7471, %v7439
        %v7760 = vpack.c.b16 %v7472, %v7440
        %v7761 = vpack.c.b16 %v7473, %v7441
        %v7762 = vpack.c.b16 %v7474, %v7442
        %v7763 = vpack.c.b16 %v7475, %v7443
        %v7764 = vpack.c.b16 %v7476, %v7444
        %v7765 = vpack.c.b16 %v7477, %v7445
        %v7766 = vpack.c.b16 %v7478, %v7446
        %v7767 = vpack.c.b16 %v7479, %v7447
        %v7768 = vpack.c.b16 %v7480, %v7448
        %v7769 = vpack.c.b16 %v7481, %v7449
        %v7770 = vpack.c.b16 %v7482, %v7450
        %v7771 = vpack.c.b16 %v7515, %v7483
        %v7772 = vpack.c.b16 %v7516, %v7484
        %v7773 = vpack.c.b16 %v7517, %v7485
        %v7774 = vpack.c.b16 %v7518, %v7486
        %v7775 = vpack.c.b16 %v7519, %v7487
        %v7776 = vpack.c.b16 %v7520, %v7488
        %v7777 = vpack.c.b16 %v7521, %v7489
        %v7778 = vpack.c.b16 %v7522, %v7490
        %v7779 = vpack.c.b16 %v7523, %v7491
        %v7780 = vpack.c.b16 %v7524, %v7492
        %v7781 = vpack.c.b16 %v7525, %v7493
        %v7782 = vpack.c.b16 %v7526, %v7494
        %v7783 = vpack.c.b16 %v7527, %v7495
        %v7784 = vpack.c.b16 %v7528, %v7496
        %v7785 = vpack.c.b16 %v7529, %v7497
        %v7786 = vpack.c.b16 %v7530, %v7498
        %v7787 = vpack.c.b16 %v7531, %v7499
        %v7788 = vpack.c.b16 %v7532, %v7500
        %v7789 = vpack.c.b16 %v7533, %v7501
        %v7790 = vpack.c.b16 %v7534, %v7502
        %v7791 = vpack.c.b16 %v7535, %v7503
        %v7792 = vpack.c.b16 %v7536, %v7504
        %v7793 = vpack.c.b16 %v7537, %v7505
        %v7794 = vpack.c.b16 %v7538, %v7506
        %v7795 = vpack.c.b16 %v7539, %v7507
        %v7796 = vpack.c.b16 %v7540, %v7508
        %v7797 = vpack.c.b16 %v7541, %v7509
        %v7798 = vpack.c.b16 %v7542, %v7510
        %v7799 = vpack.c.b16 %v7543, %v7511
        %v7800 = vpack.c.b16 %v7544, %v7512
        %v7801 = vpack.c.b16 %v7545, %v7513
        %v7802 = vpack.c.b16 %v7546, %v7514
        %v7803 = vpack.c.b16 %v7579, %v7547
        %v7804 = vpack.c.b16 %v7580, %v7548
        %v7805 = vpack.c.b16 %v7581, %v7549
        %v7806 = vpack.c.b16 %v7582, %v7550
        %v7807 = vpack.c.b16 %v7583, %v7551
        %v7808 = vpack.c.b16 %v7584, %v7552
        %v7809 = vpack.c.b16 %v7585, %v7553
        %v7810 = vpack.c.b16 %v7586, %v7554
        %v7811 = vpack.c.b16 %v7587, %v7555
        %v7812 = vpack.c.b16 %v7588, %v7556
        %v7813 = vpack.c.b16 %v7589, %v7557
        %v7814 = vpack.c.b16 %v7590, %v7558
        %v7815 = vpack.c.b16 %v7591, %v7559
        %v7816 = vpack.c.b16 %v7592, %v7560
        %v7817 = vpack.c.b16 %v7593, %v7561
        %v7818 = vpack.c.b16 %v7594, %v7562
        %v7819 = vpack.c.b16 %v7595, %v7563
        %v7820 = vpack.c.b16 %v7596, %v7564
        %v7821 = vpack.c.b16 %v7597, %v7565
        %v7822 = vpack.c.b16 %v7598, %v7566
        %v7823 = vpack.c.b16 %v7599, %v7567
        %v7824 = vpack.c.b16 %v7600, %v7568
        %v7825 = vpack.c.b16 %v7601, %v7569
        %v7826 = vpack.c.b16 %v7602, %v7570
        %v7827 = vpack.c.b16 %v7603, %v7571
        %v7828 = vpack.c.b16 %v7604, %v7572
        %v7829 = vpack.c.b16 %v7605, %v7573
        %v7830 = vpack.c.b16 %v7606, %v7574
        %v7831 = vpack.c.b16 %v7607, %v7575
        %v7832 = vpack.c.b16 %v7608, %v7576
        %v7833 = vpack.c.b16 %v7609, %v7577
        %v7834 = vpack.c.b16 %v7610, %v7578
        %v7835 = vpack.c.b16 %v7643, %v7611
        %v7836 = vpack.c.b16 %v7644, %v7612
        %v7837 = vpack.c.b16 %v7645, %v7613
        %v7838 = vpack.c.b16 %v7646, %v7614
        %v7839 = vpack.c.b16 %v7647, %v7615
        %v7840 = vpack.c.b16 %v7648, %v7616
        %v7841 = vpack.c.b16 %v7649, %v7617
        %v7842 = vpack.c.b16 %v7650, %v7618
        %v7843 = vpack.c.b16 %v7651, %v7619
        %v7844 = vpack.c.b16 %v7652, %v7620
        %v7845 = vpack.c.b16 %v7653, %v7621
        %v7846 = vpack.c.b16 %v7654, %v7622
        %v7847 = vpack.c.b16 %v7655, %v7623
        %v7848 = vpack.c.b16 %v7656, %v7624
        %v7849 = vpack.c.b16 %v7657, %v7625
        %v7850 = vpack.c.b16 %v7658, %v7626
        %v7851 = vpack.c.b16 %v7659, %v7627
        %v7852 = vpack.c.b16 %v7660, %v7628
        %v7853 = vpack.c.b16 %v7661, %v7629
        %v7854 = vpack.c.b16 %v7662, %v7630
        %v7855 = vpack.c.b16 %v7663, %v7631
        %v7856 = vpack.c.b16 %v7664, %v7632
        %v7857 = vpack.c.b16 %v7665, %v7633
        %v7858 = vpack.c.b16 %v7666, %v7634
        %v7859 = vpack.c.b16 %v7667, %v7635
        %v7860 = vpack.c.b16 %v7668, %v7636
        %v7861 = vpack.c.b16 %v7669, %v7637
        %v7862 = vpack.c.b16 %v7670, %v7638
        %v7863 = vpack.c.b16 %v7671, %v7639
        %v7864 = vpack.c.b16 %v7672, %v7640
        %v7865 = vpack.c.b16 %v7673, %v7641
        %v7866 = vpack.c.b16 %v7674, %v7642
        %v7867 = vpack.c.b16 %v7707, %v7675
        %v7868 = vpack.c.b16 %v7708, %v7676
        %v7869 = vpack.c.b16 %v7709, %v7677
        %v7870 = vpack.c.b16 %v7710, %v7678
        %v7871 = vpack.c.b16 %v7711, %v7679
        %v7872 = vpack.c.b16 %v7712, %v7680
        %v7873 = vpack.c.b16 %v7713, %v7681
        %v7874 = vpack.c.b16 %v7714, %v7682
        %v7875 = vpack.c.b16 %v7715, %v7683
        %v7876 = vpack.c.b16 %v7716, %v7684
        %v7877 = vpack.c.b16 %v7717, %v7685
        %v7878 = vpack.c.b16 %v7718, %v7686
        %v7879 = vpack.c.b16 %v7719, %v7687
        %v7880 = vpack.c.b16 %v7720, %v7688
        %v7881 = vpack.c.b16 %v7721, %v7689
        %v7882 = vpack.c.b16 %v7722, %v7690
        %v7883 = vpack.c.b16 %v7723, %v7691
        %v7884 = vpack.c.b16 %v7724, %v7692
        %v7885 = vpack.c.b16 %v7725, %v7693
        %v7886 = vpack.c.b16 %v7726, %v7694
        %v7887 = vpack.c.b16 %v7727, %v7695
        %v7888 = vpack.c.b16 %v7728, %v7696
        %v7889 = vpack.c.b16 %v7729, %v7697
        %v7890 = vpack.c.b16 %v7730, %v7698
        %v7891 = vpack.c.b16 %v7731, %v7699
        %v7892 = vpack.c.b16 %v7732, %v7700
        %v7893 = vpack.c.b16 %v7733, %v7701
        %v7894 = vpack.c.b16 %v7734, %v7702
        %v7895 = vpack.c.b16 %v7735, %v7703
        %v7896 = vpack.c.b16 %v7736, %v7704
        %v7897 = vpack.c.b16 %v7737, %v7705
        %v7898 = vpack.c.b16 %v7738, %v7706
        %v8060 = vsel %vm3900, %v7258, 0
        %8062 = vmatpush.bf16.msra.mxu0 0
        %8063 = vmatpush.bf16.msra.mxu0 0
        %8064 = vmatpush.bf16.msra.mxu0 0
        %8065 = vmatpush.bf16.msra.mxu0 %v7867
        %8066 = vmatpush.bf16.msra.mxu0 %v7835
        %8067 = vmatpush.bf16.msra.mxu0 %v7803
        %8068 = vmatpush.bf16.msra.mxu0 %v7771
        %8069 = vmatpush.bf16.msra.mxu0 %v7739
        %8070 = vmatmul.bf16.gmra.mxu0 %v8060
        %v8071 = vpop.f32.mrf.mxu0
        %v8072 = vadd.f32 0.0, %v8071
        %v8073 = vpop.f32.mrf.mxu0
        %v8074 = vadd.f32 0.0, %v8073
        %8075 = vdwg.mxu0
        %8076 = vmatpush.bf16.msra.mxu0 0
        %8077 = vmatpush.bf16.msra.mxu0 0
        %8078 = vmatpush.bf16.msra.mxu0 0
        %8079 = vmatpush.bf16.msra.mxu0 %v7868
        %8080 = vmatpush.bf16.msra.mxu0 %v7836
        %8081 = vmatpush.bf16.msra.mxu0 %v7804
        %8082 = vmatpush.bf16.msra.mxu0 %v7772
        %8083 = vmatpush.bf16.msra.mxu0 %v7740
        %8084 = vmatmul.bf16.gmra.mxu0 %v8060
        %v8085 = vpop.f32.mrf.mxu0
        %v8086 = vadd.f32 0.0, %v8085
        %v8087 = vpop.f32.mrf.mxu0
        %v8088 = vadd.f32 0.0, %v8087
        %8089 = vdwg.mxu0
        %8090 = vmatpush.bf16.msra.mxu0 0
        %8091 = vmatpush.bf16.msra.mxu0 0
        %8092 = vmatpush.bf16.msra.mxu0 0
        %8093 = vmatpush.bf16.msra.mxu0 %v7869
        %8094 = vmatpush.bf16.msra.mxu0 %v7837
        %8095 = vmatpush.bf16.msra.mxu0 %v7805
        %8096 = vmatpush.bf16.msra.mxu0 %v7773
        %8097 = vmatpush.bf16.msra.mxu0 %v7741
        %8098 = vmatmul.bf16.gmra.mxu0 %v8060
        %v8099 = vpop.f32.mrf.mxu0
        %v8100 = vadd.f32 0.0, %v8099
        %v8101 = vpop.f32.mrf.mxu0
        %v8102 = vadd.f32 0.0, %v8101
        %8103 = vdwg.mxu0
        %8104 = vmatpush.bf16.msra.mxu0 0
        %8105 = vmatpush.bf16.msra.mxu0 0
        %8106 = vmatpush.bf16.msra.mxu0 0
        %8107 = vmatpush.bf16.msra.mxu0 %v7870
        %8108 = vmatpush.bf16.msra.mxu0 %v7838
        %8109 = vmatpush.bf16.msra.mxu0 %v7806
        %8110 = vmatpush.bf16.msra.mxu0 %v7774
        %8111 = vmatpush.bf16.msra.mxu0 %v7742
        %8112 = vmatmul.bf16.gmra.mxu0 %v8060
        %v8113 = vpop.f32.mrf.mxu0
        %v8114 = vadd.f32 0.0, %v8113
        %v8115 = vpop.f32.mrf.mxu0
        %v8116 = vadd.f32 0.0, %v8115
        %8117 = vdwg.mxu0
        %8118 = vmatpush.bf16.msra.mxu0 0
        %8119 = vmatpush.bf16.msra.mxu0 0
        %8120 = vmatpush.bf16.msra.mxu0 0
        %8121 = vmatpush.bf16.msra.mxu0 %v7871
        %8122 = vmatpush.bf16.msra.mxu0 %v7839
        %8123 = vmatpush.bf16.msra.mxu0 %v7807
        %8124 = vmatpush.bf16.msra.mxu0 %v7775
        %8125 = vmatpush.bf16.msra.mxu0 %v7743
        %8126 = vmatmul.bf16.gmra.mxu0 %v8060
        %v8127 = vpop.f32.mrf.mxu0
        %v8128 = vadd.f32 0.0, %v8127
        %v8129 = vpop.f32.mrf.mxu0
        %v8130 = vadd.f32 0.0, %v8129
        %8131 = vdwg.mxu0
        %8132 = vmatpush.bf16.msra.mxu0 0
        %8133 = vmatpush.bf16.msra.mxu0 0
        %8134 = vmatpush.bf16.msra.mxu0 0
        %8135 = vmatpush.bf16.msra.mxu0 %v7872
        %8136 = vmatpush.bf16.msra.mxu0 %v7840
        %8137 = vmatpush.bf16.msra.mxu0 %v7808
        %8138 = vmatpush.bf16.msra.mxu0 %v7776
        %8139 = vmatpush.bf16.msra.mxu0 %v7744
        %8140 = vmatmul.bf16.gmra.mxu0 %v8060
        %v8141 = vpop.f32.mrf.mxu0
        %v8142 = vadd.f32 0.0, %v8141
        %v8143 = vpop.f32.mrf.mxu0
        %v8144 = vadd.f32 0.0, %v8143
        %8145 = vdwg.mxu0
        %8146 = vmatpush.bf16.msra.mxu0 0
        %8147 = vmatpush.bf16.msra.mxu0 0
        %8148 = vmatpush.bf16.msra.mxu0 0
        %8149 = vmatpush.bf16.msra.mxu0 %v7873
        %8150 = vmatpush.bf16.msra.mxu0 %v7841
        %8151 = vmatpush.bf16.msra.mxu0 %v7809
        %8152 = vmatpush.bf16.msra.mxu0 %v7777
        %8153 = vmatpush.bf16.msra.mxu0 %v7745
        %8154 = vmatmul.bf16.gmra.mxu0 %v8060
        %v8155 = vpop.f32.mrf.mxu0
        %v8156 = vadd.f32 0.0, %v8155
        %v8157 = vpop.f32.mrf.mxu0
        %v8158 = vadd.f32 0.0, %v8157
        %8159 = vdwg.mxu0
        %8160 = vmatpush.bf16.msra.mxu0 0
        %8161 = vmatpush.bf16.msra.mxu0 0
        %8162 = vmatpush.bf16.msra.mxu0 0
        %8163 = vmatpush.bf16.msra.mxu0 %v7874
        %8164 = vmatpush.bf16.msra.mxu0 %v7842
        %8165 = vmatpush.bf16.msra.mxu0 %v7810
        %8166 = vmatpush.bf16.msra.mxu0 %v7778
        %8167 = vmatpush.bf16.msra.mxu0 %v7746
        %8168 = vmatmul.bf16.gmra.mxu0 %v8060
        %v8169 = vpop.f32.mrf.mxu0
        %v8170 = vadd.f32 0.0, %v8169
        %v8171 = vpop.f32.mrf.mxu0
        %v8172 = vadd.f32 0.0, %v8171
        %8173 = vdwg.mxu0
        %8174 = vmatpush.bf16.msra.mxu0 0
        %8175 = vmatpush.bf16.msra.mxu0 0
        %8176 = vmatpush.bf16.msra.mxu0 0
        %8177 = vmatpush.bf16.msra.mxu0 %v7875
        %8178 = vmatpush.bf16.msra.mxu0 %v7843
        %8179 = vmatpush.bf16.msra.mxu0 %v7811
        %8180 = vmatpush.bf16.msra.mxu0 %v7779
        %8181 = vmatpush.bf16.msra.mxu0 %v7747
        %8182 = vmatmul.bf16.gmra.mxu0 %v8060
        %v8183 = vpop.f32.mrf.mxu0
        %v8184 = vadd.f32 0.0, %v8183
        %v8185 = vpop.f32.mrf.mxu0
        %v8186 = vadd.f32 0.0, %v8185
        %8187 = vdwg.mxu0
        %8188 = vmatpush.bf16.msra.mxu0 0
        %8189 = vmatpush.bf16.msra.mxu0 0
        %8190 = vmatpush.bf16.msra.mxu0 0
        %8191 = vmatpush.bf16.msra.mxu0 %v7876
        %8192 = vmatpush.bf16.msra.mxu0 %v7844
        %8193 = vmatpush.bf16.msra.mxu0 %v7812
        %8194 = vmatpush.bf16.msra.mxu0 %v7780
        %8195 = vmatpush.bf16.msra.mxu0 %v7748
        %8196 = vmatmul.bf16.gmra.mxu0 %v8060
        %v8197 = vpop.f32.mrf.mxu0
        %v8198 = vadd.f32 0.0, %v8197
        %v8199 = vpop.f32.mrf.mxu0
        %v8200 = vadd.f32 0.0, %v8199
        %8201 = vdwg.mxu0
        %8202 = vmatpush.bf16.msra.mxu0 0
        %8203 = vmatpush.bf16.msra.mxu0 0
        %8204 = vmatpush.bf16.msra.mxu0 0
        %8205 = vmatpush.bf16.msra.mxu0 %v7877
        %8206 = vmatpush.bf16.msra.mxu0 %v7845
        %8207 = vmatpush.bf16.msra.mxu0 %v7813
        %8208 = vmatpush.bf16.msra.mxu0 %v7781
        %8209 = vmatpush.bf16.msra.mxu0 %v7749
        %8210 = vmatmul.bf16.gmra.mxu0 %v8060
        %v8211 = vpop.f32.mrf.mxu0
        %v8212 = vadd.f32 0.0, %v8211
        %v8213 = vpop.f32.mrf.mxu0
        %v8214 = vadd.f32 0.0, %v8213
        %8215 = vdwg.mxu0
        %8216 = vmatpush.bf16.msra.mxu0 0
        %8217 = vmatpush.bf16.msra.mxu0 0
        %8218 = vmatpush.bf16.msra.mxu0 0
        %8219 = vmatpush.bf16.msra.mxu0 %v7878
        %8220 = vmatpush.bf16.msra.mxu0 %v7846
        %8221 = vmatpush.bf16.msra.mxu0 %v7814
        %8222 = vmatpush.bf16.msra.mxu0 %v7782
        %8223 = vmatpush.bf16.msra.mxu0 %v7750
        %8224 = vmatmul.bf16.gmra.mxu0 %v8060
        %v8225 = vpop.f32.mrf.mxu0
        %v8226 = vadd.f32 0.0, %v8225
        %v8227 = vpop.f32.mrf.mxu0
        %v8228 = vadd.f32 0.0, %v8227
        %8229 = vdwg.mxu0
        %8230 = vmatpush.bf16.msra.mxu0 0
        %8231 = vmatpush.bf16.msra.mxu0 0
        %8232 = vmatpush.bf16.msra.mxu0 0
        %8233 = vmatpush.bf16.msra.mxu0 %v7879
        %8234 = vmatpush.bf16.msra.mxu0 %v7847
        %8235 = vmatpush.bf16.msra.mxu0 %v7815
        %8236 = vmatpush.bf16.msra.mxu0 %v7783
        %8237 = vmatpush.bf16.msra.mxu0 %v7751
        %8238 = vmatmul.bf16.gmra.mxu0 %v8060
        %v8239 = vpop.f32.mrf.mxu0
        %v8240 = vadd.f32 0.0, %v8239
        %v8241 = vpop.f32.mrf.mxu0
        %v8242 = vadd.f32 0.0, %v8241
        %8243 = vdwg.mxu0
        %8244 = vmatpush.bf16.msra.mxu0 0
        %8245 = vmatpush.bf16.msra.mxu0 0
        %8246 = vmatpush.bf16.msra.mxu0 0
        %8247 = vmatpush.bf16.msra.mxu0 %v7880
        %8248 = vmatpush.bf16.msra.mxu0 %v7848
        %8249 = vmatpush.bf16.msra.mxu0 %v7816
        %8250 = vmatpush.bf16.msra.mxu0 %v7784
        %8251 = vmatpush.bf16.msra.mxu0 %v7752
        %8252 = vmatmul.bf16.gmra.mxu0 %v8060
        %v8253 = vpop.f32.mrf.mxu0
        %v8254 = vadd.f32 0.0, %v8253
        %v8255 = vpop.f32.mrf.mxu0
        %v8256 = vadd.f32 0.0, %v8255
        %8257 = vdwg.mxu0
        %8258 = vmatpush.bf16.msra.mxu0 0
        %8259 = vmatpush.bf16.msra.mxu0 0
        %8260 = vmatpush.bf16.msra.mxu0 0
        %8261 = vmatpush.bf16.msra.mxu0 %v7881
        %8262 = vmatpush.bf16.msra.mxu0 %v7849
        %8263 = vmatpush.bf16.msra.mxu0 %v7817
        %8264 = vmatpush.bf16.msra.mxu0 %v7785
        %8265 = vmatpush.bf16.msra.mxu0 %v7753
        %8266 = vmatmul.bf16.gmra.mxu0 %v8060
        %v8267 = vpop.f32.mrf.mxu0
        %v8268 = vadd.f32 0.0, %v8267
        %v8269 = vpop.f32.mrf.mxu0
        %v8270 = vadd.f32 0.0, %v8269
        %8271 = vdwg.mxu0
        %8272 = vmatpush.bf16.msra.mxu0 0
        %8273 = vmatpush.bf16.msra.mxu0 0
        %8274 = vmatpush.bf16.msra.mxu0 0
        %8275 = vmatpush.bf16.msra.mxu0 %v7882
        %8276 = vmatpush.bf16.msra.mxu0 %v7850
        %8277 = vmatpush.bf16.msra.mxu0 %v7818
        %8278 = vmatpush.bf16.msra.mxu0 %v7786
        %8279 = vmatpush.bf16.msra.mxu0 %v7754
        %8280 = vmatmul.bf16.gmra.mxu0 %v8060
        %v8281 = vpop.f32.mrf.mxu0
        %v8282 = vadd.f32 0.0, %v8281
        %v8283 = vpop.f32.mrf.mxu0
        %v8284 = vadd.f32 0.0, %v8283
        %8285 = vdwg.mxu0
        %8286 = vmatpush.bf16.msra.mxu0 0
        %8287 = vmatpush.bf16.msra.mxu0 0
        %8288 = vmatpush.bf16.msra.mxu0 0
        %8289 = vmatpush.bf16.msra.mxu0 %v7883
        %8290 = vmatpush.bf16.msra.mxu0 %v7851
        %8291 = vmatpush.bf16.msra.mxu0 %v7819
        %8292 = vmatpush.bf16.msra.mxu0 %v7787
        %8293 = vmatpush.bf16.msra.mxu0 %v7755
        %8294 = vmatmul.bf16.gmra.mxu0 %v8060
        %v8295 = vpop.f32.mrf.mxu0
        %v8296 = vadd.f32 0.0, %v8295
        %v8297 = vpop.f32.mrf.mxu0
        %v8298 = vadd.f32 0.0, %v8297
        %8299 = vdwg.mxu0
        %8300 = vmatpush.bf16.msra.mxu0 0
        %8301 = vmatpush.bf16.msra.mxu0 0
        %8302 = vmatpush.bf16.msra.mxu0 0
        %8303 = vmatpush.bf16.msra.mxu0 %v7884
        %8304 = vmatpush.bf16.msra.mxu0 %v7852
        %8305 = vmatpush.bf16.msra.mxu0 %v7820
        %8306 = vmatpush.bf16.msra.mxu0 %v7788
        %8307 = vmatpush.bf16.msra.mxu0 %v7756
        %8308 = vmatmul.bf16.gmra.mxu0 %v8060
        %v8309 = vpop.f32.mrf.mxu0
        %v8310 = vadd.f32 0.0, %v8309
        %v8311 = vpop.f32.mrf.mxu0
        %v8312 = vadd.f32 0.0, %v8311
        %8313 = vdwg.mxu0
        %8314 = vmatpush.bf16.msra.mxu0 0
        %8315 = vmatpush.bf16.msra.mxu0 0
        %8316 = vmatpush.bf16.msra.mxu0 0
        %8317 = vmatpush.bf16.msra.mxu0 %v7885
        %8318 = vmatpush.bf16.msra.mxu0 %v7853
        %8319 = vmatpush.bf16.msra.mxu0 %v7821
        %8320 = vmatpush.bf16.msra.mxu0 %v7789
        %8321 = vmatpush.bf16.msra.mxu0 %v7757
        %8322 = vmatmul.bf16.gmra.mxu0 %v8060
        %v8323 = vpop.f32.mrf.mxu0
        %v8324 = vadd.f32 0.0, %v8323
        %v8325 = vpop.f32.mrf.mxu0
        %v8326 = vadd.f32 0.0, %v8325
        %8327 = vdwg.mxu0
        %8328 = vmatpush.bf16.msra.mxu0 0
        %8329 = vmatpush.bf16.msra.mxu0 0
        %8330 = vmatpush.bf16.msra.mxu0 0
        %8331 = vmatpush.bf16.msra.mxu0 %v7886
        %8332 = vmatpush.bf16.msra.mxu0 %v7854
        %8333 = vmatpush.bf16.msra.mxu0 %v7822
        %8334 = vmatpush.bf16.msra.mxu0 %v7790
        %8335 = vmatpush.bf16.msra.mxu0 %v7758
        %8336 = vmatmul.bf16.gmra.mxu0 %v8060
        %v8337 = vpop.f32.mrf.mxu0
        %v8338 = vadd.f32 0.0, %v8337
        %v8339 = vpop.f32.mrf.mxu0
        %v8340 = vadd.f32 0.0, %v8339
        %8341 = vdwg.mxu0
        %8342 = vmatpush.bf16.msra.mxu0 0
        %8343 = vmatpush.bf16.msra.mxu0 0
        %8344 = vmatpush.bf16.msra.mxu0 0
        %8345 = vmatpush.bf16.msra.mxu0 %v7887
        %8346 = vmatpush.bf16.msra.mxu0 %v7855
        %8347 = vmatpush.bf16.msra.mxu0 %v7823
        %8348 = vmatpush.bf16.msra.mxu0 %v7791
        %8349 = vmatpush.bf16.msra.mxu0 %v7759
        %8350 = vmatmul.bf16.gmra.mxu0 %v8060
        %v8351 = vpop.f32.mrf.mxu0
        %v8352 = vadd.f32 0.0, %v8351
        %v8353 = vpop.f32.mrf.mxu0
        %v8354 = vadd.f32 0.0, %v8353
        %8355 = vdwg.mxu0
        %8356 = vmatpush.bf16.msra.mxu0 0
        %8357 = vmatpush.bf16.msra.mxu0 0
        %8358 = vmatpush.bf16.msra.mxu0 0
        %8359 = vmatpush.bf16.msra.mxu0 %v7888
        %8360 = vmatpush.bf16.msra.mxu0 %v7856
        %8361 = vmatpush.bf16.msra.mxu0 %v7824
        %8362 = vmatpush.bf16.msra.mxu0 %v7792
        %8363 = vmatpush.bf16.msra.mxu0 %v7760
        %8364 = vmatmul.bf16.gmra.mxu0 %v8060
        %v8365 = vpop.f32.mrf.mxu0
        %v8366 = vadd.f32 0.0, %v8365
        %v8367 = vpop.f32.mrf.mxu0
        %v8368 = vadd.f32 0.0, %v8367
        %8369 = vdwg.mxu0
        %8370 = vmatpush.bf16.msra.mxu0 0
        %8371 = vmatpush.bf16.msra.mxu0 0
        %8372 = vmatpush.bf16.msra.mxu0 0
        %8373 = vmatpush.bf16.msra.mxu0 %v7889
        %8374 = vmatpush.bf16.msra.mxu0 %v7857
        %8375 = vmatpush.bf16.msra.mxu0 %v7825
        %8376 = vmatpush.bf16.msra.mxu0 %v7793
        %8377 = vmatpush.bf16.msra.mxu0 %v7761
        %8378 = vmatmul.bf16.gmra.mxu0 %v8060
        %v8379 = vpop.f32.mrf.mxu0
        %v8380 = vadd.f32 0.0, %v8379
        %v8381 = vpop.f32.mrf.mxu0
        %v8382 = vadd.f32 0.0, %v8381
        %8383 = vdwg.mxu0
        %8384 = vmatpush.bf16.msra.mxu0 0
        %8385 = vmatpush.bf16.msra.mxu0 0
        %8386 = vmatpush.bf16.msra.mxu0 0
        %8387 = vmatpush.bf16.msra.mxu0 %v7890
        %8388 = vmatpush.bf16.msra.mxu0 %v7858
        %8389 = vmatpush.bf16.msra.mxu0 %v7826
        %8390 = vmatpush.bf16.msra.mxu0 %v7794
        %8391 = vmatpush.bf16.msra.mxu0 %v7762
        %8392 = vmatmul.bf16.gmra.mxu0 %v8060
        %v8393 = vpop.f32.mrf.mxu0
        %v8394 = vadd.f32 0.0, %v8393
        %v8395 = vpop.f32.mrf.mxu0
        %v8396 = vadd.f32 0.0, %v8395
        %8397 = vdwg.mxu0
        %8398 = vmatpush.bf16.msra.mxu0 0
        %8399 = vmatpush.bf16.msra.mxu0 0
        %8400 = vmatpush.bf16.msra.mxu0 0
        %8401 = vmatpush.bf16.msra.mxu0 %v7891
        %8402 = vmatpush.bf16.msra.mxu0 %v7859
        %8403 = vmatpush.bf16.msra.mxu0 %v7827
        %8404 = vmatpush.bf16.msra.mxu0 %v7795
        %8405 = vmatpush.bf16.msra.mxu0 %v7763
        %8406 = vmatmul.bf16.gmra.mxu0 %v8060
        %v8407 = vpop.f32.mrf.mxu0
        %v8408 = vadd.f32 0.0, %v8407
        %v8409 = vpop.f32.mrf.mxu0
        %v8410 = vadd.f32 0.0, %v8409
        %8411 = vdwg.mxu0
        %8412 = vmatpush.bf16.msra.mxu0 0
        %8413 = vmatpush.bf16.msra.mxu0 0
        %8414 = vmatpush.bf16.msra.mxu0 0
        %8415 = vmatpush.bf16.msra.mxu0 %v7892
        %8416 = vmatpush.bf16.msra.mxu0 %v7860
        %8417 = vmatpush.bf16.msra.mxu0 %v7828
        %8418 = vmatpush.bf16.msra.mxu0 %v7796
        %8419 = vmatpush.bf16.msra.mxu0 %v7764
        %8420 = vmatmul.bf16.gmra.mxu0 %v8060
        %v8421 = vpop.f32.mrf.mxu0
        %v8422 = vadd.f32 0.0, %v8421
        %v8423 = vpop.f32.mrf.mxu0
        %v8424 = vadd.f32 0.0, %v8423
        %8425 = vdwg.mxu0
        %8426 = vmatpush.bf16.msra.mxu0 0
        %8427 = vmatpush.bf16.msra.mxu0 0
        %8428 = vmatpush.bf16.msra.mxu0 0
        %8429 = vmatpush.bf16.msra.mxu0 %v7893
        %8430 = vmatpush.bf16.msra.mxu0 %v7861
        %8431 = vmatpush.bf16.msra.mxu0 %v7829
        %8432 = vmatpush.bf16.msra.mxu0 %v7797
        %8433 = vmatpush.bf16.msra.mxu0 %v7765
        %8434 = vmatmul.bf16.gmra.mxu0 %v8060
        %v8435 = vpop.f32.mrf.mxu0
        %v8436 = vadd.f32 0.0, %v8435
        %v8437 = vpop.f32.mrf.mxu0
        %v8438 = vadd.f32 0.0, %v8437
        %8439 = vdwg.mxu0
        %8440 = vmatpush.bf16.msra.mxu0 0
        %8441 = vmatpush.bf16.msra.mxu0 0
        %8442 = vmatpush.bf16.msra.mxu0 0
        %8443 = vmatpush.bf16.msra.mxu0 %v7894
        %8444 = vmatpush.bf16.msra.mxu0 %v7862
        %8445 = vmatpush.bf16.msra.mxu0 %v7830
        %8446 = vmatpush.bf16.msra.mxu0 %v7798
        %8447 = vmatpush.bf16.msra.mxu0 %v7766
        %8448 = vmatmul.bf16.gmra.mxu0 %v8060
        %v8449 = vpop.f32.mrf.mxu0
        %v8450 = vadd.f32 0.0, %v8449
        %v8451 = vpop.f32.mrf.mxu0
        %v8452 = vadd.f32 0.0, %v8451
        %8453 = vdwg.mxu0
        %8454 = vmatpush.bf16.msra.mxu0 0
        %8455 = vmatpush.bf16.msra.mxu0 0
        %8456 = vmatpush.bf16.msra.mxu0 0
        %8457 = vmatpush.bf16.msra.mxu0 %v7895
        %8458 = vmatpush.bf16.msra.mxu0 %v7863
        %8459 = vmatpush.bf16.msra.mxu0 %v7831
        %8460 = vmatpush.bf16.msra.mxu0 %v7799
        %8461 = vmatpush.bf16.msra.mxu0 %v7767
        %8462 = vmatmul.bf16.gmra.mxu0 %v8060
        %v8463 = vpop.f32.mrf.mxu0
        %v8464 = vadd.f32 0.0, %v8463
        %v8465 = vpop.f32.mrf.mxu0
        %v8466 = vadd.f32 0.0, %v8465
        %8467 = vdwg.mxu0
        %8468 = vmatpush.bf16.msra.mxu0 0
        %8469 = vmatpush.bf16.msra.mxu0 0
        %8470 = vmatpush.bf16.msra.mxu0 0
        %8471 = vmatpush.bf16.msra.mxu0 %v7896
        %8472 = vmatpush.bf16.msra.mxu0 %v7864
        %8473 = vmatpush.bf16.msra.mxu0 %v7832
        %8474 = vmatpush.bf16.msra.mxu0 %v7800
        %8475 = vmatpush.bf16.msra.mxu0 %v7768
        %8476 = vmatmul.bf16.gmra.mxu0 %v8060
        %v8477 = vpop.f32.mrf.mxu0
        %v8478 = vadd.f32 0.0, %v8477
        %v8479 = vpop.f32.mrf.mxu0
        %v8480 = vadd.f32 0.0, %v8479
        %8481 = vdwg.mxu0
        %8482 = vmatpush.bf16.msra.mxu0 0
        %8483 = vmatpush.bf16.msra.mxu0 0
        %8484 = vmatpush.bf16.msra.mxu0 0
        %8485 = vmatpush.bf16.msra.mxu0 %v7897
        %8486 = vmatpush.bf16.msra.mxu0 %v7865
        %8487 = vmatpush.bf16.msra.mxu0 %v7833
        %8488 = vmatpush.bf16.msra.mxu0 %v7801
        %8489 = vmatpush.bf16.msra.mxu0 %v7769
        %8490 = vmatmul.bf16.gmra.mxu0 %v8060
        %v8491 = vpop.f32.mrf.mxu0
        %v8492 = vadd.f32 0.0, %v8491
        %v8493 = vpop.f32.mrf.mxu0
        %v8494 = vadd.f32 0.0, %v8493
        %8495 = vdwg.mxu0
        %8496 = vmatpush.bf16.msra.mxu0 0
        %8497 = vmatpush.bf16.msra.mxu0 0
        %8498 = vmatpush.bf16.msra.mxu0 0
        %8499 = vmatpush.bf16.msra.mxu0 %v7898
        %8500 = vmatpush.bf16.msra.mxu0 %v7866
        %8501 = vmatpush.bf16.msra.mxu0 %v7834
        %8502 = vmatpush.bf16.msra.mxu0 %v7802
        %8503 = vmatpush.bf16.msra.mxu0 %v7770
        %8504 = vmatmul.bf16.gmra.mxu0 %v8060
        %v8505 = vpop.f32.mrf.mxu0
        %v8506 = vadd.f32 0.0, %v8505
        %v8507 = vpop.f32.mrf.mxu0
        %v8508 = vadd.f32 0.0, %v8507
        %8509 = vdwg.mxu0
        %v8510 = vadd.f32 %v7027, %v8072
        %v8511 = vadd.f32 %v7028, %v8086
        %v8512 = vadd.f32 %v7029, %v8100
        %v8513 = vadd.f32 %v7030, %v8114
        %v8514 = vadd.f32 %v7031, %v8128
        %v8515 = vadd.f32 %v7032, %v8142
        %v8516 = vadd.f32 %v7033, %v8156
        %v8517 = vadd.f32 %v7034, %v8170
        %v8518 = vadd.f32 %v7035, %v8184
        %v8519 = vadd.f32 %v7036, %v8198
        %v8520 = vadd.f32 %v7037, %v8212
        %v8521 = vadd.f32 %v7038, %v8226
        %v8522 = vadd.f32 %v7039, %v8240
        %v8523 = vadd.f32 %v7040, %v8254
        %v8524 = vadd.f32 %v7041, %v8268
        %v8525 = vadd.f32 %v7042, %v8282
        %v8526 = vadd.f32 %v7043, %v8296
        %v8527 = vadd.f32 %v7044, %v8310
        %v8528 = vadd.f32 %v7045, %v8324
        %v8529 = vadd.f32 %v7046, %v8338
        %v8530 = vadd.f32 %v7047, %v8352
        %v8531 = vadd.f32 %v7048, %v8366
        %v8532 = vadd.f32 %v7049, %v8380
        %v8533 = vadd.f32 %v7050, %v8394
        %v8534 = vadd.f32 %v7051, %v8408
        %v8535 = vadd.f32 %v7052, %v8422
        %v8536 = vadd.f32 %v7053, %v8436
        %v8537 = vadd.f32 %v7054, %v8450
        %v8538 = vadd.f32 %v7055, %v8464
        %v8539 = vadd.f32 %v7056, %v8478
        %v8540 = vadd.f32 %v7057, %v8492
        %v8541 = vadd.f32 %v7058, %v8506
        %v8542 = vadd.f32 %v7059, %v8074
        %v8543 = vadd.f32 %v7060, %v8088
        %v8544 = vadd.f32 %v7061, %v8102
        %v8545 = vadd.f32 %v7062, %v8116
        %v8546 = vadd.f32 %v7063, %v8130
        %v8547 = vadd.f32 %v7064, %v8144
        %v8548 = vadd.f32 %v7065, %v8158
        %v8549 = vadd.f32 %v7066, %v8172
        %v8550 = vadd.f32 %v7067, %v8186
        %v8551 = vadd.f32 %v7068, %v8200
        %v8552 = vadd.f32 %v7069, %v8214
        %v8553 = vadd.f32 %v7070, %v8228
        %v8554 = vadd.f32 %v7071, %v8242
        %v8555 = vadd.f32 %v7072, %v8256
        %v8556 = vadd.f32 %v7073, %v8270
        %v8557 = vadd.f32 %v7074, %v8284
        %v8558 = vadd.f32 %v7075, %v8298
        %v8559 = vadd.f32 %v7076, %v8312
        %v8560 = vadd.f32 %v7077, %v8326
        %v8561 = vadd.f32 %v7078, %v8340
        %v8562 = vadd.f32 %v7079, %v8354
        %v8563 = vadd.f32 %v7080, %v8368
        %v8564 = vadd.f32 %v7081, %v8382
        %v8565 = vadd.f32 %v7082, %v8396
        %v8566 = vadd.f32 %v7083, %v8410
        %v8567 = vadd.f32 %v7084, %v8424
        %v8568 = vadd.f32 %v7085, %v8438
        %v8569 = vadd.f32 %v7086, %v8452
        %v8570 = vadd.f32 %v7087, %v8466
        %v8571 = vadd.f32 %v7088, %v8480
        %v8572 = vadd.f32 %v7089, %v8494
        %v8573 = vadd.f32 %v7090, %v8508
        %s8574 = scalar_lea.vmem %s3, 32
        %v8575 = vld [vmem:[%s8574] sm:$0xf]
        %v8576 = vld [vmem:[%s8574 + $0x4] sm:$0xf]
        %v8577 = vld [vmem:[#allocation2 + $0x10] sm:$0xff]
        %v8578 = vld [vmem:[#allocation2 + $0x18] sm:$0xff]
        %v8579 = vld [vmem:[#allocation2 + $0x20] sm:$0xff]
        %v8580 = vld [vmem:[#allocation2 + $0x28] sm:$0xff]
        %v8581 = vld [vmem:[#allocation2 + $0x30] sm:$0xff]
        %v8582 = vld [vmem:[#allocation2 + $0x38] sm:$0xff]
        %v8583 = vld [vmem:[#allocation2 + $0x40] sm:$0xff]
        %v8584 = vld [vmem:[#allocation2 + $0x48] sm:$0xff]
        %v8585 = vld [vmem:[#allocation2 + $0x50] sm:$0xff]
        %v8586 = vld [vmem:[#allocation2 + $0x58] sm:$0xff]
        %v8587 = vld [vmem:[#allocation2 + $0x60] sm:$0xff]
        %v8588 = vld [vmem:[#allocation2 + $0x68] sm:$0xff]
        %v8589 = vld [vmem:[#allocation2 + $0x70] sm:$0xff]
        %v8590 = vld [vmem:[#allocation2 + $0x78] sm:$0xff]
        %v8591 = vld [vmem:[#allocation2 + $0x80] sm:$0xff]
        %v8592 = vld [vmem:[#allocation2 + $0x88] sm:$0xff]
        %v8593 = vld [vmem:[#allocation2 + $0xa0] sm:$0xff]
        %v8594 = vld [vmem:[#allocation2 + $0xa8] sm:$0xff]
        %v8595 = vld [vmem:[#allocation2 + $0xb0] sm:$0xff]
        %v8596 = vld [vmem:[#allocation2 + $0xb8] sm:$0xff]
        %v8597 = vld [vmem:[#allocation2 + $0xc0] sm:$0xff]
        %v8598 = vld [vmem:[#allocation2 + $0xc8] sm:$0xff]
        %v8599 = vld [vmem:[#allocation2 + $0xd0] sm:$0xff]
        %v8600 = vld [vmem:[#allocation2 + $0xd8] sm:$0xff]
        %v8601 = vld [vmem:[#allocation2 + $0xe0] sm:$0xff]
        %v8602 = vld [vmem:[#allocation2 + $0xe8] sm:$0xff]
        %v8603 = vld [vmem:[#allocation2 + $0xf0] sm:$0xff]
        %v8604 = vld [vmem:[#allocation2 + $0xf8] sm:$0xff]
        %v8605 = vld [vmem:[#allocation2 + $0x100] sm:$0xff]
        %v8606 = vld [vmem:[#allocation2 + $0x108] sm:$0xff]
        %v8607 = vld [vmem:[#allocation2 + $0x110] sm:$0xff]
        %v8608 = vld [vmem:[#allocation2 + $0x118] sm:$0xff]
        %v8609 = vld [vmem:[#allocation2 + $0x130] sm:$0xff]
        %v8610 = vld [vmem:[#allocation2 + $0x138] sm:$0xff]
        %v8611 = vld [vmem:[#allocation2 + $0x140] sm:$0xff]
        %v8612 = vld [vmem:[#allocation2 + $0x148] sm:$0xff]
        %v8613 = vld [vmem:[#allocation2 + $0x150] sm:$0xff]
        %v8614 = vld [vmem:[#allocation2 + $0x158] sm:$0xff]
        %v8615 = vld [vmem:[#allocation2 + $0x160] sm:$0xff]
        %v8616 = vld [vmem:[#allocation2 + $0x168] sm:$0xff]
        %v8617 = vld [vmem:[#allocation2 + $0x170] sm:$0xff]
        %v8618 = vld [vmem:[#allocation2 + $0x178] sm:$0xff]
        %v8619 = vld [vmem:[#allocation2 + $0x180] sm:$0xff]
        %v8620 = vld [vmem:[#allocation2 + $0x188] sm:$0xff]
        %v8621 = vld [vmem:[#allocation2 + $0x190] sm:$0xff]
        %v8622 = vld [vmem:[#allocation2 + $0x198] sm:$0xff]
        %v8623 = vld [vmem:[#allocation2 + $0x1a0] sm:$0xff]
        %v8624 = vld [vmem:[#allocation2 + $0x1a8] sm:$0xff]
        %v8625 = vld [vmem:[#allocation2 + $0x1c0] sm:$0xff]
        %v8626 = vld [vmem:[#allocation2 + $0x1c8] sm:$0xff]
        %v8627 = vld [vmem:[#allocation2 + $0x1d0] sm:$0xff]
        %v8628 = vld [vmem:[#allocation2 + $0x1d8] sm:$0xff]
        %v8629 = vld [vmem:[#allocation2 + $0x1e0] sm:$0xff]
        %v8630 = vld [vmem:[#allocation2 + $0x1e8] sm:$0xff]
        %v8631 = vld [vmem:[#allocation2 + $0x1f0] sm:$0xff]
        %v8632 = vld [vmem:[#allocation2 + $0x1f8] sm:$0xff]
        %v8633 = vld [vmem:[#allocation2 + $0x200] sm:$0xff]
        %v8634 = vld [vmem:[#allocation2 + $0x208] sm:$0xff]
        %v8635 = vld [vmem:[#allocation2 + $0x210] sm:$0xff]
        %v8636 = vld [vmem:[#allocation2 + $0x218] sm:$0xff]
        %v8637 = vld [vmem:[#allocation2 + $0x220] sm:$0xff]
        %v8638 = vld [vmem:[#allocation2 + $0x228] sm:$0xff]
        %v8639 = vld [vmem:[#allocation2 + $0x230] sm:$0xff]
        %v8640 = vld [vmem:[#allocation2 + $0x238] sm:$0xff]
        %v8641 = vld [vmem:[#allocation2 + $0x250] sm:$0xff]
        %v8642 = vld [vmem:[#allocation2 + $0x258] sm:$0xff]
        %v8643 = vld [vmem:[#allocation2 + $0x260] sm:$0xff]
        %v8644 = vld [vmem:[#allocation2 + $0x268] sm:$0xff]
        %v8645 = vld [vmem:[#allocation2 + $0x270] sm:$0xff]
        %v8646 = vld [vmem:[#allocation2 + $0x278] sm:$0xff]
        %v8647 = vld [vmem:[#allocation2 + $0x280] sm:$0xff]
        %v8648 = vld [vmem:[#allocation2 + $0x288] sm:$0xff]
        %v8649 = vld [vmem:[#allocation2 + $0x290] sm:$0xff]
        %v8650 = vld [vmem:[#allocation2 + $0x298] sm:$0xff]
        %v8651 = vld [vmem:[#allocation2 + $0x2a0] sm:$0xff]
        %v8652 = vld [vmem:[#allocation2 + $0x2a8] sm:$0xff]
        %v8653 = vld [vmem:[#allocation2 + $0x2b0] sm:$0xff]
        %v8654 = vld [vmem:[#allocation2 + $0x2b8] sm:$0xff]
        %v8655 = vld [vmem:[#allocation2 + $0x2c0] sm:$0xff]
        %v8656 = vld [vmem:[#allocation2 + $0x2c8] sm:$0xff]
        %v8657 = vld [vmem:[#allocation2 + $0x2e0] sm:$0xff]
        %v8658 = vld [vmem:[#allocation2 + $0x2e8] sm:$0xff]
        %v8659 = vld [vmem:[#allocation2 + $0x2f0] sm:$0xff]
        %v8660 = vld [vmem:[#allocation2 + $0x2f8] sm:$0xff]
        %v8661 = vld [vmem:[#allocation2 + $0x300] sm:$0xff]
        %v8662 = vld [vmem:[#allocation2 + $0x308] sm:$0xff]
        %v8663 = vld [vmem:[#allocation2 + $0x310] sm:$0xff]
        %v8664 = vld [vmem:[#allocation2 + $0x318] sm:$0xff]
        %v8665 = vld [vmem:[#allocation2 + $0x320] sm:$0xff]
        %v8666 = vld [vmem:[#allocation2 + $0x328] sm:$0xff]
        %v8667 = vld [vmem:[#allocation2 + $0x330] sm:$0xff]
        %v8668 = vld [vmem:[#allocation2 + $0x338] sm:$0xff]
        %v8669 = vld [vmem:[#allocation2 + $0x340] sm:$0xff]
        %v8670 = vld [vmem:[#allocation2 + $0x348] sm:$0xff]
        %v8671 = vld [vmem:[#allocation2 + $0x350] sm:$0xff]
        %v8672 = vld [vmem:[#allocation2 + $0x358] sm:$0xff]
        %v8673 = vld [vmem:[#allocation2 + $0x370] sm:$0xff]
        %v8674 = vld [vmem:[#allocation2 + $0x378] sm:$0xff]
        %v8675 = vld [vmem:[#allocation2 + $0x380] sm:$0xff]
        %v8676 = vld [vmem:[#allocation2 + $0x388] sm:$0xff]
        %v8677 = vld [vmem:[#allocation2 + $0x390] sm:$0xff]
        %v8678 = vld [vmem:[#allocation2 + $0x398] sm:$0xff]
        %v8679 = vld [vmem:[#allocation2 + $0x3a0] sm:$0xff]
        %v8680 = vld [vmem:[#allocation2 + $0x3a8] sm:$0xff]
        %v8681 = vld [vmem:[#allocation2 + $0x3b0] sm:$0xff]
        %v8682 = vld [vmem:[#allocation2 + $0x3b8] sm:$0xff]
        %v8683 = vld [vmem:[#allocation2 + $0x3c0] sm:$0xff]
        %v8684 = vld [vmem:[#allocation2 + $0x3c8] sm:$0xff]
        %v8685 = vld [vmem:[#allocation2 + $0x3d0] sm:$0xff]
        %v8686 = vld [vmem:[#allocation2 + $0x3d8] sm:$0xff]
        %v8687 = vld [vmem:[#allocation2 + $0x3e0] sm:$0xff]
        %v8688 = vld [vmem:[#allocation2 + $0x3e8] sm:$0xff]
        %v8689 = vld [vmem:[#allocation2 + $0x400] sm:$0xff]
        %v8690 = vld [vmem:[#allocation2 + $0x408] sm:$0xff]
        %v8691 = vld [vmem:[#allocation2 + $0x410] sm:$0xff]
        %v8692 = vld [vmem:[#allocation2 + $0x418] sm:$0xff]
        %v8693 = vld [vmem:[#allocation2 + $0x420] sm:$0xff]
        %v8694 = vld [vmem:[#allocation2 + $0x428] sm:$0xff]
        %v8695 = vld [vmem:[#allocation2 + $0x430] sm:$0xff]
        %v8696 = vld [vmem:[#allocation2 + $0x438] sm:$0xff]
        %v8697 = vld [vmem:[#allocation2 + $0x440] sm:$0xff]
        %v8698 = vld [vmem:[#allocation2 + $0x448] sm:$0xff]
        %v8699 = vld [vmem:[#allocation2 + $0x450] sm:$0xff]
        %v8700 = vld [vmem:[#allocation2 + $0x458] sm:$0xff]
        %v8701 = vld [vmem:[#allocation2 + $0x460] sm:$0xff]
        %v8702 = vld [vmem:[#allocation2 + $0x468] sm:$0xff]
        %v8703 = vld [vmem:[#allocation2 + $0x470] sm:$0xff]
        %v8704 = vld [vmem:[#allocation2 + $0x478] sm:$0xff]
        %v8705 = vld [vmem:[#allocation2 + $0x490] sm:$0xff]
        %v8706 = vld [vmem:[#allocation2 + $0x498] sm:$0xff]
        %v8707 = vld [vmem:[#allocation2 + $0x4a0] sm:$0xff]
        %v8708 = vld [vmem:[#allocation2 + $0x4a8] sm:$0xff]
        %v8709 = vld [vmem:[#allocation2 + $0x4b0] sm:$0xff]
        %v8710 = vld [vmem:[#allocation2 + $0x4b8] sm:$0xff]
        %v8711 = vld [vmem:[#allocation2 + $0x4c0] sm:$0xff]
        %v8712 = vld [vmem:[#allocation2 + $0x4c8] sm:$0xff]
        %v8713 = vld [vmem:[#allocation2 + $0x4d0] sm:$0xff]
        %v8714 = vld [vmem:[#allocation2 + $0x4d8] sm:$0xff]
        %v8715 = vld [vmem:[#allocation2 + $0x4e0] sm:$0xff]
        %v8716 = vld [vmem:[#allocation2 + $0x4e8] sm:$0xff]
        %v8717 = vld [vmem:[#allocation2 + $0x4f0] sm:$0xff]
        %v8718 = vld [vmem:[#allocation2 + $0x4f8] sm:$0xff]
        %v8719 = vld [vmem:[#allocation2 + $0x500] sm:$0xff]
        %v8720 = vld [vmem:[#allocation2 + $0x508] sm:$0xff]
        %v8721 = vld [vmem:[#allocation2 + $0x520] sm:$0xff]
        %v8722 = vld [vmem:[#allocation2 + $0x528] sm:$0xff]
        %v8723 = vld [vmem:[#allocation2 + $0x530] sm:$0xff]
        %v8724 = vld [vmem:[#allocation2 + $0x538] sm:$0xff]
        %v8725 = vld [vmem:[#allocation2 + $0x540] sm:$0xff]
        %v8726 = vld [vmem:[#allocation2 + $0x548] sm:$0xff]
        %v8727 = vld [vmem:[#allocation2 + $0x550] sm:$0xff]
        %v8728 = vld [vmem:[#allocation2 + $0x558] sm:$0xff]
        %v8729 = vld [vmem:[#allocation2 + $0x560] sm:$0xff]
        %v8730 = vld [vmem:[#allocation2 + $0x568] sm:$0xff]
        %v8731 = vld [vmem:[#allocation2 + $0x570] sm:$0xff]
        %v8732 = vld [vmem:[#allocation2 + $0x578] sm:$0xff]
        %v8733 = vld [vmem:[#allocation2 + $0x580] sm:$0xff]
        %v8734 = vld [vmem:[#allocation2 + $0x588] sm:$0xff]
        %v8735 = vld [vmem:[#allocation2 + $0x590] sm:$0xff]
        %v8736 = vld [vmem:[#allocation2 + $0x598] sm:$0xff]
        %v8739 = vunpack.c.l.b16 %v8575
        %v8740 = vunpack.c.l.b16 %v8576
        %v8741 = vpack.c.b16 %v8740, %v8739
        %v8902 = vunpack.c.l.b16 %v8577
        %v8903 = vunpack.c.h.b16 %v8577
        %v8904 = vunpack.c.l.b16 %v8578
        %v8905 = vunpack.c.h.b16 %v8578
        %v8906 = vunpack.c.l.b16 %v8579
        %v8907 = vunpack.c.h.b16 %v8579
        %v8908 = vunpack.c.l.b16 %v8580
        %v8909 = vunpack.c.h.b16 %v8580
        %v8910 = vunpack.c.l.b16 %v8581
        %v8911 = vunpack.c.h.b16 %v8581
        %v8912 = vunpack.c.l.b16 %v8582
        %v8913 = vunpack.c.h.b16 %v8582
        %v8914 = vunpack.c.l.b16 %v8583
        %v8915 = vunpack.c.h.b16 %v8583
        %v8916 = vunpack.c.l.b16 %v8584
        %v8917 = vunpack.c.h.b16 %v8584
        %v8918 = vunpack.c.l.b16 %v8585
        %v8919 = vunpack.c.h.b16 %v8585
        %v8920 = vunpack.c.l.b16 %v8586
        %v8921 = vunpack.c.h.b16 %v8586
        %v8922 = vunpack.c.l.b16 %v8587
        %v8923 = vunpack.c.h.b16 %v8587
        %v8924 = vunpack.c.l.b16 %v8588
        %v8925 = vunpack.c.h.b16 %v8588
        %v8926 = vunpack.c.l.b16 %v8589
        %v8927 = vunpack.c.h.b16 %v8589
        %v8928 = vunpack.c.l.b16 %v8590
        %v8929 = vunpack.c.h.b16 %v8590
        %v8930 = vunpack.c.l.b16 %v8591
        %v8931 = vunpack.c.h.b16 %v8591
        %v8932 = vunpack.c.l.b16 %v8592
        %v8933 = vunpack.c.h.b16 %v8592
        %v8934 = vunpack.c.l.b16 %v8593
        %v8935 = vunpack.c.h.b16 %v8593
        %v8936 = vunpack.c.l.b16 %v8594
        %v8937 = vunpack.c.h.b16 %v8594
        %v8938 = vunpack.c.l.b16 %v8595
        %v8939 = vunpack.c.h.b16 %v8595
        %v8940 = vunpack.c.l.b16 %v8596
        %v8941 = vunpack.c.h.b16 %v8596
        %v8942 = vunpack.c.l.b16 %v8597
        %v8943 = vunpack.c.h.b16 %v8597
        %v8944 = vunpack.c.l.b16 %v8598
        %v8945 = vunpack.c.h.b16 %v8598
        %v8946 = vunpack.c.l.b16 %v8599
        %v8947 = vunpack.c.h.b16 %v8599
        %v8948 = vunpack.c.l.b16 %v8600
        %v8949 = vunpack.c.h.b16 %v8600
        %v8950 = vunpack.c.l.b16 %v8601
        %v8951 = vunpack.c.h.b16 %v8601
        %v8952 = vunpack.c.l.b16 %v8602
        %v8953 = vunpack.c.h.b16 %v8602
        %v8954 = vunpack.c.l.b16 %v8603
        %v8955 = vunpack.c.h.b16 %v8603
        %v8956 = vunpack.c.l.b16 %v8604
        %v8957 = vunpack.c.h.b16 %v8604
        %v8958 = vunpack.c.l.b16 %v8605
        %v8959 = vunpack.c.h.b16 %v8605
        %v8960 = vunpack.c.l.b16 %v8606
        %v8961 = vunpack.c.h.b16 %v8606
        %v8962 = vunpack.c.l.b16 %v8607
        %v8963 = vunpack.c.h.b16 %v8607
        %v8964 = vunpack.c.l.b16 %v8608
        %v8965 = vunpack.c.h.b16 %v8608
        %v8966 = vunpack.c.l.b16 %v8609
        %v8967 = vunpack.c.h.b16 %v8609
        %v8968 = vunpack.c.l.b16 %v8610
        %v8969 = vunpack.c.h.b16 %v8610
        %v8970 = vunpack.c.l.b16 %v8611
        %v8971 = vunpack.c.h.b16 %v8611
        %v8972 = vunpack.c.l.b16 %v8612
        %v8973 = vunpack.c.h.b16 %v8612
        %v8974 = vunpack.c.l.b16 %v8613
        %v8975 = vunpack.c.h.b16 %v8613
        %v8976 = vunpack.c.l.b16 %v8614
        %v8977 = vunpack.c.h.b16 %v8614
        %v8978 = vunpack.c.l.b16 %v8615
        %v8979 = vunpack.c.h.b16 %v8615
        %v8980 = vunpack.c.l.b16 %v8616
        %v8981 = vunpack.c.h.b16 %v8616
        %v8982 = vunpack.c.l.b16 %v8617
        %v8983 = vunpack.c.h.b16 %v8617
        %v8984 = vunpack.c.l.b16 %v8618
        %v8985 = vunpack.c.h.b16 %v8618
        %v8986 = vunpack.c.l.b16 %v8619
        %v8987 = vunpack.c.h.b16 %v8619
        %v8988 = vunpack.c.l.b16 %v8620
        %v8989 = vunpack.c.h.b16 %v8620
        %v8990 = vunpack.c.l.b16 %v8621
        %v8991 = vunpack.c.h.b16 %v8621
        %v8992 = vunpack.c.l.b16 %v8622
        %v8993 = vunpack.c.h.b16 %v8622
        %v8994 = vunpack.c.l.b16 %v8623
        %v8995 = vunpack.c.h.b16 %v8623
        %v8996 = vunpack.c.l.b16 %v8624
        %v8997 = vunpack.c.h.b16 %v8624
        %v8998 = vunpack.c.l.b16 %v8625
        %v8999 = vunpack.c.h.b16 %v8625
        %v9000 = vunpack.c.l.b16 %v8626
        %v9001 = vunpack.c.h.b16 %v8626
        %v9002 = vunpack.c.l.b16 %v8627
        %v9003 = vunpack.c.h.b16 %v8627
        %v9004 = vunpack.c.l.b16 %v8628
        %v9005 = vunpack.c.h.b16 %v8628
        %v9006 = vunpack.c.l.b16 %v8629
        %v9007 = vunpack.c.h.b16 %v8629
        %v9008 = vunpack.c.l.b16 %v8630
        %v9009 = vunpack.c.h.b16 %v8630
        %v9010 = vunpack.c.l.b16 %v8631
        %v9011 = vunpack.c.h.b16 %v8631
        %v9012 = vunpack.c.l.b16 %v8632
        %v9013 = vunpack.c.h.b16 %v8632
        %v9014 = vunpack.c.l.b16 %v8633
        %v9015 = vunpack.c.h.b16 %v8633
        %v9016 = vunpack.c.l.b16 %v8634
        %v9017 = vunpack.c.h.b16 %v8634
        %v9018 = vunpack.c.l.b16 %v8635
        %v9019 = vunpack.c.h.b16 %v8635
        %v9020 = vunpack.c.l.b16 %v8636
        %v9021 = vunpack.c.h.b16 %v8636
        %v9022 = vunpack.c.l.b16 %v8637
        %v9023 = vunpack.c.h.b16 %v8637
        %v9024 = vunpack.c.l.b16 %v8638
        %v9025 = vunpack.c.h.b16 %v8638
        %v9026 = vunpack.c.l.b16 %v8639
        %v9027 = vunpack.c.h.b16 %v8639
        %v9028 = vunpack.c.l.b16 %v8640
        %v9029 = vunpack.c.h.b16 %v8640
        %v9030 = vunpack.c.l.b16 %v8641
        %v9031 = vunpack.c.h.b16 %v8641
        %v9032 = vunpack.c.l.b16 %v8642
        %v9033 = vunpack.c.h.b16 %v8642
        %v9034 = vunpack.c.l.b16 %v8643
        %v9035 = vunpack.c.h.b16 %v8643
        %v9036 = vunpack.c.l.b16 %v8644
        %v9037 = vunpack.c.h.b16 %v8644
        %v9038 = vunpack.c.l.b16 %v8645
        %v9039 = vunpack.c.h.b16 %v8645
        %v9040 = vunpack.c.l.b16 %v8646
        %v9041 = vunpack.c.h.b16 %v8646
        %v9042 = vunpack.c.l.b16 %v8647
        %v9043 = vunpack.c.h.b16 %v8647
        %v9044 = vunpack.c.l.b16 %v8648
        %v9045 = vunpack.c.h.b16 %v8648
        %v9046 = vunpack.c.l.b16 %v8649
        %v9047 = vunpack.c.h.b16 %v8649
        %v9048 = vunpack.c.l.b16 %v8650
        %v9049 = vunpack.c.h.b16 %v8650
        %v9050 = vunpack.c.l.b16 %v8651
        %v9051 = vunpack.c.h.b16 %v8651
        %v9052 = vunpack.c.l.b16 %v8652
        %v9053 = vunpack.c.h.b16 %v8652
        %v9054 = vunpack.c.l.b16 %v8653
        %v9055 = vunpack.c.h.b16 %v8653
        %v9056 = vunpack.c.l.b16 %v8654
        %v9057 = vunpack.c.h.b16 %v8654
        %v9058 = vunpack.c.l.b16 %v8655
        %v9059 = vunpack.c.h.b16 %v8655
        %v9060 = vunpack.c.l.b16 %v8656
        %v9061 = vunpack.c.h.b16 %v8656
        %v9062 = vunpack.c.l.b16 %v8657
        %v9063 = vunpack.c.h.b16 %v8657
        %v9064 = vunpack.c.l.b16 %v8658
        %v9065 = vunpack.c.h.b16 %v8658
        %v9066 = vunpack.c.l.b16 %v8659
        %v9067 = vunpack.c.h.b16 %v8659
        %v9068 = vunpack.c.l.b16 %v8660
        %v9069 = vunpack.c.h.b16 %v8660
        %v9070 = vunpack.c.l.b16 %v8661
        %v9071 = vunpack.c.h.b16 %v8661
        %v9072 = vunpack.c.l.b16 %v8662
        %v9073 = vunpack.c.h.b16 %v8662
        %v9074 = vunpack.c.l.b16 %v8663
        %v9075 = vunpack.c.h.b16 %v8663
        %v9076 = vunpack.c.l.b16 %v8664
        %v9077 = vunpack.c.h.b16 %v8664
        %v9078 = vunpack.c.l.b16 %v8665
        %v9079 = vunpack.c.h.b16 %v8665
        %v9080 = vunpack.c.l.b16 %v8666
        %v9081 = vunpack.c.h.b16 %v8666
        %v9082 = vunpack.c.l.b16 %v8667
        %v9083 = vunpack.c.h.b16 %v8667
        %v9084 = vunpack.c.l.b16 %v8668
        %v9085 = vunpack.c.h.b16 %v8668
        %v9086 = vunpack.c.l.b16 %v8669
        %v9087 = vunpack.c.h.b16 %v8669
        %v9088 = vunpack.c.l.b16 %v8670
        %v9089 = vunpack.c.h.b16 %v8670
        %v9090 = vunpack.c.l.b16 %v8671
        %v9091 = vunpack.c.h.b16 %v8671
        %v9092 = vunpack.c.l.b16 %v8672
        %v9093 = vunpack.c.h.b16 %v8672
        %v9094 = vunpack.c.l.b16 %v8673
        %v9095 = vunpack.c.h.b16 %v8673
        %v9096 = vunpack.c.l.b16 %v8674
        %v9097 = vunpack.c.h.b16 %v8674
        %v9098 = vunpack.c.l.b16 %v8675
        %v9099 = vunpack.c.h.b16 %v8675
        %v9100 = vunpack.c.l.b16 %v8676
        %v9101 = vunpack.c.h.b16 %v8676
        %v9102 = vunpack.c.l.b16 %v8677
        %v9103 = vunpack.c.h.b16 %v8677
        %v9104 = vunpack.c.l.b16 %v8678
        %v9105 = vunpack.c.h.b16 %v8678
        %v9106 = vunpack.c.l.b16 %v8679
        %v9107 = vunpack.c.h.b16 %v8679
        %v9108 = vunpack.c.l.b16 %v8680
        %v9109 = vunpack.c.h.b16 %v8680
        %v9110 = vunpack.c.l.b16 %v8681
        %v9111 = vunpack.c.h.b16 %v8681
        %v9112 = vunpack.c.l.b16 %v8682
        %v9113 = vunpack.c.h.b16 %v8682
        %v9114 = vunpack.c.l.b16 %v8683
        %v9115 = vunpack.c.h.b16 %v8683
        %v9116 = vunpack.c.l.b16 %v8684
        %v9117 = vunpack.c.h.b16 %v8684
        %v9118 = vunpack.c.l.b16 %v8685
        %v9119 = vunpack.c.h.b16 %v8685
        %v9120 = vunpack.c.l.b16 %v8686
        %v9121 = vunpack.c.h.b16 %v8686
        %v9122 = vunpack.c.l.b16 %v8687
        %v9123 = vunpack.c.h.b16 %v8687
        %v9124 = vunpack.c.l.b16 %v8688
        %v9125 = vunpack.c.h.b16 %v8688
        %v9126 = vunpack.c.l.b16 %v8689
        %v9127 = vunpack.c.h.b16 %v8689
        %v9128 = vunpack.c.l.b16 %v8690
        %v9129 = vunpack.c.h.b16 %v8690
        %v9130 = vunpack.c.l.b16 %v8691
        %v9131 = vunpack.c.h.b16 %v8691
        %v9132 = vunpack.c.l.b16 %v8692
        %v9133 = vunpack.c.h.b16 %v8692
        %v9134 = vunpack.c.l.b16 %v8693
        %v9135 = vunpack.c.h.b16 %v8693
        %v9136 = vunpack.c.l.b16 %v8694
        %v9137 = vunpack.c.h.b16 %v8694
        %v9138 = vunpack.c.l.b16 %v8695
        %v9139 = vunpack.c.h.b16 %v8695
        %v9140 = vunpack.c.l.b16 %v8696
        %v9141 = vunpack.c.h.b16 %v8696
        %v9142 = vunpack.c.l.b16 %v8697
        %v9143 = vunpack.c.h.b16 %v8697
        %v9144 = vunpack.c.l.b16 %v8698
        %v9145 = vunpack.c.h.b16 %v8698
        %v9146 = vunpack.c.l.b16 %v8699
        %v9147 = vunpack.c.h.b16 %v8699
        %v9148 = vunpack.c.l.b16 %v8700
        %v9149 = vunpack.c.h.b16 %v8700
        %v9150 = vunpack.c.l.b16 %v8701
        %v9151 = vunpack.c.h.b16 %v8701
        %v9152 = vunpack.c.l.b16 %v8702
        %v9153 = vunpack.c.h.b16 %v8702
        %v9154 = vunpack.c.l.b16 %v8703
        %v9155 = vunpack.c.h.b16 %v8703
        %v9156 = vunpack.c.l.b16 %v8704
        %v9157 = vunpack.c.h.b16 %v8704
        %v9158 = vunpack.c.l.b16 %v8705
        %v9159 = vunpack.c.h.b16 %v8705
        %v9160 = vunpack.c.l.b16 %v8706
        %v9161 = vunpack.c.h.b16 %v8706
        %v9162 = vunpack.c.l.b16 %v8707
        %v9163 = vunpack.c.h.b16 %v8707
        %v9164 = vunpack.c.l.b16 %v8708
        %v9165 = vunpack.c.h.b16 %v8708
        %v9166 = vunpack.c.l.b16 %v8709
        %v9167 = vunpack.c.h.b16 %v8709
        %v9168 = vunpack.c.l.b16 %v8710
        %v9169 = vunpack.c.h.b16 %v8710
        %v9170 = vunpack.c.l.b16 %v8711
        %v9171 = vunpack.c.h.b16 %v8711
        %v9172 = vunpack.c.l.b16 %v8712
        %v9173 = vunpack.c.h.b16 %v8712
        %v9174 = vunpack.c.l.b16 %v8713
        %v9175 = vunpack.c.h.b16 %v8713
        %v9176 = vunpack.c.l.b16 %v8714
        %v9177 = vunpack.c.h.b16 %v8714
        %v9178 = vunpack.c.l.b16 %v8715
        %v9179 = vunpack.c.h.b16 %v8715
        %v9180 = vunpack.c.l.b16 %v8716
        %v9181 = vunpack.c.h.b16 %v8716
        %v9182 = vunpack.c.l.b16 %v8717
        %v9183 = vunpack.c.h.b16 %v8717
        %v9184 = vunpack.c.l.b16 %v8718
        %v9185 = vunpack.c.h.b16 %v8718
        %v9186 = vunpack.c.l.b16 %v8719
        %v9187 = vunpack.c.h.b16 %v8719
        %v9188 = vunpack.c.l.b16 %v8720
        %v9189 = vunpack.c.h.b16 %v8720
        %v9190 = vunpack.c.l.b16 %v8721
        %v9191 = vunpack.c.h.b16 %v8721
        %v9192 = vunpack.c.l.b16 %v8722
        %v9193 = vunpack.c.h.b16 %v8722
        %v9194 = vunpack.c.l.b16 %v8723
        %v9195 = vunpack.c.h.b16 %v8723
        %v9196 = vunpack.c.l.b16 %v8724
        %v9197 = vunpack.c.h.b16 %v8724
        %v9198 = vunpack.c.l.b16 %v8725
        %v9199 = vunpack.c.h.b16 %v8725
        %v9200 = vunpack.c.l.b16 %v8726
        %v9201 = vunpack.c.h.b16 %v8726
        %v9202 = vunpack.c.l.b16 %v8727
        %v9203 = vunpack.c.h.b16 %v8727
        %v9204 = vunpack.c.l.b16 %v8728
        %v9205 = vunpack.c.h.b16 %v8728
        %v9206 = vunpack.c.l.b16 %v8729
        %v9207 = vunpack.c.h.b16 %v8729
        %v9208 = vunpack.c.l.b16 %v8730
        %v9209 = vunpack.c.h.b16 %v8730
        %v9210 = vunpack.c.l.b16 %v8731
        %v9211 = vunpack.c.h.b16 %v8731
        %v9212 = vunpack.c.l.b16 %v8732
        %v9213 = vunpack.c.h.b16 %v8732
        %v9214 = vunpack.c.l.b16 %v8733
        %v9215 = vunpack.c.h.b16 %v8733
        %v9216 = vunpack.c.l.b16 %v8734
        %v9217 = vunpack.c.h.b16 %v8734
        %v9218 = vunpack.c.l.b16 %v8735
        %v9219 = vunpack.c.h.b16 %v8735
        %v9220 = vunpack.c.l.b16 %v8736
        %v9221 = vunpack.c.h.b16 %v8736
        %v9222 = vpack.c.b16 %v8934, %v8902
        %v9223 = vpack.c.b16 %v8935, %v8903
        %v9224 = vpack.c.b16 %v8936, %v8904
        %v9225 = vpack.c.b16 %v8937, %v8905
        %v9226 = vpack.c.b16 %v8938, %v8906
        %v9227 = vpack.c.b16 %v8939, %v8907
        %v9228 = vpack.c.b16 %v8940, %v8908
        %v9229 = vpack.c.b16 %v8941, %v8909
        %v9230 = vpack.c.b16 %v8942, %v8910
        %v9231 = vpack.c.b16 %v8943, %v8911
        %v9232 = vpack.c.b16 %v8944, %v8912
        %v9233 = vpack.c.b16 %v8945, %v8913
        %v9234 = vpack.c.b16 %v8946, %v8914
        %v9235 = vpack.c.b16 %v8947, %v8915
        %v9236 = vpack.c.b16 %v8948, %v8916
        %v9237 = vpack.c.b16 %v8949, %v8917
        %v9238 = vpack.c.b16 %v8950, %v8918
        %v9239 = vpack.c.b16 %v8951, %v8919
        %v9240 = vpack.c.b16 %v8952, %v8920
        %v9241 = vpack.c.b16 %v8953, %v8921
        %v9242 = vpack.c.b16 %v8954, %v8922
        %v9243 = vpack.c.b16 %v8955, %v8923
        %v9244 = vpack.c.b16 %v8956, %v8924
        %v9245 = vpack.c.b16 %v8957, %v8925
        %v9246 = vpack.c.b16 %v8958, %v8926
        %v9247 = vpack.c.b16 %v8959, %v8927
        %v9248 = vpack.c.b16 %v8960, %v8928
        %v9249 = vpack.c.b16 %v8961, %v8929
        %v9250 = vpack.c.b16 %v8962, %v8930
        %v9251 = vpack.c.b16 %v8963, %v8931
        %v9252 = vpack.c.b16 %v8964, %v8932
        %v9253 = vpack.c.b16 %v8965, %v8933
        %v9254 = vpack.c.b16 %v8998, %v8966
        %v9255 = vpack.c.b16 %v8999, %v8967
        %v9256 = vpack.c.b16 %v9000, %v8968
        %v9257 = vpack.c.b16 %v9001, %v8969
        %v9258 = vpack.c.b16 %v9002, %v8970
        %v9259 = vpack.c.b16 %v9003, %v8971
        %v9260 = vpack.c.b16 %v9004, %v8972
        %v9261 = vpack.c.b16 %v9005, %v8973
        %v9262 = vpack.c.b16 %v9006, %v8974
        %v9263 = vpack.c.b16 %v9007, %v8975
        %v9264 = vpack.c.b16 %v9008, %v8976
        %v9265 = vpack.c.b16 %v9009, %v8977
        %v9266 = vpack.c.b16 %v9010, %v8978
        %v9267 = vpack.c.b16 %v9011, %v8979
        %v9268 = vpack.c.b16 %v9012, %v8980
        %v9269 = vpack.c.b16 %v9013, %v8981
        %v9270 = vpack.c.b16 %v9014, %v8982
        %v9271 = vpack.c.b16 %v9015, %v8983
        %v9272 = vpack.c.b16 %v9016, %v8984
        %v9273 = vpack.c.b16 %v9017, %v8985
        %v9274 = vpack.c.b16 %v9018, %v8986
        %v9275 = vpack.c.b16 %v9019, %v8987
        %v9276 = vpack.c.b16 %v9020, %v8988
        %v9277 = vpack.c.b16 %v9021, %v8989
        %v9278 = vpack.c.b16 %v9022, %v8990
        %v9279 = vpack.c.b16 %v9023, %v8991
        %v9280 = vpack.c.b16 %v9024, %v8992
        %v9281 = vpack.c.b16 %v9025, %v8993
        %v9282 = vpack.c.b16 %v9026, %v8994
        %v9283 = vpack.c.b16 %v9027, %v8995
        %v9284 = vpack.c.b16 %v9028, %v8996
        %v9285 = vpack.c.b16 %v9029, %v8997
        %v9286 = vpack.c.b16 %v9062, %v9030
        %v9287 = vpack.c.b16 %v9063, %v9031
        %v9288 = vpack.c.b16 %v9064, %v9032
        %v9289 = vpack.c.b16 %v9065, %v9033
        %v9290 = vpack.c.b16 %v9066, %v9034
        %v9291 = vpack.c.b16 %v9067, %v9035
        %v9292 = vpack.c.b16 %v9068, %v9036
        %v9293 = vpack.c.b16 %v9069, %v9037
        %v9294 = vpack.c.b16 %v9070, %v9038
        %v9295 = vpack.c.b16 %v9071, %v9039
        %v9296 = vpack.c.b16 %v9072, %v9040
        %v9297 = vpack.c.b16 %v9073, %v9041
        %v9298 = vpack.c.b16 %v9074, %v9042
        %v9299 = vpack.c.b16 %v9075, %v9043
        %v9300 = vpack.c.b16 %v9076, %v9044
        %v9301 = vpack.c.b16 %v9077, %v9045
        %v9302 = vpack.c.b16 %v9078, %v9046
        %v9303 = vpack.c.b16 %v9079, %v9047
        %v9304 = vpack.c.b16 %v9080, %v9048
        %v9305 = vpack.c.b16 %v9081, %v9049
        %v9306 = vpack.c.b16 %v9082, %v9050
        %v9307 = vpack.c.b16 %v9083, %v9051
        %v9308 = vpack.c.b16 %v9084, %v9052
        %v9309 = vpack.c.b16 %v9085, %v9053
        %v9310 = vpack.c.b16 %v9086, %v9054
        %v9311 = vpack.c.b16 %v9087, %v9055
        %v9312 = vpack.c.b16 %v9088, %v9056
        %v9313 = vpack.c.b16 %v9089, %v9057
        %v9314 = vpack.c.b16 %v9090, %v9058
        %v9315 = vpack.c.b16 %v9091, %v9059
        %v9316 = vpack.c.b16 %v9092, %v9060
        %v9317 = vpack.c.b16 %v9093, %v9061
        %v9318 = vpack.c.b16 %v9126, %v9094
        %v9319 = vpack.c.b16 %v9127, %v9095
        %v9320 = vpack.c.b16 %v9128, %v9096
        %v9321 = vpack.c.b16 %v9129, %v9097
        %v9322 = vpack.c.b16 %v9130, %v9098
        %v9323 = vpack.c.b16 %v9131, %v9099
        %v9324 = vpack.c.b16 %v9132, %v9100
        %v9325 = vpack.c.b16 %v9133, %v9101
        %v9326 = vpack.c.b16 %v9134, %v9102
        %v9327 = vpack.c.b16 %v9135, %v9103
        %v9328 = vpack.c.b16 %v9136, %v9104
        %v9329 = vpack.c.b16 %v9137, %v9105
        %v9330 = vpack.c.b16 %v9138, %v9106
        %v9331 = vpack.c.b16 %v9139, %v9107
        %v9332 = vpack.c.b16 %v9140, %v9108
        %v9333 = vpack.c.b16 %v9141, %v9109
        %v9334 = vpack.c.b16 %v9142, %v9110
        %v9335 = vpack.c.b16 %v9143, %v9111
        %v9336 = vpack.c.b16 %v9144, %v9112
        %v9337 = vpack.c.b16 %v9145, %v9113
        %v9338 = vpack.c.b16 %v9146, %v9114
        %v9339 = vpack.c.b16 %v9147, %v9115
        %v9340 = vpack.c.b16 %v9148, %v9116
        %v9341 = vpack.c.b16 %v9149, %v9117
        %v9342 = vpack.c.b16 %v9150, %v9118
        %v9343 = vpack.c.b16 %v9151, %v9119
        %v9344 = vpack.c.b16 %v9152, %v9120
        %v9345 = vpack.c.b16 %v9153, %v9121
        %v9346 = vpack.c.b16 %v9154, %v9122
        %v9347 = vpack.c.b16 %v9155, %v9123
        %v9348 = vpack.c.b16 %v9156, %v9124
        %v9349 = vpack.c.b16 %v9157, %v9125
        %v9350 = vpack.c.b16 %v9190, %v9158
        %v9351 = vpack.c.b16 %v9191, %v9159
        %v9352 = vpack.c.b16 %v9192, %v9160
        %v9353 = vpack.c.b16 %v9193, %v9161
        %v9354 = vpack.c.b16 %v9194, %v9162
        %v9355 = vpack.c.b16 %v9195, %v9163
        %v9356 = vpack.c.b16 %v9196, %v9164
        %v9357 = vpack.c.b16 %v9197, %v9165
        %v9358 = vpack.c.b16 %v9198, %v9166
        %v9359 = vpack.c.b16 %v9199, %v9167
        %v9360 = vpack.c.b16 %v9200, %v9168
        %v9361 = vpack.c.b16 %v9201, %v9169
        %v9362 = vpack.c.b16 %v9202, %v9170
        %v9363 = vpack.c.b16 %v9203, %v9171
        %v9364 = vpack.c.b16 %v9204, %v9172
        %v9365 = vpack.c.b16 %v9205, %v9173
        %v9366 = vpack.c.b16 %v9206, %v9174
        %v9367 = vpack.c.b16 %v9207, %v9175
        %v9368 = vpack.c.b16 %v9208, %v9176
        %v9369 = vpack.c.b16 %v9209, %v9177
        %v9370 = vpack.c.b16 %v9210, %v9178
        %v9371 = vpack.c.b16 %v9211, %v9179
        %v9372 = vpack.c.b16 %v9212, %v9180
        %v9373 = vpack.c.b16 %v9213, %v9181
        %v9374 = vpack.c.b16 %v9214, %v9182
        %v9375 = vpack.c.b16 %v9215, %v9183
        %v9376 = vpack.c.b16 %v9216, %v9184
        %v9377 = vpack.c.b16 %v9217, %v9185
        %v9378 = vpack.c.b16 %v9218, %v9186
        %v9379 = vpack.c.b16 %v9219, %v9187
        %v9380 = vpack.c.b16 %v9220, %v9188
        %v9381 = vpack.c.b16 %v9221, %v9189
        %v9543 = vsel %vm3900, %v8741, 0
        %9545 = vmatpush.bf16.msra.mxu0 0
        %9546 = vmatpush.bf16.msra.mxu0 0
        %9547 = vmatpush.bf16.msra.mxu0 0
        %9548 = vmatpush.bf16.msra.mxu0 %v9350
        %9549 = vmatpush.bf16.msra.mxu0 %v9318
        %9550 = vmatpush.bf16.msra.mxu0 %v9286
        %9551 = vmatpush.bf16.msra.mxu0 %v9254
        %9552 = vmatpush.bf16.msra.mxu0 %v9222
        %9553 = vmatmul.bf16.gmra.mxu0 %v9543
        %v9554 = vpop.f32.mrf.mxu0
        %v9555 = vadd.f32 0.0, %v9554
        %v9556 = vpop.f32.mrf.mxu0
        %v9557 = vadd.f32 0.0, %v9556
        %9558 = vdwg.mxu0
        %9559 = vmatpush.bf16.msra.mxu0 0
        %9560 = vmatpush.bf16.msra.mxu0 0
        %9561 = vmatpush.bf16.msra.mxu0 0
        %9562 = vmatpush.bf16.msra.mxu0 %v9351
        %9563 = vmatpush.bf16.msra.mxu0 %v9319
        %9564 = vmatpush.bf16.msra.mxu0 %v9287
        %9565 = vmatpush.bf16.msra.mxu0 %v9255
        %9566 = vmatpush.bf16.msra.mxu0 %v9223
        %9567 = vmatmul.bf16.gmra.mxu0 %v9543
        %v9568 = vpop.f32.mrf.mxu0
        %v9569 = vadd.f32 0.0, %v9568
        %v9570 = vpop.f32.mrf.mxu0
        %v9571 = vadd.f32 0.0, %v9570
        %9572 = vdwg.mxu0
        %9573 = vmatpush.bf16.msra.mxu0 0
        %9574 = vmatpush.bf16.msra.mxu0 0
        %9575 = vmatpush.bf16.msra.mxu0 0
        %9576 = vmatpush.bf16.msra.mxu0 %v9352
        %9577 = vmatpush.bf16.msra.mxu0 %v9320
        %9578 = vmatpush.bf16.msra.mxu0 %v9288
        %9579 = vmatpush.bf16.msra.mxu0 %v9256
        %9580 = vmatpush.bf16.msra.mxu0 %v9224
        %9581 = vmatmul.bf16.gmra.mxu0 %v9543
        %v9582 = vpop.f32.mrf.mxu0
        %v9583 = vadd.f32 0.0, %v9582
        %v9584 = vpop.f32.mrf.mxu0
        %v9585 = vadd.f32 0.0, %v9584
        %9586 = vdwg.mxu0
        %9587 = vmatpush.bf16.msra.mxu0 0
        %9588 = vmatpush.bf16.msra.mxu0 0
        %9589 = vmatpush.bf16.msra.mxu0 0
        %9590 = vmatpush.bf16.msra.mxu0 %v9353
        %9591 = vmatpush.bf16.msra.mxu0 %v9321
        %9592 = vmatpush.bf16.msra.mxu0 %v9289
        %9593 = vmatpush.bf16.msra.mxu0 %v9257
        %9594 = vmatpush.bf16.msra.mxu0 %v9225
        %9595 = vmatmul.bf16.gmra.mxu0 %v9543
        %v9596 = vpop.f32.mrf.mxu0
        %v9597 = vadd.f32 0.0, %v9596
        %v9598 = vpop.f32.mrf.mxu0
        %v9599 = vadd.f32 0.0, %v9598
        %9600 = vdwg.mxu0
        %9601 = vmatpush.bf16.msra.mxu0 0
        %9602 = vmatpush.bf16.msra.mxu0 0
        %9603 = vmatpush.bf16.msra.mxu0 0
        %9604 = vmatpush.bf16.msra.mxu0 %v9354
        %9605 = vmatpush.bf16.msra.mxu0 %v9322
        %9606 = vmatpush.bf16.msra.mxu0 %v9290
        %9607 = vmatpush.bf16.msra.mxu0 %v9258
        %9608 = vmatpush.bf16.msra.mxu0 %v9226
        %9609 = vmatmul.bf16.gmra.mxu0 %v9543
        %v9610 = vpop.f32.mrf.mxu0
        %v9611 = vadd.f32 0.0, %v9610
        %v9612 = vpop.f32.mrf.mxu0
        %v9613 = vadd.f32 0.0, %v9612
        %9614 = vdwg.mxu0
        %9615 = vmatpush.bf16.msra.mxu0 0
        %9616 = vmatpush.bf16.msra.mxu0 0
        %9617 = vmatpush.bf16.msra.mxu0 0
        %9618 = vmatpush.bf16.msra.mxu0 %v9355
        %9619 = vmatpush.bf16.msra.mxu0 %v9323
        %9620 = vmatpush.bf16.msra.mxu0 %v9291
        %9621 = vmatpush.bf16.msra.mxu0 %v9259
        %9622 = vmatpush.bf16.msra.mxu0 %v9227
        %9623 = vmatmul.bf16.gmra.mxu0 %v9543
        %v9624 = vpop.f32.mrf.mxu0
        %v9625 = vadd.f32 0.0, %v9624
        %v9626 = vpop.f32.mrf.mxu0
        %v9627 = vadd.f32 0.0, %v9626
        %9628 = vdwg.mxu0
        %9629 = vmatpush.bf16.msra.mxu0 0
        %9630 = vmatpush.bf16.msra.mxu0 0
        %9631 = vmatpush.bf16.msra.mxu0 0
        %9632 = vmatpush.bf16.msra.mxu0 %v9356
        %9633 = vmatpush.bf16.msra.mxu0 %v9324
        %9634 = vmatpush.bf16.msra.mxu0 %v9292
        %9635 = vmatpush.bf16.msra.mxu0 %v9260
        %9636 = vmatpush.bf16.msra.mxu0 %v9228
        %9637 = vmatmul.bf16.gmra.mxu0 %v9543
        %v9638 = vpop.f32.mrf.mxu0
        %v9639 = vadd.f32 0.0, %v9638
        %v9640 = vpop.f32.mrf.mxu0
        %v9641 = vadd.f32 0.0, %v9640
        %9642 = vdwg.mxu0
        %9643 = vmatpush.bf16.msra.mxu0 0
        %9644 = vmatpush.bf16.msra.mxu0 0
        %9645 = vmatpush.bf16.msra.mxu0 0
        %9646 = vmatpush.bf16.msra.mxu0 %v9357
        %9647 = vmatpush.bf16.msra.mxu0 %v9325
        %9648 = vmatpush.bf16.msra.mxu0 %v9293
        %9649 = vmatpush.bf16.msra.mxu0 %v9261
        %9650 = vmatpush.bf16.msra.mxu0 %v9229
        %9651 = vmatmul.bf16.gmra.mxu0 %v9543
        %v9652 = vpop.f32.mrf.mxu0
        %v9653 = vadd.f32 0.0, %v9652
        %v9654 = vpop.f32.mrf.mxu0
        %v9655 = vadd.f32 0.0, %v9654
        %9656 = vdwg.mxu0
        %9657 = vmatpush.bf16.msra.mxu0 0
        %9658 = vmatpush.bf16.msra.mxu0 0
        %9659 = vmatpush.bf16.msra.mxu0 0
        %9660 = vmatpush.bf16.msra.mxu0 %v9358
        %9661 = vmatpush.bf16.msra.mxu0 %v9326
        %9662 = vmatpush.bf16.msra.mxu0 %v9294
        %9663 = vmatpush.bf16.msra.mxu0 %v9262
        %9664 = vmatpush.bf16.msra.mxu0 %v9230
        %9665 = vmatmul.bf16.gmra.mxu0 %v9543
        %v9666 = vpop.f32.mrf.mxu0
        %v9667 = vadd.f32 0.0, %v9666
        %v9668 = vpop.f32.mrf.mxu0
        %v9669 = vadd.f32 0.0, %v9668
        %9670 = vdwg.mxu0
        %9671 = vmatpush.bf16.msra.mxu0 0
        %9672 = vmatpush.bf16.msra.mxu0 0
        %9673 = vmatpush.bf16.msra.mxu0 0
        %9674 = vmatpush.bf16.msra.mxu0 %v9359
        %9675 = vmatpush.bf16.msra.mxu0 %v9327
        %9676 = vmatpush.bf16.msra.mxu0 %v9295
        %9677 = vmatpush.bf16.msra.mxu0 %v9263
        %9678 = vmatpush.bf16.msra.mxu0 %v9231
        %9679 = vmatmul.bf16.gmra.mxu0 %v9543
        %v9680 = vpop.f32.mrf.mxu0
        %v9681 = vadd.f32 0.0, %v9680
        %v9682 = vpop.f32.mrf.mxu0
        %v9683 = vadd.f32 0.0, %v9682
        %9684 = vdwg.mxu0
        %9685 = vmatpush.bf16.msra.mxu0 0
        %9686 = vmatpush.bf16.msra.mxu0 0
        %9687 = vmatpush.bf16.msra.mxu0 0
        %9688 = vmatpush.bf16.msra.mxu0 %v9360
        %9689 = vmatpush.bf16.msra.mxu0 %v9328
        %9690 = vmatpush.bf16.msra.mxu0 %v9296
        %9691 = vmatpush.bf16.msra.mxu0 %v9264
        %9692 = vmatpush.bf16.msra.mxu0 %v9232
        %9693 = vmatmul.bf16.gmra.mxu0 %v9543
        %v9694 = vpop.f32.mrf.mxu0
        %v9695 = vadd.f32 0.0, %v9694
        %v9696 = vpop.f32.mrf.mxu0
        %v9697 = vadd.f32 0.0, %v9696
        %9698 = vdwg.mxu0
        %9699 = vmatpush.bf16.msra.mxu0 0
        %9700 = vmatpush.bf16.msra.mxu0 0
        %9701 = vmatpush.bf16.msra.mxu0 0
        %9702 = vmatpush.bf16.msra.mxu0 %v9361
        %9703 = vmatpush.bf16.msra.mxu0 %v9329
        %9704 = vmatpush.bf16.msra.mxu0 %v9297
        %9705 = vmatpush.bf16.msra.mxu0 %v9265
        %9706 = vmatpush.bf16.msra.mxu0 %v9233
        %9707 = vmatmul.bf16.gmra.mxu0 %v9543
        %v9708 = vpop.f32.mrf.mxu0
        %v9709 = vadd.f32 0.0, %v9708
        %v9710 = vpop.f32.mrf.mxu0
        %v9711 = vadd.f32 0.0, %v9710
        %9712 = vdwg.mxu0
        %9713 = vmatpush.bf16.msra.mxu0 0
        %9714 = vmatpush.bf16.msra.mxu0 0
        %9715 = vmatpush.bf16.msra.mxu0 0
        %9716 = vmatpush.bf16.msra.mxu0 %v9362
        %9717 = vmatpush.bf16.msra.mxu0 %v9330
        %9718 = vmatpush.bf16.msra.mxu0 %v9298
        %9719 = vmatpush.bf16.msra.mxu0 %v9266
        %9720 = vmatpush.bf16.msra.mxu0 %v9234
        %9721 = vmatmul.bf16.gmra.mxu0 %v9543
        %v9722 = vpop.f32.mrf.mxu0
        %v9723 = vadd.f32 0.0, %v9722
        %v9724 = vpop.f32.mrf.mxu0
        %v9725 = vadd.f32 0.0, %v9724
        %9726 = vdwg.mxu0
        %9727 = vmatpush.bf16.msra.mxu0 0
        %9728 = vmatpush.bf16.msra.mxu0 0
        %9729 = vmatpush.bf16.msra.mxu0 0
        %9730 = vmatpush.bf16.msra.mxu0 %v9363
        %9731 = vmatpush.bf16.msra.mxu0 %v9331
        %9732 = vmatpush.bf16.msra.mxu0 %v9299
        %9733 = vmatpush.bf16.msra.mxu0 %v9267
        %9734 = vmatpush.bf16.msra.mxu0 %v9235
        %9735 = vmatmul.bf16.gmra.mxu0 %v9543
        %v9736 = vpop.f32.mrf.mxu0
        %v9737 = vadd.f32 0.0, %v9736
        %v9738 = vpop.f32.mrf.mxu0
        %v9739 = vadd.f32 0.0, %v9738
        %9740 = vdwg.mxu0
        %9741 = vmatpush.bf16.msra.mxu0 0
        %9742 = vmatpush.bf16.msra.mxu0 0
        %9743 = vmatpush.bf16.msra.mxu0 0
        %9744 = vmatpush.bf16.msra.mxu0 %v9364
        %9745 = vmatpush.bf16.msra.mxu0 %v9332
        %9746 = vmatpush.bf16.msra.mxu0 %v9300
        %9747 = vmatpush.bf16.msra.mxu0 %v9268
        %9748 = vmatpush.bf16.msra.mxu0 %v9236
        %9749 = vmatmul.bf16.gmra.mxu0 %v9543
        %v9750 = vpop.f32.mrf.mxu0
        %v9751 = vadd.f32 0.0, %v9750
        %v9752 = vpop.f32.mrf.mxu0
        %v9753 = vadd.f32 0.0, %v9752
        %9754 = vdwg.mxu0
        %9755 = vmatpush.bf16.msra.mxu0 0
        %9756 = vmatpush.bf16.msra.mxu0 0
        %9757 = vmatpush.bf16.msra.mxu0 0
        %9758 = vmatpush.bf16.msra.mxu0 %v9365
        %9759 = vmatpush.bf16.msra.mxu0 %v9333
        %9760 = vmatpush.bf16.msra.mxu0 %v9301
        %9761 = vmatpush.bf16.msra.mxu0 %v9269
        %9762 = vmatpush.bf16.msra.mxu0 %v9237
        %9763 = vmatmul.bf16.gmra.mxu0 %v9543
        %v9764 = vpop.f32.mrf.mxu0
        %v9765 = vadd.f32 0.0, %v9764
        %v9766 = vpop.f32.mrf.mxu0
        %v9767 = vadd.f32 0.0, %v9766
        %9768 = vdwg.mxu0
        %9769 = vmatpush.bf16.msra.mxu0 0
        %9770 = vmatpush.bf16.msra.mxu0 0
        %9771 = vmatpush.bf16.msra.mxu0 0
        %9772 = vmatpush.bf16.msra.mxu0 %v9366
        %9773 = vmatpush.bf16.msra.mxu0 %v9334
        %9774 = vmatpush.bf16.msra.mxu0 %v9302
        %9775 = vmatpush.bf16.msra.mxu0 %v9270
        %9776 = vmatpush.bf16.msra.mxu0 %v9238
        %9777 = vmatmul.bf16.gmra.mxu0 %v9543
        %v9778 = vpop.f32.mrf.mxu0
        %v9779 = vadd.f32 0.0, %v9778
        %v9780 = vpop.f32.mrf.mxu0
        %v9781 = vadd.f32 0.0, %v9780
        %9782 = vdwg.mxu0
        %9783 = vmatpush.bf16.msra.mxu0 0
        %9784 = vmatpush.bf16.msra.mxu0 0
        %9785 = vmatpush.bf16.msra.mxu0 0
        %9786 = vmatpush.bf16.msra.mxu0 %v9367
        %9787 = vmatpush.bf16.msra.mxu0 %v9335
        %9788 = vmatpush.bf16.msra.mxu0 %v9303
        %9789 = vmatpush.bf16.msra.mxu0 %v9271
        %9790 = vmatpush.bf16.msra.mxu0 %v9239
        %9791 = vmatmul.bf16.gmra.mxu0 %v9543
        %v9792 = vpop.f32.mrf.mxu0
        %v9793 = vadd.f32 0.0, %v9792
        %v9794 = vpop.f32.mrf.mxu0
        %v9795 = vadd.f32 0.0, %v9794
        %9796 = vdwg.mxu0
        %9797 = vmatpush.bf16.msra.mxu0 0
        %9798 = vmatpush.bf16.msra.mxu0 0
        %9799 = vmatpush.bf16.msra.mxu0 0
        %9800 = vmatpush.bf16.msra.mxu0 %v9368
        %9801 = vmatpush.bf16.msra.mxu0 %v9336
        %9802 = vmatpush.bf16.msra.mxu0 %v9304
        %9803 = vmatpush.bf16.msra.mxu0 %v9272
        %9804 = vmatpush.bf16.msra.mxu0 %v9240
        %9805 = vmatmul.bf16.gmra.mxu0 %v9543
        %v9806 = vpop.f32.mrf.mxu0
        %v9807 = vadd.f32 0.0, %v9806
        %v9808 = vpop.f32.mrf.mxu0
        %v9809 = vadd.f32 0.0, %v9808
        %9810 = vdwg.mxu0
        %9811 = vmatpush.bf16.msra.mxu0 0
        %9812 = vmatpush.bf16.msra.mxu0 0
        %9813 = vmatpush.bf16.msra.mxu0 0
        %9814 = vmatpush.bf16.msra.mxu0 %v9369
        %9815 = vmatpush.bf16.msra.mxu0 %v9337
        %9816 = vmatpush.bf16.msra.mxu0 %v9305
        %9817 = vmatpush.bf16.msra.mxu0 %v9273
        %9818 = vmatpush.bf16.msra.mxu0 %v9241
        %9819 = vmatmul.bf16.gmra.mxu0 %v9543
        %v9820 = vpop.f32.mrf.mxu0
        %v9821 = vadd.f32 0.0, %v9820
        %v9822 = vpop.f32.mrf.mxu0
        %v9823 = vadd.f32 0.0, %v9822
        %9824 = vdwg.mxu0
        %9825 = vmatpush.bf16.msra.mxu0 0
        %9826 = vmatpush.bf16.msra.mxu0 0
        %9827 = vmatpush.bf16.msra.mxu0 0
        %9828 = vmatpush.bf16.msra.mxu0 %v9370
        %9829 = vmatpush.bf16.msra.mxu0 %v9338
        %9830 = vmatpush.bf16.msra.mxu0 %v9306
        %9831 = vmatpush.bf16.msra.mxu0 %v9274
        %9832 = vmatpush.bf16.msra.mxu0 %v9242
        %9833 = vmatmul.bf16.gmra.mxu0 %v9543
        %v9834 = vpop.f32.mrf.mxu0
        %v9835 = vadd.f32 0.0, %v9834
        %v9836 = vpop.f32.mrf.mxu0
        %v9837 = vadd.f32 0.0, %v9836
        %9838 = vdwg.mxu0
        %9839 = vmatpush.bf16.msra.mxu0 0
        %9840 = vmatpush.bf16.msra.mxu0 0
        %9841 = vmatpush.bf16.msra.mxu0 0
        %9842 = vmatpush.bf16.msra.mxu0 %v9371
        %9843 = vmatpush.bf16.msra.mxu0 %v9339
        %9844 = vmatpush.bf16.msra.mxu0 %v9307
        %9845 = vmatpush.bf16.msra.mxu0 %v9275
        %9846 = vmatpush.bf16.msra.mxu0 %v9243
        %9847 = vmatmul.bf16.gmra.mxu0 %v9543
        %v9848 = vpop.f32.mrf.mxu0
        %v9849 = vadd.f32 0.0, %v9848
        %v9850 = vpop.f32.mrf.mxu0
        %v9851 = vadd.f32 0.0, %v9850
        %9852 = vdwg.mxu0
        %9853 = vmatpush.bf16.msra.mxu0 0
        %9854 = vmatpush.bf16.msra.mxu0 0
        %9855 = vmatpush.bf16.msra.mxu0 0
        %9856 = vmatpush.bf16.msra.mxu0 %v9372
        %9857 = vmatpush.bf16.msra.mxu0 %v9340
        %9858 = vmatpush.bf16.msra.mxu0 %v9308
        %9859 = vmatpush.bf16.msra.mxu0 %v9276
        %9860 = vmatpush.bf16.msra.mxu0 %v9244
        %9861 = vmatmul.bf16.gmra.mxu0 %v9543
        %v9862 = vpop.f32.mrf.mxu0
        %v9863 = vadd.f32 0.0, %v9862
        %v9864 = vpop.f32.mrf.mxu0
        %v9865 = vadd.f32 0.0, %v9864
        %9866 = vdwg.mxu0
        %9867 = vmatpush.bf16.msra.mxu0 0
        %9868 = vmatpush.bf16.msra.mxu0 0
        %9869 = vmatpush.bf16.msra.mxu0 0
        %9870 = vmatpush.bf16.msra.mxu0 %v9373
        %9871 = vmatpush.bf16.msra.mxu0 %v9341
        %9872 = vmatpush.bf16.msra.mxu0 %v9309
        %9873 = vmatpush.bf16.msra.mxu0 %v9277
        %9874 = vmatpush.bf16.msra.mxu0 %v9245
        %9875 = vmatmul.bf16.gmra.mxu0 %v9543
        %v9876 = vpop.f32.mrf.mxu0
        %v9877 = vadd.f32 0.0, %v9876
        %v9878 = vpop.f32.mrf.mxu0
        %v9879 = vadd.f32 0.0, %v9878
        %9880 = vdwg.mxu0
        %9881 = vmatpush.bf16.msra.mxu0 0
        %9882 = vmatpush.bf16.msra.mxu0 0
        %9883 = vmatpush.bf16.msra.mxu0 0
        %9884 = vmatpush.bf16.msra.mxu0 %v9374
        %9885 = vmatpush.bf16.msra.mxu0 %v9342
        %9886 = vmatpush.bf16.msra.mxu0 %v9310
        %9887 = vmatpush.bf16.msra.mxu0 %v9278
        %9888 = vmatpush.bf16.msra.mxu0 %v9246
        %9889 = vmatmul.bf16.gmra.mxu0 %v9543
        %v9890 = vpop.f32.mrf.mxu0
        %v9891 = vadd.f32 0.0, %v9890
        %v9892 = vpop.f32.mrf.mxu0
        %v9893 = vadd.f32 0.0, %v9892
        %9894 = vdwg.mxu0
        %9895 = vmatpush.bf16.msra.mxu0 0
        %9896 = vmatpush.bf16.msra.mxu0 0
        %9897 = vmatpush.bf16.msra.mxu0 0
        %9898 = vmatpush.bf16.msra.mxu0 %v9375
        %9899 = vmatpush.bf16.msra.mxu0 %v9343
        %9900 = vmatpush.bf16.msra.mxu0 %v9311
        %9901 = vmatpush.bf16.msra.mxu0 %v9279
        %9902 = vmatpush.bf16.msra.mxu0 %v9247
        %9903 = vmatmul.bf16.gmra.mxu0 %v9543
        %v9904 = vpop.f32.mrf.mxu0
        %v9905 = vadd.f32 0.0, %v9904
        %v9906 = vpop.f32.mrf.mxu0
        %v9907 = vadd.f32 0.0, %v9906
        %9908 = vdwg.mxu0
        %9909 = vmatpush.bf16.msra.mxu0 0
        %9910 = vmatpush.bf16.msra.mxu0 0
        %9911 = vmatpush.bf16.msra.mxu0 0
        %9912 = vmatpush.bf16.msra.mxu0 %v9376
        %9913 = vmatpush.bf16.msra.mxu0 %v9344
        %9914 = vmatpush.bf16.msra.mxu0 %v9312
        %9915 = vmatpush.bf16.msra.mxu0 %v9280
        %9916 = vmatpush.bf16.msra.mxu0 %v9248
        %9917 = vmatmul.bf16.gmra.mxu0 %v9543
        %v9918 = vpop.f32.mrf.mxu0
        %v9919 = vadd.f32 0.0, %v9918
        %v9920 = vpop.f32.mrf.mxu0
        %v9921 = vadd.f32 0.0, %v9920
        %9922 = vdwg.mxu0
        %9923 = vmatpush.bf16.msra.mxu0 0
        %9924 = vmatpush.bf16.msra.mxu0 0
        %9925 = vmatpush.bf16.msra.mxu0 0
        %9926 = vmatpush.bf16.msra.mxu0 %v9377
        %9927 = vmatpush.bf16.msra.mxu0 %v9345
        %9928 = vmatpush.bf16.msra.mxu0 %v9313
        %9929 = vmatpush.bf16.msra.mxu0 %v9281
        %9930 = vmatpush.bf16.msra.mxu0 %v9249
        %9931 = vmatmul.bf16.gmra.mxu0 %v9543
        %v9932 = vpop.f32.mrf.mxu0
        %v9933 = vadd.f32 0.0, %v9932
        %v9934 = vpop.f32.mrf.mxu0
        %v9935 = vadd.f32 0.0, %v9934
        %9936 = vdwg.mxu0
        %9937 = vmatpush.bf16.msra.mxu0 0
        %9938 = vmatpush.bf16.msra.mxu0 0
        %9939 = vmatpush.bf16.msra.mxu0 0
        %9940 = vmatpush.bf16.msra.mxu0 %v9378
        %9941 = vmatpush.bf16.msra.mxu0 %v9346
        %9942 = vmatpush.bf16.msra.mxu0 %v9314
        %9943 = vmatpush.bf16.msra.mxu0 %v9282
        %9944 = vmatpush.bf16.msra.mxu0 %v9250
        %9945 = vmatmul.bf16.gmra.mxu0 %v9543
        %v9946 = vpop.f32.mrf.mxu0
        %v9947 = vadd.f32 0.0, %v9946
        %v9948 = vpop.f32.mrf.mxu0
        %v9949 = vadd.f32 0.0, %v9948
        %9950 = vdwg.mxu0
        %9951 = vmatpush.bf16.msra.mxu0 0
        %9952 = vmatpush.bf16.msra.mxu0 0
        %9953 = vmatpush.bf16.msra.mxu0 0
        %9954 = vmatpush.bf16.msra.mxu0 %v9379
        %9955 = vmatpush.bf16.msra.mxu0 %v9347
        %9956 = vmatpush.bf16.msra.mxu0 %v9315
        %9957 = vmatpush.bf16.msra.mxu0 %v9283
        %9958 = vmatpush.bf16.msra.mxu0 %v9251
        %9959 = vmatmul.bf16.gmra.mxu0 %v9543
        %v9960 = vpop.f32.mrf.mxu0
        %v9961 = vadd.f32 0.0, %v9960
        %v9962 = vpop.f32.mrf.mxu0
        %v9963 = vadd.f32 0.0, %v9962
        %9964 = vdwg.mxu0
        %9965 = vmatpush.bf16.msra.mxu0 0
        %9966 = vmatpush.bf16.msra.mxu0 0
        %9967 = vmatpush.bf16.msra.mxu0 0
        %9968 = vmatpush.bf16.msra.mxu0 %v9380
        %9969 = vmatpush.bf16.msra.mxu0 %v9348
        %9970 = vmatpush.bf16.msra.mxu0 %v9316
        %9971 = vmatpush.bf16.msra.mxu0 %v9284
        %9972 = vmatpush.bf16.msra.mxu0 %v9252
        %9973 = vmatmul.bf16.gmra.mxu0 %v9543
        %v9974 = vpop.f32.mrf.mxu0
        %v9975 = vadd.f32 0.0, %v9974
        %v9976 = vpop.f32.mrf.mxu0
        %v9977 = vadd.f32 0.0, %v9976
        %9978 = vdwg.mxu0
        %9979 = vmatpush.bf16.msra.mxu0 0
        %9980 = vmatpush.bf16.msra.mxu0 0
        %9981 = vmatpush.bf16.msra.mxu0 0
        %9982 = vmatpush.bf16.msra.mxu0 %v9381
        %9983 = vmatpush.bf16.msra.mxu0 %v9349
        %9984 = vmatpush.bf16.msra.mxu0 %v9317
        %9985 = vmatpush.bf16.msra.mxu0 %v9285
        %9986 = vmatpush.bf16.msra.mxu0 %v9253
        %9987 = vmatmul.bf16.gmra.mxu0 %v9543
        %v9988 = vpop.f32.mrf.mxu0
        %v9989 = vadd.f32 0.0, %v9988
        %v9990 = vpop.f32.mrf.mxu0
        %v9991 = vadd.f32 0.0, %v9990
        %9992 = vdwg.mxu0
        %v9993 = vadd.f32 %v8510, %v9555
        %v9994 = vadd.f32 %v8511, %v9569
        %v9995 = vadd.f32 %v8512, %v9583
        %v9996 = vadd.f32 %v8513, %v9597
        %v9997 = vadd.f32 %v8514, %v9611
        %v9998 = vadd.f32 %v8515, %v9625
        %v9999 = vadd.f32 %v8516, %v9639
        %v10000 = vadd.f32 %v8517, %v9653
        %v10001 = vadd.f32 %v8518, %v9667
        %v10002 = vadd.f32 %v8519, %v9681
        %v10003 = vadd.f32 %v8520, %v9695
        %v10004 = vadd.f32 %v8521, %v9709
        %v10005 = vadd.f32 %v8522, %v9723
        %v10006 = vadd.f32 %v8523, %v9737
        %v10007 = vadd.f32 %v8524, %v9751
        %v10008 = vadd.f32 %v8525, %v9765
        %v10009 = vadd.f32 %v8526, %v9779
        %v10010 = vadd.f32 %v8527, %v9793
        %v10011 = vadd.f32 %v8528, %v9807
        %v10012 = vadd.f32 %v8529, %v9821
        %v10013 = vadd.f32 %v8530, %v9835
        %v10014 = vadd.f32 %v8531, %v9849
        %v10015 = vadd.f32 %v8532, %v9863
        %v10016 = vadd.f32 %v8533, %v9877
        %v10017 = vadd.f32 %v8534, %v9891
        %v10018 = vadd.f32 %v8535, %v9905
        %v10019 = vadd.f32 %v8536, %v9919
        %v10020 = vadd.f32 %v8537, %v9933
        %v10021 = vadd.f32 %v8538, %v9947
        %v10022 = vadd.f32 %v8539, %v9961
        %v10023 = vadd.f32 %v8540, %v9975
        %v10024 = vadd.f32 %v8541, %v9989
        %v10025 = vadd.f32 %v8542, %v9557
        %v10026 = vadd.f32 %v8543, %v9571
        %v10027 = vadd.f32 %v8544, %v9585
        %v10028 = vadd.f32 %v8545, %v9599
        %v10029 = vadd.f32 %v8546, %v9613
        %v10030 = vadd.f32 %v8547, %v9627
        %v10031 = vadd.f32 %v8548, %v9641
        %v10032 = vadd.f32 %v8549, %v9655
        %v10033 = vadd.f32 %v8550, %v9669
        %v10034 = vadd.f32 %v8551, %v9683
        %v10035 = vadd.f32 %v8552, %v9697
        %v10036 = vadd.f32 %v8553, %v9711
        %v10037 = vadd.f32 %v8554, %v9725
        %v10038 = vadd.f32 %v8555, %v9739
        %v10039 = vadd.f32 %v8556, %v9753
        %v10040 = vadd.f32 %v8557, %v9767
        %v10041 = vadd.f32 %v8558, %v9781
        %v10042 = vadd.f32 %v8559, %v9795
        %v10043 = vadd.f32 %v8560, %v9809
        %v10044 = vadd.f32 %v8561, %v9823
        %v10045 = vadd.f32 %v8562, %v9837
        %v10046 = vadd.f32 %v8563, %v9851
        %v10047 = vadd.f32 %v8564, %v9865
        %v10048 = vadd.f32 %v8565, %v9879
        %v10049 = vadd.f32 %v8566, %v9893
        %v10050 = vadd.f32 %v8567, %v9907
        %v10051 = vadd.f32 %v8568, %v9921
        %v10052 = vadd.f32 %v8569, %v9935
        %v10053 = vadd.f32 %v8570, %v9949
        %v10054 = vadd.f32 %v8571, %v9963
        %v10055 = vadd.f32 %v8572, %v9977
        %v10056 = vadd.f32 %v8573, %v9991
        %v10057 = vld [vmem:[%s4] sm:$0xff]
        %v10058 = vld [vmem:[%s4 + $0x8] sm:$0xff]
        %10060 = vset.pattern.permute.xlu0 0
        %10061 = vperm.xlu0 %10060, %v10057
        %v10062 = vpop.permute.xlu0 %10061
        %10065 = vset.pattern.permute.xlu0 0
        %10066 = vperm.xlu0 %10065, %v10058
        %v10067 = vpop.permute.xlu0 %10066
        %v10069 = vadd.f32 %v9993, %v10062
        %v10070 = vadd.f32 %v9994, %v10062
        %v10071 = vadd.f32 %v9995, %v10062
        %v10072 = vadd.f32 %v9996, %v10062
        %v10073 = vadd.f32 %v9997, %v10062
        %v10074 = vadd.f32 %v9998, %v10062
        %v10075 = vadd.f32 %v9999, %v10062
        %v10076 = vadd.f32 %v10000, %v10062
        %v10077 = vadd.f32 %v10001, %v10062
        %v10078 = vadd.f32 %v10002, %v10062
        %v10079 = vadd.f32 %v10003, %v10062
        %v10080 = vadd.f32 %v10004, %v10062
        %v10081 = vadd.f32 %v10005, %v10062
        %v10082 = vadd.f32 %v10006, %v10062
        %v10083 = vadd.f32 %v10007, %v10062
        %v10084 = vadd.f32 %v10008, %v10062
        %v10085 = vadd.f32 %v10009, %v10062
        %v10086 = vadd.f32 %v10010, %v10062
        %v10087 = vadd.f32 %v10011, %v10062
        %v10088 = vadd.f32 %v10012, %v10062
        %v10089 = vadd.f32 %v10013, %v10062
        %v10090 = vadd.f32 %v10014, %v10062
        %v10091 = vadd.f32 %v10015, %v10062
        %v10092 = vadd.f32 %v10016, %v10062
        %v10093 = vadd.f32 %v10017, %v10062
        %v10094 = vadd.f32 %v10018, %v10062
        %v10095 = vadd.f32 %v10019, %v10062
        %v10096 = vadd.f32 %v10020, %v10062
        %v10097 = vadd.f32 %v10021, %v10062
        %v10098 = vadd.f32 %v10022, %v10062
        %v10099 = vadd.f32 %v10023, %v10062
        %v10100 = vadd.f32 %v10024, %v10062
        %v10101 = vadd.f32 %v10025, %v10067
        %v10102 = vadd.f32 %v10026, %v10067
        %v10103 = vadd.f32 %v10027, %v10067
        %v10104 = vadd.f32 %v10028, %v10067
        %v10105 = vadd.f32 %v10029, %v10067
        %v10106 = vadd.f32 %v10030, %v10067
        %v10107 = vadd.f32 %v10031, %v10067
        %v10108 = vadd.f32 %v10032, %v10067
        %v10109 = vadd.f32 %v10033, %v10067
        %v10110 = vadd.f32 %v10034, %v10067
        %v10111 = vadd.f32 %v10035, %v10067
        %v10112 = vadd.f32 %v10036, %v10067
        %v10113 = vadd.f32 %v10037, %v10067
        %v10114 = vadd.f32 %v10038, %v10067
        %v10115 = vadd.f32 %v10039, %v10067
        %v10116 = vadd.f32 %v10040, %v10067
        %v10117 = vadd.f32 %v10041, %v10067
        %v10118 = vadd.f32 %v10042, %v10067
        %v10119 = vadd.f32 %v10043, %v10067
        %v10120 = vadd.f32 %v10044, %v10067
        %v10121 = vadd.f32 %v10045, %v10067
        %v10122 = vadd.f32 %v10046, %v10067
        %v10123 = vadd.f32 %v10047, %v10067
        %v10124 = vadd.f32 %v10048, %v10067
        %v10125 = vadd.f32 %v10049, %v10067
        %v10126 = vadd.f32 %v10050, %v10067
        %v10127 = vadd.f32 %v10051, %v10067
        %v10128 = vadd.f32 %v10052, %v10067
        %v10129 = vadd.f32 %v10053, %v10067
        %v10130 = vadd.f32 %v10054, %v10067
        %v10131 = vadd.f32 %v10055, %v10067
        %v10132 = vadd.f32 %v10056, %v10067
        %vm10133 = vcmp.ge.f32.partialorder %v10069, 0.0
        %vm10134 = vcmp.ge.f32.partialorder %v10070, 0.0
        %vm10135 = vcmp.ge.f32.partialorder %v10071, 0.0
        %vm10136 = vcmp.ge.f32.partialorder %v10072, 0.0
        %vm10137 = vcmp.ge.f32.partialorder %v10073, 0.0
        %vm10138 = vcmp.ge.f32.partialorder %v10074, 0.0
        %vm10139 = vcmp.ge.f32.partialorder %v10075, 0.0
        %vm10140 = vcmp.ge.f32.partialorder %v10076, 0.0
        %vm10141 = vcmp.ge.f32.partialorder %v10077, 0.0
        %vm10142 = vcmp.ge.f32.partialorder %v10078, 0.0
        %vm10143 = vcmp.ge.f32.partialorder %v10079, 0.0
        %vm10144 = vcmp.ge.f32.partialorder %v10080, 0.0
        %vm10145 = vcmp.ge.f32.partialorder %v10081, 0.0
        %vm10146 = vcmp.ge.f32.partialorder %v10082, 0.0
        %vm10147 = vcmp.ge.f32.partialorder %v10083, 0.0
        %vm10148 = vcmp.ge.f32.partialorder %v10084, 0.0
        %vm10149 = vcmp.ge.f32.partialorder %v10085, 0.0
        %vm10150 = vcmp.ge.f32.partialorder %v10086, 0.0
        %vm10151 = vcmp.ge.f32.partialorder %v10087, 0.0
        %vm10152 = vcmp.ge.f32.partialorder %v10088, 0.0
        %vm10153 = vcmp.ge.f32.partialorder %v10089, 0.0
        %vm10154 = vcmp.ge.f32.partialorder %v10090, 0.0
        %vm10155 = vcmp.ge.f32.partialorder %v10091, 0.0
        %vm10156 = vcmp.ge.f32.partialorder %v10092, 0.0
        %vm10157 = vcmp.ge.f32.partialorder %v10093, 0.0
        %vm10158 = vcmp.ge.f32.partialorder %v10094, 0.0
        %vm10159 = vcmp.ge.f32.partialorder %v10095, 0.0
        %vm10160 = vcmp.ge.f32.partialorder %v10096, 0.0
        %vm10161 = vcmp.ge.f32.partialorder %v10097, 0.0
        %vm10162 = vcmp.ge.f32.partialorder %v10098, 0.0
        %vm10163 = vcmp.ge.f32.partialorder %v10099, 0.0
        %vm10164 = vcmp.ge.f32.partialorder %v10100, 0.0
        %vm10165 = vcmp.ge.f32.partialorder %v10101, 0.0
        %vm10166 = vcmp.ge.f32.partialorder %v10102, 0.0
        %vm10167 = vcmp.ge.f32.partialorder %v10103, 0.0
        %vm10168 = vcmp.ge.f32.partialorder %v10104, 0.0
        %vm10169 = vcmp.ge.f32.partialorder %v10105, 0.0
        %vm10170 = vcmp.ge.f32.partialorder %v10106, 0.0
        %vm10171 = vcmp.ge.f32.partialorder %v10107, 0.0
        %vm10172 = vcmp.ge.f32.partialorder %v10108, 0.0
        %vm10173 = vcmp.ge.f32.partialorder %v10109, 0.0
        %vm10174 = vcmp.ge.f32.partialorder %v10110, 0.0
        %vm10175 = vcmp.ge.f32.partialorder %v10111, 0.0
        %vm10176 = vcmp.ge.f32.partialorder %v10112, 0.0
        %vm10177 = vcmp.ge.f32.partialorder %v10113, 0.0
        %vm10178 = vcmp.ge.f32.partialorder %v10114, 0.0
        %vm10179 = vcmp.ge.f32.partialorder %v10115, 0.0
        %vm10180 = vcmp.ge.f32.partialorder %v10116, 0.0
        %vm10181 = vcmp.ge.f32.partialorder %v10117, 0.0
        %vm10182 = vcmp.ge.f32.partialorder %v10118, 0.0
        %vm10183 = vcmp.ge.f32.partialorder %v10119, 0.0
        %vm10184 = vcmp.ge.f32.partialorder %v10120, 0.0
        %vm10185 = vcmp.ge.f32.partialorder %v10121, 0.0
        %vm10186 = vcmp.ge.f32.partialorder %v10122, 0.0
        %vm10187 = vcmp.ge.f32.partialorder %v10123, 0.0
        %vm10188 = vcmp.ge.f32.partialorder %v10124, 0.0
        %vm10189 = vcmp.ge.f32.partialorder %v10125, 0.0
        %vm10190 = vcmp.ge.f32.partialorder %v10126, 0.0
        %vm10191 = vcmp.ge.f32.partialorder %v10127, 0.0
        %vm10192 = vcmp.ge.f32.partialorder %v10128, 0.0
        %vm10193 = vcmp.ge.f32.partialorder %v10129, 0.0
        %vm10194 = vcmp.ge.f32.partialorder %v10130, 0.0
        %vm10195 = vcmp.ge.f32.partialorder %v10131, 0.0
        %vm10196 = vcmp.ge.f32.partialorder %v10132, 0.0
        %v10197 = vmul.f32 %v10069, 0.01
        %v10198 = vmul.f32 %v10070, 0.01
        %v10199 = vmul.f32 %v10071, 0.01
        %v10200 = vmul.f32 %v10072, 0.01
        %v10201 = vmul.f32 %v10073, 0.01
        %v10202 = vmul.f32 %v10074, 0.01
        %v10203 = vmul.f32 %v10075, 0.01
        %v10204 = vmul.f32 %v10076, 0.01
        %v10205 = vmul.f32 %v10077, 0.01
        %v10206 = vmul.f32 %v10078, 0.01
        %v10207 = vmul.f32 %v10079, 0.01
        %v10208 = vmul.f32 %v10080, 0.01
        %v10209 = vmul.f32 %v10081, 0.01
        %v10210 = vmul.f32 %v10082, 0.01
        %v10211 = vmul.f32 %v10083, 0.01
        %v10212 = vmul.f32 %v10084, 0.01
        %v10213 = vmul.f32 %v10085, 0.01
        %v10214 = vmul.f32 %v10086, 0.01
        %v10215 = vmul.f32 %v10087, 0.01
        %v10216 = vmul.f32 %v10088, 0.01
        %v10217 = vmul.f32 %v10089, 0.01
        %v10218 = vmul.f32 %v10090, 0.01
        %v10219 = vmul.f32 %v10091, 0.01
        %v10220 = vmul.f32 %v10092, 0.01
        %v10221 = vmul.f32 %v10093, 0.01
        %v10222 = vmul.f32 %v10094, 0.01
        %v10223 = vmul.f32 %v10095, 0.01
        %v10224 = vmul.f32 %v10096, 0.01
        %v10225 = vmul.f32 %v10097, 0.01
        %v10226 = vmul.f32 %v10098, 0.01
        %v10227 = vmul.f32 %v10099, 0.01
        %v10228 = vmul.f32 %v10100, 0.01
        %v10229 = vmul.f32 %v10101, 0.01
        %v10230 = vmul.f32 %v10102, 0.01
        %v10231 = vmul.f32 %v10103, 0.01
        %v10232 = vmul.f32 %v10104, 0.01
        %v10233 = vmul.f32 %v10105, 0.01
        %v10234 = vmul.f32 %v10106, 0.01
        %v10235 = vmul.f32 %v10107, 0.01
        %v10236 = vmul.f32 %v10108, 0.01
        %v10237 = vmul.f32 %v10109, 0.01
        %v10238 = vmul.f32 %v10110, 0.01
        %v10239 = vmul.f32 %v10111, 0.01
        %v10240 = vmul.f32 %v10112, 0.01
        %v10241 = vmul.f32 %v10113, 0.01
        %v10242 = vmul.f32 %v10114, 0.01
        %v10243 = vmul.f32 %v10115, 0.01
        %v10244 = vmul.f32 %v10116, 0.01
        %v10245 = vmul.f32 %v10117, 0.01
        %v10246 = vmul.f32 %v10118, 0.01
        %v10247 = vmul.f32 %v10119, 0.01
        %v10248 = vmul.f32 %v10120, 0.01
        %v10249 = vmul.f32 %v10121, 0.01
        %v10250 = vmul.f32 %v10122, 0.01
        %v10251 = vmul.f32 %v10123, 0.01
        %v10252 = vmul.f32 %v10124, 0.01
        %v10253 = vmul.f32 %v10125, 0.01
        %v10254 = vmul.f32 %v10126, 0.01
        %v10255 = vmul.f32 %v10127, 0.01
        %v10256 = vmul.f32 %v10128, 0.01
        %v10257 = vmul.f32 %v10129, 0.01
        %v10258 = vmul.f32 %v10130, 0.01
        %v10259 = vmul.f32 %v10131, 0.01
        %v10260 = vmul.f32 %v10132, 0.01
        %v10261 = vsel %vm10133, %v10069, %v10197
        %v10262 = vsel %vm10134, %v10070, %v10198
        %v10263 = vsel %vm10135, %v10071, %v10199
        %v10264 = vsel %vm10136, %v10072, %v10200
        %v10265 = vsel %vm10137, %v10073, %v10201
        %v10266 = vsel %vm10138, %v10074, %v10202
        %v10267 = vsel %vm10139, %v10075, %v10203
        %v10268 = vsel %vm10140, %v10076, %v10204
        %v10269 = vsel %vm10141, %v10077, %v10205
        %v10270 = vsel %vm10142, %v10078, %v10206
        %v10271 = vsel %vm10143, %v10079, %v10207
        %v10272 = vsel %vm10144, %v10080, %v10208
        %v10273 = vsel %vm10145, %v10081, %v10209
        %v10274 = vsel %vm10146, %v10082, %v10210
        %v10275 = vsel %vm10147, %v10083, %v10211
        %v10276 = vsel %vm10148, %v10084, %v10212
        %v10277 = vsel %vm10149, %v10085, %v10213
        %v10278 = vsel %vm10150, %v10086, %v10214
        %v10279 = vsel %vm10151, %v10087, %v10215
        %v10280 = vsel %vm10152, %v10088, %v10216
        %v10281 = vsel %vm10153, %v10089, %v10217
        %v10282 = vsel %vm10154, %v10090, %v10218
        %v10283 = vsel %vm10155, %v10091, %v10219
        %v10284 = vsel %vm10156, %v10092, %v10220
        %v10285 = vsel %vm10157, %v10093, %v10221
        %v10286 = vsel %vm10158, %v10094, %v10222
        %v10287 = vsel %vm10159, %v10095, %v10223
        %v10288 = vsel %vm10160, %v10096, %v10224
        %v10289 = vsel %vm10161, %v10097, %v10225
        %v10290 = vsel %vm10162, %v10098, %v10226
        %v10291 = vsel %vm10163, %v10099, %v10227
        %v10292 = vsel %vm10164, %v10100, %v10228
        %v10293 = vsel %vm10165, %v10101, %v10229
        %v10294 = vsel %vm10166, %v10102, %v10230
        %v10295 = vsel %vm10167, %v10103, %v10231
        %v10296 = vsel %vm10168, %v10104, %v10232
        %v10297 = vsel %vm10169, %v10105, %v10233
        %v10298 = vsel %vm10170, %v10106, %v10234
        %v10299 = vsel %vm10171, %v10107, %v10235
        %v10300 = vsel %vm10172, %v10108, %v10236
        %v10301 = vsel %vm10173, %v10109, %v10237
        %v10302 = vsel %vm10174, %v10110, %v10238
        %v10303 = vsel %vm10175, %v10111, %v10239
        %v10304 = vsel %vm10176, %v10112, %v10240
        %v10305 = vsel %vm10177, %v10113, %v10241
        %v10306 = vsel %vm10178, %v10114, %v10242
        %v10307 = vsel %vm10179, %v10115, %v10243
        %v10308 = vsel %vm10180, %v10116, %v10244
        %v10309 = vsel %vm10181, %v10117, %v10245
        %v10310 = vsel %vm10182, %v10118, %v10246
        %v10311 = vsel %vm10183, %v10119, %v10247
        %v10312 = vsel %vm10184, %v10120, %v10248
        %v10313 = vsel %vm10185, %v10121, %v10249
        %v10314 = vsel %vm10186, %v10122, %v10250
        %v10315 = vsel %vm10187, %v10123, %v10251
        %v10316 = vsel %vm10188, %v10124, %v10252
        %v10317 = vsel %vm10189, %v10125, %v10253
        %v10318 = vsel %vm10190, %v10126, %v10254
        %v10319 = vsel %vm10191, %v10127, %v10255
        %v10320 = vsel %vm10192, %v10128, %v10256
        %v10321 = vsel %vm10193, %v10129, %v10257
        %v10322 = vsel %vm10194, %v10130, %v10258
        %v10323 = vsel %vm10195, %v10131, %v10259
        %v10324 = vsel %vm10196, %v10132, %v10260
        %v10325 = vpack.c.bf16 %v10293, %v10261
        %v10326 = vpack.c.bf16 %v10294, %v10262
        %v10327 = vpack.c.bf16 %v10295, %v10263
        %v10328 = vpack.c.bf16 %v10296, %v10264
        %v10329 = vpack.c.bf16 %v10297, %v10265
        %v10330 = vpack.c.bf16 %v10298, %v10266
        %v10331 = vpack.c.bf16 %v10299, %v10267
        %v10332 = vpack.c.bf16 %v10300, %v10268
        %v10333 = vpack.c.bf16 %v10301, %v10269
        %v10334 = vpack.c.bf16 %v10302, %v10270
        %v10335 = vpack.c.bf16 %v10303, %v10271
        %v10336 = vpack.c.bf16 %v10304, %v10272
        %v10337 = vpack.c.bf16 %v10305, %v10273
        %v10338 = vpack.c.bf16 %v10306, %v10274
        %v10339 = vpack.c.bf16 %v10307, %v10275
        %v10340 = vpack.c.bf16 %v10308, %v10276
        %v10341 = vpack.c.bf16 %v10309, %v10277
        %v10342 = vpack.c.bf16 %v10310, %v10278
        %v10343 = vpack.c.bf16 %v10311, %v10279
        %v10344 = vpack.c.bf16 %v10312, %v10280
        %v10345 = vpack.c.bf16 %v10313, %v10281
        %v10346 = vpack.c.bf16 %v10314, %v10282
        %v10347 = vpack.c.bf16 %v10315, %v10283
        %v10348 = vpack.c.bf16 %v10316, %v10284
        %v10349 = vpack.c.bf16 %v10317, %v10285
        %v10350 = vpack.c.bf16 %v10318, %v10286
        %v10351 = vpack.c.bf16 %v10319, %v10287
        %v10352 = vpack.c.bf16 %v10320, %v10288
        %v10353 = vpack.c.bf16 %v10321, %v10289
        %v10354 = vpack.c.bf16 %v10322, %v10290
        %v10355 = vpack.c.bf16 %v10323, %v10291
        %v10356 = vpack.c.bf16 %v10324, %v10292
        %v10357 = vld [vmem:[%s5] sm:$0xf]
        %v10358 = vld [vmem:[%s6] sm:$0xff]
        %10360 = vset.pattern.permute.xlu0 0
        %10361 = vperm.xlu0 %10360, %v10358
        %v10362 = vpop.permute.xlu0 %10361
        %v10365 = vsel %vm314, %v10357, 0
        %10367 = vmatpush.bf16.msra.mxu0 0
        %10368 = vmatpush.bf16.msra.mxu0 0
        %10369 = vmatpush.bf16.msra.mxu0 0
        %10370 = vmatpush.bf16.msra.mxu0 0
        %10371 = vmatpush.bf16.msra.mxu0 0
        %10372 = vmatpush.bf16.msra.mxu0 0
        %10373 = vmatpush.bf16.msra.mxu0 0
        %10374 = vmatpush.bf16.msra.mxu0 %v10325
        %10375 = vmatmul.bf16.gmra.mxu0 %v10365
        %v10376 = vpop.f32.mrf.mxu0
        %v10377 = vadd.f32 %v10362, %v10376
        %v10378 = vpop.f32.mrf.mxu0
        %10379 = vdwg.mxu0
        %10380 = vmatpush.bf16.msra.mxu0 0
        %10381 = vmatpush.bf16.msra.mxu0 0
        %10382 = vmatpush.bf16.msra.mxu0 0
        %10383 = vmatpush.bf16.msra.mxu0 0
        %10384 = vmatpush.bf16.msra.mxu0 0
        %10385 = vmatpush.bf16.msra.mxu0 0
        %10386 = vmatpush.bf16.msra.mxu0 0
        %10387 = vmatpush.bf16.msra.mxu0 %v10326
        %10388 = vmatmul.bf16.gmra.mxu0 %v10365
        %v10389 = vpop.f32.mrf.mxu0
        %v10390 = vadd.f32 %v10362, %v10389
        %v10391 = vpop.f32.mrf.mxu0
        %10392 = vdwg.mxu0
        %10393 = vmatpush.bf16.msra.mxu0 0
        %10394 = vmatpush.bf16.msra.mxu0 0
        %10395 = vmatpush.bf16.msra.mxu0 0
        %10396 = vmatpush.bf16.msra.mxu0 0
        %10397 = vmatpush.bf16.msra.mxu0 0
        %10398 = vmatpush.bf16.msra.mxu0 0
        %10399 = vmatpush.bf16.msra.mxu0 0
        %10400 = vmatpush.bf16.msra.mxu0 %v10327
        %10401 = vmatmul.bf16.gmra.mxu0 %v10365
        %v10402 = vpop.f32.mrf.mxu0
        %v10403 = vadd.f32 %v10362, %v10402
        %v10404 = vpop.f32.mrf.mxu0
        %10405 = vdwg.mxu0
        %10406 = vmatpush.bf16.msra.mxu0 0
        %10407 = vmatpush.bf16.msra.mxu0 0
        %10408 = vmatpush.bf16.msra.mxu0 0
        %10409 = vmatpush.bf16.msra.mxu0 0
        %10410 = vmatpush.bf16.msra.mxu0 0
        %10411 = vmatpush.bf16.msra.mxu0 0
        %10412 = vmatpush.bf16.msra.mxu0 0
        %10413 = vmatpush.bf16.msra.mxu0 %v10328
        %10414 = vmatmul.bf16.gmra.mxu0 %v10365
        %v10415 = vpop.f32.mrf.mxu0
        %v10416 = vadd.f32 %v10362, %v10415
        %v10417 = vpop.f32.mrf.mxu0
        %10418 = vdwg.mxu0
        %10419 = vmatpush.bf16.msra.mxu0 0
        %10420 = vmatpush.bf16.msra.mxu0 0
        %10421 = vmatpush.bf16.msra.mxu0 0
        %10422 = vmatpush.bf16.msra.mxu0 0
        %10423 = vmatpush.bf16.msra.mxu0 0
        %10424 = vmatpush.bf16.msra.mxu0 0
        %10425 = vmatpush.bf16.msra.mxu0 0
        %10426 = vmatpush.bf16.msra.mxu0 %v10329
        %10427 = vmatmul.bf16.gmra.mxu0 %v10365
        %v10428 = vpop.f32.mrf.mxu0
        %v10429 = vadd.f32 %v10362, %v10428
        %v10430 = vpop.f32.mrf.mxu0
        %10431 = vdwg.mxu0
        %10432 = vmatpush.bf16.msra.mxu0 0
        %10433 = vmatpush.bf16.msra.mxu0 0
        %10434 = vmatpush.bf16.msra.mxu0 0
        %10435 = vmatpush.bf16.msra.mxu0 0
        %10436 = vmatpush.bf16.msra.mxu0 0
        %10437 = vmatpush.bf16.msra.mxu0 0
        %10438 = vmatpush.bf16.msra.mxu0 0
        %10439 = vmatpush.bf16.msra.mxu0 %v10330
        %10440 = vmatmul.bf16.gmra.mxu0 %v10365
        %v10441 = vpop.f32.mrf.mxu0
        %v10442 = vadd.f32 %v10362, %v10441
        %v10443 = vpop.f32.mrf.mxu0
        %10444 = vdwg.mxu0
        %10445 = vmatpush.bf16.msra.mxu0 0
        %10446 = vmatpush.bf16.msra.mxu0 0
        %10447 = vmatpush.bf16.msra.mxu0 0
        %10448 = vmatpush.bf16.msra.mxu0 0
        %10449 = vmatpush.bf16.msra.mxu0 0
        %10450 = vmatpush.bf16.msra.mxu0 0
        %10451 = vmatpush.bf16.msra.mxu0 0
        %10452 = vmatpush.bf16.msra.mxu0 %v10331
        %10453 = vmatmul.bf16.gmra.mxu0 %v10365
        %v10454 = vpop.f32.mrf.mxu0
        %v10455 = vadd.f32 %v10362, %v10454
        %v10456 = vpop.f32.mrf.mxu0
        %10457 = vdwg.mxu0
        %10458 = vmatpush.bf16.msra.mxu0 0
        %10459 = vmatpush.bf16.msra.mxu0 0
        %10460 = vmatpush.bf16.msra.mxu0 0
        %10461 = vmatpush.bf16.msra.mxu0 0
        %10462 = vmatpush.bf16.msra.mxu0 0
        %10463 = vmatpush.bf16.msra.mxu0 0
        %10464 = vmatpush.bf16.msra.mxu0 0
        %10465 = vmatpush.bf16.msra.mxu0 %v10332
        %10466 = vmatmul.bf16.gmra.mxu0 %v10365
        %v10467 = vpop.f32.mrf.mxu0
        %v10468 = vadd.f32 %v10362, %v10467
        %v10469 = vpop.f32.mrf.mxu0
        %10470 = vdwg.mxu0
        %10471 = vmatpush.bf16.msra.mxu0 0
        %10472 = vmatpush.bf16.msra.mxu0 0
        %10473 = vmatpush.bf16.msra.mxu0 0
        %10474 = vmatpush.bf16.msra.mxu0 0
        %10475 = vmatpush.bf16.msra.mxu0 0
        %10476 = vmatpush.bf16.msra.mxu0 0
        %10477 = vmatpush.bf16.msra.mxu0 0
        %10478 = vmatpush.bf16.msra.mxu0 %v10333
        %10479 = vmatmul.bf16.gmra.mxu0 %v10365
        %v10480 = vpop.f32.mrf.mxu0
        %v10481 = vadd.f32 %v10362, %v10480
        %v10482 = vpop.f32.mrf.mxu0
        %10483 = vdwg.mxu0
        %10484 = vmatpush.bf16.msra.mxu0 0
        %10485 = vmatpush.bf16.msra.mxu0 0
        %10486 = vmatpush.bf16.msra.mxu0 0
        %10487 = vmatpush.bf16.msra.mxu0 0
        %10488 = vmatpush.bf16.msra.mxu0 0
        %10489 = vmatpush.bf16.msra.mxu0 0
        %10490 = vmatpush.bf16.msra.mxu0 0
        %10491 = vmatpush.bf16.msra.mxu0 %v10334
        %10492 = vmatmul.bf16.gmra.mxu0 %v10365
        %v10493 = vpop.f32.mrf.mxu0
        %v10494 = vadd.f32 %v10362, %v10493
        %v10495 = vpop.f32.mrf.mxu0
        %10496 = vdwg.mxu0
        %10497 = vmatpush.bf16.msra.mxu0 0
        %10498 = vmatpush.bf16.msra.mxu0 0
        %10499 = vmatpush.bf16.msra.mxu0 0
        %10500 = vmatpush.bf16.msra.mxu0 0
        %10501 = vmatpush.bf16.msra.mxu0 0
        %10502 = vmatpush.bf16.msra.mxu0 0
        %10503 = vmatpush.bf16.msra.mxu0 0
        %10504 = vmatpush.bf16.msra.mxu0 %v10335
        %10505 = vmatmul.bf16.gmra.mxu0 %v10365
        %v10506 = vpop.f32.mrf.mxu0
        %v10507 = vadd.f32 %v10362, %v10506
        %v10508 = vpop.f32.mrf.mxu0
        %10509 = vdwg.mxu0
        %10510 = vmatpush.bf16.msra.mxu0 0
        %10511 = vmatpush.bf16.msra.mxu0 0
        %10512 = vmatpush.bf16.msra.mxu0 0
        %10513 = vmatpush.bf16.msra.mxu0 0
        %10514 = vmatpush.bf16.msra.mxu0 0
        %10515 = vmatpush.bf16.msra.mxu0 0
        %10516 = vmatpush.bf16.msra.mxu0 0
        %10517 = vmatpush.bf16.msra.mxu0 %v10336
        %10518 = vmatmul.bf16.gmra.mxu0 %v10365
        %v10519 = vpop.f32.mrf.mxu0
        %v10520 = vadd.f32 %v10362, %v10519
        %v10521 = vpop.f32.mrf.mxu0
        %10522 = vdwg.mxu0
        %10523 = vmatpush.bf16.msra.mxu0 0
        %10524 = vmatpush.bf16.msra.mxu0 0
        %10525 = vmatpush.bf16.msra.mxu0 0
        %10526 = vmatpush.bf16.msra.mxu0 0
        %10527 = vmatpush.bf16.msra.mxu0 0
        %10528 = vmatpush.bf16.msra.mxu0 0
        %10529 = vmatpush.bf16.msra.mxu0 0
        %10530 = vmatpush.bf16.msra.mxu0 %v10337
        %10531 = vmatmul.bf16.gmra.mxu0 %v10365
        %v10532 = vpop.f32.mrf.mxu0
        %v10533 = vadd.f32 %v10362, %v10532
        %v10534 = vpop.f32.mrf.mxu0
        %10535 = vdwg.mxu0
        %10536 = vmatpush.bf16.msra.mxu0 0
        %10537 = vmatpush.bf16.msra.mxu0 0
        %10538 = vmatpush.bf16.msra.mxu0 0
        %10539 = vmatpush.bf16.msra.mxu0 0
        %10540 = vmatpush.bf16.msra.mxu0 0
        %10541 = vmatpush.bf16.msra.mxu0 0
        %10542 = vmatpush.bf16.msra.mxu0 0
        %10543 = vmatpush.bf16.msra.mxu0 %v10338
        %10544 = vmatmul.bf16.gmra.mxu0 %v10365
        %v10545 = vpop.f32.mrf.mxu0
        %v10546 = vadd.f32 %v10362, %v10545
        %v10547 = vpop.f32.mrf.mxu0
        %10548 = vdwg.mxu0
        %10549 = vmatpush.bf16.msra.mxu0 0
        %10550 = vmatpush.bf16.msra.mxu0 0
        %10551 = vmatpush.bf16.msra.mxu0 0
        %10552 = vmatpush.bf16.msra.mxu0 0
        %10553 = vmatpush.bf16.msra.mxu0 0
        %10554 = vmatpush.bf16.msra.mxu0 0
        %10555 = vmatpush.bf16.msra.mxu0 0
        %10556 = vmatpush.bf16.msra.mxu0 %v10339
        %10557 = vmatmul.bf16.gmra.mxu0 %v10365
        %v10558 = vpop.f32.mrf.mxu0
        %v10559 = vadd.f32 %v10362, %v10558
        %v10560 = vpop.f32.mrf.mxu0
        %10561 = vdwg.mxu0
        %10562 = vmatpush.bf16.msra.mxu0 0
        %10563 = vmatpush.bf16.msra.mxu0 0
        %10564 = vmatpush.bf16.msra.mxu0 0
        %10565 = vmatpush.bf16.msra.mxu0 0
        %10566 = vmatpush.bf16.msra.mxu0 0
        %10567 = vmatpush.bf16.msra.mxu0 0
        %10568 = vmatpush.bf16.msra.mxu0 0
        %10569 = vmatpush.bf16.msra.mxu0 %v10340
        %10570 = vmatmul.bf16.gmra.mxu0 %v10365
        %v10571 = vpop.f32.mrf.mxu0
        %v10572 = vadd.f32 %v10362, %v10571
        %v10573 = vpop.f32.mrf.mxu0
        %10574 = vdwg.mxu0
        %10575 = vmatpush.bf16.msra.mxu0 0
        %10576 = vmatpush.bf16.msra.mxu0 0
        %10577 = vmatpush.bf16.msra.mxu0 0
        %10578 = vmatpush.bf16.msra.mxu0 0
        %10579 = vmatpush.bf16.msra.mxu0 0
        %10580 = vmatpush.bf16.msra.mxu0 0
        %10581 = vmatpush.bf16.msra.mxu0 0
        %10582 = vmatpush.bf16.msra.mxu0 %v10341
        %10583 = vmatmul.bf16.gmra.mxu0 %v10365
        %v10584 = vpop.f32.mrf.mxu0
        %v10585 = vadd.f32 %v10362, %v10584
        %v10586 = vpop.f32.mrf.mxu0
        %10587 = vdwg.mxu0
        %10588 = vmatpush.bf16.msra.mxu0 0
        %10589 = vmatpush.bf16.msra.mxu0 0
        %10590 = vmatpush.bf16.msra.mxu0 0
        %10591 = vmatpush.bf16.msra.mxu0 0
        %10592 = vmatpush.bf16.msra.mxu0 0
        %10593 = vmatpush.bf16.msra.mxu0 0
        %10594 = vmatpush.bf16.msra.mxu0 0
        %10595 = vmatpush.bf16.msra.mxu0 %v10342
        %10596 = vmatmul.bf16.gmra.mxu0 %v10365
        %v10597 = vpop.f32.mrf.mxu0
        %v10598 = vadd.f32 %v10362, %v10597
        %v10599 = vpop.f32.mrf.mxu0
        %10600 = vdwg.mxu0
        %10601 = vmatpush.bf16.msra.mxu0 0
        %10602 = vmatpush.bf16.msra.mxu0 0
        %10603 = vmatpush.bf16.msra.mxu0 0
        %10604 = vmatpush.bf16.msra.mxu0 0
        %10605 = vmatpush.bf16.msra.mxu0 0
        %10606 = vmatpush.bf16.msra.mxu0 0
        %10607 = vmatpush.bf16.msra.mxu0 0
        %10608 = vmatpush.bf16.msra.mxu0 %v10343
        %10609 = vmatmul.bf16.gmra.mxu0 %v10365
        %v10610 = vpop.f32.mrf.mxu0
        %v10611 = vadd.f32 %v10362, %v10610
        %v10612 = vpop.f32.mrf.mxu0
        %10613 = vdwg.mxu0
        %10614 = vmatpush.bf16.msra.mxu0 0
        %10615 = vmatpush.bf16.msra.mxu0 0
        %10616 = vmatpush.bf16.msra.mxu0 0
        %10617 = vmatpush.bf16.msra.mxu0 0
        %10618 = vmatpush.bf16.msra.mxu0 0
        %10619 = vmatpush.bf16.msra.mxu0 0
        %10620 = vmatpush.bf16.msra.mxu0 0
        %10621 = vmatpush.bf16.msra.mxu0 %v10344
        %10622 = vmatmul.bf16.gmra.mxu0 %v10365
        %v10623 = vpop.f32.mrf.mxu0
        %v10624 = vadd.f32 %v10362, %v10623
        %v10625 = vpop.f32.mrf.mxu0
        %10626 = vdwg.mxu0
        %10627 = vmatpush.bf16.msra.mxu0 0
        %10628 = vmatpush.bf16.msra.mxu0 0
        %10629 = vmatpush.bf16.msra.mxu0 0
        %10630 = vmatpush.bf16.msra.mxu0 0
        %10631 = vmatpush.bf16.msra.mxu0 0
        %10632 = vmatpush.bf16.msra.mxu0 0
        %10633 = vmatpush.bf16.msra.mxu0 0
        %10634 = vmatpush.bf16.msra.mxu0 %v10345
        %10635 = vmatmul.bf16.gmra.mxu0 %v10365
        %v10636 = vpop.f32.mrf.mxu0
        %v10637 = vadd.f32 %v10362, %v10636
        %v10638 = vpop.f32.mrf.mxu0
        %10639 = vdwg.mxu0
        %10640 = vmatpush.bf16.msra.mxu0 0
        %10641 = vmatpush.bf16.msra.mxu0 0
        %10642 = vmatpush.bf16.msra.mxu0 0
        %10643 = vmatpush.bf16.msra.mxu0 0
        %10644 = vmatpush.bf16.msra.mxu0 0
        %10645 = vmatpush.bf16.msra.mxu0 0
        %10646 = vmatpush.bf16.msra.mxu0 0
        %10647 = vmatpush.bf16.msra.mxu0 %v10346
        %10648 = vmatmul.bf16.gmra.mxu0 %v10365
        %v10649 = vpop.f32.mrf.mxu0
        %v10650 = vadd.f32 %v10362, %v10649
        %v10651 = vpop.f32.mrf.mxu0
        %10652 = vdwg.mxu0
        %10653 = vmatpush.bf16.msra.mxu0 0
        %10654 = vmatpush.bf16.msra.mxu0 0
        %10655 = vmatpush.bf16.msra.mxu0 0
        %10656 = vmatpush.bf16.msra.mxu0 0
        %10657 = vmatpush.bf16.msra.mxu0 0
        %10658 = vmatpush.bf16.msra.mxu0 0
        %10659 = vmatpush.bf16.msra.mxu0 0
        %10660 = vmatpush.bf16.msra.mxu0 %v10347
        %10661 = vmatmul.bf16.gmra.mxu0 %v10365
        %v10662 = vpop.f32.mrf.mxu0
        %v10663 = vadd.f32 %v10362, %v10662
        %v10664 = vpop.f32.mrf.mxu0
        %10665 = vdwg.mxu0
        %10666 = vmatpush.bf16.msra.mxu0 0
        %10667 = vmatpush.bf16.msra.mxu0 0
        %10668 = vmatpush.bf16.msra.mxu0 0
        %10669 = vmatpush.bf16.msra.mxu0 0
        %10670 = vmatpush.bf16.msra.mxu0 0
        %10671 = vmatpush.bf16.msra.mxu0 0
        %10672 = vmatpush.bf16.msra.mxu0 0
        %10673 = vmatpush.bf16.msra.mxu0 %v10348
        %10674 = vmatmul.bf16.gmra.mxu0 %v10365
        %v10675 = vpop.f32.mrf.mxu0
        %v10676 = vadd.f32 %v10362, %v10675
        %v10677 = vpop.f32.mrf.mxu0
        %10678 = vdwg.mxu0
        %10679 = vmatpush.bf16.msra.mxu0 0
        %10680 = vmatpush.bf16.msra.mxu0 0
        %10681 = vmatpush.bf16.msra.mxu0 0
        %10682 = vmatpush.bf16.msra.mxu0 0
        %10683 = vmatpush.bf16.msra.mxu0 0
        %10684 = vmatpush.bf16.msra.mxu0 0
        %10685 = vmatpush.bf16.msra.mxu0 0
        %10686 = vmatpush.bf16.msra.mxu0 %v10349
        %10687 = vmatmul.bf16.gmra.mxu0 %v10365
        %v10688 = vpop.f32.mrf.mxu0
        %v10689 = vadd.f32 %v10362, %v10688
        %v10690 = vpop.f32.mrf.mxu0
        %10691 = vdwg.mxu0
        %10692 = vmatpush.bf16.msra.mxu0 0
        %10693 = vmatpush.bf16.msra.mxu0 0
        %10694 = vmatpush.bf16.msra.mxu0 0
        %10695 = vmatpush.bf16.msra.mxu0 0
        %10696 = vmatpush.bf16.msra.mxu0 0
        %10697 = vmatpush.bf16.msra.mxu0 0
        %10698 = vmatpush.bf16.msra.mxu0 0
        %10699 = vmatpush.bf16.msra.mxu0 %v10350
        %10700 = vmatmul.bf16.gmra.mxu0 %v10365
        %v10701 = vpop.f32.mrf.mxu0
        %v10702 = vadd.f32 %v10362, %v10701
        %v10703 = vpop.f32.mrf.mxu0
        %10704 = vdwg.mxu0
        %10705 = vmatpush.bf16.msra.mxu0 0
        %10706 = vmatpush.bf16.msra.mxu0 0
        %10707 = vmatpush.bf16.msra.mxu0 0
        %10708 = vmatpush.bf16.msra.mxu0 0
        %10709 = vmatpush.bf16.msra.mxu0 0
        %10710 = vmatpush.bf16.msra.mxu0 0
        %10711 = vmatpush.bf16.msra.mxu0 0
        %10712 = vmatpush.bf16.msra.mxu0 %v10351
        %10713 = vmatmul.bf16.gmra.mxu0 %v10365
        %v10714 = vpop.f32.mrf.mxu0
        %v10715 = vadd.f32 %v10362, %v10714
        %v10716 = vpop.f32.mrf.mxu0
        %10717 = vdwg.mxu0
        %10718 = vmatpush.bf16.msra.mxu0 0
        %10719 = vmatpush.bf16.msra.mxu0 0
        %10720 = vmatpush.bf16.msra.mxu0 0
        %10721 = vmatpush.bf16.msra.mxu0 0
        %10722 = vmatpush.bf16.msra.mxu0 0
        %10723 = vmatpush.bf16.msra.mxu0 0
        %10724 = vmatpush.bf16.msra.mxu0 0
        %10725 = vmatpush.bf16.msra.mxu0 %v10352
        %10726 = vmatmul.bf16.gmra.mxu0 %v10365
        %v10727 = vpop.f32.mrf.mxu0
        %v10728 = vadd.f32 %v10362, %v10727
        %v10729 = vpop.f32.mrf.mxu0
        %10730 = vdwg.mxu0
        %10731 = vmatpush.bf16.msra.mxu0 0
        %10732 = vmatpush.bf16.msra.mxu0 0
        %10733 = vmatpush.bf16.msra.mxu0 0
        %10734 = vmatpush.bf16.msra.mxu0 0
        %10735 = vmatpush.bf16.msra.mxu0 0
        %10736 = vmatpush.bf16.msra.mxu0 0
        %10737 = vmatpush.bf16.msra.mxu0 0
        %10738 = vmatpush.bf16.msra.mxu0 %v10353
        %10739 = vmatmul.bf16.gmra.mxu0 %v10365
        %v10740 = vpop.f32.mrf.mxu0
        %v10741 = vadd.f32 %v10362, %v10740
        %v10742 = vpop.f32.mrf.mxu0
        %10743 = vdwg.mxu0
        %10744 = vmatpush.bf16.msra.mxu0 0
        %10745 = vmatpush.bf16.msra.mxu0 0
        %10746 = vmatpush.bf16.msra.mxu0 0
        %10747 = vmatpush.bf16.msra.mxu0 0
        %10748 = vmatpush.bf16.msra.mxu0 0
        %10749 = vmatpush.bf16.msra.mxu0 0
        %10750 = vmatpush.bf16.msra.mxu0 0
        %10751 = vmatpush.bf16.msra.mxu0 %v10354
        %10752 = vmatmul.bf16.gmra.mxu0 %v10365
        %v10753 = vpop.f32.mrf.mxu0
        %v10754 = vadd.f32 %v10362, %v10753
        %v10755 = vpop.f32.mrf.mxu0
        %10756 = vdwg.mxu0
        %10757 = vmatpush.bf16.msra.mxu0 0
        %10758 = vmatpush.bf16.msra.mxu0 0
        %10759 = vmatpush.bf16.msra.mxu0 0
        %10760 = vmatpush.bf16.msra.mxu0 0
        %10761 = vmatpush.bf16.msra.mxu0 0
        %10762 = vmatpush.bf16.msra.mxu0 0
        %10763 = vmatpush.bf16.msra.mxu0 0
        %10764 = vmatpush.bf16.msra.mxu0 %v10355
        %10765 = vmatmul.bf16.gmra.mxu0 %v10365
        %v10766 = vpop.f32.mrf.mxu0
        %v10767 = vadd.f32 %v10362, %v10766
        %v10768 = vpop.f32.mrf.mxu0
        %10769 = vdwg.mxu0
        %10770 = vmatpush.bf16.msra.mxu0 0
        %10771 = vmatpush.bf16.msra.mxu0 0
        %10772 = vmatpush.bf16.msra.mxu0 0
        %10773 = vmatpush.bf16.msra.mxu0 0
        %10774 = vmatpush.bf16.msra.mxu0 0
        %10775 = vmatpush.bf16.msra.mxu0 0
        %10776 = vmatpush.bf16.msra.mxu0 0
        %10777 = vmatpush.bf16.msra.mxu0 %v10356
        %10778 = vmatmul.bf16.gmra.mxu0 %v10365
        %v10779 = vpop.f32.mrf.mxu0
        %v10780 = vadd.f32 %v10362, %v10779
        %v10781 = vpop.f32.mrf.mxu0
        %10782 = vdwg.mxu0
        %10783 = vst [vmem:[%s272] sm:$0xff] %v10377
        %10784 = vst [vmem:[%s272 + $0x8] sm:$0xff] %v10390
        %10785 = vst [vmem:[%s272 + $0x10] sm:$0xff] %v10403
        %10786 = vst [vmem:[%s272 + $0x18] sm:$0xff] %v10416
        %10787 = vst [vmem:[%s272 + $0x20] sm:$0xff] %v10429
        %10788 = vst [vmem:[%s272 + $0x28] sm:$0xff] %v10442
        %10789 = vst [vmem:[%s272 + $0x30] sm:$0xff] %v10455
        %10790 = vst [vmem:[%s272 + $0x38] sm:$0xff] %v10468
        %10791 = vst [vmem:[%s272 + $0x40] sm:$0xff] %v10481
        %10792 = vst [vmem:[%s272 + $0x48] sm:$0xff] %v10494
        %10793 = vst [vmem:[%s272 + $0x50] sm:$0xff] %v10507
        %10794 = vst [vmem:[%s272 + $0x58] sm:$0xff] %v10520
        %10795 = vst [vmem:[%s272 + $0x60] sm:$0xff] %v10533
        %10796 = vst [vmem:[%s272 + $0x68] sm:$0xff] %v10546
        %10797 = vst [vmem:[%s272 + $0x70] sm:$0xff] %v10559
        %10798 = vst [vmem:[%s272 + $0x78] sm:$0xff] %v10572
        %10799 = vst [vmem:[%s272 + $0x80] sm:$0xff] %v10585
        %10800 = vst [vmem:[%s272 + $0x88] sm:$0xff] %v10598
        %10801 = vst [vmem:[%s272 + $0x90] sm:$0xff] %v10611
        %10802 = vst [vmem:[%s272 + $0x98] sm:$0xff] %v10624
        %10803 = vst [vmem:[%s272 + $0xa0] sm:$0xff] %v10637
        %10804 = vst [vmem:[%s272 + $0xa8] sm:$0xff] %v10650
        %10805 = vst [vmem:[%s272 + $0xb0] sm:$0xff] %v10663
        %10806 = vst [vmem:[%s272 + $0xb8] sm:$0xff] %v10676
        %10807 = vst [vmem:[%s272 + $0xc0] sm:$0xff] %v10689
        %10808 = vst [vmem:[%s272 + $0xc8] sm:$0xff] %v10702
        %10809 = vst [vmem:[%s272 + $0xd0] sm:$0xff] %v10715
        %10810 = vst [vmem:[%s272 + $0xd8] sm:$0xff] %v10728
        %10811 = vst [vmem:[%s272 + $0xe0] sm:$0xff] %v10741
        %10812 = vst [vmem:[%s272 + $0xe8] sm:$0xff] %v10754
        %10813 = vst [vmem:[%s272 + $0xf0] sm:$0xff] %v10767
        %10814 = vst [vmem:[%s272 + $0xf8] sm:$0xff] %v10780
        %s10815 = sand.u32 %s181, 1
        %s10816 = scalar_lea.sflag [#allocation4], %s10815
        %s10817 = sand.u32 %s181, 1
        %s10818 = smul.addr %s10817, 256
        %s10819 = scalar_lea.vmem [#allocation3], %s10818
        // Predicated region
        $region49: #{tpu_custom_call.1} parent=47 // pred_check
          %p10820 = pneg %p191
        $region50: #{tpu_custom_call.1} parent=47 // pred_check_branch
          %10822 = sbr.rel (%p10820) target = $region52
        $region51: #{tpu_custom_call.1} parent=47 // pred_region
          %10824 = vsyncadd %s10816, 0
          %s10825 = smul.addr %s21, 32
          %s10826 = smul.addr %s10825, 8
          %s10827 = scalar_lea.hbm %s7, %s10826
          %s10829 = sshll.u32 %s10819, 4
          %s10830 = int_to_ptr.vmem [resolvable:$true] %s10829
          %s10831 = sshll.u32 %s10827, 4
          %s10832 = int_to_ptr.hbm [resolvable:$true] %s10831
          %10834 = dma.vmem_to_hbm [thread:$0]  %s10830, 4096, %s10832, %s10816
        $region52: #{tpu_custom_call.1} parent=47 // pred_fallthru
          _
      $region48: #{tpu_custom_call.1} parent=5 // pred_fallthru
        _
      %p10835 = scmp.le.s32.totalorder 2, %s16
      // Predicated region
      $region53: #{tpu_custom_call.1} parent=5 // pred_check
        %p10836 = pneg %p10835
      $region54: #{tpu_custom_call.1} parent=5 // pred_check_branch
        %10838 = sbr.rel (%p10836) target = $region56
      $region55: #{tpu_custom_call.1} parent=5 // pred_region
        %s10839 = ssub.s32 %s16, 2
        // Predicated region
        $region57: #{tpu_custom_call.1} parent=55 // pred_check
          %p10840 = pneg %p197
        $region58: #{tpu_custom_call.1} parent=55 // pred_check_branch
          %10842 = sbr.rel (%p10840) target = $region60
        $region59: #{tpu_custom_call.1} parent=55 // pred_region
          %s10843 = sand.u32 %s182, 1
          %s10844 = scalar_lea.sflag [#allocation4], %s10843
          %s10845 = sand.u32 %s182, 1
          %s10846 = smul.addr %s10845, 256
          %s10847 = scalar_lea.vmem [#allocation3], %s10846
          %10849 = dma.done %s10844, 4096
        $region60: #{tpu_custom_call.1} parent=55 // pred_fallthru
          _
      $region56: #{tpu_custom_call.1} parent=5 // pred_fallthru
        _
    $region6: #{tpu_custom_call.1} parent=1 // loop_footer
      %s20 = sadd.s32 1, %s16
    $region7: #{tpu_custom_call.1} parent=1 // loop_footer_branch
      %15 = sbr.rel target = $region3
    $region8: #{tpu_custom_call.1} parent=1 // loop_exit
      _
    %10850 = vsyncpa [#allocation4], 1
    %s10851 = scalar_lea.sflag [#allocation4], 1
    %10852 = vsyncpa %s10851, 1

</llo_original>
